<compile_context>
chip_gen: v5e
topology: v5e:2x2
jax: 0.10.0
libtpu: 0.0.40
codegen_flags: <defaults>
</compile_context>

<pallas_src>
import functools

import jax
import jax.numpy as jnp
from jax.experimental import pallas as pl
from jax.experimental.pallas import tpu as pltpu

STAGE_STRIDES = (1, 2, 2, 2)            # architecture constants (static)
STAGE_CHANNELS = (64, 128, 256, 512)
ACT_DTYPE = jnp.bfloat16                # inter-kernel activation dtype
VMEM_LIMIT = 32 * 1024 * 1024           # explicit budget, valid on v5e/v6e/v7x


def _cparams(dims):
    return pltpu.CompilerParams(dimension_semantics=dims,
                                vmem_limit_bytes=VMEM_LIMIT)


# -----------------------------------------------------------------------------
# Kernels
# -----------------------------------------------------------------------------
def _conv_s2_relu_kernel(xe_ref, xo_ref, w_ref, b_ref, o_ref, *, lout, ksize):
    """Stride-2 Conv1d + folded BN + ReLU (the stem, k=7,s=2,p=3).

    xe_ref / xo_ref: (Lh, Cin) bf16 even / odd phases of the L-padded input,
    i.e. xe[j] = xp[2j], xo[j] = xp[2j+1].  Tap k reads padded position 2j+k,
    which is a CONTIGUOUS window of phase k%2 starting at row k//2.
    w_ref: (ksize, Cin, Cout) bf16 (BN scale folded).  b_ref: (1, Cout) f32.
    """
    cout = o_ref.shape[-1]
    acc = jnp.zeros((lout, cout), jnp.float32)
    for k in range(ksize):                                    # static unroll
        src = xe_ref if (k % 2 == 0) else xo_ref
        xk = src[pl.ds(k // 2, lout), :]
        acc = acc + jnp.dot(xk, w_ref[k], preferred_element_type=jnp.float32)
    o_ref[...] = jnp.maximum(acc + b_ref[...], 0.0).astype(o_ref.dtype)


def _maxpool_k3s2p1_kernel(xe_ref, xo_ref, o_ref, *, lout):
    """MaxPool1d(kernel=3, stride=2, padding=1) on -inf padded phase slabs:
       out[j] = max(xp[2j], xp[2j+1], xp[2j+2]) = max(xe[j], xo[j], xe[j+1])."""
    o_ref[...] = jnp.maximum(
        jnp.maximum(xe_ref[pl.ds(0, lout), :], xo_ref[pl.ds(0, lout), :]),
        xe_ref[pl.ds(1, lout), :])


def _block_s1_kernel(x_ref, w1_ref, b1_ref, w2_ref, b2_ref, o_ref, h_ref, *, lout):
    """BasicBlock, stride 1, Cin == Cout, identity shortcut, fully fused.

    x_ref: (lout+2, C) bf16 (L padded by 1).  h_ref: VMEM scratch (lout+2, C) f32
    holding the zero-padded conv1 output so conv2's taps are contiguous reads.
    """
    cout = o_ref.shape[-1]
    # conv1 (k3,s1,p1) + BN + ReLU   (Dropout is identity in eval mode)
    acc = jnp.zeros((lout, cout), jnp.float32)
    for k in range(3):
        acc = acc + jnp.dot(x_ref[pl.ds(k, lout), :], w1_ref[k],
                            preferred_element_type=jnp.float32)
    h = jnp.maximum(acc + b1_ref[...], 0.0)
    h_ref[...] = jnp.zeros_like(h_ref)                 # zero pad rows for conv2
    h_ref[pl.ds(1, lout), :] = h
    # conv2 (k3,s1,p1) + BN + residual + ReLU
    acc2 = jnp.zeros((lout, cout), jnp.float32)
    for k in range(3):
        acc2 = acc2 + jnp.dot(h_ref[pl.ds(k, lout), :], w2_ref[k],
                              preferred_element_type=jnp.float32)
    identity = x_ref[pl.ds(1, lout), :].astype(jnp.float32)
    o_ref[...] = jnp.maximum(acc2 + b2_ref[...] + identity, 0.0).astype(o_ref.dtype)


def _block_s2_kernel(xe_ref, xo_ref, w1_ref, b1_ref, w2_ref, b2_ref,
                     wd_ref, bd_ref, o_ref, h_ref, *, lout):
    """BasicBlock, stride 2, with fused 1x1/stride-2 conv+BN downsample shortcut.

    xe_ref/xo_ref: (Lh, Cin) bf16 phases of the L-padded (pad=1) input.
    """
    cout = o_ref.shape[-1]
    # conv1 (k3,s2,p1) + BN + ReLU
    acc = jnp.zeros((lout, cout), jnp.float32)
    for k in range(3):
        src = xe_ref if (k % 2 == 0) else xo_ref
        acc = acc + jnp.dot(src[pl.ds(k // 2, lout), :], w1_ref[k],
                            preferred_element_type=jnp.float32)
    h = jnp.maximum(acc + b1_ref[...], 0.0)
    h_ref[...] = jnp.zeros_like(h_ref)
    h_ref[pl.ds(1, lout), :] = h
    # conv2 (k3,s1,p1) + BN
    acc2 = jnp.zeros((lout, cout), jnp.float32)
    for k in range(3):
        acc2 = acc2 + jnp.dot(h_ref[pl.ds(k, lout), :], w2_ref[k],
                              preferred_element_type=jnp.float32)
    # downsample 1x1 conv, stride 2, pad 0: original pos 2j == padded pos 2j+1 == xo[j]
    identity = (jnp.dot(xo_ref[pl.ds(0, lout), :], wd_ref[0],
                        preferred_element_type=jnp.float32) + bd_ref[...])
    o_ref[...] = jnp.maximum(acc2 + b2_ref[...] + identity, 0.0).astype(o_ref.dtype)


def _pool_fc_kernel(x_ref, w_ref, b_ref, o_ref):
    """AdaptiveAvgPool1d(1) + Dropout(eval id) + Linear (output lane-padded)."""
    pooled = jnp.mean(x_ref[...].astype(jnp.float32), axis=1)          # (N, C)
    o_ref[...] = jnp.dot(pooled, w_ref[...],
                         preferred_element_type=jnp.float32) + b_ref[...]


# -----------------------------------------------------------------------------
# Wrappers (thin XLA glue: one pad / two strided phase slices per layer)
# -----------------------------------------------------------------------------
def _split_even_odd(x_nlc, pad, value=0.0):
    """Pad L on both sides then split into even/odd positions (no duplication)."""
    xp = jnp.pad(x_nlc, ((0, 0), (pad, pad), (0, 0)), constant_values=value)
    if xp.shape[1] % 2:
        xp = jnp.pad(xp, ((0, 0), (0, 1), (0, 0)), constant_values=value)
    return xp[:, 0::2, :], xp[:, 1::2, :]


def stem_conv_bn_relu(x_nlc, p):
    n, l, cin = x_nlc.shape
    ksize, _, cout = p["w"].shape                      # (7, Cin, 64)
    lout = (l + 2 * 3 - ksize) // 2 + 1
    xe, xo = _split_even_odd(x_nlc, pad=3)
    lh = xe.shape[1]
    kernel = functools.partial(_conv_s2_relu_kernel, lout=lout, ksize=ksize)
    return pl.pallas_call(
        kernel,
        out_shape=jax.ShapeDtypeStruct((n, lout, cout), ACT_DTYPE),
        grid=(n,),
        in_specs=[pl.BlockSpec((None, lh, cin), lambda i: (i, 0, 0)),
                  pl.BlockSpec((None, lh, cin), lambda i: (i, 0, 0)),
                  pl.BlockSpec((ksize, cin, cout), lambda i: (0, 0, 0)),
                  pl.BlockSpec((1, cout), lambda i: (0, 0))],
        out_specs=pl.BlockSpec((None, lout, cout), lambda i: (i, 0, 0)),
        compiler_params=_cparams(("parallel",)),
    )(xe, xo, p["w"], p["bias"])


def maxpool1d_k3s2p1(x_nlc):
    n, l, c = x_nlc.shape
    lout = (l - 1) // 2 + 1
    xe, xo = _split_even_odd(x_nlc, pad=1, value=-jnp.inf)
    lh = xe.shape[1]
    kernel = functools.partial(_maxpool_k3s2p1_kernel, lout=lout)
    return pl.pallas_call(
        kernel,
        out_shape=jax.ShapeDtypeStruct((n, lout, c), ACT_DTYPE),
        grid=(n,),
        in_specs=[pl.BlockSpec((None, lh, c), lambda i: (i, 0, 0)),
                  pl.BlockSpec((None, lh, c), lambda i: (i, 0, 0))],
        out_specs=pl.BlockSpec((None, lout, c), lambda i: (i, 0, 0)),
        compiler_params=_cparams(("parallel",)),
    )(xe, xo)


def basic_block_s1(x_nlc, bp):
    """BasicBlock, stride 1, Cin == Cout, identity shortcut."""
    n, l, c = x_nlc.shape
    xp = jnp.pad(x_nlc, ((0, 0), (1, 1), (0, 0)))
    kernel = functools.partial(_block_s1_kernel, lout=l)
    return pl.pallas_call(
        kernel,
        out_shape=jax.ShapeDtypeStruct((n, l, c), ACT_DTYPE),
        grid=(n,),
        in_specs=[pl.BlockSpec((None, l + 2, c), lambda i: (i, 0, 0)),
                  pl.BlockSpec((3, c, c), lambda i: (0, 0, 0)),
                  pl.BlockSpec((1, c), lambda i: (0, 0)),
                  pl.BlockSpec((3, c, c), lambda i: (0, 0, 0)),
                  pl.BlockSpec((1, c), lambda i: (0, 0))],
        out_specs=pl.BlockSpec((None, l, c), lambda i: (i, 0, 0)),
        scratch_shapes=[pltpu.VMEM((l + 2, c), jnp.float32)],
        compiler_params=_cparams(("parallel",)),
    )(xp, bp["conv1"]["w"], bp["conv1"]["bias"],
      bp["conv2"]["w"], bp["conv2"]["bias"])


def basic_block_s2(x_nlc, bp):
    """BasicBlock, stride 2, with 1x1/stride-2 conv+BN downsample shortcut."""
    n, l, cin = x_nlc.shape
    cout = bp["conv1"]["w"].shape[-1]
    lout = (l - 1) // 2 + 1
    xe, xo = _split_even_odd(x_nlc, pad=1)
    lh = xe.shape[1]
    kernel = functools.partial(_block_s2_kernel, lout=lout)
    return pl.pallas_call(
        kernel,
        out_shape=jax.ShapeDtypeStruct((n, lout, cout), ACT_DTYPE),
        grid=(n,),
        in_specs=[pl.BlockSpec((None, lh, cin), lambda i: (i, 0, 0)),
                  pl.BlockSpec((None, lh, cin), lambda i: (i, 0, 0)),
                  pl.BlockSpec((3, cin, cout), lambda i: (0, 0, 0)),
                  pl.BlockSpec((1, cout), lambda i: (0, 0)),
                  pl.BlockSpec((3, cout, cout), lambda i: (0, 0, 0)),
                  pl.BlockSpec((1, cout), lambda i: (0, 0)),
                  pl.BlockSpec((1, cin, cout), lambda i: (0, 0, 0)),
                  pl.BlockSpec((1, cout), lambda i: (0, 0))],
        out_specs=pl.BlockSpec((None, lout, cout), lambda i: (i, 0, 0)),
        scratch_shapes=[pltpu.VMEM((lout + 2, cout), jnp.float32)],
        compiler_params=_cparams(("parallel",)),
    )(xe, xo, bp["conv1"]["w"], bp["conv1"]["bias"],
      bp["conv2"]["w"], bp["conv2"]["bias"],
      bp["downsample"]["w"], bp["downsample"]["bias"])


def avgpool_dropout_fc(x_nlc, fcp, num_classes):
    n, l, c = x_nlc.shape
    npad = fcp["w"].shape[1]                           # lane-padded num_classes
    out = pl.pallas_call(
        _pool_fc_kernel,
        out_shape=jax.ShapeDtypeStruct((n, npad), jnp.float32),
        grid=(1,),
        in_specs=[pl.BlockSpec((n, l, c), lambda i: (0, 0, 0)),
                  pl.BlockSpec((c, npad), lambda i: (0, 0)),
                  pl.BlockSpec((1, npad), lambda i: (0, 0))],
        out_specs=pl.BlockSpec((n, npad), lambda i: (0, 0)),
        compiler_params=_cparams(("arbitrary",)),
    )(x_nlc, fcp["w"], fcp["b"])
    return out[:, :num_classes]


def resnet1d_forward(prepped, x_ncl, num_classes=2):
    x = jnp.transpose(x_ncl, (0, 2, 1)).astype(ACT_DTYPE)      # NCL -> NLC, bf16
    x = stem_conv_bn_relu(x, prepped["stem"])                   # conv1+bn1+relu
    x = maxpool1d_k3s2p1(x)                                     # maxpool
    for stage in prepped["stages"]:                             # layer1..layer4
        for bp in stage:
            if bp["downsample"] is not None:
                x = basic_block_s2(x, bp)
            else:
                x = basic_block_s1(x, bp)
    return avgpool_dropout_fc(x, prepped["fc"], num_classes)    # avgpool+fc


# -----------------------------------------------------------------------------
# Parameters: torch-layout init + one-time prep (BN fold, layout, bf16, padding)
# -----------------------------------------------------------------------------
def _init_conv_bn(key, cin, cout, k):
    k1, k2, k3, k4 = jax.random.split(key, 4)
    return {
        "w": 0.05 * jax.random.normal(k1, (cout, cin, k), jnp.float32),
        "b": 0.05 * jax.random.normal(k2, (cout,), jnp.float32),
        "gamma": 1.0 + 0.1 * jax.random.normal(k3, (cout,), jnp.float32),
        "beta": 0.1 * jax.random.normal(k4, (cout,), jnp.float32),
        "mean": jnp.zeros((cout,), jnp.float32),     # BN running stats (eval)
        "var": jnp.ones((cout,), jnp.float32),
    }


def init_params(key, layers=(1, 1, 1, 1), num_classes=2, in_channels=12):
    keys = jax.random.split(key, 16)
    ki = iter(keys)
    params = {"stem": _init_conv_bn(next(ki), in_channels, 64, 7)}
    stages = []
    cin = 64
    for cout, nblocks, stride in zip(STAGE_CHANNELS, layers, STAGE_STRIDES):
        blocks = []
        for b in range(nblocks):
            bkey = jax.random.split(next(ki), 3)
            blk_cin = cin if b == 0 else cout
            down = None
            if b == 0 and (stride != 1 or cin != cout):
                down = _init_conv_bn(bkey[2], blk_cin, cout, 1)
            blocks.append({
                "conv1": _init_conv_bn(bkey[0], blk_cin, cout, 3),
                "conv2": _init_conv_bn(bkey[1], cout, cout, 3),
                "downsample": down,
            })
        stages.append(blocks)
        cin = cout
    params["stages"] = stages
    kf1, kf2 = jax.random.split(next(ki))
    params["fc"] = {
        "w": 0.05 * jax.random.normal(kf1, (num_classes, 512), jnp.float32),
        "b": 0.05 * jax.random.normal(kf2, (num_classes,), jnp.float32),
    }
    return params


def _round_up(v, m):
    return (v + m - 1) // m * m


def _prep_conv(p, eps=1e-5):
    """Fold eval BN + conv bias: w' = transpose(w)*scale (bf16, (k,Cin,Cout)),
       bias' = (b - mean)*scale + beta.  (Conv bias=True per nn.Conv1d default.)"""
    scale = p["gamma"] / jnp.sqrt(p["var"] + eps)
    bias = (p["b"] - p["mean"]) * scale + p["beta"]
    wk = jnp.transpose(p["w"], (2, 1, 0)) * scale[None, None, :]   # (K, Cin, Cout)
    return {"w": wk.astype(jnp.bfloat16),
            "bias": bias.reshape(1, -1).astype(jnp.float32)}


def _prep_fc(p, lane_pad=128):
    w = p["w"].T.astype(jnp.float32)                               # (512, ncls)
    b = p["b"].reshape(1, -1).astype(jnp.float32)
    ncls = w.shape[1]
    npad = _round_up(max(ncls, lane_pad), lane_pad)                # lane-dense out
    return {"w": jnp.pad(w, ((0, 0), (0, npad - ncls))),
            "b": jnp.pad(b, ((0, 0), (0, npad - ncls)))}


def prepare_params(params, eps=1e-5):
    prepped = {"stem": _prep_conv(params["stem"], eps)}
    stages = []
    for blocks in params["stages"]:
        pblocks = []
        for bp in blocks:
            pblocks.append({
                "conv1": _prep_conv(bp["conv1"], eps),
                "conv2": _prep_conv(bp["conv2"], eps),
                "downsample": (None if bp["downsample"] is None
                               else _prep_conv(bp["downsample"], eps)),
            })
        stages.append(pblocks)
    prepped["stages"] = stages
    prepped["fc"] = _prep_fc(params["fc"])
    return prepped


# -----------------------------------------------------------------------------
if __name__ == "__main__":
    key = jax.random.PRNGKey(0)
    kx, kp = jax.random.split(key)
    # PyTorch layout: [batch, in_channels, length]
    x = jax.random.normal(kx, (2, 12, 64), jnp.float32)
    params = init_params(kp, layers=(1, 1, 1, 1), num_classes=2, in_channels=12)
    prepped = prepare_params(params)          # one-time BN fold / layout / bf16

    fwd = jax.jit(functools.partial(resnet1d_forward, num_classes=2))
    out = jax.block_until_ready(fwd(prepped, x))
    assert out.shape == (2, 2), out.shape
    assert bool(jnp.all(jnp.isfinite(out)))
    print("KERNEL_OK")
</pallas_src>

<mosaic_0001>
module attributes {stable_mosaic.version = 11 : i64} {
  func.func @_maxpool_k3s2p1_kernel(%arg0: i32, %arg1: memref<1x17x64xbf16, #tpu.memory_space<vmem>>, %arg2: memref<1x17x64xbf16, #tpu.memory_space<vmem>>, %arg3: memref<1x16x64xbf16, #tpu.memory_space<vmem>>) attributes {dimension_semantics = [#tpu.dimension_semantics<parallel>], iteration_bounds = array<i64: 2>, scalar_prefetch = 0 : i64, scratch_operands = 0 : i64, tpu.core_type = #tpu.core_type<tc>, window_params = [{transform_indices = @transform_0, window_bounds = array<i64: 1, 17, 64>}, {transform_indices = @transform_1, window_bounds = array<i64: 1, 17, 64>}, {transform_indices = @transform_2, window_bounds = array<i64: 1, 16, 64>}]} {
    %c0 = arith.constant 0 : index
    %c0_0 = arith.constant 0 : index
    %c0_1 = arith.constant 0 : index
    %0 = vector.load %arg1[%c0, %c0_0, %c0_1] : memref<1x17x64xbf16, #tpu.memory_space<vmem>>, vector<1x16x64xbf16>
    %1 = vector.shape_cast %0 : vector<1x16x64xbf16> to vector<16x64xbf16>
    %c0_2 = arith.constant 0 : index
    %c0_3 = arith.constant 0 : index
    %c0_4 = arith.constant 0 : index
    %2 = vector.load %arg2[%c0_2, %c0_3, %c0_4] : memref<1x17x64xbf16, #tpu.memory_space<vmem>>, vector<1x16x64xbf16>
    %3 = vector.shape_cast %2 : vector<1x16x64xbf16> to vector<16x64xbf16>
    %4 = arith.maximumf %1, %3 : vector<16x64xbf16>
    %c0_5 = arith.constant 0 : index
    %c1 = arith.constant 1 : index
    %c0_6 = arith.constant 0 : index
    %5 = vector.load %arg1[%c0_5, %c1, %c0_6] : memref<1x17x64xbf16, #tpu.memory_space<vmem>>, vector<1x16x64xbf16>
    %6 = vector.shape_cast %5 : vector<1x16x64xbf16> to vector<16x64xbf16>
    %7 = arith.maximumf %4, %6 : vector<16x64xbf16>
    %c0_7 = arith.constant 0 : index
    %c0_8 = arith.constant 0 : index
    %c0_9 = arith.constant 0 : index
    %8 = vector.load %arg3[%c0_7, %c0_8, %c0_9] : memref<1x16x64xbf16, #tpu.memory_space<vmem>>, vector<1x16x64xbf16>
    %9 = vector.shape_cast %8 : vector<1x16x64xbf16> to vector<16x64xbf16>
    %10 = vector.shape_cast %7 : vector<16x64xbf16> to vector<1x16x64xbf16>
    tpu.vector_store %arg3[%c0_7, %c0_8, %c0_9], %10 {strides = array<i32>} : memref<1x16x64xbf16, #tpu.memory_space<vmem>>, vector<1x16x64xbf16>,
    return
  }
  func.func @transform_0(%arg0: i32) -> (i32, i32, i32) {
    %c0_i32 = arith.constant 0 : i32
    %c0_i32_0 = arith.constant 0 : i32
    %c0_i32_1 = arith.constant 0 : i32
    return %arg0, %c0_i32, %c0_i32_0 : i32, i32, i32
  }
  func.func @transform_1(%arg0: i32) -> (i32, i32, i32) {
    %c0_i32 = arith.constant 0 : i32
    %c0_i32_0 = arith.constant 0 : i32
    %c0_i32_1 = arith.constant 0 : i32
    return %arg0, %c0_i32, %c0_i32_0 : i32, i32, i32
  }
  func.func @transform_2(%arg0: i32) -> (i32, i32, i32) {
    %c0_i32 = arith.constant 0 : i32
    %c0_i32_0 = arith.constant 0 : i32
    %c0_i32_1 = arith.constant 0 : i32
    return %arg0, %c0_i32, %c0_i32_0 : i32, i32, i32
  }
}

module attributes {stable_mosaic.version = 11 : i64} {
  func.func @_conv_s2_relu_kernel(%arg0: i32, %arg1: memref<1x35x12xbf16, #tpu.memory_space<vmem>>, %arg2: memref<1x35x12xbf16, #tpu.memory_space<vmem>>, %arg3: memref<7x12x64xbf16, #tpu.memory_space<vmem>>, %arg4: memref<1x64xf32, #tpu.memory_space<vmem>>, %arg5: memref<1x32x64xbf16, #tpu.memory_space<vmem>>) attributes {dimension_semantics = [#tpu.dimension_semantics<parallel>], iteration_bounds = array<i64: 2>, scalar_prefetch = 0 : i64, scratch_operands = 0 : i64, tpu.core_type = #tpu.core_type<tc>, window_params = [{transform_indices = @transform_0, window_bounds = array<i64: 1, 35, 12>}, {transform_indices = @transform_1, window_bounds = array<i64: 1, 35, 12>}, {pipeline_mode = #tpu.pipeline_mode<synchronous>, transform_indices = @transform_2, window_bounds = array<i64: 7, 12, 64>}, {pipeline_mode = #tpu.pipeline_mode<synchronous>, transform_indices = @transform_3, window_bounds = array<i64: 1, 64>}, {transform_indices = @transform_4, window_bounds = array<i64: 1, 32, 64>}]} {
    %cst = arith.constant 0.000000e+00 : f32
    %0 = vector.broadcast %cst : f32 to vector<32x64xf32>
    %c0 = arith.constant 0 : index
    %c0_0 = arith.constant 0 : index
    %c0_1 = arith.constant 0 : index
    %1 = vector.load %arg1[%c0, %c0_0, %c0_1] : memref<1x35x12xbf16, #tpu.memory_space<vmem>>, vector<1x32x12xbf16>
    %2 = vector.shape_cast %1 : vector<1x32x12xbf16> to vector<32x12xbf16>
    %c0_2 = arith.constant 0 : index
    %c0_3 = arith.constant 0 : index
    %c0_4 = arith.constant 0 : index
    %3 = vector.load %arg3[%c0_2, %c0_3, %c0_4] : memref<7x12x64xbf16, #tpu.memory_space<vmem>>, vector<1x12x64xbf16>
    %4 = vector.shape_cast %3 : vector<1x12x64xbf16> to vector<12x64xbf16>
    %cst_5 = arith.constant dense<0.000000e+00> : vector<32x64xf32>
    %5 = tpu.matmul %2, %4, %cst_5 {dimension_numbers = #tpu.dot_dimension_numbers<[1], [0], [0], [1], [0, 0, 1, 1], [], []>} : vector<32x12xbf16>, vector<12x64xbf16>, vector<32x64xf32> -> vector<32x64xf32>
    %6 = arith.addf %0, %5 : vector<32x64xf32>
    %c0_6 = arith.constant 0 : index
    %c0_7 = arith.constant 0 : index
    %c0_8 = arith.constant 0 : index
    %7 = vector.load %arg2[%c0_6, %c0_7, %c0_8] : memref<1x35x12xbf16, #tpu.memory_space<vmem>>, vector<1x32x12xbf16>
    %8 = vector.shape_cast %7 : vector<1x32x12xbf16> to vector<32x12xbf16>
    %c1 = arith.constant 1 : index
    %c0_9 = arith.constant 0 : index
    %c0_10 = arith.constant 0 : index
    %9 = vector.load %arg3[%c1, %c0_9, %c0_10] : memref<7x12x64xbf16, #tpu.memory_space<vmem>>, vector<1x12x64xbf16>
    %10 = vector.shape_cast %9 : vector<1x12x64xbf16> to vector<12x64xbf16>
    %cst_11 = arith.constant dense<0.000000e+00> : vector<32x64xf32>
    %11 = tpu.matmul %8, %10, %cst_11 {dimension_numbers = #tpu.dot_dimension_numbers<[1], [0], [0], [1], [0, 0, 1, 1], [], []>} : vector<32x12xbf16>, vector<12x64xbf16>, vector<32x64xf32> -> vector<32x64xf32>
    %12 = arith.addf %6, %11 : vector<32x64xf32>
    %c0_12 = arith.constant 0 : index
    %c1_13 = arith.constant 1 : index
    %c0_14 = arith.constant 0 : index
    %13 = vector.load %arg1[%c0_12, %c1_13, %c0_14] : memref<1x35x12xbf16, #tpu.memory_space<vmem>>, vector<1x32x12xbf16>
    %14 = vector.shape_cast %13 : vector<1x32x12xbf16> to vector<32x12xbf16>
    %c2 = arith.constant 2 : index
    %c0_15 = arith.constant 0 : index
    %c0_16 = arith.constant 0 : index
    %15 = vector.load %arg3[%c2, %c0_15, %c0_16] : memref<7x12x64xbf16, #tpu.memory_space<vmem>>, vector<1x12x64xbf16>
    %16 = vector.shape_cast %15 : vector<1x12x64xbf16> to vector<12x64xbf16>
    %cst_17 = arith.constant dense<0.000000e+00> : vector<32x64xf32>
    %17 = tpu.matmul %14, %16, %cst_17 {dimension_numbers = #tpu.dot_dimension_numbers<[1], [0], [0], [1], [0, 0, 1, 1], [], []>} : vector<32x12xbf16>, vector<12x64xbf16>, vector<32x64xf32> -> vector<32x64xf32>
    %18 = arith.addf %12, %17 : vector<32x64xf32>
    %c0_18 = arith.constant 0 : index
    %c1_19 = arith.constant 1 : index
    %c0_20 = arith.constant 0 : index
    %19 = vector.load %arg2[%c0_18, %c1_19, %c0_20] : memref<1x35x12xbf16, #tpu.memory_space<vmem>>, vector<1x32x12xbf16>
    %20 = vector.shape_cast %19 : vector<1x32x12xbf16> to vector<32x12xbf16>
    %c3 = arith.constant 3 : index
    %c0_21 = arith.constant 0 : index
    %c0_22 = arith.constant 0 : index
    %21 = vector.load %arg3[%c3, %c0_21, %c0_22] : memref<7x12x64xbf16, #tpu.memory_space<vmem>>, vector<1x12x64xbf16>
    %22 = vector.shape_cast %21 : vector<1x12x64xbf16> to vector<12x64xbf16>
    %cst_23 = arith.constant dense<0.000000e+00> : vector<32x64xf32>
    %23 = tpu.matmul %20, %22, %cst_23 {dimension_numbers = #tpu.dot_dimension_numbers<[1], [0], [0], [1], [0, 0, 1, 1], [], []>} : vector<32x12xbf16>, vector<12x64xbf16>, vector<32x64xf32> -> vector<32x64xf32>
    %24 = arith.addf %18, %23 : vector<32x64xf32>
    %c0_24 = arith.constant 0 : index
    %c2_25 = arith.constant 2 : index
    %c0_26 = arith.constant 0 : index
    %25 = vector.load %arg1[%c0_24, %c2_25, %c0_26] : memref<1x35x12xbf16, #tpu.memory_space<vmem>>, vector<1x32x12xbf16>
    %26 = vector.shape_cast %25 : vector<1x32x12xbf16> to vector<32x12xbf16>
    %c4 = arith.constant 4 : index
    %c0_27 = arith.constant 0 : index
    %c0_28 = arith.constant 0 : index
    %27 = vector.load %arg3[%c4, %c0_27, %c0_28] : memref<7x12x64xbf16, #tpu.memory_space<vmem>>, vector<1x12x64xbf16>
    %28 = vector.shape_cast %27 : vector<1x12x64xbf16> to vector<12x64xbf16>
    %cst_29 = arith.constant dense<0.000000e+00> : vector<32x64xf32>
    %29 = tpu.matmul %26, %28, %cst_29 {dimension_numbers = #tpu.dot_dimension_numbers<[1], [0], [0], [1], [0, 0, 1, 1], [], []>} : vector<32x12xbf16>, vector<12x64xbf16>, vector<32x64xf32> -> vector<32x64xf32>
    %30 = arith.addf %24, %29 : vector<32x64xf32>
    %c0_30 = arith.constant 0 : index
    %c2_31 = arith.constant 2 : index
    %c0_32 = arith.constant 0 : index
    %31 = vector.load %arg2[%c0_30, %c2_31, %c0_32] : memref<1x35x12xbf16, #tpu.memory_space<vmem>>, vector<1x32x12xbf16>
    %32 = vector.shape_cast %31 : vector<1x32x12xbf16> to vector<32x12xbf16>
    %c5 = arith.constant 5 : index
    %c0_33 = arith.constant 0 : index
    %c0_34 = arith.constant 0 : index
    %33 = vector.load %arg3[%c5, %c0_33, %c0_34] : memref<7x12x64xbf16, #tpu.memory_space<vmem>>, vector<1x12x64xbf16>
    %34 = vector.shape_cast %33 : vector<1x12x64xbf16> to vector<12x64xbf16>
    %cst_35 = arith.constant dense<0.000000e+00> : vector<32x64xf32>
    %35 = tpu.matmul %32, %34, %cst_35 {dimension_numbers = #tpu.dot_dimension_numbers<[1], [0], [0], [1], [0, 0, 1, 1], [], []>} : vector<32x12xbf16>, vector<12x64xbf16>, vector<32x64xf32> -> vector<32x64xf32>
    %36 = arith.addf %30, %35 : vector<32x64xf32>
    %c0_36 = arith.constant 0 : index
    %c3_37 = arith.constant 3 : index
    %c0_38 = arith.constant 0 : index
    %37 = vector.load %arg1[%c0_36, %c3_37, %c0_38] : memref<1x35x12xbf16, #tpu.memory_space<vmem>>, vector<1x32x12xbf16>
    %38 = vector.shape_cast %37 : vector<1x32x12xbf16> to vector<32x12xbf16>
    %c6 = arith.constant 6 : index
    %c0_39 = arith.constant 0 : index
    %c0_40 = arith.constant 0 : index
    %39 = vector.load %arg3[%c6, %c0_39, %c0_40] : memref<7x12x64xbf16, #tpu.memory_space<vmem>>, vector<1x12x64xbf16>
    %40 = vector.shape_cast %39 : vector<1x12x64xbf16> to vector<12x64xbf16>
    %cst_41 = arith.constant dense<0.000000e+00> : vector<32x64xf32>
    %41 = tpu.matmul %38, %40, %cst_41 {dimension_numbers = #tpu.dot_dimension_numbers<[1], [0], [0], [1], [0, 0, 1, 1], [], []>} : vector<32x12xbf16>, vector<12x64xbf16>, vector<32x64xf32> -> vector<32x64xf32>
    %42 = arith.addf %36, %41 : vector<32x64xf32>
    %c0_42 = arith.constant 0 : index
    %c0_43 = arith.constant 0 : index
    %43 = vector.load %arg4[%c0_42, %c0_43] : memref<1x64xf32, #tpu.memory_space<vmem>>, vector<1x64xf32>
    %44 = vector.broadcast %43 : vector<1x64xf32> to vector<32x64xf32>
    %45 = arith.addf %42, %44 : vector<32x64xf32>
    %cst_44 = arith.constant 0.000000e+00 : f32
    %46 = vector.broadcast %cst_44 : f32 to vector<32x64xf32>
    %47 = arith.maximumf %45, %46 : vector<32x64xf32>
    %48 = arith.truncf %47 : vector<32x64xf32> to vector<32x64xbf16>
    %c0_45 = arith.constant 0 : index
    %c0_46 = arith.constant 0 : index
    %c0_47 = arith.constant 0 : index
    %49 = vector.load %arg5[%c0_45, %c0_46, %c0_47] : memref<1x32x64xbf16, #tpu.memory_space<vmem>>, vector<1x32x64xbf16>
    %50 = vector.shape_cast %49 : vector<1x32x64xbf16> to vector<32x64xbf16>
    %51 = vector.shape_cast %48 : vector<32x64xbf16> to vector<1x32x64xbf16>
    tpu.vector_store %arg5[%c0_45, %c0_46, %c0_47], %51 {strides = array<i32>} : memref<1x32x64xbf16, #tpu.memory_space<vmem>>, vector<1x32x64xbf16>,
    return
  }
  func.func @transform_0(%arg0: i32) -> (i32, i32, i32) {
    %c0_i32 = arith.constant 0 : i32
    %c0_i32_0 = arith.constant 0 : i32
    %c0_i32_1 = arith.constant 0 : i32
    return %arg0, %c0_i32, %c0_i32_0 : i32, i32, i32
  }
  func.func @transform_1(%arg0: i32) -> (i32, i32, i32) {
    %c0_i32 = arith.constant 0 : i32
    %c0_i32_0 = arith.constant 0 : i32
    %c0_i32_1 = arith.constant 0 : i32
    return %arg0, %c0_i32, %c0_i32_0 : i32, i32, i32
  }
  func.func @transform_2(%arg0: i32) -> (i32, i32, i32) {
    %c0_i32 = arith.constant 0 : i32
    %c0_i32_0 = arith.constant 0 : i32
    %c0_i32_1 = arith.constant 0 : i32
    %c0_i32_2 = arith.constant 0 : i32
    return %c0_i32, %c0_i32_0, %c0_i32_1 : i32, i32, i32
  }
  func.func @transform_3(%arg0: i32) -> (i32, i32) {
    %c0_i32 = arith.constant 0 : i32
    %c0_i32_0 = arith.constant 0 : i32
    %c0_i32_1 = arith.constant 0 : i32
    return %c0_i32, %c0_i32_0 : i32, i32
  }
  func.func @transform_4(%arg0: i32) -> (i32, i32, i32) {
    %c0_i32 = arith.constant 0 : i32
    %c0_i32_0 = arith.constant 0 : i32
    %c0_i32_1 = arith.constant 0 : i32
    return %arg0, %c0_i32, %c0_i32_0 : i32, i32, i32
  }
}

module attributes {stable_mosaic.version = 11 : i64} {
  func.func @_block_s1_kernel(%arg0: i32, %arg1: memref<1x18x64xbf16, #tpu.memory_space<vmem>>, %arg2: memref<3x64x64xbf16, #tpu.memory_space<vmem>>, %arg3: memref<1x64xf32, #tpu.memory_space<vmem>>, %arg4: memref<3x64x64xbf16, #tpu.memory_space<vmem>>, %arg5: memref<1x64xf32, #tpu.memory_space<vmem>>, %arg6: memref<1x16x64xbf16, #tpu.memory_space<vmem>>, %arg7: memref<18x64xf32, #tpu.memory_space<vmem>>) attributes {dimension_semantics = [#tpu.dimension_semantics<parallel>], iteration_bounds = array<i64: 2>, scalar_prefetch = 0 : i64, scratch_operands = 1 : i64, tpu.core_type = #tpu.core_type<tc>, window_params = [{transform_indices = @transform_0, window_bounds = array<i64: 1, 18, 64>}, {pipeline_mode = #tpu.pipeline_mode<synchronous>, transform_indices = @transform_1, window_bounds = array<i64: 3, 64, 64>}, {pipeline_mode = #tpu.pipeline_mode<synchronous>, transform_indices = @transform_2, window_bounds = array<i64: 1, 64>}, {pipeline_mode = #tpu.pipeline_mode<synchronous>, transform_indices = @transform_3, window_bounds = array<i64: 3, 64, 64>}, {pipeline_mode = #tpu.pipeline_mode<synchronous>, transform_indices = @transform_4, window_bounds = array<i64: 1, 64>}, {transform_indices = @transform_5, window_bounds = array<i64: 1, 16, 64>}]} {
    %cst = arith.constant 0.000000e+00 : f32
    %0 = vector.broadcast %cst : f32 to vector<16x64xf32>
    %c0 = arith.constant 0 : index
    %c0_0 = arith.constant 0 : index
    %c0_1 = arith.constant 0 : index
    %1 = vector.load %arg1[%c0, %c0_0, %c0_1] : memref<1x18x64xbf16, #tpu.memory_space<vmem>>, vector<1x16x64xbf16>
    %2 = vector.shape_cast %1 : vector<1x16x64xbf16> to vector<16x64xbf16>
    %c0_2 = arith.constant 0 : index
    %c0_3 = arith.constant 0 : index
    %c0_4 = arith.constant 0 : index
    %3 = vector.load %arg2[%c0_2, %c0_3, %c0_4] : memref<3x64x64xbf16, #tpu.memory_space<vmem>>, vector<1x64x64xbf16>
    %4 = vector.shape_cast %3 : vector<1x64x64xbf16> to vector<64x64xbf16>
    %cst_5 = arith.constant dense<0.000000e+00> : vector<16x64xf32>
    %5 = tpu.matmul %2, %4, %cst_5 {dimension_numbers = #tpu.dot_dimension_numbers<[1], [0], [0], [1], [0, 0, 1, 1], [], []>} : vector<16x64xbf16>, vector<64x64xbf16>, vector<16x64xf32> -> vector<16x64xf32>
    %6 = arith.addf %0, %5 : vector<16x64xf32>
    %c0_6 = arith.constant 0 : index
    %c1 = arith.constant 1 : index
    %c0_7 = arith.constant 0 : index
    %7 = vector.load %arg1[%c0_6, %c1, %c0_7] : memref<1x18x64xbf16, #tpu.memory_space<vmem>>, vector<1x16x64xbf16>
    %8 = vector.shape_cast %7 : vector<1x16x64xbf16> to vector<16x64xbf16>
    %c1_8 = arith.constant 1 : index
    %c0_9 = arith.constant 0 : index
    %c0_10 = arith.constant 0 : index
    %9 = vector.load %arg2[%c1_8, %c0_9, %c0_10] : memref<3x64x64xbf16, #tpu.memory_space<vmem>>, vector<1x64x64xbf16>
    %10 = vector.shape_cast %9 : vector<1x64x64xbf16> to vector<64x64xbf16>
    %cst_11 = arith.constant dense<0.000000e+00> : vector<16x64xf32>
    %11 = tpu.matmul %8, %10, %cst_11 {dimension_numbers = #tpu.dot_dimension_numbers<[1], [0], [0], [1], [0, 0, 1, 1], [], []>} : vector<16x64xbf16>, vector<64x64xbf16>, vector<16x64xf32> -> vector<16x64xf32>
    %12 = arith.addf %6, %11 : vector<16x64xf32>
    %c0_12 = arith.constant 0 : index
    %c2 = arith.constant 2 : index
    %c0_13 = arith.constant 0 : index
    %13 = vector.load %arg1[%c0_12, %c2, %c0_13] : memref<1x18x64xbf16, #tpu.memory_space<vmem>>, vector<1x16x64xbf16>
    %14 = vector.shape_cast %13 : vector<1x16x64xbf16> to vector<16x64xbf16>
    %c2_14 = arith.constant 2 : index
    %c0_15 = arith.constant 0 : index
    %c0_16 = arith.constant 0 : index
    %15 = vector.load %arg2[%c2_14, %c0_15, %c0_16] : memref<3x64x64xbf16, #tpu.memory_space<vmem>>, vector<1x64x64xbf16>
    %16 = vector.shape_cast %15 : vector<1x64x64xbf16> to vector<64x64xbf16>
    %cst_17 = arith.constant dense<0.000000e+00> : vector<16x64xf32>
    %17 = tpu.matmul %14, %16, %cst_17 {dimension_numbers = #tpu.dot_dimension_numbers<[1], [0], [0], [1], [0, 0, 1, 1], [], []>} : vector<16x64xbf16>, vector<64x64xbf16>, vector<16x64xf32> -> vector<16x64xf32>
    %18 = arith.addf %12, %17 : vector<16x64xf32>
    %c0_18 = arith.constant 0 : index
    %c0_19 = arith.constant 0 : index
    %19 = vector.load %arg3[%c0_18, %c0_19] : memref<1x64xf32, #tpu.memory_space<vmem>>, vector<1x64xf32>
    %20 = vector.broadcast %19 : vector<1x64xf32> to vector<16x64xf32>
    %21 = arith.addf %18, %20 : vector<16x64xf32>
    %cst_20 = arith.constant 0.000000e+00 : f32
    %22 = vector.broadcast %cst_20 : f32 to vector<16x64xf32>
    %23 = arith.maximumf %21, %22 : vector<16x64xf32>
    %cst_21 = arith.constant 0.000000e+00 : f32
    %24 = vector.broadcast %cst_21 : f32 to vector<18x64xf32>
    %c0_22 = arith.constant 0 : index
    %c0_23 = arith.constant 0 : index
    %25 = vector.load %arg7[%c0_22, %c0_23] : memref<18x64xf32, #tpu.memory_space<vmem>>, vector<18x64xf32>
    tpu.vector_store %arg7[%c0_22, %c0_23], %24 {strides = array<i32>} : memref<18x64xf32, #tpu.memory_space<vmem>>, vector<18x64xf32>,
    %c1_24 = arith.constant 1 : index
    %c0_25 = arith.constant 0 : index
    %26 = vector.load %arg7[%c1_24, %c0_25] : memref<18x64xf32, #tpu.memory_space<vmem>>, vector<16x64xf32>
    tpu.vector_store %arg7[%c1_24, %c0_25], %23 {strides = array<i32>} : memref<18x64xf32, #tpu.memory_space<vmem>>, vector<16x64xf32>,
    %cst_26 = arith.constant 0.000000e+00 : f32
    %27 = vector.broadcast %cst_26 : f32 to vector<16x64xf32>
    %c0_27 = arith.constant 0 : index
    %c0_28 = arith.constant 0 : index
    %28 = vector.load %arg7[%c0_27, %c0_28] : memref<18x64xf32, #tpu.memory_space<vmem>>, vector<16x64xf32>
    %c0_29 = arith.constant 0 : index
    %c0_30 = arith.constant 0 : index
    %c0_31 = arith.constant 0 : index
    %29 = vector.load %arg4[%c0_29, %c0_30, %c0_31] : memref<3x64x64xbf16, #tpu.memory_space<vmem>>, vector<1x64x64xbf16>
    %30 = vector.shape_cast %29 : vector<1x64x64xbf16> to vector<64x64xbf16>
    %cst_32 = arith.constant dense<0.000000e+00> : vector<16x64xf32>
    %31 = tpu.matmul %28, %30, %cst_32 {dimension_numbers = #tpu.dot_dimension_numbers<[1], [0], [0], [1], [0, 0, 1, 1], [], []>} : vector<16x64xf32>, vector<64x64xbf16>, vector<16x64xf32> -> vector<16x64xf32>
    %32 = arith.addf %27, %31 : vector<16x64xf32>
    %c1_33 = arith.constant 1 : index
    %c0_34 = arith.constant 0 : index
    %33 = vector.load %arg7[%c1_33, %c0_34] : memref<18x64xf32, #tpu.memory_space<vmem>>, vector<16x64xf32>
    %c1_35 = arith.constant 1 : index
    %c0_36 = arith.constant 0 : index
    %c0_37 = arith.constant 0 : index
    %34 = vector.load %arg4[%c1_35, %c0_36, %c0_37] : memref<3x64x64xbf16, #tpu.memory_space<vmem>>, vector<1x64x64xbf16>
    %35 = vector.shape_cast %34 : vector<1x64x64xbf16> to vector<64x64xbf16>
    %cst_38 = arith.constant dense<0.000000e+00> : vector<16x64xf32>
    %36 = tpu.matmul %33, %35, %cst_38 {dimension_numbers = #tpu.dot_dimension_numbers<[1], [0], [0], [1], [0, 0, 1, 1], [], []>} : vector<16x64xf32>, vector<64x64xbf16>, vector<16x64xf32> -> vector<16x64xf32>
    %37 = arith.addf %32, %36 : vector<16x64xf32>
    %c2_39 = arith.constant 2 : index
    %c0_40 = arith.constant 0 : index
    %38 = vector.load %arg7[%c2_39, %c0_40] : memref<18x64xf32, #tpu.memory_space<vmem>>, vector<16x64xf32>
    %c2_41 = arith.constant 2 : index
    %c0_42 = arith.constant 0 : index
    %c0_43 = arith.constant 0 : index
    %39 = vector.load %arg4[%c2_41, %c0_42, %c0_43] : memref<3x64x64xbf16, #tpu.memory_space<vmem>>, vector<1x64x64xbf16>
    %40 = vector.shape_cast %39 : vector<1x64x64xbf16> to vector<64x64xbf16>
    %cst_44 = arith.constant dense<0.000000e+00> : vector<16x64xf32>
    %41 = tpu.matmul %38, %40, %cst_44 {dimension_numbers = #tpu.dot_dimension_numbers<[1], [0], [0], [1], [0, 0, 1, 1], [], []>} : vector<16x64xf32>, vector<64x64xbf16>, vector<16x64xf32> -> vector<16x64xf32>
    %42 = arith.addf %37, %41 : vector<16x64xf32>
    %c0_45 = arith.constant 0 : index
    %c1_46 = arith.constant 1 : index
    %c0_47 = arith.constant 0 : index
    %43 = vector.load %arg1[%c0_45, %c1_46, %c0_47] : memref<1x18x64xbf16, #tpu.memory_space<vmem>>, vector<1x16x64xbf16>
    %44 = vector.shape_cast %43 : vector<1x16x64xbf16> to vector<16x64xbf16>
    %45 = arith.extf %44 : vector<16x64xbf16> to vector<16x64xf32>
    %c0_48 = arith.constant 0 : index
    %c0_49 = arith.constant 0 : index
    %46 = vector.load %arg5[%c0_48, %c0_49] : memref<1x64xf32, #tpu.memory_space<vmem>>, vector<1x64xf32>
    %47 = vector.broadcast %46 : vector<1x64xf32> to vector<16x64xf32>
    %48 = arith.addf %42, %47 : vector<16x64xf32>
    %49 = arith.addf %48, %45 : vector<16x64xf32>
    %cst_50 = arith.constant 0.000000e+00 : f32
    %50 = vector.broadcast %cst_50 : f32 to vector<16x64xf32>
    %51 = arith.maximumf %49, %50 : vector<16x64xf32>
    %52 = arith.truncf %51 : vector<16x64xf32> to vector<16x64xbf16>
    %c0_51 = arith.constant 0 : index
    %c0_52 = arith.constant 0 : index
    %c0_53 = arith.constant 0 : index
    %53 = vector.load %arg6[%c0_51, %c0_52, %c0_53] : memref<1x16x64xbf16, #tpu.memory_space<vmem>>, vector<1x16x64xbf16>
    %54 = vector.shape_cast %53 : vector<1x16x64xbf16> to vector<16x64xbf16>
    %55 = vector.shape_cast %52 : vector<16x64xbf16> to vector<1x16x64xbf16>
    tpu.vector_store %arg6[%c0_51, %c0_52, %c0_53], %55 {strides = array<i32>} : memref<1x16x64xbf16, #tpu.memory_space<vmem>>, vector<1x16x64xbf16>,
    return
  }
  func.func @transform_0(%arg0: i32) -> (i32, i32, i32) {
    %c0_i32 = arith.constant 0 : i32
    %c0_i32_0 = arith.constant 0 : i32
    %c0_i32_1 = arith.constant 0 : i32
    return %arg0, %c0_i32, %c0_i32_0 : i32, i32, i32
  }
  func.func @transform_1(%arg0: i32) -> (i32, i32, i32) {
    %c0_i32 = arith.constant 0 : i32
    %c0_i32_0 = arith.constant 0 : i32
    %c0_i32_1 = arith.constant 0 : i32
    %c0_i32_2 = arith.constant 0 : i32
    return %c0_i32, %c0_i32_0, %c0_i32_1 : i32, i32, i32
  }
  func.func @transform_2(%arg0: i32) -> (i32, i32) {
    %c0_i32 = arith.constant 0 : i32
    %c0_i32_0 = arith.constant 0 : i32
    %c0_i32_1 = arith.constant 0 : i32
    return %c0_i32, %c0_i32_0 : i32, i32
  }
  func.func @transform_3(%arg0: i32) -> (i32, i32, i32) {
    %c0_i32 = arith.constant 0 : i32
    %c0_i32_0 = arith.constant 0 : i32
    %c0_i32_1 = arith.constant 0 : i32
    %c0_i32_2 = arith.constant 0 : i32
    return %c0_i32, %c0_i32_0, %c0_i32_1 : i32, i32, i32
  }
  func.func @transform_4(%arg0: i32) -> (i32, i32) {
    %c0_i32 = arith.constant 0 : i32
    %c0_i32_0 = arith.constant 0 : i32
    %c0_i32_1 = arith.constant 0 : i32
    return %c0_i32, %c0_i32_0 : i32, i32
  }
  func.func @transform_5(%arg0: i32) -> (i32, i32, i32) {
    %c0_i32 = arith.constant 0 : i32
    %c0_i32_0 = arith.constant 0 : i32
    %c0_i32_1 = arith.constant 0 : i32
    return %arg0, %c0_i32, %c0_i32_0 : i32, i32, i32
  }
}

module attributes {stable_mosaic.version = 11 : i64} {
  func.func @_block_s2_kernel(%arg0: i32, %arg1: memref<1x9x64xbf16, #tpu.memory_space<vmem>>, %arg2: memref<1x9x64xbf16, #tpu.memory_space<vmem>>, %arg3: memref<3x64x128xbf16, #tpu.memory_space<vmem>>, %arg4: memref<1x128xf32, #tpu.memory_space<vmem>>, %arg5: memref<3x128x128xbf16, #tpu.memory_space<vmem>>, %arg6: memref<1x128xf32, #tpu.memory_space<vmem>>, %arg7: memref<1x64x128xbf16, #tpu.memory_space<vmem>>, %arg8: memref<1x128xf32, #tpu.memory_space<vmem>>, %arg9: memref<1x8x128xbf16, #tpu.memory_space<vmem>>, %arg10: memref<10x128xf32, #tpu.memory_space<vmem>>) attributes {dimension_semantics = [#tpu.dimension_semantics<parallel>], iteration_bounds = array<i64: 2>, scalar_prefetch = 0 : i64, scratch_operands = 1 : i64, tpu.core_type = #tpu.core_type<tc>, window_params = [{transform_indices = @transform_0, window_bounds = array<i64: 1, 9, 64>}, {transform_indices = @transform_1, window_bounds = array<i64: 1, 9, 64>}, {pipeline_mode = #tpu.pipeline_mode<synchronous>, transform_indices = @transform_2, window_bounds = array<i64: 3, 64, 128>}, {pipeline_mode = #tpu.pipeline_mode<synchronous>, transform_indices = @transform_3, window_bounds = array<i64: 1, 128>}, {pipeline_mode = #tpu.pipeline_mode<synchronous>, transform_indices = @transform_4, window_bounds = array<i64: 3, 128, 128>}, {pipeline_mode = #tpu.pipeline_mode<synchronous>, transform_indices = @transform_5, window_bounds = array<i64: 1, 128>}, {pipeline_mode = #tpu.pipeline_mode<synchronous>, transform_indices = @transform_6, window_bounds = array<i64: 1, 64, 128>}, {pipeline_mode = #tpu.pipeline_mode<synchronous>, transform_indices = @transform_7, window_bounds = array<i64: 1, 128>}, {transform_indices = @transform_8, window_bounds = array<i64: 1, 8, 128>}]} {
    %cst = arith.constant 0.000000e+00 : f32
    %0 = vector.broadcast %cst : f32 to vector<8x128xf32>
    %c0 = arith.constant 0 : index
    %c0_0 = arith.constant 0 : index
    %c0_1 = arith.constant 0 : index
    %1 = vector.load %arg1[%c0, %c0_0, %c0_1] : memref<1x9x64xbf16, #tpu.memory_space<vmem>>, vector<1x8x64xbf16>
    %2 = vector.shape_cast %1 : vector<1x8x64xbf16> to vector<8x64xbf16>
    %c0_2 = arith.constant 0 : index
    %c0_3 = arith.constant 0 : index
    %c0_4 = arith.constant 0 : index
    %3 = vector.load %arg3[%c0_2, %c0_3, %c0_4] : memref<3x64x128xbf16, #tpu.memory_space<vmem>>, vector<1x64x128xbf16>
    %4 = vector.shape_cast %3 : vector<1x64x128xbf16> to vector<64x128xbf16>
    %cst_5 = arith.constant dense<0.000000e+00> : vector<8x128xf32>
    %5 = tpu.matmul %2, %4, %cst_5 {dimension_numbers = #tpu.dot_dimension_numbers<[1], [0], [0], [1], [0, 0, 1, 1], [], []>} : vector<8x64xbf16>, vector<64x128xbf16>, vector<8x128xf32> -> vector<8x128xf32>
    %6 = arith.addf %0, %5 : vector<8x128xf32>
    %c0_6 = arith.constant 0 : index
    %c0_7 = arith.constant 0 : index
    %c0_8 = arith.constant 0 : index
    %7 = vector.load %arg2[%c0_6, %c0_7, %c0_8] : memref<1x9x64xbf16, #tpu.memory_space<vmem>>, vector<1x8x64xbf16>
    %8 = vector.shape_cast %7 : vector<1x8x64xbf16> to vector<8x64xbf16>
    %c1 = arith.constant 1 : index
    %c0_9 = arith.constant 0 : index
    %c0_10 = arith.constant 0 : index
    %9 = vector.load %arg3[%c1, %c0_9, %c0_10] : memref<3x64x128xbf16, #tpu.memory_space<vmem>>, vector<1x64x128xbf16>
    %10 = vector.shape_cast %9 : vector<1x64x128xbf16> to vector<64x128xbf16>
    %cst_11 = arith.constant dense<0.000000e+00> : vector<8x128xf32>
    %11 = tpu.matmul %8, %10, %cst_11 {dimension_numbers = #tpu.dot_dimension_numbers<[1], [0], [0], [1], [0, 0, 1, 1], [], []>} : vector<8x64xbf16>, vector<64x128xbf16>, vector<8x128xf32> -> vector<8x128xf32>
    %12 = arith.addf %6, %11 : vector<8x128xf32>
    %c0_12 = arith.constant 0 : index
    %c1_13 = arith.constant 1 : index
    %c0_14 = arith.constant 0 : index
    %13 = vector.load %arg1[%c0_12, %c1_13, %c0_14] : memref<1x9x64xbf16, #tpu.memory_space<vmem>>, vector<1x8x64xbf16>
    %14 = vector.shape_cast %13 : vector<1x8x64xbf16> to vector<8x64xbf16>
    %c2 = arith.constant 2 : index
    %c0_15 = arith.constant 0 : index
    %c0_16 = arith.constant 0 : index
    %15 = vector.load %arg3[%c2, %c0_15, %c0_16] : memref<3x64x128xbf16, #tpu.memory_space<vmem>>, vector<1x64x128xbf16>
    %16 = vector.shape_cast %15 : vector<1x64x128xbf16> to vector<64x128xbf16>
    %cst_17 = arith.constant dense<0.000000e+00> : vector<8x128xf32>
    %17 = tpu.matmul %14, %16, %cst_17 {dimension_numbers = #tpu.dot_dimension_numbers<[1], [0], [0], [1], [0, 0, 1, 1], [], []>} : vector<8x64xbf16>, vector<64x128xbf16>, vector<8x128xf32> -> vector<8x128xf32>
    %18 = arith.addf %12, %17 : vector<8x128xf32>
    %c0_18 = arith.constant 0 : index
    %c0_19 = arith.constant 0 : index
    %19 = vector.load %arg4[%c0_18, %c0_19] : memref<1x128xf32, #tpu.memory_space<vmem>>, vector<1x128xf32>
    %20 = vector.broadcast %19 : vector<1x128xf32> to vector<8x128xf32>
    %21 = arith.addf %18, %20 : vector<8x128xf32>
    %cst_20 = arith.constant 0.000000e+00 : f32
    %22 = vector.broadcast %cst_20 : f32 to vector<8x128xf32>
    %23 = arith.maximumf %21, %22 : vector<8x128xf32>
    %cst_21 = arith.constant 0.000000e+00 : f32
    %24 = vector.broadcast %cst_21 : f32 to vector<10x128xf32>
    %c0_22 = arith.constant 0 : index
    %c0_23 = arith.constant 0 : index
    %25 = vector.load %arg10[%c0_22, %c0_23] : memref<10x128xf32, #tpu.memory_space<vmem>>, vector<10x128xf32>
    tpu.vector_store %arg10[%c0_22, %c0_23], %24 {strides = array<i32>} : memref<10x128xf32, #tpu.memory_space<vmem>>, vector<10x128xf32>,
    %c1_24 = arith.constant 1 : index
    %c0_25 = arith.constant 0 : index
    %26 = vector.load %arg10[%c1_24, %c0_25] : memref<10x128xf32, #tpu.memory_space<vmem>>, vector<8x128xf32>
    tpu.vector_store %arg10[%c1_24, %c0_25], %23 {strides = array<i32>} : memref<10x128xf32, #tpu.memory_space<vmem>>, vector<8x128xf32>,
    %cst_26 = arith.constant 0.000000e+00 : f32
    %27 = vector.broadcast %cst_26 : f32 to vector<8x128xf32>
    %c0_27 = arith.constant 0 : index
    %c0_28 = arith.constant 0 : index
    %28 = vector.load %arg10[%c0_27, %c0_28] : memref<10x128xf32, #tpu.memory_space<vmem>>, vector<8x128xf32>
    %c0_29 = arith.constant 0 : index
    %c0_30 = arith.constant 0 : index
    %c0_31 = arith.constant 0 : index
    %29 = vector.load %arg5[%c0_29, %c0_30, %c0_31] : memref<3x128x128xbf16, #tpu.memory_space<vmem>>, vector<1x128x128xbf16>
    %30 = vector.shape_cast %29 : vector<1x128x128xbf16> to vector<128x128xbf16>
    %cst_32 = arith.constant dense<0.000000e+00> : vector<8x128xf32>
    %31 = tpu.matmul %28, %30, %cst_32 {dimension_numbers = #tpu.dot_dimension_numbers<[1], [0], [0], [1], [0, 0, 1, 1], [], []>} : vector<8x128xf32>, vector<128x128xbf16>, vector<8x128xf32> -> vector<8x128xf32>
    %32 = arith.addf %27, %31 : vector<8x128xf32>
    %c1_33 = arith.constant 1 : index
    %c0_34 = arith.constant 0 : index
    %33 = vector.load %arg10[%c1_33, %c0_34] : memref<10x128xf32, #tpu.memory_space<vmem>>, vector<8x128xf32>
    %c1_35 = arith.constant 1 : index
    %c0_36 = arith.constant 0 : index
    %c0_37 = arith.constant 0 : index
    %34 = vector.load %arg5[%c1_35, %c0_36, %c0_37] : memref<3x128x128xbf16, #tpu.memory_space<vmem>>, vector<1x128x128xbf16>
    %35 = vector.shape_cast %34 : vector<1x128x128xbf16> to vector<128x128xbf16>
    %cst_38 = arith.constant dense<0.000000e+00> : vector<8x128xf32>
    %36 = tpu.matmul %33, %35, %cst_38 {dimension_numbers = #tpu.dot_dimension_numbers<[1], [0], [0], [1], [0, 0, 1, 1], [], []>} : vector<8x128xf32>, vector<128x128xbf16>, vector<8x128xf32> -> vector<8x128xf32>
    %37 = arith.addf %32, %36 : vector<8x128xf32>
    %c2_39 = arith.constant 2 : index
    %c0_40 = arith.constant 0 : index
    %38 = vector.load %arg10[%c2_39, %c0_40] : memref<10x128xf32, #tpu.memory_space<vmem>>, vector<8x128xf32>
    %c2_41 = arith.constant 2 : index
    %c0_42 = arith.constant 0 : index
    %c0_43 = arith.constant 0 : index
    %39 = vector.load %arg5[%c2_41, %c0_42, %c0_43] : memref<3x128x128xbf16, #tpu.memory_space<vmem>>, vector<1x128x128xbf16>
    %40 = vector.shape_cast %39 : vector<1x128x128xbf16> to vector<128x128xbf16>
    %cst_44 = arith.constant dense<0.000000e+00> : vector<8x128xf32>
    %41 = tpu.matmul %38, %40, %cst_44 {dimension_numbers = #tpu.dot_dimension_numbers<[1], [0], [0], [1], [0, 0, 1, 1], [], []>} : vector<8x128xf32>, vector<128x128xbf16>, vector<8x128xf32> -> vector<8x128xf32>
    %42 = arith.addf %37, %41 : vector<8x128xf32>
    %c0_45 = arith.constant 0 : index
    %c0_46 = arith.constant 0 : index
    %c0_47 = arith.constant 0 : index
    %43 = vector.load %arg2[%c0_45, %c0_46, %c0_47] : memref<1x9x64xbf16, #tpu.memory_space<vmem>>, vector<1x8x64xbf16>
    %44 = vector.shape_cast %43 : vector<1x8x64xbf16> to vector<8x64xbf16>
    %c0_48 = arith.constant 0 : index
    %c0_49 = arith.constant 0 : index
    %c0_50 = arith.constant 0 : index
    %45 = vector.load %arg7[%c0_48, %c0_49, %c0_50] : memref<1x64x128xbf16, #tpu.memory_space<vmem>>, vector<1x64x128xbf16>
    %46 = vector.shape_cast %45 : vector<1x64x128xbf16> to vector<64x128xbf16>
    %cst_51 = arith.constant dense<0.000000e+00> : vector<8x128xf32>
    %47 = tpu.matmul %44, %46, %cst_51 {dimension_numbers = #tpu.dot_dimension_numbers<[1], [0], [0], [1], [0, 0, 1, 1], [], []>} : vector<8x64xbf16>, vector<64x128xbf16>, vector<8x128xf32> -> vector<8x128xf32>
    %c0_52 = arith.constant 0 : index
    %c0_53 = arith.constant 0 : index
    %48 = vector.load %arg8[%c0_52, %c0_53] : memref<1x128xf32, #tpu.memory_space<vmem>>, vector<1x128xf32>
    %49 = vector.broadcast %48 : vector<1x128xf32> to vector<8x128xf32>
    %50 = arith.addf %47, %49 : vector<8x128xf32>
    %c0_54 = arith.constant 0 : index
    %c0_55 = arith.constant 0 : index
    %51 = vector.load %arg6[%c0_54, %c0_55] : memref<1x128xf32, #tpu.memory_space<vmem>>, vector<1x128xf32>
    %52 = vector.broadcast %51 : vector<1x128xf32> to vector<8x128xf32>
    %53 = arith.addf %42, %52 : vector<8x128xf32>
    %54 = arith.addf %53, %50 : vector<8x128xf32>
    %cst_56 = arith.constant 0.000000e+00 : f32
    %55 = vector.broadcast %cst_56 : f32 to vector<8x128xf32>
    %56 = arith.maximumf %54, %55 : vector<8x128xf32>
    %57 = arith.truncf %56 : vector<8x128xf32> to vector<8x128xbf16>
    %c0_57 = arith.constant 0 : index
    %c0_58 = arith.constant 0 : index
    %c0_59 = arith.constant 0 : index
    %58 = vector.load %arg9[%c0_57, %c0_58, %c0_59] : memref<1x8x128xbf16, #tpu.memory_space<vmem>>, vector<1x8x128xbf16>
    %59 = vector.shape_cast %58 : vector<1x8x128xbf16> to vector<8x128xbf16>
    %60 = vector.shape_cast %57 : vector<8x128xbf16> to vector<1x8x128xbf16>
    tpu.vector_store %arg9[%c0_57, %c0_58, %c0_59], %60 {strides = array<i32>} : memref<1x8x128xbf16, #tpu.memory_space<vmem>>, vector<1x8x128xbf16>,
    return
  }
  func.func @transform_0(%arg0: i32) -> (i32, i32, i32) {
    %c0_i32 = arith.constant 0 : i32
    %c0_i32_0 = arith.constant 0 : i32
    %c0_i32_1 = arith.constant 0 : i32
    return %arg0, %c0_i32, %c0_i32_0 : i32, i32, i32
  }
  func.func @transform_1(%arg0: i32) -> (i32, i32, i32) {
    %c0_i32 = arith.constant 0 : i32
    %c0_i32_0 = arith.constant 0 : i32
    %c0_i32_1 = arith.constant 0 : i32
    return %arg0, %c0_i32, %c0_i32_0 : i32, i32, i32
  }
  func.func @transform_2(%arg0: i32) -> (i32, i32, i32) {
    %c0_i32 = arith.constant 0 : i32
    %c0_i32_0 = arith.constant 0 : i32
    %c0_i32_1 = arith.constant 0 : i32
    %c0_i32_2 = arith.constant 0 : i32
    return %c0_i32, %c0_i32_0, %c0_i32_1 : i32, i32, i32
  }
  func.func @transform_3(%arg0: i32) -> (i32, i32) {
    %c0_i32 = arith.constant 0 : i32
    %c0_i32_0 = arith.constant 0 : i32
    %c0_i32_1 = arith.constant 0 : i32
    return %c0_i32, %c0_i32_0 : i32, i32
  }
  func.func @transform_4(%arg0: i32) -> (i32, i32, i32) {
    %c0_i32 = arith.constant 0 : i32
    %c0_i32_0 = arith.constant 0 : i32
    %c0_i32_1 = arith.constant 0 : i32
    %c0_i32_2 = arith.constant 0 : i32
    return %c0_i32, %c0_i32_0, %c0_i32_1 : i32, i32, i32
  }
  func.func @transform_5(%arg0: i32) -> (i32, i32) {
    %c0_i32 = arith.constant 0 : i32
    %c0_i32_0 = arith.constant 0 : i32
    %c0_i32_1 = arith.constant 0 : i32
    return %c0_i32, %c0_i32_0 : i32, i32
  }
  func.func @transform_6(%arg0: i32) -> (i32, i32, i32) {
    %c0_i32 = arith.constant 0 : i32
    %c0_i32_0 = arith.constant 0 : i32
    %c0_i32_1 = arith.constant 0 : i32
    %c0_i32_2 = arith.constant 0 : i32
    return %c0_i32, %c0_i32_0, %c0_i32_1 : i32, i32, i32
  }
  func.func @transform_7(%arg0: i32) -> (i32, i32) {
    %c0_i32 = arith.constant 0 : i32
    %c0_i32_0 = arith.constant 0 : i32
    %c0_i32_1 = arith.constant 0 : i32
    return %c0_i32, %c0_i32_0 : i32, i32
  }
  func.func @transform_8(%arg0: i32) -> (i32, i32, i32) {
    %c0_i32 = arith.constant 0 : i32
    %c0_i32_0 = arith.constant 0 : i32
    %c0_i32_1 = arith.constant 0 : i32
    return %arg0, %c0_i32, %c0_i32_0 : i32, i32, i32
  }
}

module attributes {stable_mosaic.version = 11 : i64} {
  func.func @_block_s2_kernel(%arg0: i32, %arg1: memref<1x5x128xbf16, #tpu.memory_space<vmem>>, %arg2: memref<1x5x128xbf16, #tpu.memory_space<vmem>>, %arg3: memref<3x128x256xbf16, #tpu.memory_space<vmem>>, %arg4: memref<1x256xf32, #tpu.memory_space<vmem>>, %arg5: memref<3x256x256xbf16, #tpu.memory_space<vmem>>, %arg6: memref<1x256xf32, #tpu.memory_space<vmem>>, %arg7: memref<1x128x256xbf16, #tpu.memory_space<vmem>>, %arg8: memref<1x256xf32, #tpu.memory_space<vmem>>, %arg9: memref<1x4x256xbf16, #tpu.memory_space<vmem>>, %arg10: memref<6x256xf32, #tpu.memory_space<vmem>>) attributes {dimension_semantics = [#tpu.dimension_semantics<parallel>], iteration_bounds = array<i64: 2>, scalar_prefetch = 0 : i64, scratch_operands = 1 : i64, tpu.core_type = #tpu.core_type<tc>, window_params = [{transform_indices = @transform_0, window_bounds = array<i64: 1, 5, 128>}, {transform_indices = @transform_1, window_bounds = array<i64: 1, 5, 128>}, {pipeline_mode = #tpu.pipeline_mode<synchronous>, transform_indices = @transform_2, window_bounds = array<i64: 3, 128, 256>}, {pipeline_mode = #tpu.pipeline_mode<synchronous>, transform_indices = @transform_3, window_bounds = array<i64: 1, 256>}, {pipeline_mode = #tpu.pipeline_mode<synchronous>, transform_indices = @transform_4, window_bounds = array<i64: 3, 256, 256>}, {pipeline_mode = #tpu.pipeline_mode<synchronous>, transform_indices = @transform_5, window_bounds = array<i64: 1, 256>}, {pipeline_mode = #tpu.pipeline_mode<synchronous>, transform_indices = @transform_6, window_bounds = array<i64: 1, 128, 256>}, {pipeline_mode = #tpu.pipeline_mode<synchronous>, transform_indices = @transform_7, window_bounds = array<i64: 1, 256>}, {transform_indices = @transform_8, window_bounds = array<i64: 1, 4, 256>}]} {
    %cst = arith.constant 0.000000e+00 : f32
    %0 = vector.broadcast %cst : f32 to vector<4x256xf32>
    %c0 = arith.constant 0 : index
    %c0_0 = arith.constant 0 : index
    %c0_1 = arith.constant 0 : index
    %1 = vector.load %arg1[%c0, %c0_0, %c0_1] : memref<1x5x128xbf16, #tpu.memory_space<vmem>>, vector<1x4x128xbf16>
    %2 = vector.shape_cast %1 : vector<1x4x128xbf16> to vector<4x128xbf16>
    %c0_2 = arith.constant 0 : index
    %c0_3 = arith.constant 0 : index
    %c0_4 = arith.constant 0 : index
    %3 = vector.load %arg3[%c0_2, %c0_3, %c0_4] : memref<3x128x256xbf16, #tpu.memory_space<vmem>>, vector<1x128x256xbf16>
    %4 = vector.shape_cast %3 : vector<1x128x256xbf16> to vector<128x256xbf16>
    %cst_5 = arith.constant dense<0.000000e+00> : vector<4x256xf32>
    %5 = tpu.matmul %2, %4, %cst_5 {dimension_numbers = #tpu.dot_dimension_numbers<[1], [0], [0], [1], [0, 0, 1, 1], [], []>} : vector<4x128xbf16>, vector<128x256xbf16>, vector<4x256xf32> -> vector<4x256xf32>
    %6 = arith.addf %0, %5 : vector<4x256xf32>
    %c0_6 = arith.constant 0 : index
    %c0_7 = arith.constant 0 : index
    %c0_8 = arith.constant 0 : index
    %7 = vector.load %arg2[%c0_6, %c0_7, %c0_8] : memref<1x5x128xbf16, #tpu.memory_space<vmem>>, vector<1x4x128xbf16>
    %8 = vector.shape_cast %7 : vector<1x4x128xbf16> to vector<4x128xbf16>
    %c1 = arith.constant 1 : index
    %c0_9 = arith.constant 0 : index
    %c0_10 = arith.constant 0 : index
    %9 = vector.load %arg3[%c1, %c0_9, %c0_10] : memref<3x128x256xbf16, #tpu.memory_space<vmem>>, vector<1x128x256xbf16>
    %10 = vector.shape_cast %9 : vector<1x128x256xbf16> to vector<128x256xbf16>
    %cst_11 = arith.constant dense<0.000000e+00> : vector<4x256xf32>
    %11 = tpu.matmul %8, %10, %cst_11 {dimension_numbers = #tpu.dot_dimension_numbers<[1], [0], [0], [1], [0, 0, 1, 1], [], []>} : vector<4x128xbf16>, vector<128x256xbf16>, vector<4x256xf32> -> vector<4x256xf32>
    %12 = arith.addf %6, %11 : vector<4x256xf32>
    %c0_12 = arith.constant 0 : index
    %c1_13 = arith.constant 1 : index
    %c0_14 = arith.constant 0 : index
    %13 = vector.load %arg1[%c0_12, %c1_13, %c0_14] : memref<1x5x128xbf16, #tpu.memory_space<vmem>>, vector<1x4x128xbf16>
    %14 = vector.shape_cast %13 : vector<1x4x128xbf16> to vector<4x128xbf16>
    %c2 = arith.constant 2 : index
    %c0_15 = arith.constant 0 : index
    %c0_16 = arith.constant 0 : index
    %15 = vector.load %arg3[%c2, %c0_15, %c0_16] : memref<3x128x256xbf16, #tpu.memory_space<vmem>>, vector<1x128x256xbf16>
    %16 = vector.shape_cast %15 : vector<1x128x256xbf16> to vector<128x256xbf16>
    %cst_17 = arith.constant dense<0.000000e+00> : vector<4x256xf32>
    %17 = tpu.matmul %14, %16, %cst_17 {dimension_numbers = #tpu.dot_dimension_numbers<[1], [0], [0], [1], [0, 0, 1, 1], [], []>} : vector<4x128xbf16>, vector<128x256xbf16>, vector<4x256xf32> -> vector<4x256xf32>
    %18 = arith.addf %12, %17 : vector<4x256xf32>
    %c0_18 = arith.constant 0 : index
    %c0_19 = arith.constant 0 : index
    %19 = vector.load %arg4[%c0_18, %c0_19] : memref<1x256xf32, #tpu.memory_space<vmem>>, vector<1x256xf32>
    %20 = vector.broadcast %19 : vector<1x256xf32> to vector<4x256xf32>
    %21 = arith.addf %18, %20 : vector<4x256xf32>
    %cst_20 = arith.constant 0.000000e+00 : f32
    %22 = vector.broadcast %cst_20 : f32 to vector<4x256xf32>
    %23 = arith.maximumf %21, %22 : vector<4x256xf32>
    %cst_21 = arith.constant 0.000000e+00 : f32
    %24 = vector.broadcast %cst_21 : f32 to vector<6x256xf32>
    %c0_22 = arith.constant 0 : index
    %c0_23 = arith.constant 0 : index
    %25 = vector.load %arg10[%c0_22, %c0_23] : memref<6x256xf32, #tpu.memory_space<vmem>>, vector<6x256xf32>
    tpu.vector_store %arg10[%c0_22, %c0_23], %24 {strides = array<i32>} : memref<6x256xf32, #tpu.memory_space<vmem>>, vector<6x256xf32>,
    %c1_24 = arith.constant 1 : index
    %c0_25 = arith.constant 0 : index
    %26 = vector.load %arg10[%c1_24, %c0_25] : memref<6x256xf32, #tpu.memory_space<vmem>>, vector<4x256xf32>
    tpu.vector_store %arg10[%c1_24, %c0_25], %23 {strides = array<i32>} : memref<6x256xf32, #tpu.memory_space<vmem>>, vector<4x256xf32>,
    %cst_26 = arith.constant 0.000000e+00 : f32
    %27 = vector.broadcast %cst_26 : f32 to vector<4x256xf32>
    %c0_27 = arith.constant 0 : index
    %c0_28 = arith.constant 0 : index
    %28 = vector.load %arg10[%c0_27, %c0_28] : memref<6x256xf32, #tpu.memory_space<vmem>>, vector<4x256xf32>
    %c0_29 = arith.constant 0 : index
    %c0_30 = arith.constant 0 : index
    %c0_31 = arith.constant 0 : index
    %29 = vector.load %arg5[%c0_29, %c0_30, %c0_31] : memref<3x256x256xbf16, #tpu.memory_space<vmem>>, vector<1x256x256xbf16>
    %30 = vector.shape_cast %29 : vector<1x256x256xbf16> to vector<256x256xbf16>
    %cst_32 = arith.constant dense<0.000000e+00> : vector<4x256xf32>
    %31 = tpu.matmul %28, %30, %cst_32 {dimension_numbers = #tpu.dot_dimension_numbers<[1], [0], [0], [1], [0, 0, 1, 1], [], []>} : vector<4x256xf32>, vector<256x256xbf16>, vector<4x256xf32> -> vector<4x256xf32>
    %32 = arith.addf %27, %31 : vector<4x256xf32>
    %c1_33 = arith.constant 1 : index
    %c0_34 = arith.constant 0 : index
    %33 = vector.load %arg10[%c1_33, %c0_34] : memref<6x256xf32, #tpu.memory_space<vmem>>, vector<4x256xf32>
    %c1_35 = arith.constant 1 : index
    %c0_36 = arith.constant 0 : index
    %c0_37 = arith.constant 0 : index
    %34 = vector.load %arg5[%c1_35, %c0_36, %c0_37] : memref<3x256x256xbf16, #tpu.memory_space<vmem>>, vector<1x256x256xbf16>
    %35 = vector.shape_cast %34 : vector<1x256x256xbf16> to vector<256x256xbf16>
    %cst_38 = arith.constant dense<0.000000e+00> : vector<4x256xf32>
    %36 = tpu.matmul %33, %35, %cst_38 {dimension_numbers = #tpu.dot_dimension_numbers<[1], [0], [0], [1], [0, 0, 1, 1], [], []>} : vector<4x256xf32>, vector<256x256xbf16>, vector<4x256xf32> -> vector<4x256xf32>
    %37 = arith.addf %32, %36 : vector<4x256xf32>
    %c2_39 = arith.constant 2 : index
    %c0_40 = arith.constant 0 : index
    %38 = vector.load %arg10[%c2_39, %c0_40] : memref<6x256xf32, #tpu.memory_space<vmem>>, vector<4x256xf32>
    %c2_41 = arith.constant 2 : index
    %c0_42 = arith.constant 0 : index
    %c0_43 = arith.constant 0 : index
    %39 = vector.load %arg5[%c2_41, %c0_42, %c0_43] : memref<3x256x256xbf16, #tpu.memory_space<vmem>>, vector<1x256x256xbf16>
    %40 = vector.shape_cast %39 : vector<1x256x256xbf16> to vector<256x256xbf16>
    %cst_44 = arith.constant dense<0.000000e+00> : vector<4x256xf32>
    %41 = tpu.matmul %38, %40, %cst_44 {dimension_numbers = #tpu.dot_dimension_numbers<[1], [0], [0], [1], [0, 0, 1, 1], [], []>} : vector<4x256xf32>, vector<256x256xbf16>, vector<4x256xf32> -> vector<4x256xf32>
    %42 = arith.addf %37, %41 : vector<4x256xf32>
    %c0_45 = arith.constant 0 : index
    %c0_46 = arith.constant 0 : index
    %c0_47 = arith.constant 0 : index
    %43 = vector.load %arg2[%c0_45, %c0_46, %c0_47] : memref<1x5x128xbf16, #tpu.memory_space<vmem>>, vector<1x4x128xbf16>
    %44 = vector.shape_cast %43 : vector<1x4x128xbf16> to vector<4x128xbf16>
    %c0_48 = arith.constant 0 : index
    %c0_49 = arith.constant 0 : index
    %c0_50 = arith.constant 0 : index
    %45 = vector.load %arg7[%c0_48, %c0_49, %c0_50] : memref<1x128x256xbf16, #tpu.memory_space<vmem>>, vector<1x128x256xbf16>
    %46 = vector.shape_cast %45 : vector<1x128x256xbf16> to vector<128x256xbf16>
    %cst_51 = arith.constant dense<0.000000e+00> : vector<4x256xf32>
    %47 = tpu.matmul %44, %46, %cst_51 {dimension_numbers = #tpu.dot_dimension_numbers<[1], [0], [0], [1], [0, 0, 1, 1], [], []>} : vector<4x128xbf16>, vector<128x256xbf16>, vector<4x256xf32> -> vector<4x256xf32>
    %c0_52 = arith.constant 0 : index
    %c0_53 = arith.constant 0 : index
    %48 = vector.load %arg8[%c0_52, %c0_53] : memref<1x256xf32, #tpu.memory_space<vmem>>, vector<1x256xf32>
    %49 = vector.broadcast %48 : vector<1x256xf32> to vector<4x256xf32>
    %50 = arith.addf %47, %49 : vector<4x256xf32>
    %c0_54 = arith.constant 0 : index
    %c0_55 = arith.constant 0 : index
    %51 = vector.load %arg6[%c0_54, %c0_55] : memref<1x256xf32, #tpu.memory_space<vmem>>, vector<1x256xf32>
    %52 = vector.broadcast %51 : vector<1x256xf32> to vector<4x256xf32>
    %53 = arith.addf %42, %52 : vector<4x256xf32>
    %54 = arith.addf %53, %50 : vector<4x256xf32>
    %cst_56 = arith.constant 0.000000e+00 : f32
    %55 = vector.broadcast %cst_56 : f32 to vector<4x256xf32>
    %56 = arith.maximumf %54, %55 : vector<4x256xf32>
    %57 = arith.truncf %56 : vector<4x256xf32> to vector<4x256xbf16>
    %c0_57 = arith.constant 0 : index
    %c0_58 = arith.constant 0 : index
    %c0_59 = arith.constant 0 : index
    %58 = vector.load %arg9[%c0_57, %c0_58, %c0_59] : memref<1x4x256xbf16, #tpu.memory_space<vmem>>, vector<1x4x256xbf16>
    %59 = vector.shape_cast %58 : vector<1x4x256xbf16> to vector<4x256xbf16>
    %60 = vector.shape_cast %57 : vector<4x256xbf16> to vector<1x4x256xbf16>
    tpu.vector_store %arg9[%c0_57, %c0_58, %c0_59], %60 {strides = array<i32>} : memref<1x4x256xbf16, #tpu.memory_space<vmem>>, vector<1x4x256xbf16>,
    return
  }
  func.func @transform_0(%arg0: i32) -> (i32, i32, i32) {
    %c0_i32 = arith.constant 0 : i32
    %c0_i32_0 = arith.constant 0 : i32
    %c0_i32_1 = arith.constant 0 : i32
    return %arg0, %c0_i32, %c0_i32_0 : i32, i32, i32
  }
  func.func @transform_1(%arg0: i32) -> (i32, i32, i32) {
    %c0_i32 = arith.constant 0 : i32
    %c0_i32_0 = arith.constant 0 : i32
    %c0_i32_1 = arith.constant 0 : i32
    return %arg0, %c0_i32, %c0_i32_0 : i32, i32, i32
  }
  func.func @transform_2(%arg0: i32) -> (i32, i32, i32) {
    %c0_i32 = arith.constant 0 : i32
    %c0_i32_0 = arith.constant 0 : i32
    %c0_i32_1 = arith.constant 0 : i32
    %c0_i32_2 = arith.constant 0 : i32
    return %c0_i32, %c0_i32_0, %c0_i32_1 : i32, i32, i32
  }
  func.func @transform_3(%arg0: i32) -> (i32, i32) {
    %c0_i32 = arith.constant 0 : i32
    %c0_i32_0 = arith.constant 0 : i32
    %c0_i32_1 = arith.constant 0 : i32
    return %c0_i32, %c0_i32_0 : i32, i32
  }
  func.func @transform_4(%arg0: i32) -> (i32, i32, i32) {
    %c0_i32 = arith.constant 0 : i32
    %c0_i32_0 = arith.constant 0 : i32
    %c0_i32_1 = arith.constant 0 : i32
    %c0_i32_2 = arith.constant 0 : i32
    return %c0_i32, %c0_i32_0, %c0_i32_1 : i32, i32, i32
  }
  func.func @transform_5(%arg0: i32) -> (i32, i32) {
    %c0_i32 = arith.constant 0 : i32
    %c0_i32_0 = arith.constant 0 : i32
    %c0_i32_1 = arith.constant 0 : i32
    return %c0_i32, %c0_i32_0 : i32, i32
  }
  func.func @transform_6(%arg0: i32) -> (i32, i32, i32) {
    %c0_i32 = arith.constant 0 : i32
    %c0_i32_0 = arith.constant 0 : i32
    %c0_i32_1 = arith.constant 0 : i32
    %c0_i32_2 = arith.constant 0 : i32
    return %c0_i32, %c0_i32_0, %c0_i32_1 : i32, i32, i32
  }
  func.func @transform_7(%arg0: i32) -> (i32, i32) {
    %c0_i32 = arith.constant 0 : i32
    %c0_i32_0 = arith.constant 0 : i32
    %c0_i32_1 = arith.constant 0 : i32
    return %c0_i32, %c0_i32_0 : i32, i32
  }
  func.func @transform_8(%arg0: i32) -> (i32, i32, i32) {
    %c0_i32 = arith.constant 0 : i32
    %c0_i32_0 = arith.constant 0 : i32
    %c0_i32_1 = arith.constant 0 : i32
    return %arg0, %c0_i32, %c0_i32_0 : i32, i32, i32
  }
}

module attributes {stable_mosaic.version = 11 : i64} {
  func.func @_pool_fc_kernel(%arg0: i32, %arg1: memref<2x2x512xbf16, #tpu.memory_space<vmem>>, %arg2: memref<512x128xf32, #tpu.memory_space<vmem>>, %arg3: memref<1x128xf32, #tpu.memory_space<vmem>>, %arg4: memref<2x128xf32, #tpu.memory_space<vmem>>) attributes {dimension_semantics = [#tpu.dimension_semantics<arbitrary>], iteration_bounds = array<i64: 1>, scalar_prefetch = 0 : i64, scratch_operands = 0 : i64, tpu.core_type = #tpu.core_type<tc>, window_params = [{pipeline_mode = #tpu.pipeline_mode<synchronous>, transform_indices = @transform_0, window_bounds = array<i64: 2, 2, 512>}, {pipeline_mode = #tpu.pipeline_mode<synchronous>, transform_indices = @transform_1, window_bounds = array<i64: 512, 128>}, {pipeline_mode = #tpu.pipeline_mode<synchronous>, transform_indices = @transform_2, window_bounds = array<i64: 1, 128>}, {pipeline_mode = #tpu.pipeline_mode<synchronous>, transform_indices = @transform_3, window_bounds = array<i64: 2, 128>}]} {
    %c0 = arith.constant 0 : index
    %c0_0 = arith.constant 0 : index
    %c0_1 = arith.constant 0 : index
    %0 = vector.load %arg1[%c0, %c0_0, %c0_1] : memref<2x2x512xbf16, #tpu.memory_space<vmem>>, vector<2x2x512xbf16>
    %1 = arith.extf %0 : vector<2x2x512xbf16> to vector<2x2x512xf32>
    %cst = arith.constant dense<0.000000e+00> : vector<2x512xf32>
    %2 = vector.multi_reduction <add>, %1, %cst [1] : vector<2x2x512xf32> to vector<2x512xf32>
    %cst_2 = arith.constant 2.000000e+00 : f32
    %3 = vector.broadcast %cst_2 : f32 to vector<2x512xf32>
    %4 = arith.divf %2, %3 : vector<2x512xf32>
    %c0_3 = arith.constant 0 : index
    %c0_4 = arith.constant 0 : index
    %5 = vector.load %arg2[%c0_3, %c0_4] : memref<512x128xf32, #tpu.memory_space<vmem>>, vector<512x128xf32>
    %cst_5 = arith.constant dense<0.000000e+00> : vector<2x128xf32>
    %6 = tpu.matmul %4, %5, %cst_5 {dimension_numbers = #tpu.dot_dimension_numbers<[1], [0], [0], [1], [0, 0, 1, 1], [], []>} : vector<2x512xf32>, vector<512x128xf32>, vector<2x128xf32> -> vector<2x128xf32>
    %c0_6 = arith.constant 0 : index
    %c0_7 = arith.constant 0 : index
    %7 = vector.load %arg3[%c0_6, %c0_7] : memref<1x128xf32, #tpu.memory_space<vmem>>, vector<1x128xf32>
    %8 = vector.broadcast %7 : vector<1x128xf32> to vector<2x128xf32>
    %9 = arith.addf %6, %8 : vector<2x128xf32>
    %c0_8 = arith.constant 0 : index
    %c0_9 = arith.constant 0 : index
    %10 = vector.load %arg4[%c0_8, %c0_9] : memref<2x128xf32, #tpu.memory_space<vmem>>, vector<2x128xf32>
    tpu.vector_store %arg4[%c0_8, %c0_9], %9 {strides = array<i32>} : memref<2x128xf32, #tpu.memory_space<vmem>>, vector<2x128xf32>,
    return
  }
  func.func @transform_0(%arg0: i32) -> (i32, i32, i32) {
    %c0_i32 = arith.constant 0 : i32
    %c0_i32_0 = arith.constant 0 : i32
    %c0_i32_1 = arith.constant 0 : i32
    %c0_i32_2 = arith.constant 0 : i32
    return %c0_i32, %c0_i32_0, %c0_i32_1 : i32, i32, i32
  }
  func.func @transform_1(%arg0: i32) -> (i32, i32) {
    %c0_i32 = arith.constant 0 : i32
    %c0_i32_0 = arith.constant 0 : i32
    %c0_i32_1 = arith.constant 0 : i32
    return %c0_i32, %c0_i32_0 : i32, i32
  }
  func.func @transform_2(%arg0: i32) -> (i32, i32) {
    %c0_i32 = arith.constant 0 : i32
    %c0_i32_0 = arith.constant 0 : i32
    %c0_i32_1 = arith.constant 0 : i32
    return %c0_i32, %c0_i32_0 : i32, i32
  }
  func.func @transform_3(%arg0: i32) -> (i32, i32) {
    %c0_i32 = arith.constant 0 : i32
    %c0_i32_0 = arith.constant 0 : i32
    %c0_i32_1 = arith.constant 0 : i32
    return %c0_i32, %c0_i32_0 : i32, i32
  }
}

module attributes {stable_mosaic.version = 11 : i64} {
  func.func @_block_s2_kernel(%arg0: i32, %arg1: memref<1x3x256xbf16, #tpu.memory_space<vmem>>, %arg2: memref<1x3x256xbf16, #tpu.memory_space<vmem>>, %arg3: memref<3x256x512xbf16, #tpu.memory_space<vmem>>, %arg4: memref<1x512xf32, #tpu.memory_space<vmem>>, %arg5: memref<3x512x512xbf16, #tpu.memory_space<vmem>>, %arg6: memref<1x512xf32, #tpu.memory_space<vmem>>, %arg7: memref<1x256x512xbf16, #tpu.memory_space<vmem>>, %arg8: memref<1x512xf32, #tpu.memory_space<vmem>>, %arg9: memref<1x2x512xbf16, #tpu.memory_space<vmem>>, %arg10: memref<4x512xf32, #tpu.memory_space<vmem>>) attributes {dimension_semantics = [#tpu.dimension_semantics<parallel>], iteration_bounds = array<i64: 2>, scalar_prefetch = 0 : i64, scratch_operands = 1 : i64, tpu.core_type = #tpu.core_type<tc>, window_params = [{transform_indices = @transform_0, window_bounds = array<i64: 1, 3, 256>}, {transform_indices = @transform_1, window_bounds = array<i64: 1, 3, 256>}, {pipeline_mode = #tpu.pipeline_mode<synchronous>, transform_indices = @transform_2, window_bounds = array<i64: 3, 256, 512>}, {pipeline_mode = #tpu.pipeline_mode<synchronous>, transform_indices = @transform_3, window_bounds = array<i64: 1, 512>}, {pipeline_mode = #tpu.pipeline_mode<synchronous>, transform_indices = @transform_4, window_bounds = array<i64: 3, 512, 512>}, {pipeline_mode = #tpu.pipeline_mode<synchronous>, transform_indices = @transform_5, window_bounds = array<i64: 1, 512>}, {pipeline_mode = #tpu.pipeline_mode<synchronous>, transform_indices = @transform_6, window_bounds = array<i64: 1, 256, 512>}, {pipeline_mode = #tpu.pipeline_mode<synchronous>, transform_indices = @transform_7, window_bounds = array<i64: 1, 512>}, {transform_indices = @transform_8, window_bounds = array<i64: 1, 2, 512>}]} {
    %cst = arith.constant 0.000000e+00 : f32
    %0 = vector.broadcast %cst : f32 to vector<2x512xf32>
    %c0 = arith.constant 0 : index
    %c0_0 = arith.constant 0 : index
    %c0_1 = arith.constant 0 : index
    %1 = vector.load %arg1[%c0, %c0_0, %c0_1] : memref<1x3x256xbf16, #tpu.memory_space<vmem>>, vector<1x2x256xbf16>
    %2 = vector.shape_cast %1 : vector<1x2x256xbf16> to vector<2x256xbf16>
    %c0_2 = arith.constant 0 : index
    %c0_3 = arith.constant 0 : index
    %c0_4 = arith.constant 0 : index
    %3 = vector.load %arg3[%c0_2, %c0_3, %c0_4] : memref<3x256x512xbf16, #tpu.memory_space<vmem>>, vector<1x256x512xbf16>
    %4 = vector.shape_cast %3 : vector<1x256x512xbf16> to vector<256x512xbf16>
    %cst_5 = arith.constant dense<0.000000e+00> : vector<2x512xf32>
    %5 = tpu.matmul %2, %4, %cst_5 {dimension_numbers = #tpu.dot_dimension_numbers<[1], [0], [0], [1], [0, 0, 1, 1], [], []>} : vector<2x256xbf16>, vector<256x512xbf16>, vector<2x512xf32> -> vector<2x512xf32>
    %6 = arith.addf %0, %5 : vector<2x512xf32>
    %c0_6 = arith.constant 0 : index
    %c0_7 = arith.constant 0 : index
    %c0_8 = arith.constant 0 : index
    %7 = vector.load %arg2[%c0_6, %c0_7, %c0_8] : memref<1x3x256xbf16, #tpu.memory_space<vmem>>, vector<1x2x256xbf16>
    %8 = vector.shape_cast %7 : vector<1x2x256xbf16> to vector<2x256xbf16>
    %c1 = arith.constant 1 : index
    %c0_9 = arith.constant 0 : index
    %c0_10 = arith.constant 0 : index
    %9 = vector.load %arg3[%c1, %c0_9, %c0_10] : memref<3x256x512xbf16, #tpu.memory_space<vmem>>, vector<1x256x512xbf16>
    %10 = vector.shape_cast %9 : vector<1x256x512xbf16> to vector<256x512xbf16>
    %cst_11 = arith.constant dense<0.000000e+00> : vector<2x512xf32>
    %11 = tpu.matmul %8, %10, %cst_11 {dimension_numbers = #tpu.dot_dimension_numbers<[1], [0], [0], [1], [0, 0, 1, 1], [], []>} : vector<2x256xbf16>, vector<256x512xbf16>, vector<2x512xf32> -> vector<2x512xf32>
    %12 = arith.addf %6, %11 : vector<2x512xf32>
    %c0_12 = arith.constant 0 : index
    %c1_13 = arith.constant 1 : index
    %c0_14 = arith.constant 0 : index
    %13 = vector.load %arg1[%c0_12, %c1_13, %c0_14] : memref<1x3x256xbf16, #tpu.memory_space<vmem>>, vector<1x2x256xbf16>
    %14 = vector.shape_cast %13 : vector<1x2x256xbf16> to vector<2x256xbf16>
    %c2 = arith.constant 2 : index
    %c0_15 = arith.constant 0 : index
    %c0_16 = arith.constant 0 : index
    %15 = vector.load %arg3[%c2, %c0_15, %c0_16] : memref<3x256x512xbf16, #tpu.memory_space<vmem>>, vector<1x256x512xbf16>
    %16 = vector.shape_cast %15 : vector<1x256x512xbf16> to vector<256x512xbf16>
    %cst_17 = arith.constant dense<0.000000e+00> : vector<2x512xf32>
    %17 = tpu.matmul %14, %16, %cst_17 {dimension_numbers = #tpu.dot_dimension_numbers<[1], [0], [0], [1], [0, 0, 1, 1], [], []>} : vector<2x256xbf16>, vector<256x512xbf16>, vector<2x512xf32> -> vector<2x512xf32>
    %18 = arith.addf %12, %17 : vector<2x512xf32>
    %c0_18 = arith.constant 0 : index
    %c0_19 = arith.constant 0 : index
    %19 = vector.load %arg4[%c0_18, %c0_19] : memref<1x512xf32, #tpu.memory_space<vmem>>, vector<1x512xf32>
    %20 = vector.broadcast %19 : vector<1x512xf32> to vector<2x512xf32>
    %21 = arith.addf %18, %20 : vector<2x512xf32>
    %cst_20 = arith.constant 0.000000e+00 : f32
    %22 = vector.broadcast %cst_20 : f32 to vector<2x512xf32>
    %23 = arith.maximumf %21, %22 : vector<2x512xf32>
    %cst_21 = arith.constant 0.000000e+00 : f32
    %24 = vector.broadcast %cst_21 : f32 to vector<4x512xf32>
    %c0_22 = arith.constant 0 : index
    %c0_23 = arith.constant 0 : index
    %25 = vector.load %arg10[%c0_22, %c0_23] : memref<4x512xf32, #tpu.memory_space<vmem>>, vector<4x512xf32>
    tpu.vector_store %arg10[%c0_22, %c0_23], %24 {strides = array<i32>} : memref<4x512xf32, #tpu.memory_space<vmem>>, vector<4x512xf32>,
    %c1_24 = arith.constant 1 : index
    %c0_25 = arith.constant 0 : index
    %26 = vector.load %arg10[%c1_24, %c0_25] : memref<4x512xf32, #tpu.memory_space<vmem>>, vector<2x512xf32>
    tpu.vector_store %arg10[%c1_24, %c0_25], %23 {strides = array<i32>} : memref<4x512xf32, #tpu.memory_space<vmem>>, vector<2x512xf32>,
    %cst_26 = arith.constant 0.000000e+00 : f32
    %27 = vector.broadcast %cst_26 : f32 to vector<2x512xf32>
    %c0_27 = arith.constant 0 : index
    %c0_28 = arith.constant 0 : index
    %28 = vector.load %arg10[%c0_27, %c0_28] : memref<4x512xf32, #tpu.memory_space<vmem>>, vector<2x512xf32>
    %c0_29 = arith.constant 0 : index
    %c0_30 = arith.constant 0 : index
    %c0_31 = arith.constant 0 : index
    %29 = vector.load %arg5[%c0_29, %c0_30, %c0_31] : memref<3x512x512xbf16, #tpu.memory_space<vmem>>, vector<1x512x512xbf16>
    %30 = vector.shape_cast %29 : vector<1x512x512xbf16> to vector<512x512xbf16>
    %cst_32 = arith.constant dense<0.000000e+00> : vector<2x512xf32>
    %31 = tpu.matmul %28, %30, %cst_32 {dimension_numbers = #tpu.dot_dimension_numbers<[1], [0], [0], [1], [0, 0, 1, 1], [], []>} : vector<2x512xf32>, vector<512x512xbf16>, vector<2x512xf32> -> vector<2x512xf32>
    %32 = arith.addf %27, %31 : vector<2x512xf32>
    %c1_33 = arith.constant 1 : index
    %c0_34 = arith.constant 0 : index
    %33 = vector.load %arg10[%c1_33, %c0_34] : memref<4x512xf32, #tpu.memory_space<vmem>>, vector<2x512xf32>
    %c1_35 = arith.constant 1 : index
    %c0_36 = arith.constant 0 : index
    %c0_37 = arith.constant 0 : index
    %34 = vector.load %arg5[%c1_35, %c0_36, %c0_37] : memref<3x512x512xbf16, #tpu.memory_space<vmem>>, vector<1x512x512xbf16>
    %35 = vector.shape_cast %34 : vector<1x512x512xbf16> to vector<512x512xbf16>
    %cst_38 = arith.constant dense<0.000000e+00> : vector<2x512xf32>
    %36 = tpu.matmul %33, %35, %cst_38 {dimension_numbers = #tpu.dot_dimension_numbers<[1], [0], [0], [1], [0, 0, 1, 1], [], []>} : vector<2x512xf32>, vector<512x512xbf16>, vector<2x512xf32> -> vector<2x512xf32>
    %37 = arith.addf %32, %36 : vector<2x512xf32>
    %c2_39 = arith.constant 2 : index
    %c0_40 = arith.constant 0 : index
    %38 = vector.load %arg10[%c2_39, %c0_40] : memref<4x512xf32, #tpu.memory_space<vmem>>, vector<2x512xf32>
    %c2_41 = arith.constant 2 : index
    %c0_42 = arith.constant 0 : index
    %c0_43 = arith.constant 0 : index
    %39 = vector.load %arg5[%c2_41, %c0_42, %c0_43] : memref<3x512x512xbf16, #tpu.memory_space<vmem>>, vector<1x512x512xbf16>
    %40 = vector.shape_cast %39 : vector<1x512x512xbf16> to vector<512x512xbf16>
    %cst_44 = arith.constant dense<0.000000e+00> : vector<2x512xf32>
    %41 = tpu.matmul %38, %40, %cst_44 {dimension_numbers = #tpu.dot_dimension_numbers<[1], [0], [0], [1], [0, 0, 1, 1], [], []>} : vector<2x512xf32>, vector<512x512xbf16>, vector<2x512xf32> -> vector<2x512xf32>
    %42 = arith.addf %37, %41 : vector<2x512xf32>
    %c0_45 = arith.constant 0 : index
    %c0_46 = arith.constant 0 : index
    %c0_47 = arith.constant 0 : index
    %43 = vector.load %arg2[%c0_45, %c0_46, %c0_47] : memref<1x3x256xbf16, #tpu.memory_space<vmem>>, vector<1x2x256xbf16>
    %44 = vector.shape_cast %43 : vector<1x2x256xbf16> to vector<2x256xbf16>
    %c0_48 = arith.constant 0 : index
    %c0_49 = arith.constant 0 : index
    %c0_50 = arith.constant 0 : index
    %45 = vector.load %arg7[%c0_48, %c0_49, %c0_50] : memref<1x256x512xbf16, #tpu.memory_space<vmem>>, vector<1x256x512xbf16>
    %46 = vector.shape_cast %45 : vector<1x256x512xbf16> to vector<256x512xbf16>
    %cst_51 = arith.constant dense<0.000000e+00> : vector<2x512xf32>
    %47 = tpu.matmul %44, %46, %cst_51 {dimension_numbers = #tpu.dot_dimension_numbers<[1], [0], [0], [1], [0, 0, 1, 1], [], []>} : vector<2x256xbf16>, vector<256x512xbf16>, vector<2x512xf32> -> vector<2x512xf32>
    %c0_52 = arith.constant 0 : index
    %c0_53 = arith.constant 0 : index
    %48 = vector.load %arg8[%c0_52, %c0_53] : memref<1x512xf32, #tpu.memory_space<vmem>>, vector<1x512xf32>
    %49 = vector.broadcast %48 : vector<1x512xf32> to vector<2x512xf32>
    %50 = arith.addf %47, %49 : vector<2x512xf32>
    %c0_54 = arith.constant 0 : index
    %c0_55 = arith.constant 0 : index
    %51 = vector.load %arg6[%c0_54, %c0_55] : memref<1x512xf32, #tpu.memory_space<vmem>>, vector<1x512xf32>
    %52 = vector.broadcast %51 : vector<1x512xf32> to vector<2x512xf32>
    %53 = arith.addf %42, %52 : vector<2x512xf32>
    %54 = arith.addf %53, %50 : vector<2x512xf32>
    %cst_56 = arith.constant 0.000000e+00 : f32
    %55 = vector.broadcast %cst_56 : f32 to vector<2x512xf32>
    %56 = arith.maximumf %54, %55 : vector<2x512xf32>
    %57 = arith.truncf %56 : vector<2x512xf32> to vector<2x512xbf16>
    %c0_57 = arith.constant 0 : index
    %c0_58 = arith.constant 0 : index
    %c0_59 = arith.constant 0 : index
    %58 = vector.load %arg9[%c0_57, %c0_58, %c0_59] : memref<1x2x512xbf16, #tpu.memory_space<vmem>>, vector<1x2x512xbf16>
    %59 = vector.shape_cast %58 : vector<1x2x512xbf16> to vector<2x512xbf16>
    %60 = vector.shape_cast %57 : vector<2x512xbf16> to vector<1x2x512xbf16>
    tpu.vector_store %arg9[%c0_57, %c0_58, %c0_59], %60 {strides = array<i32>} : memref<1x2x512xbf16, #tpu.memory_space<vmem>>, vector<1x2x512xbf16>,
    return
  }
  func.func @transform_0(%arg0: i32) -> (i32, i32, i32) {
    %c0_i32 = arith.constant 0 : i32
    %c0_i32_0 = arith.constant 0 : i32
    %c0_i32_1 = arith.constant 0 : i32
    return %arg0, %c0_i32, %c0_i32_0 : i32, i32, i32
  }
  func.func @transform_1(%arg0: i32) -> (i32, i32, i32) {
    %c0_i32 = arith.constant 0 : i32
    %c0_i32_0 = arith.constant 0 : i32
    %c0_i32_1 = arith.constant 0 : i32
    return %arg0, %c0_i32, %c0_i32_0 : i32, i32, i32
  }
  func.func @transform_2(%arg0: i32) -> (i32, i32, i32) {
    %c0_i32 = arith.constant 0 : i32
    %c0_i32_0 = arith.constant 0 : i32
    %c0_i32_1 = arith.constant 0 : i32
    %c0_i32_2 = arith.constant 0 : i32
    return %c0_i32, %c0_i32_0, %c0_i32_1 : i32, i32, i32
  }
  func.func @transform_3(%arg0: i32) -> (i32, i32) {
    %c0_i32 = arith.constant 0 : i32
    %c0_i32_0 = arith.constant 0 : i32
    %c0_i32_1 = arith.constant 0 : i32
    return %c0_i32, %c0_i32_0 : i32, i32
  }
  func.func @transform_4(%arg0: i32) -> (i32, i32, i32) {
    %c0_i32 = arith.constant 0 : i32
    %c0_i32_0 = arith.constant 0 : i32
    %c0_i32_1 = arith.constant 0 : i32
    %c0_i32_2 = arith.constant 0 : i32
    return %c0_i32, %c0_i32_0, %c0_i32_1 : i32, i32, i32
  }
  func.func @transform_5(%arg0: i32) -> (i32, i32) {
    %c0_i32 = arith.constant 0 : i32
    %c0_i32_0 = arith.constant 0 : i32
    %c0_i32_1 = arith.constant 0 : i32
    return %c0_i32, %c0_i32_0 : i32, i32
  }
  func.func @transform_6(%arg0: i32) -> (i32, i32, i32) {
    %c0_i32 = arith.constant 0 : i32
    %c0_i32_0 = arith.constant 0 : i32
    %c0_i32_1 = arith.constant 0 : i32
    %c0_i32_2 = arith.constant 0 : i32
    return %c0_i32, %c0_i32_0, %c0_i32_1 : i32, i32, i32
  }
  func.func @transform_7(%arg0: i32) -> (i32, i32) {
    %c0_i32 = arith.constant 0 : i32
    %c0_i32_0 = arith.constant 0 : i32
    %c0_i32_1 = arith.constant 0 : i32
    return %c0_i32, %c0_i32_0 : i32, i32
  }
  func.func @transform_8(%arg0: i32) -> (i32, i32, i32) {
    %c0_i32 = arith.constant 0 : i32
    %c0_i32_0 = arith.constant 0 : i32
    %c0_i32_1 = arith.constant 0 : i32
    return %arg0, %c0_i32, %c0_i32_0 : i32, i32, i32
  }
}

</mosaic_0001>

<llo_original>
// kernel: resnet1d_forward.8
$region0: #{resnet1d_forward.8}
  #allocation0 [shape = 'u32[]', space=smem, size = 0x4, offset = 0x4, fixed_abs, tag = 'smem constant byte address 0x4 - core index']
  #allocation1 [shape = 'u32[72,128]{1,0:T(1,128)}', space=vmem, size = 0x9000, scoped, tag = 'internal scratch']
  %s0 = inlined_call_operand.vmem [shape: bf16[2,17,64], index: 0, kind: input, shape index: {}]
  %s1 = inlined_call_operand.vmem [shape: bf16[2,17,64], index: 1, kind: input, shape index: {}]
  %s2 = inlined_call_operand.vmem [shape: bf16[2,16,64], index: 2, kind: output, shape index: {}]
  %s3 = sld [smem:[#allocation0]]
  $region41: #{resnet1d_forward.8} parent=0
    _
  %s5 = ssub.s32 1, %s3
  %s6 = scalar_select 0, %s5, %s3
  loop: start=0, step=1, limit=4
  $region2: #{resnet1d_forward.8} parent=0 // loop_pre_header
    _
  $region3: #{resnet1d_forward.8} parent=0 // loop_header
    %s8 = sphi 0, %s12
    %p9 = scmp.ge.s32.totalorder %s8, 4
    %s18 = sphi 0, %s20
    %s21 = sphi 0, %s18
    %s22 = sphi 0, %s21
    %s38 = sphi 0, %s22
    %s44 = sphi 0, %s46
    %s47 = sphi 0, %s44
    %s48 = sphi 0, %s47
    %s64 = sphi 0, %s48
    %s70 = sphi 0, %s72
    %s73 = sphi 0, %s70
    %s74 = sphi 0, %s73
    %s90 = sphi 0, %s74
  $region4: #{resnet1d_forward.8} parent=0 // loop_header_branch
    %11 = sbr.rel (%p9) target = $region8
  $region5: #{resnet1d_forward.8} parent=0 // loop_body
    %s13 = ssub.s32 %s8, 1
    %s14 = ssub.s32 %s8, 2
    %s15 = sadd.s32 %s8, 1
    %s16 = ssub.s32 %s8, %s15
    %p17 = scmp.eq.s32.totalorder %s16, 0
    %s19 = sadd.s32 %s18, 1
    %s20 = scalar_select %p17, %s18, %s19
    %p23 = pneg %p17
    %p24 = scmp.eq.s32.totalorder %s8, 1
    %p25 = por %p23, %p24
    %p26 = scmp.ne.s32.totalorder %s18, %s21
    %p27 = scmp.eq.s32.totalorder %s8, 0
    %p28 = por %p26, %p27
    %p29 = scmp.ne.s32.totalorder %s18, %s21
    %p30 = scmp.eq.s32.totalorder %s13, 1
    %p31 = por %p29, %p30
    %p32 = scmp.ne.s32.totalorder %s21, %s22
    %p33 = scmp.eq.s32.totalorder %s13, 0
    %p34 = por %p32, %p33
    %p35 = scmp.ne.s32.totalorder %s21, %s22
    %p36 = scmp.eq.s32.totalorder %s14, 1
    %p37 = por %p35, %p36
    %p39 = scmp.ne.s32.totalorder %s22, %s38
    %p40 = scmp.eq.s32.totalorder %s14, 0
    %p41 = por %p39, %p40
    %s42 = ssub.s32 %s8, %s15
    %p43 = scmp.eq.s32.totalorder %s42, 0
    %s45 = sadd.s32 %s44, 1
    %s46 = scalar_select %p43, %s44, %s45
    %p49 = pneg %p43
    %p50 = scmp.eq.s32.totalorder %s8, 1
    %p51 = por %p49, %p50
    %p52 = scmp.ne.s32.totalorder %s44, %s47
    %p53 = scmp.eq.s32.totalorder %s8, 0
    %p54 = por %p52, %p53
    %p55 = scmp.ne.s32.totalorder %s44, %s47
    %p56 = scmp.eq.s32.totalorder %s13, 1
    %p57 = por %p55, %p56
    %p58 = scmp.ne.s32.totalorder %s47, %s48
    %p59 = scmp.eq.s32.totalorder %s13, 0
    %p60 = por %p58, %p59
    %p61 = scmp.ne.s32.totalorder %s47, %s48
    %p62 = scmp.eq.s32.totalorder %s14, 1
    %p63 = por %p61, %p62
    %p65 = scmp.ne.s32.totalorder %s48, %s64
    %p66 = scmp.eq.s32.totalorder %s14, 0
    %p67 = por %p65, %p66
    %s68 = ssub.s32 %s8, %s15
    %p69 = scmp.eq.s32.totalorder %s68, 0
    %s71 = sadd.s32 %s70, 1
    %s72 = scalar_select %p69, %s70, %s71
    %p75 = pneg %p69
    %p76 = scmp.eq.s32.totalorder %s8, 1
    %p77 = por %p75, %p76
    %p78 = scmp.ne.s32.totalorder %s70, %s73
    %p79 = scmp.eq.s32.totalorder %s8, 0
    %p80 = por %p78, %p79
    %p81 = scmp.ne.s32.totalorder %s70, %s73
    %p82 = scmp.eq.s32.totalorder %s13, 1
    %p83 = por %p81, %p82
    %p84 = scmp.ne.s32.totalorder %s73, %s74
    %p85 = scmp.eq.s32.totalorder %s13, 0
    %p86 = por %p84, %p85
    %p87 = scmp.ne.s32.totalorder %s73, %s74
    %p88 = scmp.eq.s32.totalorder %s14, 1
    %p89 = por %p87, %p88
    %p91 = scmp.ne.s32.totalorder %s74, %s90
    %p92 = scmp.eq.s32.totalorder %s14, 0
    %p93 = por %p91, %p92
    %p94 = scmp.le.s32.totalorder 1, %s8
    %p95 = scmp.lt.s32.totalorder %s8, 3
    %p96 = pnand %p94, %p95
    %p97 = pneg %p96
    // Predicated region
    $region9: #{resnet1d_forward.8} parent=5 // pred_check
      _
    $region10: #{resnet1d_forward.8} parent=5 // pred_check_branch
      %99 = sbr.rel (%p96) target = $region12
    $region11: #{resnet1d_forward.8} parent=5 // pred_region
      %s100 = ssub.s32 %s8, 1
    $region12: #{resnet1d_forward.8} parent=5 // pred_fallthru
      _
    %p101 = scmp.lt.s32.totalorder %s8, 2
    // Predicated region
    $region13: #{resnet1d_forward.8} parent=5 // pred_check
      %p102 = pneg %p101
    $region14: #{resnet1d_forward.8} parent=5 // pred_check_branch
      %104 = sbr.rel (%p102) target = $region16
    $region15: #{resnet1d_forward.8} parent=5 // pred_region
      // Predicated region
      $region17: #{resnet1d_forward.8} parent=15 // pred_check
        %p105 = pneg %p28
      $region18: #{resnet1d_forward.8} parent=15 // pred_check_branch
        %107 = sbr.rel (%p105) target = $region20
      $region19: #{resnet1d_forward.8} parent=15 // pred_region
        %p108 = scmp.lt.s32.totalorder %s8, 1
        %s109 = scalar_select %p108, %s8, 1
        %s110 = smul.addr %s109, 3
        %s111 = smul.addr %s110, 4
        %s112 = scalar_lea.vmem %s0, %s111
      $region20: #{resnet1d_forward.8} parent=15 // pred_fallthru
        _
      // Predicated region
      $region21: #{resnet1d_forward.8} parent=15 // pred_check
        %p113 = pneg %p54
      $region22: #{resnet1d_forward.8} parent=15 // pred_check_branch
        %115 = sbr.rel (%p113) target = $region24
      $region23: #{resnet1d_forward.8} parent=15 // pred_region
        %p116 = scmp.lt.s32.totalorder %s8, 1
        %s117 = scalar_select %p116, %s8, 1
        %s118 = smul.addr %s117, 3
        %s119 = smul.addr %s118, 4
        %s120 = scalar_lea.vmem %s1, %s119
      $region24: #{resnet1d_forward.8} parent=15 // pred_fallthru
        _
    $region16: #{resnet1d_forward.8} parent=5 // pred_fallthru
      _
    %p121 = scmp.le.s32.totalorder 1, %s8
    %p122 = scmp.lt.s32.totalorder %s8, 3
    %p123 = pnand %p121, %p122
    %p124 = pneg %p123
    // Predicated region
    $region25: #{resnet1d_forward.8} parent=5 // pred_check
      _
    $region26: #{resnet1d_forward.8} parent=5 // pred_check_branch
      %126 = sbr.rel (%p123) target = $region28
    $region27: #{resnet1d_forward.8} parent=5 // pred_region
      %s127 = ssub.s32 %s8, 1
      %p128 = scmp.lt.s32.totalorder %s13, 1
      %s129 = scalar_select %p128, %s13, 1
      %s130 = smul.addr %s129, 3
      %s131 = smul.addr %s130, 4
      %s132 = scalar_lea.vmem %s0, %s131
      %p133 = pneg %p34
      %p134 = pneg %p31
      %p135 = scmp.lt.s32.totalorder %s13, 1
      %s136 = scalar_select %p135, %s13, 1
      %s137 = smul.addr %s136, 3
      %s138 = smul.addr %s137, 4
      %s139 = scalar_lea.vmem %s1, %s138
      %p140 = pneg %p60
      %p141 = pneg %p57
      %p142 = pneg %p86
      %p143 = pneg %p83
      %p144 = scmp.lt.s32.totalorder %s13, 1
      %s145 = scalar_select %p144, %s13, 1
      %s146 = smul.addr %s145, 2
      %s147 = smul.addr %s146, 4
      %s148 = scalar_lea.vmem %s2, %s147
      %p149 = scmp.lt.s32.totalorder %s13, 1
      %s150 = scalar_select %p149, %s13, 1
      %s151 = smul.addr %s150, 3
      %s152 = smul.addr %s151, 4
      %s153 = scalar_lea.vmem %s0, %s152
      %p154 = scmp.lt.s32.totalorder %s13, 1
      %s155 = scalar_select %p154, %s13, 1
      %s156 = smul.addr %s155, 3
      %s157 = smul.addr %s156, 4
      %s158 = scalar_lea.vmem %s1, %s157
      %p159 = scmp.lt.s32.totalorder %s13, 1
      %s160 = scalar_select %p159, %s13, 1
      %s161 = smul.addr %s160, 2
      %s162 = smul.addr %s161, 4
      %s163 = scalar_lea.vmem %s2, %s162
      %v164 = vld [vmem:[%s153] sm:$0xf]
      %v165 = vld [vmem:[%s153 + $0x4] sm:$0xf]
      %v166 = vld [vmem:[%s158] sm:$0xf]
      %v167 = vld [vmem:[%s158 + $0x4] sm:$0xf]
      %v168 = vunpack.c.l.bf16 %v164
      %v169 = vunpack.c.l.bf16 %v165
      %v170 = vunpack.c.l.bf16 %v166
      %v171 = vunpack.c.l.bf16 %v167
      %v172 = vmax.f32 %v168, %v170
      %v173 = vmax.f32 %v169, %v171
      %v174 = vpack.c.bf16 %v172, %v172
      %v175 = vpack.c.bf16 %v173, %v173
      %v176 = vld [vmem:[%s153 + $0x8] sm:$0x1]
      %v177 = vunpack.c.l.bf16 %v174
      %v178 = vunpack.c.l.bf16 %v175
      %v179 = vunpack.c.l.bf16 %v176
      %vm183 = vcmask 1046528
      %v184 = vrot.slane %v168, 1
      %v185 = vrot.slane %v169, 1
      %v186 = vsel %vm183, %v184, %v185
      %v187 = vrot.slane %v179, 1
      %v188 = vsel %vm183, %v185, %v187
      %v191 = vmax.f32 %v177, %v186
      %v192 = vmax.f32 %v178, %v188
      %v193 = vpack.c.bf16 %v191, %v191
      %v194 = vpack.c.bf16 %v192, %v192
      %vm195 = vcmask 519168
      %196 = vst.msk [vmem:[%s163] sm:$0xf] %vm195, %v193
      %197 = vst.msk [vmem:[%s163 + $0x4] sm:$0xf] %vm195, %v194
      %p198 = scmp.lt.s32.totalorder %s13, 1
      %s199 = scalar_select %p198, %s13, 1
      %s200 = smul.addr %s199, 2
      %s201 = smul.addr %s200, 4
      %s202 = scalar_lea.vmem %s2, %s201
      // Predicated region
      $region29: #{resnet1d_forward.8} parent=27 // pred_check
        %p203 = pneg %p83
      $region30: #{resnet1d_forward.8} parent=27 // pred_check_branch
        %205 = sbr.rel (%p203) target = $region32
      $region31: #{resnet1d_forward.8} parent=27 // pred_region
        _
      $region32: #{resnet1d_forward.8} parent=27 // pred_fallthru
        _
    $region28: #{resnet1d_forward.8} parent=5 // pred_fallthru
      _
    %p206 = scmp.le.s32.totalorder 2, %s8
    // Predicated region
    $region33: #{resnet1d_forward.8} parent=5 // pred_check
      %p207 = pneg %p206
    $region34: #{resnet1d_forward.8} parent=5 // pred_check_branch
      %209 = sbr.rel (%p207) target = $region36
    $region35: #{resnet1d_forward.8} parent=5 // pred_region
      %s210 = ssub.s32 %s8, 2
      // Predicated region
      $region37: #{resnet1d_forward.8} parent=35 // pred_check
        %p211 = pneg %p89
      $region38: #{resnet1d_forward.8} parent=35 // pred_check_branch
        %213 = sbr.rel (%p211) target = $region40
      $region39: #{resnet1d_forward.8} parent=35 // pred_region
        %p214 = scmp.lt.s32.totalorder %s14, 1
        %s215 = scalar_select %p214, %s14, 1
        %s216 = smul.addr %s215, 2
        %s217 = smul.addr %s216, 4
        %s218 = scalar_lea.vmem %s2, %s217
      $region40: #{resnet1d_forward.8} parent=35 // pred_fallthru
        _
    $region36: #{resnet1d_forward.8} parent=5 // pred_fallthru
      _
  $region6: #{resnet1d_forward.8} parent=0 // loop_footer
    %s12 = sadd.s32 1, %s8
  $region7: #{resnet1d_forward.8} parent=0 // loop_footer_branch
    %7 = sbr.rel target = $region3
  $region8: #{resnet1d_forward.8} parent=0 // loop_exit
    _

// kernel: resnet1d_forward.7
$region0: #{resnet1d_forward.7}
  #allocation0 [shape = 'u32[]', space=smem, size = 0x4, offset = 0x4, fixed_abs, tag = 'smem constant byte address 0x4 - core index']
  #allocation1 [shape = 'u32[72,128]{1,0:T(1,128)}', space=vmem, size = 0x9000, scoped, tag = 'internal scratch']
  %s0 = inlined_call_operand.vmem [shape: bf16[2,35,12], index: 0, kind: input, shape index: {}]
  %s1 = inlined_call_operand.vmem [shape: bf16[2,35,12], index: 1, kind: input, shape index: {}]
  %s2 = inlined_call_operand.vmem [shape: bf16[7,12,64], index: 2, kind: input, shape index: {}]
  %s3 = inlined_call_operand.hbm [shape: f32[1,64], index: 3, kind: input, shape index: {}]
  %s4 = inlined_call_operand.vmem [shape: bf16[2,32,64], index: 4, kind: output, shape index: {}]
  %s5 = sld [smem:[#allocation0]]
  $region53: #{resnet1d_forward.7} parent=0
    _
  %s7 = ssub.s32 1, %s5
  %s8 = scalar_select 0, %s7, %s5
  $region1: #{resnet1d_forward.7} parent=0
    #allocation2 [shape = 'u8[512]{0}', space=vmem, size = 0x400, scoped, tag = 'input window, operand 3, single buffered']
    #allocation3 [shape = 's32[2]{0}', space=sflag, size = 0x8, scoped, tag = 'scoped memory for resnet1d_forward.7']
    %9 = vsyncpa [#allocation3], 0
    loop: start=0, step=1, limit=4
    $region2: #{resnet1d_forward.7} parent=1 // loop_pre_header
      _
    $region3: #{resnet1d_forward.7} parent=1 // loop_header
      %s11 = sphi 0, %s15
      %p12 = scmp.ge.s32.totalorder %s11, 4
      %s21 = sphi 0, %s23
      %s24 = sphi 0, %s21
      %s25 = sphi 0, %s24
      %s41 = sphi 0, %s25
      %s47 = sphi 0, %s49
      %s50 = sphi 0, %s47
      %s51 = sphi 0, %s50
      %s67 = sphi 0, %s51
      %s71 = sphi 0, %s71
      %s73 = sphi 0, %s71
      %s74 = sphi 0, %s73
      %s88 = sphi 0, %s74
      %s92 = sphi 0, %s92
      %s94 = sphi 0, %s92
      %s95 = sphi 0, %s94
      %s109 = sphi 0, %s95
      %s115 = sphi 0, %s117
      %s118 = sphi 0, %s115
      %s119 = sphi 0, %s118
      %s135 = sphi 0, %s119
    $region4: #{resnet1d_forward.7} parent=1 // loop_header_branch
      %14 = sbr.rel (%p12) target = $region8
    $region5: #{resnet1d_forward.7} parent=1 // loop_body
      %s16 = ssub.s32 %s11, 1
      %s17 = ssub.s32 %s11, 2
      %s18 = sadd.s32 %s11, 1
      %s19 = ssub.s32 %s11, %s18
      %p20 = scmp.eq.s32.totalorder %s19, 0
      %s22 = sadd.s32 %s21, 1
      %s23 = scalar_select %p20, %s21, %s22
      %p26 = pneg %p20
      %p27 = scmp.eq.s32.totalorder %s11, 1
      %p28 = por %p26, %p27
      %p29 = scmp.ne.s32.totalorder %s21, %s24
      %p30 = scmp.eq.s32.totalorder %s11, 0
      %p31 = por %p29, %p30
      %p32 = scmp.ne.s32.totalorder %s21, %s24
      %p33 = scmp.eq.s32.totalorder %s16, 1
      %p34 = por %p32, %p33
      %p35 = scmp.ne.s32.totalorder %s24, %s25
      %p36 = scmp.eq.s32.totalorder %s16, 0
      %p37 = por %p35, %p36
      %p38 = scmp.ne.s32.totalorder %s24, %s25
      %p39 = scmp.eq.s32.totalorder %s17, 1
      %p40 = por %p38, %p39
      %p42 = scmp.ne.s32.totalorder %s25, %s41
      %p43 = scmp.eq.s32.totalorder %s17, 0
      %p44 = por %p42, %p43
      %s45 = ssub.s32 %s11, %s18
      %p46 = scmp.eq.s32.totalorder %s45, 0
      %s48 = sadd.s32 %s47, 1
      %s49 = scalar_select %p46, %s47, %s48
      %p52 = pneg %p46
      %p53 = scmp.eq.s32.totalorder %s11, 1
      %p54 = por %p52, %p53
      %p55 = scmp.ne.s32.totalorder %s47, %s50
      %p56 = scmp.eq.s32.totalorder %s11, 0
      %p57 = por %p55, %p56
      %p58 = scmp.ne.s32.totalorder %s47, %s50
      %p59 = scmp.eq.s32.totalorder %s16, 1
      %p60 = por %p58, %p59
      %p61 = scmp.ne.s32.totalorder %s50, %s51
      %p62 = scmp.eq.s32.totalorder %s16, 0
      %p63 = por %p61, %p62
      %p64 = scmp.ne.s32.totalorder %s50, %s51
      %p65 = scmp.eq.s32.totalorder %s17, 1
      %p66 = por %p64, %p65
      %p68 = scmp.ne.s32.totalorder %s51, %s67
      %p69 = scmp.eq.s32.totalorder %s17, 0
      %p70 = por %p68, %p69
      %s72 = sadd.s32 %s71, 1
      %p75 = scmp.eq.s32.totalorder %s11, 1
      %p76 = scmp.ne.s32.totalorder %s71, %s73
      %p77 = scmp.eq.s32.totalorder %s11, 0
      %p78 = por %p76, %p77
      %p79 = scmp.ne.s32.totalorder %s71, %s73
      %p80 = scmp.eq.s32.totalorder %s16, 1
      %p81 = por %p79, %p80
      %p82 = scmp.ne.s32.totalorder %s73, %s74
      %p83 = scmp.eq.s32.totalorder %s16, 0
      %p84 = por %p82, %p83
      %p85 = scmp.ne.s32.totalorder %s73, %s74
      %p86 = scmp.eq.s32.totalorder %s17, 1
      %p87 = por %p85, %p86
      %p89 = scmp.ne.s32.totalorder %s74, %s88
      %p90 = scmp.eq.s32.totalorder %s17, 0
      %p91 = por %p89, %p90
      %s93 = sadd.s32 %s92, 1
      %p96 = scmp.eq.s32.totalorder %s11, 1
      %p97 = scmp.ne.s32.totalorder %s92, %s94
      %p98 = scmp.eq.s32.totalorder %s11, 0
      %p99 = por %p97, %p98
      %p100 = scmp.ne.s32.totalorder %s92, %s94
      %p101 = scmp.eq.s32.totalorder %s16, 1
      %p102 = por %p100, %p101
      %p103 = scmp.ne.s32.totalorder %s94, %s95
      %p104 = scmp.eq.s32.totalorder %s16, 0
      %p105 = por %p103, %p104
      %p106 = scmp.ne.s32.totalorder %s94, %s95
      %p107 = scmp.eq.s32.totalorder %s17, 1
      %p108 = por %p106, %p107
      %p110 = scmp.ne.s32.totalorder %s95, %s109
      %p111 = scmp.eq.s32.totalorder %s17, 0
      %p112 = por %p110, %p111
      %s113 = ssub.s32 %s11, %s18
      %p114 = scmp.eq.s32.totalorder %s113, 0
      %s116 = sadd.s32 %s115, 1
      %s117 = scalar_select %p114, %s115, %s116
      %p120 = pneg %p114
      %p121 = scmp.eq.s32.totalorder %s11, 1
      %p122 = por %p120, %p121
      %p123 = scmp.ne.s32.totalorder %s115, %s118
      %p124 = scmp.eq.s32.totalorder %s11, 0
      %p125 = por %p123, %p124
      %p126 = scmp.ne.s32.totalorder %s115, %s118
      %p127 = scmp.eq.s32.totalorder %s16, 1
      %p128 = por %p126, %p127
      %p129 = scmp.ne.s32.totalorder %s118, %s119
      %p130 = scmp.eq.s32.totalorder %s16, 0
      %p131 = por %p129, %p130
      %p132 = scmp.ne.s32.totalorder %s118, %s119
      %p133 = scmp.eq.s32.totalorder %s17, 1
      %p134 = por %p132, %p133
      %p136 = scmp.ne.s32.totalorder %s119, %s135
      %p137 = scmp.eq.s32.totalorder %s17, 0
      %p138 = por %p136, %p137
      %p139 = scmp.le.s32.totalorder 1, %s11
      %p140 = scmp.lt.s32.totalorder %s11, 3
      %p141 = pnand %p139, %p140
      %p142 = pneg %p141
      // Predicated region
      $region9: #{resnet1d_forward.7} parent=5 // pred_check
        _
      $region10: #{resnet1d_forward.7} parent=5 // pred_check_branch
        %144 = sbr.rel (%p141) target = $region12
      $region11: #{resnet1d_forward.7} parent=5 // pred_region
        %s145 = ssub.s32 %s11, 1
        // Predicated region
        $region13: #{resnet1d_forward.7} parent=11 // pred_check
          %p146 = pneg %p84
        $region14: #{resnet1d_forward.7} parent=11 // pred_check_branch
          %148 = sbr.rel (%p146) target = $region16
        $region15: #{resnet1d_forward.7} parent=11 // pred_region
          _
        $region16: #{resnet1d_forward.7} parent=11 // pred_fallthru
          _
        // Predicated region
        $region17: #{resnet1d_forward.7} parent=11 // pred_check
          %p149 = pneg %p105
        $region18: #{resnet1d_forward.7} parent=11 // pred_check_branch
          %151 = sbr.rel (%p149) target = $region20
        $region19: #{resnet1d_forward.7} parent=11 // pred_region
          %153 = vsyncadd [#allocation3], 0
          %s155 = sshll.u32 %s3, 4
          %s156 = int_to_ptr.hbm [resolvable:$true] %s155
          %s157 = sshll.u32 [#allocation2], 4
          %s158 = int_to_ptr.vmem [resolvable:$true] %s157
          %160 = dma.hbm_to_vmem [thread:$0]  %s156, 16, %s158, [#allocation3]
        $region20: #{resnet1d_forward.7} parent=11 // pred_fallthru
          _
      $region12: #{resnet1d_forward.7} parent=5 // pred_fallthru
        _
      %p161 = scmp.lt.s32.totalorder %s11, 2
      // Predicated region
      $region21: #{resnet1d_forward.7} parent=5 // pred_check
        %p162 = pneg %p161
      $region22: #{resnet1d_forward.7} parent=5 // pred_check_branch
        %164 = sbr.rel (%p162) target = $region24
      $region23: #{resnet1d_forward.7} parent=5 // pred_region
        // Predicated region
        $region25: #{resnet1d_forward.7} parent=23 // pred_check
          %p165 = pneg %p31
        $region26: #{resnet1d_forward.7} parent=23 // pred_check_branch
          %167 = sbr.rel (%p165) target = $region28
        $region27: #{resnet1d_forward.7} parent=23 // pred_region
          %p168 = scmp.lt.s32.totalorder %s11, 1
          %s169 = scalar_select %p168, %s11, 1
          %s170 = smul.addr %s169, 5
          %s171 = smul.addr %s170, 4
          %s172 = scalar_lea.vmem %s0, %s171
        $region28: #{resnet1d_forward.7} parent=23 // pred_fallthru
          _
        // Predicated region
        $region29: #{resnet1d_forward.7} parent=23 // pred_check
          %p173 = pneg %p57
        $region30: #{resnet1d_forward.7} parent=23 // pred_check_branch
          %175 = sbr.rel (%p173) target = $region32
        $region31: #{resnet1d_forward.7} parent=23 // pred_region
          %p176 = scmp.lt.s32.totalorder %s11, 1
          %s177 = scalar_select %p176, %s11, 1
          %s178 = smul.addr %s177, 5
          %s179 = smul.addr %s178, 4
          %s180 = scalar_lea.vmem %s1, %s179
        $region32: #{resnet1d_forward.7} parent=23 // pred_fallthru
          _
      $region24: #{resnet1d_forward.7} parent=5 // pred_fallthru
        _
      %p181 = scmp.le.s32.totalorder 1, %s11
      %p182 = scmp.lt.s32.totalorder %s11, 3
      %p183 = pnand %p181, %p182
      %p184 = pneg %p183
      // Predicated region
      $region33: #{resnet1d_forward.7} parent=5 // pred_check
        _
      $region34: #{resnet1d_forward.7} parent=5 // pred_check_branch
        %186 = sbr.rel (%p183) target = $region36
      $region35: #{resnet1d_forward.7} parent=5 // pred_region
        %s187 = ssub.s32 %s11, 1
        // Predicated region
        $region37: #{resnet1d_forward.7} parent=35 // pred_check
          %p188 = pneg %p105
        $region38: #{resnet1d_forward.7} parent=35 // pred_check_branch
          %190 = sbr.rel (%p188) target = $region40
        $region39: #{resnet1d_forward.7} parent=35 // pred_region
          %192 = dma.done [#allocation3], 16
        $region40: #{resnet1d_forward.7} parent=35 // pred_fallthru
          _
        %p193 = scmp.lt.s32.totalorder %s16, 1
        %s194 = scalar_select %p193, %s16, 1
        %s195 = smul.addr %s194, 5
        %s196 = smul.addr %s195, 4
        %s197 = scalar_lea.vmem %s0, %s196
        %p198 = pneg %p37
        %p199 = pneg %p34
        %p200 = scmp.lt.s32.totalorder %s16, 1
        %s201 = scalar_select %p200, %s16, 1
        %s202 = smul.addr %s201, 5
        %s203 = smul.addr %s202, 4
        %s204 = scalar_lea.vmem %s1, %s203
        %p205 = pneg %p63
        %p206 = pneg %p60
        %p207 = pneg %p84
        %p208 = pneg %p81
        %p209 = pneg %p105
        %p210 = pneg %p102
        %p211 = pneg %p131
        %p212 = pneg %p128
        %p213 = scmp.lt.s32.totalorder %s16, 1
        %s214 = scalar_select %p213, %s16, 1
        %s215 = smul.addr %s214, 4
        %s216 = smul.addr %s215, 4
        %s217 = scalar_lea.vmem %s4, %s216
        %p218 = scmp.lt.s32.totalorder %s16, 1
        %s219 = scalar_select %p218, %s16, 1
        %s220 = smul.addr %s219, 5
        %s221 = smul.addr %s220, 4
        %s222 = scalar_lea.vmem %s0, %s221
        %p223 = scmp.lt.s32.totalorder %s16, 1
        %s224 = scalar_select %p223, %s16, 1
        %s225 = smul.addr %s224, 5
        %s226 = smul.addr %s225, 4
        %s227 = scalar_lea.vmem %s1, %s226
        %p228 = scmp.lt.s32.totalorder %s16, 1
        %s229 = scalar_select %p228, %s16, 1
        %s230 = smul.addr %s229, 4
        %s231 = smul.addr %s230, 4
        %s232 = scalar_lea.vmem %s4, %s231
        %v234 = vld [vmem:[%s222] sm:$0xf]
        %v235 = vld [vmem:[%s222 + $0x4] sm:$0xf]
        %v236 = vld [vmem:[%s222 + $0x8] sm:$0xf]
        %v237 = vld [vmem:[%s222 + $0xc] sm:$0xf]
        %v238 = vld [vmem:[%s2] sm:$0xf]
        %v239 = vld [vmem:[%s2 + $0x4] sm:$0x3]
        %v240 = vld [vmem:[%s227] sm:$0xf]
        %v241 = vld [vmem:[%s227 + $0x4] sm:$0xf]
        %v242 = vld [vmem:[%s227 + $0x8] sm:$0xf]
        %v243 = vld [vmem:[%s227 + $0xc] sm:$0xf]
        %s244 = scalar_lea.vmem %s2, 8
        %v245 = vld [vmem:[%s244] sm:$0xf]
        %v246 = vld [vmem:[%s244 + $0x4] sm:$0x3]
        %v251 = vunpack.c.l.b16 %v240
        %v252 = vunpack.c.l.b16 %v241
        %v253 = vunpack.c.l.b16 %v242
        %v254 = vunpack.c.l.b16 %v243
        %v255 = vpack.c.b16 %v252, %v251
        %v256 = vpack.c.b16 %v254, %v253
        %v259 = vunpack.c.l.b16 %v245
        %v260 = vunpack.c.l.b16 %v246
        %v261 = vpack.c.b16 %v260, %v259
        %vm262 = vcmask 97280
        %v264 = vsel %vm262, %v255, 0
        %v267 = vsel %vm262, %v256, 0
        %vm269 = vcmask 1045504
        %v271 = vsel %vm269, %v261, 0
        %273 = vmatpush.bf16.msra.mxu0 0
        %274 = vmatpush.bf16.msra.mxu0 0
        %275 = vmatpush.bf16.msra.mxu0 0
        %276 = vmatpush.bf16.msra.mxu0 0
        %277 = vmatpush.bf16.msra.mxu0 0
        %278 = vmatpush.bf16.msra.mxu0 0
        %279 = vmatpush.bf16.msra.mxu0 0
        %280 = vmatpush.bf16.msra.mxu0 %v271
        %281 = vmatmul.bf16.gmra.mxu0 %v264
        %v282 = vpop.f32.mrf.mxu0
        %v283 = vadd.f32 0.0, %v282
        %v284 = vpop.f32.mrf.mxu0
        %v285 = vadd.f32 0.0, %v284
        %286 = vmatmul.bf16.gmra.mxu0 %v267
        %v287 = vpop.f32.mrf.mxu0
        %v288 = vadd.f32 0.0, %v287
        %v289 = vpop.f32.mrf.mxu0
        %v290 = vadd.f32 0.0, %v289
        %291 = vdwg.mxu0
        %v296 = vunpack.c.l.b16 %v234
        %v297 = vunpack.c.l.b16 %v235
        %v298 = vunpack.c.l.b16 %v236
        %v299 = vunpack.c.l.b16 %v237
        %v300 = vpack.c.b16 %v297, %v296
        %v301 = vpack.c.b16 %v299, %v298
        %v304 = vunpack.c.l.b16 %v238
        %v305 = vunpack.c.l.b16 %v239
        %v306 = vpack.c.b16 %v305, %v304
        %v308 = vsel %vm262, %v300, 0
        %v311 = vsel %vm262, %v301, 0
        %v314 = vsel %vm269, %v306, 0
        %316 = vmatpush.bf16.msra.mxu0 0
        %317 = vmatpush.bf16.msra.mxu0 0
        %318 = vmatpush.bf16.msra.mxu0 0
        %319 = vmatpush.bf16.msra.mxu0 0
        %320 = vmatpush.bf16.msra.mxu0 0
        %321 = vmatpush.bf16.msra.mxu0 0
        %322 = vmatpush.bf16.msra.mxu0 0
        %323 = vmatpush.bf16.msra.mxu0 %v314
        %324 = vmatmul.bf16.gmra.mxu0 %v308
        %v325 = vpop.f32.mrf.mxu0
        %v326 = vadd.f32 %v283, %v325
        %v327 = vpop.f32.mrf.mxu0
        %v328 = vadd.f32 %v285, %v327
        %329 = vmatmul.bf16.gmra.mxu0 %v311
        %v330 = vpop.f32.mrf.mxu0
        %v331 = vadd.f32 %v288, %v330
        %v332 = vpop.f32.mrf.mxu0
        %v333 = vadd.f32 %v290, %v332
        %334 = vdwg.mxu0
        %v335 = vld [vmem:[%s222] sm:$0xf]
        %v336 = vld [vmem:[%s222 + $0x4] sm:$0xf]
        %v337 = vld [vmem:[%s222 + $0x8] sm:$0xf]
        %v338 = vld [vmem:[%s222 + $0xc] sm:$0xf]
        %v339 = vld [vmem:[%s222 + $0x10] sm:$0x1]
        %s340 = scalar_lea.vmem %s2, 16
        %v341 = vld [vmem:[%s340] sm:$0xf]
        %v342 = vld [vmem:[%s340 + $0x4] sm:$0x3]
        %v348 = vunpack.c.l.b16 %v335
        %v349 = vunpack.c.l.b16 %v336
        %v350 = vunpack.c.l.b16 %v337
        %v351 = vunpack.c.l.b16 %v338
        %v352 = vunpack.c.l.b16 %v339
        %v353 = vpack.c.b16 %v349, %v348
        %v354 = vpack.c.b16 %v351, %v350
        %v355 = vpack.c.b16 %v352, %v352
        %vm356 = vsmask.f32 7424
        %v358 = vshrl.u32 %v353, 16
        %v360 = vshll.u32 %v353, 16
        %v362 = vrot.slane %v360, 1
        %v363 = vor.u32 %v358, %v362
        %v365 = vshll.u32 %v354, 16
        %v367 = vrot.slane %v365, 1
        %v368 = vsel %vm356, %v363, %v367
        %v369 = vshrl.u32 %v354, 16
        %v371 = vor.u32 %v369, %v367
        %v373 = vshll.u32 %v355, 16
        %v375 = vrot.slane %v373, 1
        %v376 = vsel %vm356, %v371, %v375
        %v379 = vunpack.c.l.b16 %v341
        %v380 = vunpack.c.l.b16 %v342
        %v381 = vpack.c.b16 %v380, %v379
        %v383 = vsel %vm262, %v368, 0
        %v386 = vsel %vm262, %v376, 0
        %v389 = vsel %vm269, %v381, 0
        %391 = vmatpush.bf16.msra.mxu0 0
        %392 = vmatpush.bf16.msra.mxu0 0
        %393 = vmatpush.bf16.msra.mxu0 0
        %394 = vmatpush.bf16.msra.mxu0 0
        %395 = vmatpush.bf16.msra.mxu0 0
        %396 = vmatpush.bf16.msra.mxu0 0
        %397 = vmatpush.bf16.msra.mxu0 0
        %398 = vmatpush.bf16.msra.mxu0 %v389
        %399 = vmatmul.bf16.gmra.mxu0 %v383
        %v400 = vpop.f32.mrf.mxu0
        %v401 = vadd.f32 0.0, %v400
        %v402 = vpop.f32.mrf.mxu0
        %v403 = vadd.f32 0.0, %v402
        %404 = vmatmul.bf16.gmra.mxu0 %v386
        %v405 = vpop.f32.mrf.mxu0
        %v406 = vadd.f32 0.0, %v405
        %v407 = vpop.f32.mrf.mxu0
        %v408 = vadd.f32 0.0, %v407
        %409 = vdwg.mxu0
        %v410 = vadd.f32 %v326, %v401
        %v411 = vadd.f32 %v328, %v403
        %v412 = vadd.f32 %v331, %v406
        %v413 = vadd.f32 %v333, %v408
        %v414 = vld [vmem:[%s227] sm:$0xf]
        %v415 = vld [vmem:[%s227 + $0x4] sm:$0xf]
        %v416 = vld [vmem:[%s227 + $0x8] sm:$0xf]
        %v417 = vld [vmem:[%s227 + $0xc] sm:$0xf]
        %v418 = vld [vmem:[%s227 + $0x10] sm:$0x1]
        %s419 = scalar_lea.vmem %s2, 24
        %v420 = vld [vmem:[%s419] sm:$0xf]
        %v421 = vld [vmem:[%s419 + $0x4] sm:$0x3]
        %v427 = vunpack.c.l.b16 %v414
        %v428 = vunpack.c.l.b16 %v415
        %v429 = vunpack.c.l.b16 %v416
        %v430 = vunpack.c.l.b16 %v417
        %v431 = vunpack.c.l.b16 %v418
        %v432 = vpack.c.b16 %v428, %v427
        %v433 = vpack.c.b16 %v430, %v429
        %v434 = vpack.c.b16 %v431, %v431
        %v436 = vshrl.u32 %v432, 16
        %v438 = vshll.u32 %v432, 16
        %v440 = vrot.slane %v438, 1
        %v441 = vor.u32 %v436, %v440
        %v443 = vshll.u32 %v433, 16
        %v445 = vrot.slane %v443, 1
        %v446 = vsel %vm356, %v441, %v445
        %v447 = vshrl.u32 %v433, 16
        %v449 = vor.u32 %v447, %v445
        %v451 = vshll.u32 %v434, 16
        %v453 = vrot.slane %v451, 1
        %v454 = vsel %vm356, %v449, %v453
        %v457 = vunpack.c.l.b16 %v420
        %v458 = vunpack.c.l.b16 %v421
        %v459 = vpack.c.b16 %v458, %v457
        %v461 = vsel %vm262, %v446, 0
        %v464 = vsel %vm262, %v454, 0
        %v467 = vsel %vm269, %v459, 0
        %469 = vmatpush.bf16.msra.mxu0 0
        %470 = vmatpush.bf16.msra.mxu0 0
        %471 = vmatpush.bf16.msra.mxu0 0
        %472 = vmatpush.bf16.msra.mxu0 0
        %473 = vmatpush.bf16.msra.mxu0 0
        %474 = vmatpush.bf16.msra.mxu0 0
        %475 = vmatpush.bf16.msra.mxu0 0
        %476 = vmatpush.bf16.msra.mxu0 %v467
        %477 = vmatmul.bf16.gmra.mxu0 %v461
        %v478 = vpop.f32.mrf.mxu0
        %v479 = vadd.f32 0.0, %v478
        %v480 = vpop.f32.mrf.mxu0
        %v481 = vadd.f32 0.0, %v480
        %482 = vmatmul.bf16.gmra.mxu0 %v464
        %v483 = vpop.f32.mrf.mxu0
        %v484 = vadd.f32 0.0, %v483
        %v485 = vpop.f32.mrf.mxu0
        %v486 = vadd.f32 0.0, %v485
        %487 = vdwg.mxu0
        %v488 = vadd.f32 %v410, %v479
        %v489 = vadd.f32 %v411, %v481
        %v490 = vadd.f32 %v412, %v484
        %v491 = vadd.f32 %v413, %v486
        %v492 = vld [vmem:[%s222] sm:$0xe]
        %s493 = scalar_lea.vmem %s2, 32
        %v494 = vld [vmem:[%s493] sm:$0xf]
        %v495 = vld [vmem:[%s493 + $0x4] sm:$0x3]
        %v497 = vunpack.c.l.b16 %v492
        %v498 = vpack.c.b16 %v349, %v497
        %vm499 = vcmask 1046528
        %v500 = vrot.slane %v498, 1
        %v501 = vrot.slane %v354, 1
        %v502 = vsel %vm499, %v500, %v501
        %v503 = vrot.slane %v355, 1
        %v504 = vsel %vm499, %v501, %v503
        %v507 = vunpack.c.l.b16 %v494
        %v508 = vunpack.c.l.b16 %v495
        %v509 = vpack.c.b16 %v508, %v507
        %v511 = vsel %vm262, %v502, 0
        %v514 = vsel %vm262, %v504, 0
        %v517 = vsel %vm269, %v509, 0
        %519 = vmatpush.bf16.msra.mxu0 0
        %520 = vmatpush.bf16.msra.mxu0 0
        %521 = vmatpush.bf16.msra.mxu0 0
        %522 = vmatpush.bf16.msra.mxu0 0
        %523 = vmatpush.bf16.msra.mxu0 0
        %524 = vmatpush.bf16.msra.mxu0 0
        %525 = vmatpush.bf16.msra.mxu0 0
        %526 = vmatpush.bf16.msra.mxu0 %v517
        %527 = vmatmul.bf16.gmra.mxu0 %v511
        %v528 = vpop.f32.mrf.mxu0
        %v529 = vadd.f32 0.0, %v528
        %v530 = vpop.f32.mrf.mxu0
        %v531 = vadd.f32 0.0, %v530
        %532 = vmatmul.bf16.gmra.mxu0 %v514
        %v533 = vpop.f32.mrf.mxu0
        %v534 = vadd.f32 0.0, %v533
        %v535 = vpop.f32.mrf.mxu0
        %v536 = vadd.f32 0.0, %v535
        %537 = vdwg.mxu0
        %v538 = vadd.f32 %v488, %v529
        %v539 = vadd.f32 %v489, %v531
        %v540 = vadd.f32 %v490, %v534
        %v541 = vadd.f32 %v491, %v536
        %v542 = vld [vmem:[%s227] sm:$0xe]
        %s543 = scalar_lea.vmem %s2, 40
        %v544 = vld [vmem:[%s543] sm:$0xf]
        %v545 = vld [vmem:[%s543 + $0x4] sm:$0x3]
        %v547 = vunpack.c.l.b16 %v542
        %v548 = vpack.c.b16 %v428, %v547
        %v549 = vrot.slane %v548, 1
        %v550 = vrot.slane %v433, 1
        %v551 = vsel %vm499, %v549, %v550
        %v552 = vrot.slane %v434, 1
        %v553 = vsel %vm499, %v550, %v552
        %v556 = vunpack.c.l.b16 %v544
        %v557 = vunpack.c.l.b16 %v545
        %v558 = vpack.c.b16 %v557, %v556
        %v560 = vsel %vm262, %v551, 0
        %v563 = vsel %vm262, %v553, 0
        %v566 = vsel %vm269, %v558, 0
        %568 = vmatpush.bf16.msra.mxu0 0
        %569 = vmatpush.bf16.msra.mxu0 0
        %570 = vmatpush.bf16.msra.mxu0 0
        %571 = vmatpush.bf16.msra.mxu0 0
        %572 = vmatpush.bf16.msra.mxu0 0
        %573 = vmatpush.bf16.msra.mxu0 0
        %574 = vmatpush.bf16.msra.mxu0 0
        %575 = vmatpush.bf16.msra.mxu0 %v566
        %576 = vmatmul.bf16.gmra.mxu0 %v560
        %v577 = vpop.f32.mrf.mxu0
        %v578 = vadd.f32 0.0, %v577
        %v579 = vpop.f32.mrf.mxu0
        %v580 = vadd.f32 0.0, %v579
        %581 = vmatmul.bf16.gmra.mxu0 %v563
        %v582 = vpop.f32.mrf.mxu0
        %v583 = vadd.f32 0.0, %v582
        %v584 = vpop.f32.mrf.mxu0
        %v585 = vadd.f32 0.0, %v584
        %586 = vdwg.mxu0
        %v587 = vadd.f32 %v538, %v578
        %v588 = vadd.f32 %v539, %v580
        %v589 = vadd.f32 %v540, %v583
        %v590 = vadd.f32 %v541, %v585
        %v591 = vld [vmem:[%s222 + $0x10] sm:$0x3]
        %s592 = scalar_lea.vmem %s2, 48
        %v593 = vld [vmem:[%s592] sm:$0xf]
        %v594 = vld [vmem:[%s592 + $0x4] sm:$0x3]
        %v596 = vunpack.c.l.b16 %v591
        %v597 = vpack.c.b16 %v596, %v596
        %vm598 = vsmask.f32 6400
        %v600 = vshrl.u32 %v498, 16
        %v602 = vrot.slane %v600, 1
        %v603 = vshll.u32 %v498, 16
        %v605 = vrot.slane %v603, 2
        %v606 = vor.u32 %v602, %v605
        %v607 = vrot.slane %v369, 1
        %v608 = vrot.slane %v365, 2
        %v609 = vor.u32 %v607, %v608
        %v610 = vsel %vm598, %v606, %v609
        %v612 = vshrl.u32 %v597, 16
        %v614 = vrot.slane %v612, 1
        %v615 = vshll.u32 %v597, 16
        %v617 = vrot.slane %v615, 2
        %v618 = vor.u32 %v614, %v617
        %v619 = vsel %vm598, %v609, %v618
        %v622 = vunpack.c.l.b16 %v593
        %v623 = vunpack.c.l.b16 %v594
        %v624 = vpack.c.b16 %v623, %v622
        %v626 = vsel %vm262, %v610, 0
        %v629 = vsel %vm262, %v619, 0
        %v632 = vsel %vm269, %v624, 0
        %634 = vmatpush.bf16.msra.mxu0 0
        %635 = vmatpush.bf16.msra.mxu0 0
        %636 = vmatpush.bf16.msra.mxu0 0
        %637 = vmatpush.bf16.msra.mxu0 0
        %638 = vmatpush.bf16.msra.mxu0 0
        %639 = vmatpush.bf16.msra.mxu0 0
        %640 = vmatpush.bf16.msra.mxu0 0
        %641 = vmatpush.bf16.msra.mxu0 %v632
        %642 = vmatmul.bf16.gmra.mxu0 %v626
        %v643 = vpop.f32.mrf.mxu0
        %v644 = vadd.f32 0.0, %v643
        %v645 = vpop.f32.mrf.mxu0
        %v646 = vadd.f32 0.0, %v645
        %647 = vmatmul.bf16.gmra.mxu0 %v629
        %v648 = vpop.f32.mrf.mxu0
        %v649 = vadd.f32 0.0, %v648
        %v650 = vpop.f32.mrf.mxu0
        %v651 = vadd.f32 0.0, %v650
        %652 = vdwg.mxu0
        %v653 = vadd.f32 %v587, %v644
        %v654 = vadd.f32 %v588, %v646
        %v655 = vadd.f32 %v589, %v649
        %v656 = vadd.f32 %v590, %v651
        %v657 = vld [vmem:[#allocation2] sm:$0x1]
        %v659 = vperm.slane %v657, 0
        %v661 = vadd.f32 %v653, %v659
        %v662 = vadd.f32 %v654, %v659
        %v663 = vadd.f32 %v655, %v659
        %v664 = vadd.f32 %v656, %v659
        %v665 = vmax.f32 %v661, 0.0
        %v666 = vmax.f32 %v662, 0.0
        %v667 = vmax.f32 %v663, 0.0
        %v668 = vmax.f32 %v664, 0.0
        %v669 = vpack.c.bf16 %v665, %v665
        %v670 = vpack.c.bf16 %v666, %v666
        %v671 = vpack.c.bf16 %v667, %v667
        %v672 = vpack.c.bf16 %v668, %v668
        %vm673 = vcmask 519168
        %674 = vst.msk [vmem:[%s232] sm:$0xf] %vm673, %v669
        %675 = vst.msk [vmem:[%s232 + $0x4] sm:$0xf] %vm673, %v670
        %676 = vst.msk [vmem:[%s232 + $0x8] sm:$0xf] %vm673, %v671
        %677 = vst.msk [vmem:[%s232 + $0xc] sm:$0xf] %vm673, %v672
        %p678 = scmp.lt.s32.totalorder %s16, 1
        %s679 = scalar_select %p678, %s16, 1
        %s680 = smul.addr %s679, 4
        %s681 = smul.addr %s680, 4
        %s682 = scalar_lea.vmem %s4, %s681
        // Predicated region
        $region41: #{resnet1d_forward.7} parent=35 // pred_check
          %p683 = pneg %p128
        $region42: #{resnet1d_forward.7} parent=35 // pred_check_branch
          %685 = sbr.rel (%p683) target = $region44
        $region43: #{resnet1d_forward.7} parent=35 // pred_region
          _
        $region44: #{resnet1d_forward.7} parent=35 // pred_fallthru
          _
      $region36: #{resnet1d_forward.7} parent=5 // pred_fallthru
        _
      %p686 = scmp.le.s32.totalorder 2, %s11
      // Predicated region
      $region45: #{resnet1d_forward.7} parent=5 // pred_check
        %p687 = pneg %p686
      $region46: #{resnet1d_forward.7} parent=5 // pred_check_branch
        %689 = sbr.rel (%p687) target = $region48
      $region47: #{resnet1d_forward.7} parent=5 // pred_region
        %s690 = ssub.s32 %s11, 2
        // Predicated region
        $region49: #{resnet1d_forward.7} parent=47 // pred_check
          %p691 = pneg %p134
        $region50: #{resnet1d_forward.7} parent=47 // pred_check_branch
          %693 = sbr.rel (%p691) target = $region52
        $region51: #{resnet1d_forward.7} parent=47 // pred_region
          %p694 = scmp.lt.s32.totalorder %s17, 1
          %s695 = scalar_select %p694, %s17, 1
          %s696 = smul.addr %s695, 4
          %s697 = smul.addr %s696, 4
          %s698 = scalar_lea.vmem %s4, %s697
        $region52: #{resnet1d_forward.7} parent=47 // pred_fallthru
          _
      $region48: #{resnet1d_forward.7} parent=5 // pred_fallthru
        _
    $region6: #{resnet1d_forward.7} parent=1 // loop_footer
      %s15 = sadd.s32 1, %s11
    $region7: #{resnet1d_forward.7} parent=1 // loop_footer_branch
      %10 = sbr.rel target = $region3
    $region8: #{resnet1d_forward.7} parent=1 // loop_exit
      _
    %699 = vsyncpa [#allocation3], 1
    %s700 = scalar_lea.sflag [#allocation3], 1
    %701 = vsyncpa %s700, 1

// kernel: resnet1d_forward.9
$region0: #{resnet1d_forward.9}
  #allocation0 [shape = 'u32[]', space=smem, size = 0x4, offset = 0x4, fixed_abs, tag = 'smem constant byte address 0x4 - core index']
  #allocation1 [shape = 'u32[72,128]{1,0:T(1,128)}', space=vmem, size = 0x9000, scoped, tag = 'internal scratch']
  #allocation2 [shape = 'f32[18,64]{1,0:T(8,128)}', space=vmem, size = 0x3000, scoped, tag = 'scratch operand']
  %s0 = inlined_call_operand.vmem [shape: bf16[2,18,64], index: 0, kind: input, shape index: {}]
  %s1 = inlined_call_operand.hbm [shape: bf16[3,64,64], index: 1, kind: input, shape index: {}]
  %s2 = inlined_call_operand.hbm [shape: f32[1,64], index: 2, kind: input, shape index: {}]
  %s3 = inlined_call_operand.hbm [shape: bf16[3,64,64], index: 3, kind: input, shape index: {}]
  %s4 = inlined_call_operand.hbm [shape: f32[1,64], index: 4, kind: input, shape index: {}]
  %s5 = inlined_call_operand.vmem [shape: bf16[2,16,64], index: 5, kind: output, shape index: {}]
  %s6 = sld [smem:[#allocation0]]
  $region69: #{resnet1d_forward.9} parent=0
    _
  %s8 = ssub.s32 1, %s6
  %s9 = scalar_select 0, %s8, %s6
  $region1: #{resnet1d_forward.9} parent=0
    #allocation3 [shape = 'u8[49152]{0}', space=vmem, size = 0xc000, scoped, tag = 'input window, operand 1, single buffered']
    #allocation4 [shape = 's32[2]{0}', space=sflag, size = 0x8, scoped, tag = 'scoped memory for resnet1d_forward.9']
    #allocation5 [shape = 'u8[512]{0}', space=vmem, size = 0x400, scoped, tag = 'input window, operand 2, single buffered']
    #allocation6 [shape = 's32[1]{0}', space=sflag, size = 0x4, scoped, tag = 'scoped memory for resnet1d_forward.9']
    #allocation7 [shape = 'u8[49152]{0}', space=vmem, size = 0xc000, scoped, tag = 'input window, operand 3, single buffered']
    #allocation8 [shape = 'u8[512]{0}', space=vmem, size = 0x400, scoped, tag = 'input window, operand 4, single buffered']
    #allocation9 [shape = 's32[1]{0}', space=sflag, size = 0x4, scoped, tag = 'scoped memory for resnet1d_forward.9']
    %10 = vsyncpa [#allocation4], 0
    %11 = vsyncpa [#allocation6], 0
    %12 = vsyncpa [#allocation9], 0
    loop: start=0, step=1, limit=4
    $region2: #{resnet1d_forward.9} parent=1 // loop_pre_header
      _
    $region3: #{resnet1d_forward.9} parent=1 // loop_header
      %s14 = sphi 0, %s18
      %p15 = scmp.ge.s32.totalorder %s14, 4
      %s24 = sphi 0, %s26
      %s27 = sphi 0, %s24
      %s28 = sphi 0, %s27
      %s44 = sphi 0, %s28
      %s48 = sphi 0, %s48
      %s50 = sphi 0, %s48
      %s51 = sphi 0, %s50
      %s65 = sphi 0, %s51
      %s69 = sphi 0, %s69
      %s71 = sphi 0, %s69
      %s72 = sphi 0, %s71
      %s86 = sphi 0, %s72
      %s90 = sphi 0, %s90
      %s92 = sphi 0, %s90
      %s93 = sphi 0, %s92
      %s107 = sphi 0, %s93
      %s111 = sphi 0, %s111
      %s113 = sphi 0, %s111
      %s114 = sphi 0, %s113
      %s128 = sphi 0, %s114
      %s134 = sphi 0, %s136
      %s137 = sphi 0, %s134
      %s138 = sphi 0, %s137
      %s154 = sphi 0, %s138
    $region4: #{resnet1d_forward.9} parent=1 // loop_header_branch
      %17 = sbr.rel (%p15) target = $region8
    $region5: #{resnet1d_forward.9} parent=1 // loop_body
      %s19 = ssub.s32 %s14, 1
      %s20 = ssub.s32 %s14, 2
      %s21 = sadd.s32 %s14, 1
      %s22 = ssub.s32 %s14, %s21
      %p23 = scmp.eq.s32.totalorder %s22, 0
      %s25 = sadd.s32 %s24, 1
      %s26 = scalar_select %p23, %s24, %s25
      %p29 = pneg %p23
      %p30 = scmp.eq.s32.totalorder %s14, 1
      %p31 = por %p29, %p30
      %p32 = scmp.ne.s32.totalorder %s24, %s27
      %p33 = scmp.eq.s32.totalorder %s14, 0
      %p34 = por %p32, %p33
      %p35 = scmp.ne.s32.totalorder %s24, %s27
      %p36 = scmp.eq.s32.totalorder %s19, 1
      %p37 = por %p35, %p36
      %p38 = scmp.ne.s32.totalorder %s27, %s28
      %p39 = scmp.eq.s32.totalorder %s19, 0
      %p40 = por %p38, %p39
      %p41 = scmp.ne.s32.totalorder %s27, %s28
      %p42 = scmp.eq.s32.totalorder %s20, 1
      %p43 = por %p41, %p42
      %p45 = scmp.ne.s32.totalorder %s28, %s44
      %p46 = scmp.eq.s32.totalorder %s20, 0
      %p47 = por %p45, %p46
      %s49 = sadd.s32 %s48, 1
      %p52 = scmp.eq.s32.totalorder %s14, 1
      %p53 = scmp.ne.s32.totalorder %s48, %s50
      %p54 = scmp.eq.s32.totalorder %s14, 0
      %p55 = por %p53, %p54
      %p56 = scmp.ne.s32.totalorder %s48, %s50
      %p57 = scmp.eq.s32.totalorder %s19, 1
      %p58 = por %p56, %p57
      %p59 = scmp.ne.s32.totalorder %s50, %s51
      %p60 = scmp.eq.s32.totalorder %s19, 0
      %p61 = por %p59, %p60
      %p62 = scmp.ne.s32.totalorder %s50, %s51
      %p63 = scmp.eq.s32.totalorder %s20, 1
      %p64 = por %p62, %p63
      %p66 = scmp.ne.s32.totalorder %s51, %s65
      %p67 = scmp.eq.s32.totalorder %s20, 0
      %p68 = por %p66, %p67
      %s70 = sadd.s32 %s69, 1
      %p73 = scmp.eq.s32.totalorder %s14, 1
      %p74 = scmp.ne.s32.totalorder %s69, %s71
      %p75 = scmp.eq.s32.totalorder %s14, 0
      %p76 = por %p74, %p75
      %p77 = scmp.ne.s32.totalorder %s69, %s71
      %p78 = scmp.eq.s32.totalorder %s19, 1
      %p79 = por %p77, %p78
      %p80 = scmp.ne.s32.totalorder %s71, %s72
      %p81 = scmp.eq.s32.totalorder %s19, 0
      %p82 = por %p80, %p81
      %p83 = scmp.ne.s32.totalorder %s71, %s72
      %p84 = scmp.eq.s32.totalorder %s20, 1
      %p85 = por %p83, %p84
      %p87 = scmp.ne.s32.totalorder %s72, %s86
      %p88 = scmp.eq.s32.totalorder %s20, 0
      %p89 = por %p87, %p88
      %s91 = sadd.s32 %s90, 1
      %p94 = scmp.eq.s32.totalorder %s14, 1
      %p95 = scmp.ne.s32.totalorder %s90, %s92
      %p96 = scmp.eq.s32.totalorder %s14, 0
      %p97 = por %p95, %p96
      %p98 = scmp.ne.s32.totalorder %s90, %s92
      %p99 = scmp.eq.s32.totalorder %s19, 1
      %p100 = por %p98, %p99
      %p101 = scmp.ne.s32.totalorder %s92, %s93
      %p102 = scmp.eq.s32.totalorder %s19, 0
      %p103 = por %p101, %p102
      %p104 = scmp.ne.s32.totalorder %s92, %s93
      %p105 = scmp.eq.s32.totalorder %s20, 1
      %p106 = por %p104, %p105
      %p108 = scmp.ne.s32.totalorder %s93, %s107
      %p109 = scmp.eq.s32.totalorder %s20, 0
      %p110 = por %p108, %p109
      %s112 = sadd.s32 %s111, 1
      %p115 = scmp.eq.s32.totalorder %s14, 1
      %p116 = scmp.ne.s32.totalorder %s111, %s113
      %p117 = scmp.eq.s32.totalorder %s14, 0
      %p118 = por %p116, %p117
      %p119 = scmp.ne.s32.totalorder %s111, %s113
      %p120 = scmp.eq.s32.totalorder %s19, 1
      %p121 = por %p119, %p120
      %p122 = scmp.ne.s32.totalorder %s113, %s114
      %p123 = scmp.eq.s32.totalorder %s19, 0
      %p124 = por %p122, %p123
      %p125 = scmp.ne.s32.totalorder %s113, %s114
      %p126 = scmp.eq.s32.totalorder %s20, 1
      %p127 = por %p125, %p126
      %p129 = scmp.ne.s32.totalorder %s114, %s128
      %p130 = scmp.eq.s32.totalorder %s20, 0
      %p131 = por %p129, %p130
      %s132 = ssub.s32 %s14, %s21
      %p133 = scmp.eq.s32.totalorder %s132, 0
      %s135 = sadd.s32 %s134, 1
      %s136 = scalar_select %p133, %s134, %s135
      %p139 = pneg %p133
      %p140 = scmp.eq.s32.totalorder %s14, 1
      %p141 = por %p139, %p140
      %p142 = scmp.ne.s32.totalorder %s134, %s137
      %p143 = scmp.eq.s32.totalorder %s14, 0
      %p144 = por %p142, %p143
      %p145 = scmp.ne.s32.totalorder %s134, %s137
      %p146 = scmp.eq.s32.totalorder %s19, 1
      %p147 = por %p145, %p146
      %p148 = scmp.ne.s32.totalorder %s137, %s138
      %p149 = scmp.eq.s32.totalorder %s19, 0
      %p150 = por %p148, %p149
      %p151 = scmp.ne.s32.totalorder %s137, %s138
      %p152 = scmp.eq.s32.totalorder %s20, 1
      %p153 = por %p151, %p152
      %p155 = scmp.ne.s32.totalorder %s138, %s154
      %p156 = scmp.eq.s32.totalorder %s20, 0
      %p157 = por %p155, %p156
      %p158 = scmp.le.s32.totalorder 1, %s14
      %p159 = scmp.lt.s32.totalorder %s14, 3
      %p160 = pnand %p158, %p159
      %p161 = pneg %p160
      // Predicated region
      $region9: #{resnet1d_forward.9} parent=5 // pred_check
        _
      $region10: #{resnet1d_forward.9} parent=5 // pred_check_branch
        %163 = sbr.rel (%p160) target = $region12
      $region11: #{resnet1d_forward.9} parent=5 // pred_region
        %s164 = ssub.s32 %s14, 1
        // Predicated region
        $region13: #{resnet1d_forward.9} parent=11 // pred_check
          %p165 = pneg %p61
        $region14: #{resnet1d_forward.9} parent=11 // pred_check_branch
          %167 = sbr.rel (%p165) target = $region16
        $region15: #{resnet1d_forward.9} parent=11 // pred_region
          %169 = vsyncadd [#allocation4], 0
          %s170 = sshll.u32 %s1, 4
          %s171 = int_to_ptr.hbm [resolvable:$true] %s170
          %s172 = sshll.u32 [#allocation3], 4
          %s173 = int_to_ptr.vmem [resolvable:$true] %s172
          %178 = dma.hbm_to_vmem [thread:$0]  %s171, 1536, %s173, [#allocation4], 64, 64, 4
        $region16: #{resnet1d_forward.9} parent=11 // pred_fallthru
          _
        // Predicated region
        $region17: #{resnet1d_forward.9} parent=11 // pred_check
          %p179 = pneg %p82
        $region18: #{resnet1d_forward.9} parent=11 // pred_check_branch
          %181 = sbr.rel (%p179) target = $region20
        $region19: #{resnet1d_forward.9} parent=11 // pred_region
          %183 = vsyncadd [#allocation6], 0
          %s185 = sshll.u32 %s2, 4
          %s186 = int_to_ptr.hbm [resolvable:$true] %s185
          %s187 = sshll.u32 [#allocation5], 4
          %s188 = int_to_ptr.vmem [resolvable:$true] %s187
          %190 = dma.hbm_to_vmem [thread:$0]  %s186, 16, %s188, [#allocation6]
        $region20: #{resnet1d_forward.9} parent=11 // pred_fallthru
          _
        // Predicated region
        $region21: #{resnet1d_forward.9} parent=11 // pred_check
          %p191 = pneg %p103
        $region22: #{resnet1d_forward.9} parent=11 // pred_check_branch
          %193 = sbr.rel (%p191) target = $region24
        $region23: #{resnet1d_forward.9} parent=11 // pred_region
          %195 = vsyncadd [#allocation6], 0
          %s196 = sshll.u32 %s3, 4
          %s197 = int_to_ptr.hbm [resolvable:$true] %s196
          %s198 = sshll.u32 [#allocation7], 4
          %s199 = int_to_ptr.vmem [resolvable:$true] %s198
          %204 = dma.hbm_to_vmem [thread:$0]  %s197, 1536, %s199, [#allocation6], 64, 64, 4
        $region24: #{resnet1d_forward.9} parent=11 // pred_fallthru
          _
        // Predicated region
        $region25: #{resnet1d_forward.9} parent=11 // pred_check
          %p205 = pneg %p124
        $region26: #{resnet1d_forward.9} parent=11 // pred_check_branch
          %207 = sbr.rel (%p205) target = $region28
        $region27: #{resnet1d_forward.9} parent=11 // pred_region
          %209 = vsyncadd [#allocation9], 0
          %s211 = sshll.u32 %s4, 4
          %s212 = int_to_ptr.hbm [resolvable:$true] %s211
          %s213 = sshll.u32 [#allocation8], 4
          %s214 = int_to_ptr.vmem [resolvable:$true] %s213
          %216 = dma.hbm_to_vmem [thread:$0]  %s212, 16, %s214, [#allocation9]
        $region28: #{resnet1d_forward.9} parent=11 // pred_fallthru
          _
      $region12: #{resnet1d_forward.9} parent=5 // pred_fallthru
        _
      %p217 = scmp.lt.s32.totalorder %s14, 2
      // Predicated region
      $region29: #{resnet1d_forward.9} parent=5 // pred_check
        %p218 = pneg %p217
      $region30: #{resnet1d_forward.9} parent=5 // pred_check_branch
        %220 = sbr.rel (%p218) target = $region32
      $region31: #{resnet1d_forward.9} parent=5 // pred_region
        // Predicated region
        $region33: #{resnet1d_forward.9} parent=31 // pred_check
          %p221 = pneg %p34
        $region34: #{resnet1d_forward.9} parent=31 // pred_check_branch
          %223 = sbr.rel (%p221) target = $region36
        $region35: #{resnet1d_forward.9} parent=31 // pred_region
          %p224 = scmp.lt.s32.totalorder %s14, 1
          %s225 = scalar_select %p224, %s14, 1
          %s226 = smul.addr %s225, 3
          %s227 = smul.addr %s226, 4
          %s228 = scalar_lea.vmem %s0, %s227
        $region36: #{resnet1d_forward.9} parent=31 // pred_fallthru
          _
      $region32: #{resnet1d_forward.9} parent=5 // pred_fallthru
        _
      %p229 = scmp.le.s32.totalorder 1, %s14
      %p230 = scmp.lt.s32.totalorder %s14, 3
      %p231 = pnand %p229, %p230
      %p232 = pneg %p231
      // Predicated region
      $region37: #{resnet1d_forward.9} parent=5 // pred_check
        _
      $region38: #{resnet1d_forward.9} parent=5 // pred_check_branch
        %234 = sbr.rel (%p231) target = $region40
      $region39: #{resnet1d_forward.9} parent=5 // pred_region
        %s235 = ssub.s32 %s14, 1
        // Predicated region
        $region41: #{resnet1d_forward.9} parent=39 // pred_check
          %p236 = pneg %p61
        $region42: #{resnet1d_forward.9} parent=39 // pred_check_branch
          %238 = sbr.rel (%p236) target = $region44
        $region43: #{resnet1d_forward.9} parent=39 // pred_region
          %240 = dma.done [#allocation4], 1536
        $region44: #{resnet1d_forward.9} parent=39 // pred_fallthru
          _
        // Predicated region
        $region45: #{resnet1d_forward.9} parent=39 // pred_check
          %p241 = pneg %p82
        $region46: #{resnet1d_forward.9} parent=39 // pred_check_branch
          %243 = sbr.rel (%p241) target = $region48
        $region47: #{resnet1d_forward.9} parent=39 // pred_region
          %245 = dma.done [#allocation6], 16
        $region48: #{resnet1d_forward.9} parent=39 // pred_fallthru
          _
        // Predicated region
        $region49: #{resnet1d_forward.9} parent=39 // pred_check
          %p246 = pneg %p103
        $region50: #{resnet1d_forward.9} parent=39 // pred_check_branch
          %248 = sbr.rel (%p246) target = $region52
        $region51: #{resnet1d_forward.9} parent=39 // pred_region
          %250 = dma.done [#allocation6], 1536
        $region52: #{resnet1d_forward.9} parent=39 // pred_fallthru
          _
        // Predicated region
        $region53: #{resnet1d_forward.9} parent=39 // pred_check
          %p251 = pneg %p124
        $region54: #{resnet1d_forward.9} parent=39 // pred_check_branch
          %253 = sbr.rel (%p251) target = $region56
        $region55: #{resnet1d_forward.9} parent=39 // pred_region
          %255 = dma.done [#allocation9], 16
        $region56: #{resnet1d_forward.9} parent=39 // pred_fallthru
          _
        %p256 = scmp.lt.s32.totalorder %s19, 1
        %s257 = scalar_select %p256, %s19, 1
        %s258 = smul.addr %s257, 3
        %s259 = smul.addr %s258, 4
        %s260 = scalar_lea.vmem %s0, %s259
        %p261 = pneg %p40
        %p262 = pneg %p37
        %p263 = pneg %p61
        %p264 = pneg %p58
        %p265 = pneg %p82
        %p266 = pneg %p79
        %p267 = pneg %p103
        %p268 = pneg %p100
        %p269 = pneg %p124
        %p270 = pneg %p121
        %p271 = pneg %p150
        %p272 = pneg %p147
        %p273 = scmp.lt.s32.totalorder %s19, 1
        %s274 = scalar_select %p273, %s19, 1
        %s275 = smul.addr %s274, 2
        %s276 = smul.addr %s275, 4
        %s277 = scalar_lea.vmem %s5, %s276
        %p278 = scmp.lt.s32.totalorder %s19, 1
        %s279 = scalar_select %p278, %s19, 1
        %s280 = smul.addr %s279, 3
        %s281 = smul.addr %s280, 4
        %s282 = scalar_lea.vmem %s0, %s281
        %p283 = scmp.lt.s32.totalorder %s19, 1
        %s284 = scalar_select %p283, %s19, 1
        %s285 = smul.addr %s284, 2
        %s286 = smul.addr %s285, 4
        %s287 = scalar_lea.vmem %s5, %s286
        %v289 = vld [vmem:[%s282] sm:$0xf]
        %v290 = vld [vmem:[%s282 + $0x4] sm:$0xf]
        %v291 = vld [vmem:[#allocation3] sm:$0xf]
        %v292 = vld [vmem:[#allocation3 + $0x4] sm:$0xf]
        %v293 = vld [vmem:[#allocation3 + $0x8] sm:$0xf]
        %v294 = vld [vmem:[#allocation3 + $0xc] sm:$0xf]
        %v295 = vld [vmem:[#allocation3 + $0x10] sm:$0xf]
        %v296 = vld [vmem:[#allocation3 + $0x14] sm:$0xf]
        %v297 = vld [vmem:[#allocation3 + $0x18] sm:$0xf]
        %v298 = vld [vmem:[#allocation3 + $0x1c] sm:$0xf]
        %v299 = vld [vmem:[%s282 + $0x8] sm:$0x1]
        %s300 = scalar_lea.vmem [#allocation3], 32
        %v301 = vld [vmem:[%s300] sm:$0xf]
        %v302 = vld [vmem:[%s300 + $0x4] sm:$0xf]
        %v303 = vld [vmem:[%s300 + $0x8] sm:$0xf]
        %v304 = vld [vmem:[%s300 + $0xc] sm:$0xf]
        %v305 = vld [vmem:[%s300 + $0x10] sm:$0xf]
        %v306 = vld [vmem:[%s300 + $0x14] sm:$0xf]
        %v307 = vld [vmem:[%s300 + $0x18] sm:$0xf]
        %v308 = vld [vmem:[%s300 + $0x1c] sm:$0xf]
        %v312 = vunpack.c.l.b16 %v289
        %v313 = vunpack.c.l.b16 %v290
        %v314 = vunpack.c.l.b16 %v299
        %v315 = vpack.c.b16 %v313, %v312
        %v316 = vpack.c.b16 %v314, %v314
        %vm317 = vsmask.f32 7424
        %v319 = vshrl.u32 %v315, 16
        %v321 = vshll.u32 %v315, 16
        %v323 = vrot.slane %v321, 1
        %v324 = vor.u32 %v319, %v323
        %v326 = vshll.u32 %v316, 16
        %v328 = vrot.slane %v326, 1
        %v329 = vsel %vm317, %v324, %v328
        %v338 = vunpack.c.l.b16 %v301
        %v339 = vunpack.c.l.b16 %v302
        %v340 = vunpack.c.l.b16 %v303
        %v341 = vunpack.c.l.b16 %v304
        %v342 = vunpack.c.l.b16 %v305
        %v343 = vunpack.c.l.b16 %v306
        %v344 = vunpack.c.l.b16 %v307
        %v345 = vunpack.c.l.b16 %v308
        %v346 = vpack.c.b16 %v339, %v338
        %v347 = vpack.c.b16 %v341, %v340
        %v348 = vpack.c.b16 %v343, %v342
        %v349 = vpack.c.b16 %v345, %v344
        %vm354 = vcmask 523264
        %v356 = vsel %vm354, %v329, 0
        %358 = vmatpush.bf16.msra.mxu0 0
        %359 = vmatpush.bf16.msra.mxu0 0
        %360 = vmatpush.bf16.msra.mxu0 0
        %361 = vmatpush.bf16.msra.mxu0 0
        %362 = vmatpush.bf16.msra.mxu0 %v349
        %363 = vmatpush.bf16.msra.mxu0 %v348
        %364 = vmatpush.bf16.msra.mxu0 %v347
        %365 = vmatpush.bf16.msra.mxu0 %v346
        %366 = vmatmul.bf16.gmra.mxu0 %v356
        %v367 = vpop.f32.mrf.mxu0
        %v368 = vadd.f32 0.0, %v367
        %v369 = vpop.f32.mrf.mxu0
        %v370 = vadd.f32 0.0, %v369
        %371 = vdwg.mxu0
        %v380 = vunpack.c.l.b16 %v291
        %v381 = vunpack.c.l.b16 %v292
        %v382 = vunpack.c.l.b16 %v293
        %v383 = vunpack.c.l.b16 %v294
        %v384 = vunpack.c.l.b16 %v295
        %v385 = vunpack.c.l.b16 %v296
        %v386 = vunpack.c.l.b16 %v297
        %v387 = vunpack.c.l.b16 %v298
        %v388 = vpack.c.b16 %v381, %v380
        %v389 = vpack.c.b16 %v383, %v382
        %v390 = vpack.c.b16 %v385, %v384
        %v391 = vpack.c.b16 %v387, %v386
        %v396 = vsel %vm354, %v315, 0
        %398 = vmatpush.bf16.msra.mxu0 0
        %399 = vmatpush.bf16.msra.mxu0 0
        %400 = vmatpush.bf16.msra.mxu0 0
        %401 = vmatpush.bf16.msra.mxu0 0
        %402 = vmatpush.bf16.msra.mxu0 %v391
        %403 = vmatpush.bf16.msra.mxu0 %v390
        %404 = vmatpush.bf16.msra.mxu0 %v389
        %405 = vmatpush.bf16.msra.mxu0 %v388
        %406 = vmatmul.bf16.gmra.mxu0 %v396
        %v407 = vpop.f32.mrf.mxu0
        %v408 = vadd.f32 %v368, %v407
        %v409 = vpop.f32.mrf.mxu0
        %v410 = vadd.f32 %v370, %v409
        %411 = vdwg.mxu0
        %v412 = vld [vmem:[%s282] sm:$0xe]
        %s413 = scalar_lea.vmem [#allocation3], 64
        %v414 = vld [vmem:[%s413] sm:$0xf]
        %v415 = vld [vmem:[%s413 + $0x4] sm:$0xf]
        %v416 = vld [vmem:[%s413 + $0x8] sm:$0xf]
        %v417 = vld [vmem:[%s413 + $0xc] sm:$0xf]
        %v418 = vld [vmem:[%s413 + $0x10] sm:$0xf]
        %v419 = vld [vmem:[%s413 + $0x14] sm:$0xf]
        %v420 = vld [vmem:[%s413 + $0x18] sm:$0xf]
        %v421 = vld [vmem:[%s413 + $0x1c] sm:$0xf]
        %v423 = vunpack.c.l.b16 %v412
        %v424 = vpack.c.b16 %v313, %v423
        %vm425 = vcmask 1046528
        %v426 = vrot.slane %v424, 1
        %v427 = vrot.slane %v316, 1
        %v428 = vsel %vm425, %v426, %v427
        %v437 = vunpack.c.l.b16 %v414
        %v438 = vunpack.c.l.b16 %v415
        %v439 = vunpack.c.l.b16 %v416
        %v440 = vunpack.c.l.b16 %v417
        %v441 = vunpack.c.l.b16 %v418
        %v442 = vunpack.c.l.b16 %v419
        %v443 = vunpack.c.l.b16 %v420
        %v444 = vunpack.c.l.b16 %v421
        %v445 = vpack.c.b16 %v438, %v437
        %v446 = vpack.c.b16 %v440, %v439
        %v447 = vpack.c.b16 %v442, %v441
        %v448 = vpack.c.b16 %v444, %v443
        %v454 = vsel %vm354, %v428, 0
        %456 = vmatpush.bf16.msra.mxu0 0
        %457 = vmatpush.bf16.msra.mxu0 0
        %458 = vmatpush.bf16.msra.mxu0 0
        %459 = vmatpush.bf16.msra.mxu0 0
        %460 = vmatpush.bf16.msra.mxu0 %v448
        %461 = vmatpush.bf16.msra.mxu0 %v447
        %462 = vmatpush.bf16.msra.mxu0 %v446
        %463 = vmatpush.bf16.msra.mxu0 %v445
        %464 = vmatmul.bf16.gmra.mxu0 %v454
        %v465 = vpop.f32.mrf.mxu0
        %v466 = vadd.f32 0.0, %v465
        %v467 = vpop.f32.mrf.mxu0
        %v468 = vadd.f32 0.0, %v467
        %469 = vdwg.mxu0
        %v470 = vadd.f32 %v408, %v466
        %v471 = vadd.f32 %v410, %v468
        %v472 = vld [vmem:[#allocation5] sm:$0x1]
        %v474 = vperm.slane %v472, 0
        %v476 = vadd.f32 %v470, %v474
        %v477 = vadd.f32 %v471, %v474
        %v478 = vmax.f32 %v476, 0.0
        %v479 = vmax.f32 %v477, 0.0
        %480 = vst.msk [vmem:[#allocation2] sm:$0xff] %vm354, 0.0
        %481 = vst.msk [vmem:[#allocation2 + $0x8] sm:$0xff] %vm354, 0.0
        %vm482 = vcmask 517120
        %483 = vst.msk [vmem:[#allocation2 + $0x10] sm:$0x3] %vm482, 0.0
        %484 = vst.msk [vmem:[#allocation2 + $0x1] sm:$0xff] %vm354, %v478
        %485 = vst.msk [vmem:[#allocation2 + $0x9] sm:$0xff] %vm354, %v479
        %v486 = vld [vmem:[#allocation2] sm:$0xff]
        %v487 = vld [vmem:[#allocation2 + $0x8] sm:$0xff]
        %v488 = vld [vmem:[#allocation7] sm:$0xf]
        %v489 = vld [vmem:[#allocation7 + $0x4] sm:$0xf]
        %v490 = vld [vmem:[#allocation7 + $0x8] sm:$0xf]
        %v491 = vld [vmem:[#allocation7 + $0xc] sm:$0xf]
        %v492 = vld [vmem:[#allocation7 + $0x10] sm:$0xf]
        %v493 = vld [vmem:[#allocation7 + $0x14] sm:$0xf]
        %v494 = vld [vmem:[#allocation7 + $0x18] sm:$0xf]
        %v495 = vld [vmem:[#allocation7 + $0x1c] sm:$0xf]
        %v496 = vld [vmem:[#allocation2 + $0x1] sm:$0xff]
        %v497 = vld [vmem:[#allocation2 + $0x9] sm:$0xff]
        %s498 = scalar_lea.vmem [#allocation7], 32
        %v499 = vld [vmem:[%s498] sm:$0xf]
        %v500 = vld [vmem:[%s498 + $0x4] sm:$0xf]
        %v501 = vld [vmem:[%s498 + $0x8] sm:$0xf]
        %v502 = vld [vmem:[%s498 + $0xc] sm:$0xf]
        %v503 = vld [vmem:[%s498 + $0x10] sm:$0xf]
        %v504 = vld [vmem:[%s498 + $0x14] sm:$0xf]
        %v505 = vld [vmem:[%s498 + $0x18] sm:$0xf]
        %v506 = vld [vmem:[%s498 + $0x1c] sm:$0xf]
        %v515 = vunpack.c.l.b16 %v499
        %v516 = vunpack.c.l.b16 %v500
        %v517 = vunpack.c.l.b16 %v501
        %v518 = vunpack.c.l.b16 %v502
        %v519 = vunpack.c.l.b16 %v503
        %v520 = vunpack.c.l.b16 %v504
        %v521 = vunpack.c.l.b16 %v505
        %v522 = vunpack.c.l.b16 %v506
        %v523 = vpack.c.b16 %v516, %v515
        %v524 = vpack.c.b16 %v518, %v517
        %v525 = vpack.c.b16 %v520, %v519
        %v526 = vpack.c.b16 %v522, %v521
        %v532 = vsel %vm354, %v496, 0
        %v535 = vsel %vm354, %v497, 0
        %537 = vmatpush.bf16.msra.mxu0 0
        %538 = vmatpush.bf16.msra.mxu0 0
        %539 = vmatpush.bf16.msra.mxu0 0
        %540 = vmatpush.bf16.msra.mxu0 0
        %541 = vmatpush.bf16.msra.mxu0 %v526
        %542 = vmatpush.bf16.msra.mxu0 %v525
        %543 = vmatpush.bf16.msra.mxu0 %v524
        %544 = vmatpush.bf16.msra.mxu0 %v523
        %545 = vmatmul.f32.gmra.mxu0 %v532
        %v546 = vpop.f32.mrf.mxu0
        %v547 = vadd.f32 0.0, %v546
        %548 = vmatmul.f32.gmra.mxu0 %v535
        %v549 = vpop.f32.mrf.mxu0
        %v550 = vadd.f32 0.0, %v549
        %551 = vdwg.mxu0
        %v560 = vunpack.c.l.b16 %v488
        %v561 = vunpack.c.l.b16 %v489
        %v562 = vunpack.c.l.b16 %v490
        %v563 = vunpack.c.l.b16 %v491
        %v564 = vunpack.c.l.b16 %v492
        %v565 = vunpack.c.l.b16 %v493
        %v566 = vunpack.c.l.b16 %v494
        %v567 = vunpack.c.l.b16 %v495
        %v568 = vpack.c.b16 %v561, %v560
        %v569 = vpack.c.b16 %v563, %v562
        %v570 = vpack.c.b16 %v565, %v564
        %v571 = vpack.c.b16 %v567, %v566
        %v577 = vsel %vm354, %v486, 0
        %v580 = vsel %vm354, %v487, 0
        %582 = vmatpush.bf16.msra.mxu0 0
        %583 = vmatpush.bf16.msra.mxu0 0
        %584 = vmatpush.bf16.msra.mxu0 0
        %585 = vmatpush.bf16.msra.mxu0 0
        %586 = vmatpush.bf16.msra.mxu0 %v571
        %587 = vmatpush.bf16.msra.mxu0 %v570
        %588 = vmatpush.bf16.msra.mxu0 %v569
        %589 = vmatpush.bf16.msra.mxu0 %v568
        %590 = vmatmul.f32.gmra.mxu0 %v577
        %v591 = vpop.f32.mrf.mxu0
        %v592 = vadd.f32 %v547, %v591
        %593 = vmatmul.f32.gmra.mxu0 %v580
        %v594 = vpop.f32.mrf.mxu0
        %v595 = vadd.f32 %v550, %v594
        %596 = vdwg.mxu0
        %v597 = vld [vmem:[#allocation2 + $0x2] sm:$0xff]
        %v598 = vld [vmem:[#allocation2 + $0xa] sm:$0xff]
        %s599 = scalar_lea.vmem [#allocation7], 64
        %v600 = vld [vmem:[%s599] sm:$0xf]
        %v601 = vld [vmem:[%s599 + $0x4] sm:$0xf]
        %v602 = vld [vmem:[%s599 + $0x8] sm:$0xf]
        %v603 = vld [vmem:[%s599 + $0xc] sm:$0xf]
        %v604 = vld [vmem:[%s599 + $0x10] sm:$0xf]
        %v605 = vld [vmem:[%s599 + $0x14] sm:$0xf]
        %v606 = vld [vmem:[%s599 + $0x18] sm:$0xf]
        %v607 = vld [vmem:[%s599 + $0x1c] sm:$0xf]
        %v616 = vunpack.c.l.b16 %v600
        %v617 = vunpack.c.l.b16 %v601
        %v618 = vunpack.c.l.b16 %v602
        %v619 = vunpack.c.l.b16 %v603
        %v620 = vunpack.c.l.b16 %v604
        %v621 = vunpack.c.l.b16 %v605
        %v622 = vunpack.c.l.b16 %v606
        %v623 = vunpack.c.l.b16 %v607
        %v624 = vpack.c.b16 %v617, %v616
        %v625 = vpack.c.b16 %v619, %v618
        %v626 = vpack.c.b16 %v621, %v620
        %v627 = vpack.c.b16 %v623, %v622
        %v633 = vsel %vm354, %v597, 0
        %v636 = vsel %vm354, %v598, 0
        %638 = vmatpush.bf16.msra.mxu0 0
        %639 = vmatpush.bf16.msra.mxu0 0
        %640 = vmatpush.bf16.msra.mxu0 0
        %641 = vmatpush.bf16.msra.mxu0 0
        %642 = vmatpush.bf16.msra.mxu0 %v627
        %643 = vmatpush.bf16.msra.mxu0 %v626
        %644 = vmatpush.bf16.msra.mxu0 %v625
        %645 = vmatpush.bf16.msra.mxu0 %v624
        %646 = vmatmul.f32.gmra.mxu0 %v633
        %v647 = vpop.f32.mrf.mxu0
        %v648 = vadd.f32 0.0, %v647
        %649 = vmatmul.f32.gmra.mxu0 %v636
        %v650 = vpop.f32.mrf.mxu0
        %v651 = vadd.f32 0.0, %v650
        %652 = vdwg.mxu0
        %v653 = vadd.f32 %v592, %v648
        %v654 = vadd.f32 %v595, %v651
        %v655 = vld [vmem:[%s282] sm:$0xf]
        %v656 = vld [vmem:[%s282 + $0x4] sm:$0xf]
        %v657 = vld [vmem:[%s282 + $0x8] sm:$0x1]
        %v658 = vunpack.c.l.bf16 %v655
        %v659 = vunpack.c.l.bf16 %v656
        %v660 = vunpack.c.l.bf16 %v657
        %v661 = vld [vmem:[#allocation8] sm:$0x1]
        %v663 = vperm.slane %v661, 0
        %v665 = vadd.f32 %v653, %v663
        %v666 = vadd.f32 %v654, %v663
        %vm670 = vcmask 1046528
        %v671 = vrot.slane %v658, 1
        %v672 = vrot.slane %v659, 1
        %v673 = vsel %vm670, %v671, %v672
        %v674 = vrot.slane %v660, 1
        %v675 = vsel %vm670, %v672, %v674
        %v678 = vadd.f32 %v665, %v673
        %v679 = vadd.f32 %v666, %v675
        %v680 = vmax.f32 %v678, 0.0
        %v681 = vmax.f32 %v679, 0.0
        %v682 = vpack.c.bf16 %v680, %v680
        %v683 = vpack.c.bf16 %v681, %v681
        %vm684 = vcmask 519168
        %685 = vst.msk [vmem:[%s287] sm:$0xf] %vm684, %v682
        %686 = vst.msk [vmem:[%s287 + $0x4] sm:$0xf] %vm684, %v683
        %p687 = scmp.lt.s32.totalorder %s19, 1
        %s688 = scalar_select %p687, %s19, 1
        %s689 = smul.addr %s688, 2
        %s690 = smul.addr %s689, 4
        %s691 = scalar_lea.vmem %s5, %s690
        // Predicated region
        $region57: #{resnet1d_forward.9} parent=39 // pred_check
          %p692 = pneg %p147
        $region58: #{resnet1d_forward.9} parent=39 // pred_check_branch
          %694 = sbr.rel (%p692) target = $region60
        $region59: #{resnet1d_forward.9} parent=39 // pred_region
          _
        $region60: #{resnet1d_forward.9} parent=39 // pred_fallthru
          _
      $region40: #{resnet1d_forward.9} parent=5 // pred_fallthru
        _
      %p695 = scmp.le.s32.totalorder 2, %s14
      // Predicated region
      $region61: #{resnet1d_forward.9} parent=5 // pred_check
        %p696 = pneg %p695
      $region62: #{resnet1d_forward.9} parent=5 // pred_check_branch
        %698 = sbr.rel (%p696) target = $region64
      $region63: #{resnet1d_forward.9} parent=5 // pred_region
        %s699 = ssub.s32 %s14, 2
        // Predicated region
        $region65: #{resnet1d_forward.9} parent=63 // pred_check
          %p700 = pneg %p153
        $region66: #{resnet1d_forward.9} parent=63 // pred_check_branch
          %702 = sbr.rel (%p700) target = $region68
        $region67: #{resnet1d_forward.9} parent=63 // pred_region
          %p703 = scmp.lt.s32.totalorder %s20, 1
          %s704 = scalar_select %p703, %s20, 1
          %s705 = smul.addr %s704, 2
          %s706 = smul.addr %s705, 4
          %s707 = scalar_lea.vmem %s5, %s706
        $region68: #{resnet1d_forward.9} parent=63 // pred_fallthru
          _
      $region64: #{resnet1d_forward.9} parent=5 // pred_fallthru
        _
    $region6: #{resnet1d_forward.9} parent=1 // loop_footer
      %s18 = sadd.s32 1, %s14
    $region7: #{resnet1d_forward.9} parent=1 // loop_footer_branch
      %13 = sbr.rel target = $region3
    $region8: #{resnet1d_forward.9} parent=1 // loop_exit
      _
    %708 = vsyncpa [#allocation4], 1
    %s709 = scalar_lea.sflag [#allocation4], 1
    %710 = vsyncpa %s709, 1
    %711 = vsyncpa [#allocation6], 1
    %712 = vsyncpa [#allocation9], 1

// kernel: resnet1d_forward.10
$region0: #{resnet1d_forward.10}
  #allocation0 [shape = 'u32[]', space=smem, size = 0x4, offset = 0x4, fixed_abs, tag = 'smem constant byte address 0x4 - core index']
  #allocation1 [shape = 'u32[72,128]{1,0:T(1,128)}', space=vmem, size = 0x9000, scoped, tag = 'internal scratch']
  #allocation2 [shape = 'f32[10,128]{1,0:T(8,128)}', space=vmem, size = 0x2000, scoped, tag = 'scratch operand']
  %s0 = inlined_call_operand.vmem [shape: bf16[2,9,64], index: 0, kind: input, shape index: {}]
  %s1 = inlined_call_operand.vmem [shape: bf16[2,9,64], index: 1, kind: input, shape index: {}]
  %s2 = inlined_call_operand.hbm [shape: bf16[3,64,128], index: 2, kind: input, shape index: {}]
  %s3 = inlined_call_operand.hbm [shape: f32[1,128], index: 3, kind: input, shape index: {}]
  %s4 = inlined_call_operand.hbm [shape: bf16[3,128,128], index: 4, kind: input, shape index: {}]
  %s5 = inlined_call_operand.hbm [shape: f32[1,128], index: 5, kind: input, shape index: {}]
  %s6 = inlined_call_operand.hbm [shape: bf16[1,64,128], index: 6, kind: input, shape index: {}]
  %s7 = inlined_call_operand.hbm [shape: f32[1,128], index: 7, kind: input, shape index: {}]
  %s8 = inlined_call_operand.vmem [shape: bf16[2,8,128], index: 8, kind: output, shape index: {}]
  %s9 = sld [smem:[#allocation0]]
  $region89: #{resnet1d_forward.10} parent=0
    _
  %s11 = ssub.s32 1, %s9
  %s12 = scalar_select 0, %s11, %s9
  $region1: #{resnet1d_forward.10} parent=0
    #allocation3 [shape = 'u8[49152]{0}', space=vmem, size = 0xc000, scoped, tag = 'input window, operand 2, single buffered']
    #allocation4 [shape = 's32[2]{0}', space=sflag, size = 0x8, scoped, tag = 'scoped memory for resnet1d_forward.10']
    #allocation5 [shape = 'u8[512]{0}', space=vmem, size = 0x400, scoped, tag = 'input window, operand 3, single buffered']
    #allocation6 [shape = 's32[1]{0}', space=sflag, size = 0x4, scoped, tag = 'scoped memory for resnet1d_forward.10']
    #allocation7 [shape = 'u8[98304]{0}', space=vmem, size = 0x18000, scoped, tag = 'input window, operand 4, single buffered']
    #allocation8 [shape = 'u8[512]{0}', space=vmem, size = 0x400, scoped, tag = 'input window, operand 5, single buffered']
    #allocation9 [shape = 's32[1]{0}', space=sflag, size = 0x4, scoped, tag = 'scoped memory for resnet1d_forward.10']
    #allocation10 [shape = 'u8[16384]{0}', space=vmem, size = 0x4000, scoped, tag = 'input window, operand 6, single buffered']
    #allocation11 [shape = 'u8[512]{0}', space=vmem, size = 0x400, scoped, tag = 'input window, operand 7, single buffered']
    #allocation12 [shape = 's32[1]{0}', space=sflag, size = 0x4, scoped, tag = 'scoped memory for resnet1d_forward.10']
    %13 = vsyncpa [#allocation4], 0
    %14 = vsyncpa [#allocation6], 0
    %15 = vsyncpa [#allocation9], 0
    %16 = vsyncpa [#allocation12], 0
    loop: start=0, step=1, limit=4
    $region2: #{resnet1d_forward.10} parent=1 // loop_pre_header
      _
    $region3: #{resnet1d_forward.10} parent=1 // loop_header
      %s18 = sphi 0, %s22
      %p19 = scmp.ge.s32.totalorder %s18, 4
      %s28 = sphi 0, %s30
      %s31 = sphi 0, %s28
      %s32 = sphi 0, %s31
      %s48 = sphi 0, %s32
      %s54 = sphi 0, %s56
      %s57 = sphi 0, %s54
      %s58 = sphi 0, %s57
      %s74 = sphi 0, %s58
      %s78 = sphi 0, %s78
      %s80 = sphi 0, %s78
      %s81 = sphi 0, %s80
      %s95 = sphi 0, %s81
      %s99 = sphi 0, %s99
      %s101 = sphi 0, %s99
      %s102 = sphi 0, %s101
      %s116 = sphi 0, %s102
      %s120 = sphi 0, %s120
      %s122 = sphi 0, %s120
      %s123 = sphi 0, %s122
      %s137 = sphi 0, %s123
      %s141 = sphi 0, %s141
      %s143 = sphi 0, %s141
      %s144 = sphi 0, %s143
      %s158 = sphi 0, %s144
      %s162 = sphi 0, %s162
      %s164 = sphi 0, %s162
      %s165 = sphi 0, %s164
      %s179 = sphi 0, %s165
      %s183 = sphi 0, %s183
      %s185 = sphi 0, %s183
      %s186 = sphi 0, %s185
      %s200 = sphi 0, %s186
      %s206 = sphi 0, %s208
      %s209 = sphi 0, %s206
      %s210 = sphi 0, %s209
      %s226 = sphi 0, %s210
    $region4: #{resnet1d_forward.10} parent=1 // loop_header_branch
      %21 = sbr.rel (%p19) target = $region8
    $region5: #{resnet1d_forward.10} parent=1 // loop_body
      %s23 = ssub.s32 %s18, 1
      %s24 = ssub.s32 %s18, 2
      %s25 = sadd.s32 %s18, 1
      %s26 = ssub.s32 %s18, %s25
      %p27 = scmp.eq.s32.totalorder %s26, 0
      %s29 = sadd.s32 %s28, 1
      %s30 = scalar_select %p27, %s28, %s29
      %p33 = pneg %p27
      %p34 = scmp.eq.s32.totalorder %s18, 1
      %p35 = por %p33, %p34
      %p36 = scmp.ne.s32.totalorder %s28, %s31
      %p37 = scmp.eq.s32.totalorder %s18, 0
      %p38 = por %p36, %p37
      %p39 = scmp.ne.s32.totalorder %s28, %s31
      %p40 = scmp.eq.s32.totalorder %s23, 1
      %p41 = por %p39, %p40
      %p42 = scmp.ne.s32.totalorder %s31, %s32
      %p43 = scmp.eq.s32.totalorder %s23, 0
      %p44 = por %p42, %p43
      %p45 = scmp.ne.s32.totalorder %s31, %s32
      %p46 = scmp.eq.s32.totalorder %s24, 1
      %p47 = por %p45, %p46
      %p49 = scmp.ne.s32.totalorder %s32, %s48
      %p50 = scmp.eq.s32.totalorder %s24, 0
      %p51 = por %p49, %p50
      %s52 = ssub.s32 %s18, %s25
      %p53 = scmp.eq.s32.totalorder %s52, 0
      %s55 = sadd.s32 %s54, 1
      %s56 = scalar_select %p53, %s54, %s55
      %p59 = pneg %p53
      %p60 = scmp.eq.s32.totalorder %s18, 1
      %p61 = por %p59, %p60
      %p62 = scmp.ne.s32.totalorder %s54, %s57
      %p63 = scmp.eq.s32.totalorder %s18, 0
      %p64 = por %p62, %p63
      %p65 = scmp.ne.s32.totalorder %s54, %s57
      %p66 = scmp.eq.s32.totalorder %s23, 1
      %p67 = por %p65, %p66
      %p68 = scmp.ne.s32.totalorder %s57, %s58
      %p69 = scmp.eq.s32.totalorder %s23, 0
      %p70 = por %p68, %p69
      %p71 = scmp.ne.s32.totalorder %s57, %s58
      %p72 = scmp.eq.s32.totalorder %s24, 1
      %p73 = por %p71, %p72
      %p75 = scmp.ne.s32.totalorder %s58, %s74
      %p76 = scmp.eq.s32.totalorder %s24, 0
      %p77 = por %p75, %p76
      %s79 = sadd.s32 %s78, 1
      %p82 = scmp.eq.s32.totalorder %s18, 1
      %p83 = scmp.ne.s32.totalorder %s78, %s80
      %p84 = scmp.eq.s32.totalorder %s18, 0
      %p85 = por %p83, %p84
      %p86 = scmp.ne.s32.totalorder %s78, %s80
      %p87 = scmp.eq.s32.totalorder %s23, 1
      %p88 = por %p86, %p87
      %p89 = scmp.ne.s32.totalorder %s80, %s81
      %p90 = scmp.eq.s32.totalorder %s23, 0
      %p91 = por %p89, %p90
      %p92 = scmp.ne.s32.totalorder %s80, %s81
      %p93 = scmp.eq.s32.totalorder %s24, 1
      %p94 = por %p92, %p93
      %p96 = scmp.ne.s32.totalorder %s81, %s95
      %p97 = scmp.eq.s32.totalorder %s24, 0
      %p98 = por %p96, %p97
      %s100 = sadd.s32 %s99, 1
      %p103 = scmp.eq.s32.totalorder %s18, 1
      %p104 = scmp.ne.s32.totalorder %s99, %s101
      %p105 = scmp.eq.s32.totalorder %s18, 0
      %p106 = por %p104, %p105
      %p107 = scmp.ne.s32.totalorder %s99, %s101
      %p108 = scmp.eq.s32.totalorder %s23, 1
      %p109 = por %p107, %p108
      %p110 = scmp.ne.s32.totalorder %s101, %s102
      %p111 = scmp.eq.s32.totalorder %s23, 0
      %p112 = por %p110, %p111
      %p113 = scmp.ne.s32.totalorder %s101, %s102
      %p114 = scmp.eq.s32.totalorder %s24, 1
      %p115 = por %p113, %p114
      %p117 = scmp.ne.s32.totalorder %s102, %s116
      %p118 = scmp.eq.s32.totalorder %s24, 0
      %p119 = por %p117, %p118
      %s121 = sadd.s32 %s120, 1
      %p124 = scmp.eq.s32.totalorder %s18, 1
      %p125 = scmp.ne.s32.totalorder %s120, %s122
      %p126 = scmp.eq.s32.totalorder %s18, 0
      %p127 = por %p125, %p126
      %p128 = scmp.ne.s32.totalorder %s120, %s122
      %p129 = scmp.eq.s32.totalorder %s23, 1
      %p130 = por %p128, %p129
      %p131 = scmp.ne.s32.totalorder %s122, %s123
      %p132 = scmp.eq.s32.totalorder %s23, 0
      %p133 = por %p131, %p132
      %p134 = scmp.ne.s32.totalorder %s122, %s123
      %p135 = scmp.eq.s32.totalorder %s24, 1
      %p136 = por %p134, %p135
      %p138 = scmp.ne.s32.totalorder %s123, %s137
      %p139 = scmp.eq.s32.totalorder %s24, 0
      %p140 = por %p138, %p139
      %s142 = sadd.s32 %s141, 1
      %p145 = scmp.eq.s32.totalorder %s18, 1
      %p146 = scmp.ne.s32.totalorder %s141, %s143
      %p147 = scmp.eq.s32.totalorder %s18, 0
      %p148 = por %p146, %p147
      %p149 = scmp.ne.s32.totalorder %s141, %s143
      %p150 = scmp.eq.s32.totalorder %s23, 1
      %p151 = por %p149, %p150
      %p152 = scmp.ne.s32.totalorder %s143, %s144
      %p153 = scmp.eq.s32.totalorder %s23, 0
      %p154 = por %p152, %p153
      %p155 = scmp.ne.s32.totalorder %s143, %s144
      %p156 = scmp.eq.s32.totalorder %s24, 1
      %p157 = por %p155, %p156
      %p159 = scmp.ne.s32.totalorder %s144, %s158
      %p160 = scmp.eq.s32.totalorder %s24, 0
      %p161 = por %p159, %p160
      %s163 = sadd.s32 %s162, 1
      %p166 = scmp.eq.s32.totalorder %s18, 1
      %p167 = scmp.ne.s32.totalorder %s162, %s164
      %p168 = scmp.eq.s32.totalorder %s18, 0
      %p169 = por %p167, %p168
      %p170 = scmp.ne.s32.totalorder %s162, %s164
      %p171 = scmp.eq.s32.totalorder %s23, 1
      %p172 = por %p170, %p171
      %p173 = scmp.ne.s32.totalorder %s164, %s165
      %p174 = scmp.eq.s32.totalorder %s23, 0
      %p175 = por %p173, %p174
      %p176 = scmp.ne.s32.totalorder %s164, %s165
      %p177 = scmp.eq.s32.totalorder %s24, 1
      %p178 = por %p176, %p177
      %p180 = scmp.ne.s32.totalorder %s165, %s179
      %p181 = scmp.eq.s32.totalorder %s24, 0
      %p182 = por %p180, %p181
      %s184 = sadd.s32 %s183, 1
      %p187 = scmp.eq.s32.totalorder %s18, 1
      %p188 = scmp.ne.s32.totalorder %s183, %s185
      %p189 = scmp.eq.s32.totalorder %s18, 0
      %p190 = por %p188, %p189
      %p191 = scmp.ne.s32.totalorder %s183, %s185
      %p192 = scmp.eq.s32.totalorder %s23, 1
      %p193 = por %p191, %p192
      %p194 = scmp.ne.s32.totalorder %s185, %s186
      %p195 = scmp.eq.s32.totalorder %s23, 0
      %p196 = por %p194, %p195
      %p197 = scmp.ne.s32.totalorder %s185, %s186
      %p198 = scmp.eq.s32.totalorder %s24, 1
      %p199 = por %p197, %p198
      %p201 = scmp.ne.s32.totalorder %s186, %s200
      %p202 = scmp.eq.s32.totalorder %s24, 0
      %p203 = por %p201, %p202
      %s204 = ssub.s32 %s18, %s25
      %p205 = scmp.eq.s32.totalorder %s204, 0
      %s207 = sadd.s32 %s206, 1
      %s208 = scalar_select %p205, %s206, %s207
      %p211 = pneg %p205
      %p212 = scmp.eq.s32.totalorder %s18, 1
      %p213 = por %p211, %p212
      %p214 = scmp.ne.s32.totalorder %s206, %s209
      %p215 = scmp.eq.s32.totalorder %s18, 0
      %p216 = por %p214, %p215
      %p217 = scmp.ne.s32.totalorder %s206, %s209
      %p218 = scmp.eq.s32.totalorder %s23, 1
      %p219 = por %p217, %p218
      %p220 = scmp.ne.s32.totalorder %s209, %s210
      %p221 = scmp.eq.s32.totalorder %s23, 0
      %p222 = por %p220, %p221
      %p223 = scmp.ne.s32.totalorder %s209, %s210
      %p224 = scmp.eq.s32.totalorder %s24, 1
      %p225 = por %p223, %p224
      %p227 = scmp.ne.s32.totalorder %s210, %s226
      %p228 = scmp.eq.s32.totalorder %s24, 0
      %p229 = por %p227, %p228
      %p230 = scmp.le.s32.totalorder 1, %s18
      %p231 = scmp.lt.s32.totalorder %s18, 3
      %p232 = pnand %p230, %p231
      %p233 = pneg %p232
      // Predicated region
      $region9: #{resnet1d_forward.10} parent=5 // pred_check
        _
      $region10: #{resnet1d_forward.10} parent=5 // pred_check_branch
        %235 = sbr.rel (%p232) target = $region12
      $region11: #{resnet1d_forward.10} parent=5 // pred_region
        %s236 = ssub.s32 %s18, 1
        // Predicated region
        $region13: #{resnet1d_forward.10} parent=11 // pred_check
          %p237 = pneg %p91
        $region14: #{resnet1d_forward.10} parent=11 // pred_check_branch
          %239 = sbr.rel (%p237) target = $region16
        $region15: #{resnet1d_forward.10} parent=11 // pred_region
          %241 = vsyncadd [#allocation4], 0
          %s242 = sshll.u32 %s2, 4
          %s243 = int_to_ptr.hbm [resolvable:$true] %s242
          %s244 = sshll.u32 [#allocation3], 4
          %s245 = int_to_ptr.vmem [resolvable:$true] %s244
          %250 = dma.hbm_to_vmem [thread:$0]  %s243, 1536, %s245, [#allocation4], 64, 64, 4
        $region16: #{resnet1d_forward.10} parent=11 // pred_fallthru
          _
        // Predicated region
        $region17: #{resnet1d_forward.10} parent=11 // pred_check
          %p251 = pneg %p112
        $region18: #{resnet1d_forward.10} parent=11 // pred_check_branch
          %253 = sbr.rel (%p251) target = $region20
        $region19: #{resnet1d_forward.10} parent=11 // pred_region
          %255 = vsyncadd [#allocation6], 0
          %s257 = sshll.u32 %s3, 4
          %s258 = int_to_ptr.hbm [resolvable:$true] %s257
          %s259 = sshll.u32 [#allocation5], 4
          %s260 = int_to_ptr.vmem [resolvable:$true] %s259
          %262 = dma.hbm_to_vmem [thread:$0]  %s258, 16, %s260, [#allocation6]
        $region20: #{resnet1d_forward.10} parent=11 // pred_fallthru
          _
        // Predicated region
        $region21: #{resnet1d_forward.10} parent=11 // pred_check
          %p263 = pneg %p133
        $region22: #{resnet1d_forward.10} parent=11 // pred_check_branch
          %265 = sbr.rel (%p263) target = $region24
        $region23: #{resnet1d_forward.10} parent=11 // pred_region
          %267 = vsyncadd [#allocation6], 0
          %s268 = sshll.u32 %s4, 4
          %s269 = int_to_ptr.hbm [resolvable:$true] %s268
          %s270 = sshll.u32 [#allocation7], 4
          %s271 = int_to_ptr.vmem [resolvable:$true] %s270
          %276 = dma.hbm_to_vmem [thread:$0]  %s269, 3072, %s271, [#allocation6], 64, 64, 4
        $region24: #{resnet1d_forward.10} parent=11 // pred_fallthru
          _
        // Predicated region
        $region25: #{resnet1d_forward.10} parent=11 // pred_check
          %p277 = pneg %p154
        $region26: #{resnet1d_forward.10} parent=11 // pred_check_branch
          %279 = sbr.rel (%p277) target = $region28
        $region27: #{resnet1d_forward.10} parent=11 // pred_region
          %281 = vsyncadd [#allocation9], 0
          %s283 = sshll.u32 %s5, 4
          %s284 = int_to_ptr.hbm [resolvable:$true] %s283
          %s285 = sshll.u32 [#allocation8], 4
          %s286 = int_to_ptr.vmem [resolvable:$true] %s285
          %288 = dma.hbm_to_vmem [thread:$0]  %s284, 16, %s286, [#allocation9]
        $region28: #{resnet1d_forward.10} parent=11 // pred_fallthru
          _
        // Predicated region
        $region29: #{resnet1d_forward.10} parent=11 // pred_check
          %p289 = pneg %p175
        $region30: #{resnet1d_forward.10} parent=11 // pred_check_branch
          %291 = sbr.rel (%p289) target = $region32
        $region31: #{resnet1d_forward.10} parent=11 // pred_region
          %293 = vsyncadd [#allocation9], 0
          %s294 = sshll.u32 %s6, 4
          %s295 = int_to_ptr.hbm [resolvable:$true] %s294
          %s296 = sshll.u32 [#allocation10], 4
          %s297 = int_to_ptr.vmem [resolvable:$true] %s296
          %302 = dma.hbm_to_vmem [thread:$0]  %s295, 512, %s297, [#allocation9], 64, 64, 4
        $region32: #{resnet1d_forward.10} parent=11 // pred_fallthru
          _
        // Predicated region
        $region33: #{resnet1d_forward.10} parent=11 // pred_check
          %p303 = pneg %p196
        $region34: #{resnet1d_forward.10} parent=11 // pred_check_branch
          %305 = sbr.rel (%p303) target = $region36
        $region35: #{resnet1d_forward.10} parent=11 // pred_region
          %307 = vsyncadd [#allocation12], 0
          %s309 = sshll.u32 %s7, 4
          %s310 = int_to_ptr.hbm [resolvable:$true] %s309
          %s311 = sshll.u32 [#allocation11], 4
          %s312 = int_to_ptr.vmem [resolvable:$true] %s311
          %314 = dma.hbm_to_vmem [thread:$0]  %s310, 16, %s312, [#allocation12]
        $region36: #{resnet1d_forward.10} parent=11 // pred_fallthru
          _
      $region12: #{resnet1d_forward.10} parent=5 // pred_fallthru
        _
      %p315 = scmp.lt.s32.totalorder %s18, 2
      // Predicated region
      $region37: #{resnet1d_forward.10} parent=5 // pred_check
        %p316 = pneg %p315
      $region38: #{resnet1d_forward.10} parent=5 // pred_check_branch
        %318 = sbr.rel (%p316) target = $region40
      $region39: #{resnet1d_forward.10} parent=5 // pred_region
        // Predicated region
        $region41: #{resnet1d_forward.10} parent=39 // pred_check
          %p319 = pneg %p38
        $region42: #{resnet1d_forward.10} parent=39 // pred_check_branch
          %321 = sbr.rel (%p319) target = $region44
        $region43: #{resnet1d_forward.10} parent=39 // pred_region
          %p322 = scmp.lt.s32.totalorder %s18, 1
          %s323 = scalar_select %p322, %s18, 1
          %s324 = smul.addr %s323, 2
          %s325 = smul.addr %s324, 4
          %s326 = scalar_lea.vmem %s0, %s325
        $region44: #{resnet1d_forward.10} parent=39 // pred_fallthru
          _
        // Predicated region
        $region45: #{resnet1d_forward.10} parent=39 // pred_check
          %p327 = pneg %p64
        $region46: #{resnet1d_forward.10} parent=39 // pred_check_branch
          %329 = sbr.rel (%p327) target = $region48
        $region47: #{resnet1d_forward.10} parent=39 // pred_region
          %p330 = scmp.lt.s32.totalorder %s18, 1
          %s331 = scalar_select %p330, %s18, 1
          %s332 = smul.addr %s331, 2
          %s333 = smul.addr %s332, 4
          %s334 = scalar_lea.vmem %s1, %s333
        $region48: #{resnet1d_forward.10} parent=39 // pred_fallthru
          _
      $region40: #{resnet1d_forward.10} parent=5 // pred_fallthru
        _
      %p335 = scmp.le.s32.totalorder 1, %s18
      %p336 = scmp.lt.s32.totalorder %s18, 3
      %p337 = pnand %p335, %p336
      %p338 = pneg %p337
      // Predicated region
      $region49: #{resnet1d_forward.10} parent=5 // pred_check
        _
      $region50: #{resnet1d_forward.10} parent=5 // pred_check_branch
        %340 = sbr.rel (%p337) target = $region52
      $region51: #{resnet1d_forward.10} parent=5 // pred_region
        %s341 = ssub.s32 %s18, 1
        // Predicated region
        $region53: #{resnet1d_forward.10} parent=51 // pred_check
          %p342 = pneg %p91
        $region54: #{resnet1d_forward.10} parent=51 // pred_check_branch
          %344 = sbr.rel (%p342) target = $region56
        $region55: #{resnet1d_forward.10} parent=51 // pred_region
          %346 = dma.done [#allocation4], 1536
        $region56: #{resnet1d_forward.10} parent=51 // pred_fallthru
          _
        // Predicated region
        $region57: #{resnet1d_forward.10} parent=51 // pred_check
          %p347 = pneg %p112
        $region58: #{resnet1d_forward.10} parent=51 // pred_check_branch
          %349 = sbr.rel (%p347) target = $region60
        $region59: #{resnet1d_forward.10} parent=51 // pred_region
          %351 = dma.done [#allocation6], 16
        $region60: #{resnet1d_forward.10} parent=51 // pred_fallthru
          _
        // Predicated region
        $region61: #{resnet1d_forward.10} parent=51 // pred_check
          %p352 = pneg %p133
        $region62: #{resnet1d_forward.10} parent=51 // pred_check_branch
          %354 = sbr.rel (%p352) target = $region64
        $region63: #{resnet1d_forward.10} parent=51 // pred_region
          %356 = dma.done [#allocation6], 3072
        $region64: #{resnet1d_forward.10} parent=51 // pred_fallthru
          _
        // Predicated region
        $region65: #{resnet1d_forward.10} parent=51 // pred_check
          %p357 = pneg %p154
        $region66: #{resnet1d_forward.10} parent=51 // pred_check_branch
          %359 = sbr.rel (%p357) target = $region68
        $region67: #{resnet1d_forward.10} parent=51 // pred_region
          %361 = dma.done [#allocation9], 16
        $region68: #{resnet1d_forward.10} parent=51 // pred_fallthru
          _
        // Predicated region
        $region69: #{resnet1d_forward.10} parent=51 // pred_check
          %p362 = pneg %p175
        $region70: #{resnet1d_forward.10} parent=51 // pred_check_branch
          %364 = sbr.rel (%p362) target = $region72
        $region71: #{resnet1d_forward.10} parent=51 // pred_region
          %366 = dma.done [#allocation9], 512
        $region72: #{resnet1d_forward.10} parent=51 // pred_fallthru
          _
        // Predicated region
        $region73: #{resnet1d_forward.10} parent=51 // pred_check
          %p367 = pneg %p196
        $region74: #{resnet1d_forward.10} parent=51 // pred_check_branch
          %369 = sbr.rel (%p367) target = $region76
        $region75: #{resnet1d_forward.10} parent=51 // pred_region
          %371 = dma.done [#allocation12], 16
        $region76: #{resnet1d_forward.10} parent=51 // pred_fallthru
          _
        %p372 = scmp.lt.s32.totalorder %s23, 1
        %s373 = scalar_select %p372, %s23, 1
        %s374 = smul.addr %s373, 2
        %s375 = smul.addr %s374, 4
        %s376 = scalar_lea.vmem %s0, %s375
        %p377 = pneg %p44
        %p378 = pneg %p41
        %p379 = scmp.lt.s32.totalorder %s23, 1
        %s380 = scalar_select %p379, %s23, 1
        %s381 = smul.addr %s380, 2
        %s382 = smul.addr %s381, 4
        %s383 = scalar_lea.vmem %s1, %s382
        %p384 = pneg %p70
        %p385 = pneg %p67
        %p386 = pneg %p91
        %p387 = pneg %p88
        %p388 = pneg %p112
        %p389 = pneg %p109
        %p390 = pneg %p133
        %p391 = pneg %p130
        %p392 = pneg %p154
        %p393 = pneg %p151
        %p394 = pneg %p175
        %p395 = pneg %p172
        %p396 = pneg %p196
        %p397 = pneg %p193
        %p398 = pneg %p222
        %p399 = pneg %p219
        %p400 = scmp.lt.s32.totalorder %s23, 1
        %s401 = scalar_select %p400, %s23, 1
        %s402 = smul.addr %s401, 4
        %s403 = scalar_lea.vmem %s8, %s402
        %p404 = scmp.lt.s32.totalorder %s23, 1
        %s405 = scalar_select %p404, %s23, 1
        %s406 = smul.addr %s405, 2
        %s407 = smul.addr %s406, 4
        %s408 = scalar_lea.vmem %s0, %s407
        %p409 = scmp.lt.s32.totalorder %s23, 1
        %s410 = scalar_select %p409, %s23, 1
        %s411 = smul.addr %s410, 2
        %s412 = smul.addr %s411, 4
        %s413 = scalar_lea.vmem %s1, %s412
        %p414 = scmp.lt.s32.totalorder %s23, 1
        %s415 = scalar_select %p414, %s23, 1
        %s416 = smul.addr %s415, 4
        %s417 = scalar_lea.vmem %s8, %s416
        %v419 = vld [vmem:[%s408] sm:$0xf]
        %v420 = vld [vmem:[#allocation3] sm:$0xf]
        %v421 = vld [vmem:[#allocation3 + $0x4] sm:$0xf]
        %v422 = vld [vmem:[#allocation3 + $0x8] sm:$0xf]
        %v423 = vld [vmem:[#allocation3 + $0xc] sm:$0xf]
        %v424 = vld [vmem:[#allocation3 + $0x10] sm:$0xf]
        %v425 = vld [vmem:[#allocation3 + $0x14] sm:$0xf]
        %v426 = vld [vmem:[#allocation3 + $0x18] sm:$0xf]
        %v427 = vld [vmem:[#allocation3 + $0x1c] sm:$0xf]
        %v428 = vld [vmem:[%s413] sm:$0xf]
        %s429 = scalar_lea.vmem [#allocation3], 32
        %v430 = vld [vmem:[%s429] sm:$0xf]
        %v431 = vld [vmem:[%s429 + $0x4] sm:$0xf]
        %v432 = vld [vmem:[%s429 + $0x8] sm:$0xf]
        %v433 = vld [vmem:[%s429 + $0xc] sm:$0xf]
        %v434 = vld [vmem:[%s429 + $0x10] sm:$0xf]
        %v435 = vld [vmem:[%s429 + $0x14] sm:$0xf]
        %v436 = vld [vmem:[%s429 + $0x18] sm:$0xf]
        %v437 = vld [vmem:[%s429 + $0x1c] sm:$0xf]
        %v446 = vunpack.c.l.b16 %v430
        %v447 = vunpack.c.l.b16 %v431
        %v448 = vunpack.c.l.b16 %v432
        %v449 = vunpack.c.l.b16 %v433
        %v450 = vunpack.c.l.b16 %v434
        %v451 = vunpack.c.l.b16 %v435
        %v452 = vunpack.c.l.b16 %v436
        %v453 = vunpack.c.l.b16 %v437
        %v454 = vpack.c.b16 %v447, %v446
        %v455 = vpack.c.b16 %v449, %v448
        %v456 = vpack.c.b16 %v451, %v450
        %v457 = vpack.c.b16 %v453, %v452
        %vm462 = vcmask 523264
        %v464 = vsel %vm462, %v428, 0
        %466 = vmatpush.bf16.msra.mxu0 0
        %467 = vmatpush.bf16.msra.mxu0 0
        %468 = vmatpush.bf16.msra.mxu0 0
        %469 = vmatpush.bf16.msra.mxu0 0
        %470 = vmatpush.bf16.msra.mxu0 %v457
        %471 = vmatpush.bf16.msra.mxu0 %v456
        %472 = vmatpush.bf16.msra.mxu0 %v455
        %473 = vmatpush.bf16.msra.mxu0 %v454
        %474 = vmatmul.bf16.gmra.mxu0 %v464
        %v475 = vpop.f32.mrf.mxu0
        %v476 = vadd.f32 0.0, %v475
        %v477 = vpop.f32.mrf.mxu0
        %478 = vdwg.mxu0
        %v487 = vunpack.c.l.b16 %v420
        %v488 = vunpack.c.l.b16 %v421
        %v489 = vunpack.c.l.b16 %v422
        %v490 = vunpack.c.l.b16 %v423
        %v491 = vunpack.c.l.b16 %v424
        %v492 = vunpack.c.l.b16 %v425
        %v493 = vunpack.c.l.b16 %v426
        %v494 = vunpack.c.l.b16 %v427
        %v495 = vpack.c.b16 %v488, %v487
        %v496 = vpack.c.b16 %v490, %v489
        %v497 = vpack.c.b16 %v492, %v491
        %v498 = vpack.c.b16 %v494, %v493
        %v504 = vsel %vm462, %v419, 0
        %506 = vmatpush.bf16.msra.mxu0 0
        %507 = vmatpush.bf16.msra.mxu0 0
        %508 = vmatpush.bf16.msra.mxu0 0
        %509 = vmatpush.bf16.msra.mxu0 0
        %510 = vmatpush.bf16.msra.mxu0 %v498
        %511 = vmatpush.bf16.msra.mxu0 %v497
        %512 = vmatpush.bf16.msra.mxu0 %v496
        %513 = vmatpush.bf16.msra.mxu0 %v495
        %514 = vmatmul.bf16.gmra.mxu0 %v504
        %v515 = vpop.f32.mrf.mxu0
        %v516 = vadd.f32 %v476, %v515
        %v517 = vpop.f32.mrf.mxu0
        %518 = vdwg.mxu0
        %v519 = vld [vmem:[%s408] sm:$0xf]
        %v520 = vld [vmem:[%s408 + $0x4] sm:$0x1]
        %s521 = scalar_lea.vmem [#allocation3], 64
        %v522 = vld [vmem:[%s521] sm:$0xf]
        %v523 = vld [vmem:[%s521 + $0x4] sm:$0xf]
        %v524 = vld [vmem:[%s521 + $0x8] sm:$0xf]
        %v525 = vld [vmem:[%s521 + $0xc] sm:$0xf]
        %v526 = vld [vmem:[%s521 + $0x10] sm:$0xf]
        %v527 = vld [vmem:[%s521 + $0x14] sm:$0xf]
        %v528 = vld [vmem:[%s521 + $0x18] sm:$0xf]
        %v529 = vld [vmem:[%s521 + $0x1c] sm:$0xf]
        %v532 = vunpack.c.l.b16 %v519
        %v533 = vunpack.c.l.b16 %v520
        %v534 = vpack.c.b16 %v533, %v532
        %v536 = vshrl.u32 %v534, 16
        %v538 = vshll.u32 %v534, 16
        %v540 = vrot.slane %v538, 1
        %v541 = vor.u32 %v536, %v540
        %v550 = vunpack.c.l.b16 %v522
        %v551 = vunpack.c.l.b16 %v523
        %v552 = vunpack.c.l.b16 %v524
        %v553 = vunpack.c.l.b16 %v525
        %v554 = vunpack.c.l.b16 %v526
        %v555 = vunpack.c.l.b16 %v527
        %v556 = vunpack.c.l.b16 %v528
        %v557 = vunpack.c.l.b16 %v529
        %v558 = vpack.c.b16 %v551, %v550
        %v559 = vpack.c.b16 %v553, %v552
        %v560 = vpack.c.b16 %v555, %v554
        %v561 = vpack.c.b16 %v557, %v556
        %v567 = vsel %vm462, %v541, 0
        %569 = vmatpush.bf16.msra.mxu0 0
        %570 = vmatpush.bf16.msra.mxu0 0
        %571 = vmatpush.bf16.msra.mxu0 0
        %572 = vmatpush.bf16.msra.mxu0 0
        %573 = vmatpush.bf16.msra.mxu0 %v561
        %574 = vmatpush.bf16.msra.mxu0 %v560
        %575 = vmatpush.bf16.msra.mxu0 %v559
        %576 = vmatpush.bf16.msra.mxu0 %v558
        %577 = vmatmul.bf16.gmra.mxu0 %v567
        %v578 = vpop.f32.mrf.mxu0
        %v579 = vadd.f32 0.0, %v578
        %v580 = vpop.f32.mrf.mxu0
        %581 = vdwg.mxu0
        %v582 = vadd.f32 %v516, %v579
        %v583 = vld [vmem:[#allocation5] sm:$0x1]
        %v585 = vperm.slane %v583, 0
        %v587 = vadd.f32 %v582, %v585
        %v588 = vmax.f32 %v587, 0.0
        %589 = vst [vmem:[#allocation2] sm:$0xff] 0.0
        %590 = vst [vmem:[#allocation2 + $0x8] sm:$0x3] 0.0
        %591 = vst [vmem:[#allocation2 + $0x1] sm:$0xff] %v588
        %v592 = vld [vmem:[#allocation2] sm:$0xff]
        %v593 = vld [vmem:[#allocation7] sm:$0xf]
        %v594 = vld [vmem:[#allocation7 + $0x4] sm:$0xf]
        %v595 = vld [vmem:[#allocation7 + $0x8] sm:$0xf]
        %v596 = vld [vmem:[#allocation7 + $0xc] sm:$0xf]
        %v597 = vld [vmem:[#allocation7 + $0x10] sm:$0xf]
        %v598 = vld [vmem:[#allocation7 + $0x14] sm:$0xf]
        %v599 = vld [vmem:[#allocation7 + $0x18] sm:$0xf]
        %v600 = vld [vmem:[#allocation7 + $0x1c] sm:$0xf]
        %v601 = vld [vmem:[#allocation7 + $0x20] sm:$0xf]
        %v602 = vld [vmem:[#allocation7 + $0x24] sm:$0xf]
        %v603 = vld [vmem:[#allocation7 + $0x28] sm:$0xf]
        %v604 = vld [vmem:[#allocation7 + $0x2c] sm:$0xf]
        %v605 = vld [vmem:[#allocation7 + $0x30] sm:$0xf]
        %v606 = vld [vmem:[#allocation7 + $0x34] sm:$0xf]
        %v607 = vld [vmem:[#allocation7 + $0x38] sm:$0xf]
        %v608 = vld [vmem:[#allocation7 + $0x3c] sm:$0xf]
        %v609 = vld [vmem:[#allocation2 + $0x1] sm:$0xff]
        %s610 = scalar_lea.vmem [#allocation7], 64
        %v611 = vld [vmem:[%s610] sm:$0xf]
        %v612 = vld [vmem:[%s610 + $0x4] sm:$0xf]
        %v613 = vld [vmem:[%s610 + $0x8] sm:$0xf]
        %v614 = vld [vmem:[%s610 + $0xc] sm:$0xf]
        %v615 = vld [vmem:[%s610 + $0x10] sm:$0xf]
        %v616 = vld [vmem:[%s610 + $0x14] sm:$0xf]
        %v617 = vld [vmem:[%s610 + $0x18] sm:$0xf]
        %v618 = vld [vmem:[%s610 + $0x1c] sm:$0xf]
        %v619 = vld [vmem:[%s610 + $0x20] sm:$0xf]
        %v620 = vld [vmem:[%s610 + $0x24] sm:$0xf]
        %v621 = vld [vmem:[%s610 + $0x28] sm:$0xf]
        %v622 = vld [vmem:[%s610 + $0x2c] sm:$0xf]
        %v623 = vld [vmem:[%s610 + $0x30] sm:$0xf]
        %v624 = vld [vmem:[%s610 + $0x34] sm:$0xf]
        %v625 = vld [vmem:[%s610 + $0x38] sm:$0xf]
        %v626 = vld [vmem:[%s610 + $0x3c] sm:$0xf]
        %v643 = vunpack.c.l.b16 %v611
        %v644 = vunpack.c.l.b16 %v612
        %v645 = vunpack.c.l.b16 %v613
        %v646 = vunpack.c.l.b16 %v614
        %v647 = vunpack.c.l.b16 %v615
        %v648 = vunpack.c.l.b16 %v616
        %v649 = vunpack.c.l.b16 %v617
        %v650 = vunpack.c.l.b16 %v618
        %v651 = vunpack.c.l.b16 %v619
        %v652 = vunpack.c.l.b16 %v620
        %v653 = vunpack.c.l.b16 %v621
        %v654 = vunpack.c.l.b16 %v622
        %v655 = vunpack.c.l.b16 %v623
        %v656 = vunpack.c.l.b16 %v624
        %v657 = vunpack.c.l.b16 %v625
        %v658 = vunpack.c.l.b16 %v626
        %v659 = vpack.c.b16 %v644, %v643
        %v660 = vpack.c.b16 %v646, %v645
        %v661 = vpack.c.b16 %v648, %v647
        %v662 = vpack.c.b16 %v650, %v649
        %v663 = vpack.c.b16 %v652, %v651
        %v664 = vpack.c.b16 %v654, %v653
        %v665 = vpack.c.b16 %v656, %v655
        %v666 = vpack.c.b16 %v658, %v657
        %675 = vmatpush.bf16.msra.mxu0 %v666
        %676 = vmatpush.bf16.msra.mxu0 %v665
        %677 = vmatpush.bf16.msra.mxu0 %v664
        %678 = vmatpush.bf16.msra.mxu0 %v663
        %679 = vmatpush.bf16.msra.mxu0 %v662
        %680 = vmatpush.bf16.msra.mxu0 %v661
        %681 = vmatpush.bf16.msra.mxu0 %v660
        %682 = vmatpush.bf16.msra.mxu0 %v659
        %683 = vmatmul.f32.gmra.mxu0 %v609
        %v684 = vpop.f32.mrf.mxu0
        %v685 = vadd.f32 0.0, %v684
        %686 = vdwg.mxu0
        %v703 = vunpack.c.l.b16 %v593
        %v704 = vunpack.c.l.b16 %v594
        %v705 = vunpack.c.l.b16 %v595
        %v706 = vunpack.c.l.b16 %v596
        %v707 = vunpack.c.l.b16 %v597
        %v708 = vunpack.c.l.b16 %v598
        %v709 = vunpack.c.l.b16 %v599
        %v710 = vunpack.c.l.b16 %v600
        %v711 = vunpack.c.l.b16 %v601
        %v712 = vunpack.c.l.b16 %v602
        %v713 = vunpack.c.l.b16 %v603
        %v714 = vunpack.c.l.b16 %v604
        %v715 = vunpack.c.l.b16 %v605
        %v716 = vunpack.c.l.b16 %v606
        %v717 = vunpack.c.l.b16 %v607
        %v718 = vunpack.c.l.b16 %v608
        %v719 = vpack.c.b16 %v704, %v703
        %v720 = vpack.c.b16 %v706, %v705
        %v721 = vpack.c.b16 %v708, %v707
        %v722 = vpack.c.b16 %v710, %v709
        %v723 = vpack.c.b16 %v712, %v711
        %v724 = vpack.c.b16 %v714, %v713
        %v725 = vpack.c.b16 %v716, %v715
        %v726 = vpack.c.b16 %v718, %v717
        %735 = vmatpush.bf16.msra.mxu0 %v726
        %736 = vmatpush.bf16.msra.mxu0 %v725
        %737 = vmatpush.bf16.msra.mxu0 %v724
        %738 = vmatpush.bf16.msra.mxu0 %v723
        %739 = vmatpush.bf16.msra.mxu0 %v722
        %740 = vmatpush.bf16.msra.mxu0 %v721
        %741 = vmatpush.bf16.msra.mxu0 %v720
        %742 = vmatpush.bf16.msra.mxu0 %v719
        %743 = vmatmul.f32.gmra.mxu0 %v592
        %v744 = vpop.f32.mrf.mxu0
        %v745 = vadd.f32 %v685, %v744
        %746 = vdwg.mxu0
        %v747 = vld [vmem:[#allocation2 + $0x2] sm:$0xff]
        %s748 = scalar_lea.vmem [#allocation7], 128
        %v749 = vld [vmem:[%s748] sm:$0xf]
        %v750 = vld [vmem:[%s748 + $0x4] sm:$0xf]
        %v751 = vld [vmem:[%s748 + $0x8] sm:$0xf]
        %v752 = vld [vmem:[%s748 + $0xc] sm:$0xf]
        %v753 = vld [vmem:[%s748 + $0x10] sm:$0xf]
        %v754 = vld [vmem:[%s748 + $0x14] sm:$0xf]
        %v755 = vld [vmem:[%s748 + $0x18] sm:$0xf]
        %v756 = vld [vmem:[%s748 + $0x1c] sm:$0xf]
        %v757 = vld [vmem:[%s748 + $0x20] sm:$0xf]
        %v758 = vld [vmem:[%s748 + $0x24] sm:$0xf]
        %v759 = vld [vmem:[%s748 + $0x28] sm:$0xf]
        %v760 = vld [vmem:[%s748 + $0x2c] sm:$0xf]
        %v761 = vld [vmem:[%s748 + $0x30] sm:$0xf]
        %v762 = vld [vmem:[%s748 + $0x34] sm:$0xf]
        %v763 = vld [vmem:[%s748 + $0x38] sm:$0xf]
        %v764 = vld [vmem:[%s748 + $0x3c] sm:$0xf]
        %v781 = vunpack.c.l.b16 %v749
        %v782 = vunpack.c.l.b16 %v750
        %v783 = vunpack.c.l.b16 %v751
        %v784 = vunpack.c.l.b16 %v752
        %v785 = vunpack.c.l.b16 %v753
        %v786 = vunpack.c.l.b16 %v754
        %v787 = vunpack.c.l.b16 %v755
        %v788 = vunpack.c.l.b16 %v756
        %v789 = vunpack.c.l.b16 %v757
        %v790 = vunpack.c.l.b16 %v758
        %v791 = vunpack.c.l.b16 %v759
        %v792 = vunpack.c.l.b16 %v760
        %v793 = vunpack.c.l.b16 %v761
        %v794 = vunpack.c.l.b16 %v762
        %v795 = vunpack.c.l.b16 %v763
        %v796 = vunpack.c.l.b16 %v764
        %v797 = vpack.c.b16 %v782, %v781
        %v798 = vpack.c.b16 %v784, %v783
        %v799 = vpack.c.b16 %v786, %v785
        %v800 = vpack.c.b16 %v788, %v787
        %v801 = vpack.c.b16 %v790, %v789
        %v802 = vpack.c.b16 %v792, %v791
        %v803 = vpack.c.b16 %v794, %v793
        %v804 = vpack.c.b16 %v796, %v795
        %813 = vmatpush.bf16.msra.mxu0 %v804
        %814 = vmatpush.bf16.msra.mxu0 %v803
        %815 = vmatpush.bf16.msra.mxu0 %v802
        %816 = vmatpush.bf16.msra.mxu0 %v801
        %817 = vmatpush.bf16.msra.mxu0 %v800
        %818 = vmatpush.bf16.msra.mxu0 %v799
        %819 = vmatpush.bf16.msra.mxu0 %v798
        %820 = vmatpush.bf16.msra.mxu0 %v797
        %821 = vmatmul.f32.gmra.mxu0 %v747
        %v822 = vpop.f32.mrf.mxu0
        %v823 = vadd.f32 0.0, %v822
        %824 = vdwg.mxu0
        %v825 = vadd.f32 %v745, %v823
        %v826 = vld [vmem:[%s413] sm:$0xf]
        %v827 = vld [vmem:[#allocation10] sm:$0xf]
        %v828 = vld [vmem:[#allocation10 + $0x4] sm:$0xf]
        %v829 = vld [vmem:[#allocation10 + $0x8] sm:$0xf]
        %v830 = vld [vmem:[#allocation10 + $0xc] sm:$0xf]
        %v831 = vld [vmem:[#allocation10 + $0x10] sm:$0xf]
        %v832 = vld [vmem:[#allocation10 + $0x14] sm:$0xf]
        %v833 = vld [vmem:[#allocation10 + $0x18] sm:$0xf]
        %v834 = vld [vmem:[#allocation10 + $0x1c] sm:$0xf]
        %v835 = vld [vmem:[#allocation11] sm:$0x1]
        %v837 = vperm.slane %v835, 0
        %v847 = vunpack.c.l.b16 %v827
        %v848 = vunpack.c.l.b16 %v828
        %v849 = vunpack.c.l.b16 %v829
        %v850 = vunpack.c.l.b16 %v830
        %v851 = vunpack.c.l.b16 %v831
        %v852 = vunpack.c.l.b16 %v832
        %v853 = vunpack.c.l.b16 %v833
        %v854 = vunpack.c.l.b16 %v834
        %v855 = vpack.c.b16 %v848, %v847
        %v856 = vpack.c.b16 %v850, %v849
        %v857 = vpack.c.b16 %v852, %v851
        %v858 = vpack.c.b16 %v854, %v853
        %v864 = vsel %vm462, %v826, 0
        %866 = vmatpush.bf16.msra.mxu0 0
        %867 = vmatpush.bf16.msra.mxu0 0
        %868 = vmatpush.bf16.msra.mxu0 0
        %869 = vmatpush.bf16.msra.mxu0 0
        %870 = vmatpush.bf16.msra.mxu0 %v858
        %871 = vmatpush.bf16.msra.mxu0 %v857
        %872 = vmatpush.bf16.msra.mxu0 %v856
        %873 = vmatpush.bf16.msra.mxu0 %v855
        %874 = vmatmul.bf16.gmra.mxu0 %v864
        %v875 = vpop.f32.mrf.mxu0
        %v876 = vadd.f32 %v837, %v875
        %v877 = vpop.f32.mrf.mxu0
        %878 = vdwg.mxu0
        %v879 = vld [vmem:[#allocation8] sm:$0x1]
        %v881 = vperm.slane %v879, 0
        %v883 = vadd.f32 %v825, %v881
        %v884 = vadd.f32 %v883, %v876
        %v885 = vmax.f32 %v884, 0.0
        %v886 = vpack.c.bf16 %v885, %v885
        %887 = vst [vmem:[%s417] sm:$0xf] %v886
        %p888 = scmp.lt.s32.totalorder %s23, 1
        %s889 = scalar_select %p888, %s23, 1
        %s890 = smul.addr %s889, 4
        %s891 = scalar_lea.vmem %s8, %s890
        // Predicated region
        $region77: #{resnet1d_forward.10} parent=51 // pred_check
          %p892 = pneg %p219
        $region78: #{resnet1d_forward.10} parent=51 // pred_check_branch
          %894 = sbr.rel (%p892) target = $region80
        $region79: #{resnet1d_forward.10} parent=51 // pred_region
          _
        $region80: #{resnet1d_forward.10} parent=51 // pred_fallthru
          _
      $region52: #{resnet1d_forward.10} parent=5 // pred_fallthru
        _
      %p895 = scmp.le.s32.totalorder 2, %s18
      // Predicated region
      $region81: #{resnet1d_forward.10} parent=5 // pred_check
        %p896 = pneg %p895
      $region82: #{resnet1d_forward.10} parent=5 // pred_check_branch
        %898 = sbr.rel (%p896) target = $region84
      $region83: #{resnet1d_forward.10} parent=5 // pred_region
        %s899 = ssub.s32 %s18, 2
        // Predicated region
        $region85: #{resnet1d_forward.10} parent=83 // pred_check
          %p900 = pneg %p225
        $region86: #{resnet1d_forward.10} parent=83 // pred_check_branch
          %902 = sbr.rel (%p900) target = $region88
        $region87: #{resnet1d_forward.10} parent=83 // pred_region
          %p903 = scmp.lt.s32.totalorder %s24, 1
          %s904 = scalar_select %p903, %s24, 1
          %s905 = smul.addr %s904, 4
          %s906 = scalar_lea.vmem %s8, %s905
        $region88: #{resnet1d_forward.10} parent=83 // pred_fallthru
          _
      $region84: #{resnet1d_forward.10} parent=5 // pred_fallthru
        _
    $region6: #{resnet1d_forward.10} parent=1 // loop_footer
      %s22 = sadd.s32 1, %s18
    $region7: #{resnet1d_forward.10} parent=1 // loop_footer_branch
      %17 = sbr.rel target = $region3
    $region8: #{resnet1d_forward.10} parent=1 // loop_exit
      _
    %907 = vsyncpa [#allocation4], 1
    %s908 = scalar_lea.sflag [#allocation4], 1
    %909 = vsyncpa %s908, 1
    %910 = vsyncpa [#allocation6], 1
    %911 = vsyncpa [#allocation9], 1
    %912 = vsyncpa [#allocation12], 1

// kernel: resnet1d_forward.13
$region0: #{resnet1d_forward.13}
  #allocation0 [shape = 'u32[]', space=smem, size = 0x4, offset = 0x4, fixed_abs, tag = 'smem constant byte address 0x4 - core index']
  #allocation1 [shape = 'u32[72,128]{1,0:T(1,128)}', space=vmem, size = 0x9000, scoped, tag = 'internal scratch']
  %s0 = inlined_call_operand.vmem [shape: bf16[2,2,512], index: 0, kind: input, shape index: {}]
  %s1 = inlined_call_operand.hbm [shape: f32[512,128], index: 1, kind: input, shape index: {}]
  %s2 = inlined_call_operand.hbm [shape: f32[1,128], index: 2, kind: input, shape index: {}]
  %s3 = inlined_call_operand.hbm [shape: f32[2,128], index: 3, kind: output, shape index: {}]
  %s4 = sld [smem:[#allocation0]]
  $region30: #{resnet1d_forward.13} parent=0
    _
  %s6 = ssub.s32 1, %s4
  %s7 = scalar_select 0, %s6, %s4
  $region1: #{resnet1d_forward.13} parent=0
    #allocation2 [shape = 'u8[262144]{0}', space=vmem, size = 0x40000, scoped, tag = 'input window, operand 1, single buffered']
    #allocation3 [shape = 's32[1]{0}', space=sflag, size = 0x4, scoped, tag = 'scoped memory for resnet1d_forward.13']
    #allocation4 [shape = 's32[1]{0}', space=sflag, size = 0x4, scoped, tag = 'scoped memory for resnet1d_forward.13']
    #allocation5 [shape = 'u8[512]{0}', space=vmem, size = 0x400, scoped, tag = 'input window, operand 2, single buffered']
    #allocation6 [shape = 's32[1]{0}', space=sflag, size = 0x4, scoped, tag = 'scoped memory for resnet1d_forward.13']
    #allocation7 [shape = 'u8[1024]{0}', space=vmem, size = 0x400, scoped, tag = 'output window, operand 0, single buffered']
    %8 = vsyncpa [#allocation3], 0
    %9 = vsyncpa [#allocation6], 0
    %10 = vsyncpa [#allocation4], 0
    // Predicated region
    $region2: #{resnet1d_forward.13} parent=1 // pred_check
      _
    $region3: #{resnet1d_forward.13} parent=1 // pred_check_branch
      %12 = sbr.rel (0) target = $region5
    $region4: #{resnet1d_forward.13} parent=1 // pred_region
      _
    $region5: #{resnet1d_forward.13} parent=1 // pred_fallthru
      _
    // Predicated region
    $region6: #{resnet1d_forward.13} parent=1 // pred_check
      _
    $region7: #{resnet1d_forward.13} parent=1 // pred_check_branch
      %14 = sbr.rel (0) target = $region9
    $region8: #{resnet1d_forward.13} parent=1 // pred_region
      %16 = vsyncadd [#allocation3], 0
      %s17 = sshll.u32 %s1, 4
      %s18 = int_to_ptr.hbm [resolvable:$true] %s17
      %s19 = sshll.u32 [#allocation2], 4
      %s20 = int_to_ptr.vmem [resolvable:$true] %s19
      %25 = dma.hbm_to_vmem [thread:$0]  %s18, 8192, %s20, [#allocation3], 128, 128, 8
    $region9: #{resnet1d_forward.13} parent=1 // pred_fallthru
      _
    // Predicated region
    $region10: #{resnet1d_forward.13} parent=1 // pred_check
      _
    $region11: #{resnet1d_forward.13} parent=1 // pred_check_branch
      %27 = sbr.rel (0) target = $region13
    $region12: #{resnet1d_forward.13} parent=1 // pred_region
      %29 = vsyncadd [#allocation6], 0
      %s31 = sshll.u32 %s2, 4
      %s32 = int_to_ptr.hbm [resolvable:$true] %s31
      %s33 = sshll.u32 [#allocation5], 4
      %s34 = int_to_ptr.vmem [resolvable:$true] %s33
      %36 = dma.hbm_to_vmem [thread:$0]  %s32, 16, %s34, [#allocation6]
    $region13: #{resnet1d_forward.13} parent=1 // pred_fallthru
      _
    // Predicated region
    $region14: #{resnet1d_forward.13} parent=1 // pred_check
      _
    $region15: #{resnet1d_forward.13} parent=1 // pred_check_branch
      %38 = sbr.rel (0) target = $region17
    $region16: #{resnet1d_forward.13} parent=1 // pred_region
      %40 = dma.done [#allocation3], 8192
    $region17: #{resnet1d_forward.13} parent=1 // pred_fallthru
      _
    // Predicated region
    $region18: #{resnet1d_forward.13} parent=1 // pred_check
      _
    $region19: #{resnet1d_forward.13} parent=1 // pred_check_branch
      %42 = sbr.rel (0) target = $region21
    $region20: #{resnet1d_forward.13} parent=1 // pred_region
      %44 = dma.done [#allocation6], 16
    $region21: #{resnet1d_forward.13} parent=1 // pred_fallthru
      _
    %v45 = vld [vmem:[%s0] sm:$0xf]
    %v46 = vld [vmem:[%s0 + $0x4] sm:$0xf]
    %v47 = vunpack.c.l.bf16 %v45
    %v48 = vunpack.c.l.bf16 %v46
    %51 = vst [vmem:[#allocation1] ss:$4 sm:$0xff] %v47
    %v52 = vld.sshfl [vmem:[#allocation1] sm:$0xff pattern:$0x73625140]
    %v53 = vld.sshfl [vmem:[#allocation1 + $0x8] sm:$0xff pattern:$0x73625140]
    %v54 = vld.sshfl [vmem:[#allocation1 + $0x10] sm:$0xff pattern:$0x73625140]
    %v55 = vld.sshfl [vmem:[#allocation1 + $0x18] sm:$0xff pattern:$0x73625140]
    %s56 = scalar_lea.vmem [#allocation1], 32
    %57 = vst [vmem:[%s56] ss:$4 sm:$0xff] %v48
    %v58 = vld.sshfl [vmem:[#allocation1 + $0x20] sm:$0xff pattern:$0x73625140]
    %v59 = vld.sshfl [vmem:[#allocation1 + $0x28] sm:$0xff pattern:$0x73625140]
    %v60 = vld.sshfl [vmem:[#allocation1 + $0x30] sm:$0xff pattern:$0x73625140]
    %v61 = vld.sshfl [vmem:[#allocation1 + $0x38] sm:$0xff pattern:$0x73625140]
    %vm70 = vcmask 1041408
    %v71 = vsel %vm70, %v52, 0.0
    %v72 = vrot.slane %v71, 4
    %v73 = vadd.f32 %v71, %v72
    %v74 = vrot.slane %v73, 2
    %v75 = vadd.f32 %v73, %v74
    %v76 = vrot.slane %v75, 1
    %v77 = vadd.f32 %v75, %v76
    %v78 = vsel %vm70, %v53, 0.0
    %v79 = vrot.slane %v78, 4
    %v80 = vadd.f32 %v78, %v79
    %v81 = vrot.slane %v80, 2
    %v82 = vadd.f32 %v80, %v81
    %v83 = vrot.slane %v82, 1
    %v84 = vadd.f32 %v82, %v83
    %v85 = vsel %vm70, %v54, 0.0
    %v86 = vrot.slane %v85, 4
    %v87 = vadd.f32 %v85, %v86
    %v88 = vrot.slane %v87, 2
    %v89 = vadd.f32 %v87, %v88
    %v90 = vrot.slane %v89, 1
    %v91 = vadd.f32 %v89, %v90
    %v92 = vsel %vm70, %v55, 0.0
    %v93 = vrot.slane %v92, 4
    %v94 = vadd.f32 %v92, %v93
    %v95 = vrot.slane %v94, 2
    %v96 = vadd.f32 %v94, %v95
    %v97 = vrot.slane %v96, 1
    %v98 = vadd.f32 %v96, %v97
    %v99 = vsel %vm70, %v58, 0.0
    %v100 = vrot.slane %v99, 4
    %v101 = vadd.f32 %v99, %v100
    %v102 = vrot.slane %v101, 2
    %v103 = vadd.f32 %v101, %v102
    %v104 = vrot.slane %v103, 1
    %v105 = vadd.f32 %v103, %v104
    %v106 = vsel %vm70, %v59, 0.0
    %v107 = vrot.slane %v106, 4
    %v108 = vadd.f32 %v106, %v107
    %v109 = vrot.slane %v108, 2
    %v110 = vadd.f32 %v108, %v109
    %v111 = vrot.slane %v110, 1
    %v112 = vadd.f32 %v110, %v111
    %v113 = vsel %vm70, %v60, 0.0
    %v114 = vrot.slane %v113, 4
    %v115 = vadd.f32 %v113, %v114
    %v116 = vrot.slane %v115, 2
    %v117 = vadd.f32 %v115, %v116
    %v118 = vrot.slane %v117, 1
    %v119 = vadd.f32 %v117, %v118
    %v120 = vsel %vm70, %v61, 0.0
    %v121 = vrot.slane %v120, 4
    %v122 = vadd.f32 %v120, %v121
    %v123 = vrot.slane %v122, 2
    %v124 = vadd.f32 %v122, %v123
    %v125 = vrot.slane %v124, 1
    %v126 = vadd.f32 %v124, %v125
    %v127 = vrcp.pop 2.0
    %v128 = vmul.f32 2.0, %v127
    %v129 = vsub.f32 1.0, %v128
    %v130 = vmul.f32 %v127, %v129
    %v131 = vadd.f32 %v127, %v130
    %vm132 = vweird.f32 %v127
    %v133 = vsel %vm132, %v127, %v131
    %v134 = vmul.f32 %v77, %v133
    %v135 = vmul.f32 %v84, %v133
    %v136 = vmul.f32 %v91, %v133
    %v137 = vmul.f32 %v98, %v133
    %v138 = vmul.f32 %v105, %v133
    %v139 = vmul.f32 %v112, %v133
    %v140 = vmul.f32 %v119, %v133
    %v141 = vmul.f32 %v126, %v133
    %v142 = vld [vmem:[#allocation2] sm:$0xff]
    %v143 = vld [vmem:[#allocation2 + $0x8] sm:$0xff]
    %v144 = vld [vmem:[#allocation2 + $0x10] sm:$0xff]
    %v145 = vld [vmem:[#allocation2 + $0x18] sm:$0xff]
    %v146 = vld [vmem:[#allocation2 + $0x20] sm:$0xff]
    %v147 = vld [vmem:[#allocation2 + $0x28] sm:$0xff]
    %v148 = vld [vmem:[#allocation2 + $0x30] sm:$0xff]
    %v149 = vld [vmem:[#allocation2 + $0x38] sm:$0xff]
    %v150 = vld [vmem:[#allocation2 + $0x40] sm:$0xff]
    %v151 = vld [vmem:[#allocation2 + $0x48] sm:$0xff]
    %v152 = vld [vmem:[#allocation2 + $0x50] sm:$0xff]
    %v153 = vld [vmem:[#allocation2 + $0x58] sm:$0xff]
    %v154 = vld [vmem:[#allocation2 + $0x60] sm:$0xff]
    %v155 = vld [vmem:[#allocation2 + $0x68] sm:$0xff]
    %v156 = vld [vmem:[#allocation2 + $0x70] sm:$0xff]
    %v157 = vld [vmem:[#allocation2 + $0x78] sm:$0xff]
    %v158 = vld [vmem:[#allocation2 + $0x80] sm:$0xff]
    %v159 = vld [vmem:[#allocation2 + $0x88] sm:$0xff]
    %v160 = vld [vmem:[#allocation2 + $0x90] sm:$0xff]
    %v161 = vld [vmem:[#allocation2 + $0x98] sm:$0xff]
    %v162 = vld [vmem:[#allocation2 + $0xa0] sm:$0xff]
    %v163 = vld [vmem:[#allocation2 + $0xa8] sm:$0xff]
    %v164 = vld [vmem:[#allocation2 + $0xb0] sm:$0xff]
    %v165 = vld [vmem:[#allocation2 + $0xb8] sm:$0xff]
    %v166 = vld [vmem:[#allocation2 + $0xc0] sm:$0xff]
    %v167 = vld [vmem:[#allocation2 + $0xc8] sm:$0xff]
    %v168 = vld [vmem:[#allocation2 + $0xd0] sm:$0xff]
    %v169 = vld [vmem:[#allocation2 + $0xd8] sm:$0xff]
    %v170 = vld [vmem:[#allocation2 + $0xe0] sm:$0xff]
    %v171 = vld [vmem:[#allocation2 + $0xe8] sm:$0xff]
    %v172 = vld [vmem:[#allocation2 + $0xf0] sm:$0xff]
    %v173 = vld [vmem:[#allocation2 + $0xf8] sm:$0xff]
    %v174 = vld [vmem:[#allocation2 + $0x100] sm:$0xff]
    %v175 = vld [vmem:[#allocation2 + $0x108] sm:$0xff]
    %v176 = vld [vmem:[#allocation2 + $0x110] sm:$0xff]
    %v177 = vld [vmem:[#allocation2 + $0x118] sm:$0xff]
    %v178 = vld [vmem:[#allocation2 + $0x120] sm:$0xff]
    %v179 = vld [vmem:[#allocation2 + $0x128] sm:$0xff]
    %v180 = vld [vmem:[#allocation2 + $0x130] sm:$0xff]
    %v181 = vld [vmem:[#allocation2 + $0x138] sm:$0xff]
    %v182 = vld [vmem:[#allocation2 + $0x140] sm:$0xff]
    %v183 = vld [vmem:[#allocation2 + $0x148] sm:$0xff]
    %v184 = vld [vmem:[#allocation2 + $0x150] sm:$0xff]
    %v185 = vld [vmem:[#allocation2 + $0x158] sm:$0xff]
    %v186 = vld [vmem:[#allocation2 + $0x160] sm:$0xff]
    %v187 = vld [vmem:[#allocation2 + $0x168] sm:$0xff]
    %v188 = vld [vmem:[#allocation2 + $0x170] sm:$0xff]
    %v189 = vld [vmem:[#allocation2 + $0x178] sm:$0xff]
    %v190 = vld [vmem:[#allocation2 + $0x180] sm:$0xff]
    %v191 = vld [vmem:[#allocation2 + $0x188] sm:$0xff]
    %v192 = vld [vmem:[#allocation2 + $0x190] sm:$0xff]
    %v193 = vld [vmem:[#allocation2 + $0x198] sm:$0xff]
    %v194 = vld [vmem:[#allocation2 + $0x1a0] sm:$0xff]
    %v195 = vld [vmem:[#allocation2 + $0x1a8] sm:$0xff]
    %v196 = vld [vmem:[#allocation2 + $0x1b0] sm:$0xff]
    %v197 = vld [vmem:[#allocation2 + $0x1b8] sm:$0xff]
    %v198 = vld [vmem:[#allocation2 + $0x1c0] sm:$0xff]
    %v199 = vld [vmem:[#allocation2 + $0x1c8] sm:$0xff]
    %v200 = vld [vmem:[#allocation2 + $0x1d0] sm:$0xff]
    %v201 = vld [vmem:[#allocation2 + $0x1d8] sm:$0xff]
    %v202 = vld [vmem:[#allocation2 + $0x1e0] sm:$0xff]
    %v203 = vld [vmem:[#allocation2 + $0x1e8] sm:$0xff]
    %v204 = vld [vmem:[#allocation2 + $0x1f0] sm:$0xff]
    %v205 = vld [vmem:[#allocation2 + $0x1f8] sm:$0xff]
    %v206 = vld [vmem:[#allocation5] sm:$0x1]
    %v208 = vperm.slane %v206, 0
    %vm218 = vcmask 1041409
    %v219 = vsel %vm218, %v138, %v134
    %v220 = vsel %vm218, %v139, %v135
    %v221 = vsel %vm218, %v140, %v136
    %v222 = vsel %vm218, %v141, %v137
    %227 = vmatpush.msra.mxu0 %v157
    %228 = vmatpush.msra.mxu0 %v156
    %229 = vmatpush.msra.mxu0 %v155
    %230 = vmatpush.msra.mxu0 %v154
    %231 = vmatpush.msra.mxu0 %v153
    %232 = vmatpush.msra.mxu0 %v152
    %233 = vmatpush.msra.mxu0 %v151
    %234 = vmatpush.msra.mxu0 %v150
    %235 = vmatpush.msra.mxu0 %v149
    %236 = vmatpush.msra.mxu0 %v148
    %237 = vmatpush.msra.mxu0 %v147
    %238 = vmatpush.msra.mxu0 %v146
    %239 = vmatpush.msra.mxu0 %v145
    %240 = vmatpush.msra.mxu0 %v144
    %241 = vmatpush.msra.mxu0 %v143
    %242 = vmatpush.msra.mxu0 %v142
    %243 = vmatmul.f32.gmra.mxu0 %v219
    %v244 = vpop.f32.mrf.mxu0
    %v245 = vadd.f32 %v208, %v244
    %246 = vdwg.mxu0
    %247 = vmatpush.msra.mxu0 %v173
    %248 = vmatpush.msra.mxu0 %v172
    %249 = vmatpush.msra.mxu0 %v171
    %250 = vmatpush.msra.mxu0 %v170
    %251 = vmatpush.msra.mxu0 %v169
    %252 = vmatpush.msra.mxu0 %v168
    %253 = vmatpush.msra.mxu0 %v167
    %254 = vmatpush.msra.mxu0 %v166
    %255 = vmatpush.msra.mxu0 %v165
    %256 = vmatpush.msra.mxu0 %v164
    %257 = vmatpush.msra.mxu0 %v163
    %258 = vmatpush.msra.mxu0 %v162
    %259 = vmatpush.msra.mxu0 %v161
    %260 = vmatpush.msra.mxu0 %v160
    %261 = vmatpush.msra.mxu0 %v159
    %262 = vmatpush.msra.mxu0 %v158
    %263 = vmatmul.f32.gmra.mxu0 %v220
    %v264 = vpop.f32.mrf.mxu0
    %v265 = vadd.f32 %v245, %v264
    %266 = vdwg.mxu0
    %267 = vmatpush.msra.mxu0 %v189
    %268 = vmatpush.msra.mxu0 %v188
    %269 = vmatpush.msra.mxu0 %v187
    %270 = vmatpush.msra.mxu0 %v186
    %271 = vmatpush.msra.mxu0 %v185
    %272 = vmatpush.msra.mxu0 %v184
    %273 = vmatpush.msra.mxu0 %v183
    %274 = vmatpush.msra.mxu0 %v182
    %275 = vmatpush.msra.mxu0 %v181
    %276 = vmatpush.msra.mxu0 %v180
    %277 = vmatpush.msra.mxu0 %v179
    %278 = vmatpush.msra.mxu0 %v178
    %279 = vmatpush.msra.mxu0 %v177
    %280 = vmatpush.msra.mxu0 %v176
    %281 = vmatpush.msra.mxu0 %v175
    %282 = vmatpush.msra.mxu0 %v174
    %283 = vmatmul.f32.gmra.mxu0 %v221
    %v284 = vpop.f32.mrf.mxu0
    %v285 = vadd.f32 %v265, %v284
    %286 = vdwg.mxu0
    %287 = vmatpush.msra.mxu0 %v205
    %288 = vmatpush.msra.mxu0 %v204
    %289 = vmatpush.msra.mxu0 %v203
    %290 = vmatpush.msra.mxu0 %v202
    %291 = vmatpush.msra.mxu0 %v201
    %292 = vmatpush.msra.mxu0 %v200
    %293 = vmatpush.msra.mxu0 %v199
    %294 = vmatpush.msra.mxu0 %v198
    %295 = vmatpush.msra.mxu0 %v197
    %296 = vmatpush.msra.mxu0 %v196
    %297 = vmatpush.msra.mxu0 %v195
    %298 = vmatpush.msra.mxu0 %v194
    %299 = vmatpush.msra.mxu0 %v193
    %300 = vmatpush.msra.mxu0 %v192
    %301 = vmatpush.msra.mxu0 %v191
    %302 = vmatpush.msra.mxu0 %v190
    %303 = vmatmul.f32.gmra.mxu0 %v222
    %v304 = vpop.f32.mrf.mxu0
    %v305 = vadd.f32 %v285, %v304
    %306 = vdwg.mxu0
    %307 = vst [vmem:[#allocation7] sm:$0x3] %v305
    // Predicated region
    $region22: #{resnet1d_forward.13} parent=1 // pred_check
      _
    $region23: #{resnet1d_forward.13} parent=1 // pred_check_branch
      %309 = sbr.rel (0) target = $region25
    $region24: #{resnet1d_forward.13} parent=1 // pred_region
      %311 = vsyncadd [#allocation4], 0
      %s313 = sshll.u32 [#allocation7], 4
      %s314 = int_to_ptr.vmem [resolvable:$true] %s313
      %s315 = sshll.u32 %s3, 4
      %s316 = int_to_ptr.hbm [resolvable:$true] %s315
      %318 = dma.vmem_to_hbm [thread:$0]  %s314, 32, %s316, [#allocation4]
    $region25: #{resnet1d_forward.13} parent=1 // pred_fallthru
      _
    // Predicated region
    $region26: #{resnet1d_forward.13} parent=1 // pred_check
      _
    $region27: #{resnet1d_forward.13} parent=1 // pred_check_branch
      %320 = sbr.rel (0) target = $region29
    $region28: #{resnet1d_forward.13} parent=1 // pred_region
      %322 = dma.done [#allocation4], 32
    $region29: #{resnet1d_forward.13} parent=1 // pred_fallthru
      _
    %323 = vsyncpa [#allocation3], 1
    %324 = vsyncpa [#allocation6], 1
    %325 = vsyncpa [#allocation4], 1

// kernel: resnet1d_forward.11
$region0: #{resnet1d_forward.11}
  #allocation0 [shape = 'u32[]', space=smem, size = 0x4, offset = 0x4, fixed_abs, tag = 'smem constant byte address 0x4 - core index']
  #allocation1 [shape = 'u32[72,128]{1,0:T(1,128)}', space=vmem, size = 0x9000, scoped, tag = 'internal scratch']
  #allocation2 [shape = 'f32[6,256]{1,0:T(8,128)}', space=vmem, size = 0x2000, scoped, tag = 'scratch operand']
  %s0 = inlined_call_operand.vmem [shape: bf16[2,5,128], index: 0, kind: input, shape index: {}]
  %s1 = inlined_call_operand.vmem [shape: bf16[2,5,128], index: 1, kind: input, shape index: {}]
  %s2 = inlined_call_operand.hbm [shape: bf16[3,128,256], index: 2, kind: input, shape index: {}]
  %s3 = inlined_call_operand.hbm [shape: f32[1,256], index: 3, kind: input, shape index: {}]
  %s4 = inlined_call_operand.hbm [shape: bf16[3,256,256], index: 4, kind: input, shape index: {}]
  %s5 = inlined_call_operand.hbm [shape: f32[1,256], index: 5, kind: input, shape index: {}]
  %s6 = inlined_call_operand.hbm [shape: bf16[1,128,256], index: 6, kind: input, shape index: {}]
  %s7 = inlined_call_operand.hbm [shape: f32[1,256], index: 7, kind: input, shape index: {}]
  %s8 = inlined_call_operand.vmem [shape: bf16[2,4,256], index: 8, kind: output, shape index: {}]
  %s9 = sld [smem:[#allocation0]]
  $region89: #{resnet1d_forward.11} parent=0
    _
  %s11 = ssub.s32 1, %s9
  %s12 = scalar_select 0, %s11, %s9
  $region1: #{resnet1d_forward.11} parent=0
    #allocation3 [shape = 'u8[196608]{0}', space=vmem, size = 0x30000, scoped, tag = 'input window, operand 2, single buffered']
    #allocation4 [shape = 's32[2]{0}', space=sflag, size = 0x8, scoped, tag = 'scoped memory for resnet1d_forward.11']
    #allocation5 [shape = 'u8[1024]{0}', space=vmem, size = 0x400, scoped, tag = 'input window, operand 3, single buffered']
    #allocation6 [shape = 's32[1]{0}', space=sflag, size = 0x4, scoped, tag = 'scoped memory for resnet1d_forward.11']
    #allocation7 [shape = 'u8[393216]{0}', space=vmem, size = 0x60000, scoped, tag = 'input window, operand 4, single buffered']
    #allocation8 [shape = 'u8[1024]{0}', space=vmem, size = 0x400, scoped, tag = 'input window, operand 5, single buffered']
    #allocation9 [shape = 's32[1]{0}', space=sflag, size = 0x4, scoped, tag = 'scoped memory for resnet1d_forward.11']
    #allocation10 [shape = 'u8[65536]{0}', space=vmem, size = 0x10000, scoped, tag = 'input window, operand 6, single buffered']
    #allocation11 [shape = 'u8[1024]{0}', space=vmem, size = 0x400, scoped, tag = 'input window, operand 7, single buffered']
    #allocation12 [shape = 's32[1]{0}', space=sflag, size = 0x4, scoped, tag = 'scoped memory for resnet1d_forward.11']
    %13 = vsyncpa [#allocation4], 0
    %14 = vsyncpa [#allocation6], 0
    %15 = vsyncpa [#allocation9], 0
    %16 = vsyncpa [#allocation12], 0
    loop: start=0, step=1, limit=4
    $region2: #{resnet1d_forward.11} parent=1 // loop_pre_header
      _
    $region3: #{resnet1d_forward.11} parent=1 // loop_header
      %s18 = sphi 0, %s22
      %p19 = scmp.ge.s32.totalorder %s18, 4
      %s28 = sphi 0, %s30
      %s31 = sphi 0, %s28
      %s32 = sphi 0, %s31
      %s48 = sphi 0, %s32
      %s54 = sphi 0, %s56
      %s57 = sphi 0, %s54
      %s58 = sphi 0, %s57
      %s74 = sphi 0, %s58
      %s78 = sphi 0, %s78
      %s80 = sphi 0, %s78
      %s81 = sphi 0, %s80
      %s95 = sphi 0, %s81
      %s99 = sphi 0, %s99
      %s101 = sphi 0, %s99
      %s102 = sphi 0, %s101
      %s116 = sphi 0, %s102
      %s120 = sphi 0, %s120
      %s122 = sphi 0, %s120
      %s123 = sphi 0, %s122
      %s137 = sphi 0, %s123
      %s141 = sphi 0, %s141
      %s143 = sphi 0, %s141
      %s144 = sphi 0, %s143
      %s158 = sphi 0, %s144
      %s162 = sphi 0, %s162
      %s164 = sphi 0, %s162
      %s165 = sphi 0, %s164
      %s179 = sphi 0, %s165
      %s183 = sphi 0, %s183
      %s185 = sphi 0, %s183
      %s186 = sphi 0, %s185
      %s200 = sphi 0, %s186
      %s206 = sphi 0, %s208
      %s209 = sphi 0, %s206
      %s210 = sphi 0, %s209
      %s226 = sphi 0, %s210
    $region4: #{resnet1d_forward.11} parent=1 // loop_header_branch
      %21 = sbr.rel (%p19) target = $region8
    $region5: #{resnet1d_forward.11} parent=1 // loop_body
      %s23 = ssub.s32 %s18, 1
      %s24 = ssub.s32 %s18, 2
      %s25 = sadd.s32 %s18, 1
      %s26 = ssub.s32 %s18, %s25
      %p27 = scmp.eq.s32.totalorder %s26, 0
      %s29 = sadd.s32 %s28, 1
      %s30 = scalar_select %p27, %s28, %s29
      %p33 = pneg %p27
      %p34 = scmp.eq.s32.totalorder %s18, 1
      %p35 = por %p33, %p34
      %p36 = scmp.ne.s32.totalorder %s28, %s31
      %p37 = scmp.eq.s32.totalorder %s18, 0
      %p38 = por %p36, %p37
      %p39 = scmp.ne.s32.totalorder %s28, %s31
      %p40 = scmp.eq.s32.totalorder %s23, 1
      %p41 = por %p39, %p40
      %p42 = scmp.ne.s32.totalorder %s31, %s32
      %p43 = scmp.eq.s32.totalorder %s23, 0
      %p44 = por %p42, %p43
      %p45 = scmp.ne.s32.totalorder %s31, %s32
      %p46 = scmp.eq.s32.totalorder %s24, 1
      %p47 = por %p45, %p46
      %p49 = scmp.ne.s32.totalorder %s32, %s48
      %p50 = scmp.eq.s32.totalorder %s24, 0
      %p51 = por %p49, %p50
      %s52 = ssub.s32 %s18, %s25
      %p53 = scmp.eq.s32.totalorder %s52, 0
      %s55 = sadd.s32 %s54, 1
      %s56 = scalar_select %p53, %s54, %s55
      %p59 = pneg %p53
      %p60 = scmp.eq.s32.totalorder %s18, 1
      %p61 = por %p59, %p60
      %p62 = scmp.ne.s32.totalorder %s54, %s57
      %p63 = scmp.eq.s32.totalorder %s18, 0
      %p64 = por %p62, %p63
      %p65 = scmp.ne.s32.totalorder %s54, %s57
      %p66 = scmp.eq.s32.totalorder %s23, 1
      %p67 = por %p65, %p66
      %p68 = scmp.ne.s32.totalorder %s57, %s58
      %p69 = scmp.eq.s32.totalorder %s23, 0
      %p70 = por %p68, %p69
      %p71 = scmp.ne.s32.totalorder %s57, %s58
      %p72 = scmp.eq.s32.totalorder %s24, 1
      %p73 = por %p71, %p72
      %p75 = scmp.ne.s32.totalorder %s58, %s74
      %p76 = scmp.eq.s32.totalorder %s24, 0
      %p77 = por %p75, %p76
      %s79 = sadd.s32 %s78, 1
      %p82 = scmp.eq.s32.totalorder %s18, 1
      %p83 = scmp.ne.s32.totalorder %s78, %s80
      %p84 = scmp.eq.s32.totalorder %s18, 0
      %p85 = por %p83, %p84
      %p86 = scmp.ne.s32.totalorder %s78, %s80
      %p87 = scmp.eq.s32.totalorder %s23, 1
      %p88 = por %p86, %p87
      %p89 = scmp.ne.s32.totalorder %s80, %s81
      %p90 = scmp.eq.s32.totalorder %s23, 0
      %p91 = por %p89, %p90
      %p92 = scmp.ne.s32.totalorder %s80, %s81
      %p93 = scmp.eq.s32.totalorder %s24, 1
      %p94 = por %p92, %p93
      %p96 = scmp.ne.s32.totalorder %s81, %s95
      %p97 = scmp.eq.s32.totalorder %s24, 0
      %p98 = por %p96, %p97
      %s100 = sadd.s32 %s99, 1
      %p103 = scmp.eq.s32.totalorder %s18, 1
      %p104 = scmp.ne.s32.totalorder %s99, %s101
      %p105 = scmp.eq.s32.totalorder %s18, 0
      %p106 = por %p104, %p105
      %p107 = scmp.ne.s32.totalorder %s99, %s101
      %p108 = scmp.eq.s32.totalorder %s23, 1
      %p109 = por %p107, %p108
      %p110 = scmp.ne.s32.totalorder %s101, %s102
      %p111 = scmp.eq.s32.totalorder %s23, 0
      %p112 = por %p110, %p111
      %p113 = scmp.ne.s32.totalorder %s101, %s102
      %p114 = scmp.eq.s32.totalorder %s24, 1
      %p115 = por %p113, %p114
      %p117 = scmp.ne.s32.totalorder %s102, %s116
      %p118 = scmp.eq.s32.totalorder %s24, 0
      %p119 = por %p117, %p118
      %s121 = sadd.s32 %s120, 1
      %p124 = scmp.eq.s32.totalorder %s18, 1
      %p125 = scmp.ne.s32.totalorder %s120, %s122
      %p126 = scmp.eq.s32.totalorder %s18, 0
      %p127 = por %p125, %p126
      %p128 = scmp.ne.s32.totalorder %s120, %s122
      %p129 = scmp.eq.s32.totalorder %s23, 1
      %p130 = por %p128, %p129
      %p131 = scmp.ne.s32.totalorder %s122, %s123
      %p132 = scmp.eq.s32.totalorder %s23, 0
      %p133 = por %p131, %p132
      %p134 = scmp.ne.s32.totalorder %s122, %s123
      %p135 = scmp.eq.s32.totalorder %s24, 1
      %p136 = por %p134, %p135
      %p138 = scmp.ne.s32.totalorder %s123, %s137
      %p139 = scmp.eq.s32.totalorder %s24, 0
      %p140 = por %p138, %p139
      %s142 = sadd.s32 %s141, 1
      %p145 = scmp.eq.s32.totalorder %s18, 1
      %p146 = scmp.ne.s32.totalorder %s141, %s143
      %p147 = scmp.eq.s32.totalorder %s18, 0
      %p148 = por %p146, %p147
      %p149 = scmp.ne.s32.totalorder %s141, %s143
      %p150 = scmp.eq.s32.totalorder %s23, 1
      %p151 = por %p149, %p150
      %p152 = scmp.ne.s32.totalorder %s143, %s144
      %p153 = scmp.eq.s32.totalorder %s23, 0
      %p154 = por %p152, %p153
      %p155 = scmp.ne.s32.totalorder %s143, %s144
      %p156 = scmp.eq.s32.totalorder %s24, 1
      %p157 = por %p155, %p156
      %p159 = scmp.ne.s32.totalorder %s144, %s158
      %p160 = scmp.eq.s32.totalorder %s24, 0
      %p161 = por %p159, %p160
      %s163 = sadd.s32 %s162, 1
      %p166 = scmp.eq.s32.totalorder %s18, 1
      %p167 = scmp.ne.s32.totalorder %s162, %s164
      %p168 = scmp.eq.s32.totalorder %s18, 0
      %p169 = por %p167, %p168
      %p170 = scmp.ne.s32.totalorder %s162, %s164
      %p171 = scmp.eq.s32.totalorder %s23, 1
      %p172 = por %p170, %p171
      %p173 = scmp.ne.s32.totalorder %s164, %s165
      %p174 = scmp.eq.s32.totalorder %s23, 0
      %p175 = por %p173, %p174
      %p176 = scmp.ne.s32.totalorder %s164, %s165
      %p177 = scmp.eq.s32.totalorder %s24, 1
      %p178 = por %p176, %p177
      %p180 = scmp.ne.s32.totalorder %s165, %s179
      %p181 = scmp.eq.s32.totalorder %s24, 0
      %p182 = por %p180, %p181
      %s184 = sadd.s32 %s183, 1
      %p187 = scmp.eq.s32.totalorder %s18, 1
      %p188 = scmp.ne.s32.totalorder %s183, %s185
      %p189 = scmp.eq.s32.totalorder %s18, 0
      %p190 = por %p188, %p189
      %p191 = scmp.ne.s32.totalorder %s183, %s185
      %p192 = scmp.eq.s32.totalorder %s23, 1
      %p193 = por %p191, %p192
      %p194 = scmp.ne.s32.totalorder %s185, %s186
      %p195 = scmp.eq.s32.totalorder %s23, 0
      %p196 = por %p194, %p195
      %p197 = scmp.ne.s32.totalorder %s185, %s186
      %p198 = scmp.eq.s32.totalorder %s24, 1
      %p199 = por %p197, %p198
      %p201 = scmp.ne.s32.totalorder %s186, %s200
      %p202 = scmp.eq.s32.totalorder %s24, 0
      %p203 = por %p201, %p202
      %s204 = ssub.s32 %s18, %s25
      %p205 = scmp.eq.s32.totalorder %s204, 0
      %s207 = sadd.s32 %s206, 1
      %s208 = scalar_select %p205, %s206, %s207
      %p211 = pneg %p205
      %p212 = scmp.eq.s32.totalorder %s18, 1
      %p213 = por %p211, %p212
      %p214 = scmp.ne.s32.totalorder %s206, %s209
      %p215 = scmp.eq.s32.totalorder %s18, 0
      %p216 = por %p214, %p215
      %p217 = scmp.ne.s32.totalorder %s206, %s209
      %p218 = scmp.eq.s32.totalorder %s23, 1
      %p219 = por %p217, %p218
      %p220 = scmp.ne.s32.totalorder %s209, %s210
      %p221 = scmp.eq.s32.totalorder %s23, 0
      %p222 = por %p220, %p221
      %p223 = scmp.ne.s32.totalorder %s209, %s210
      %p224 = scmp.eq.s32.totalorder %s24, 1
      %p225 = por %p223, %p224
      %p227 = scmp.ne.s32.totalorder %s210, %s226
      %p228 = scmp.eq.s32.totalorder %s24, 0
      %p229 = por %p227, %p228
      %p230 = scmp.le.s32.totalorder 1, %s18
      %p231 = scmp.lt.s32.totalorder %s18, 3
      %p232 = pnand %p230, %p231
      %p233 = pneg %p232
      // Predicated region
      $region9: #{resnet1d_forward.11} parent=5 // pred_check
        _
      $region10: #{resnet1d_forward.11} parent=5 // pred_check_branch
        %235 = sbr.rel (%p232) target = $region12
      $region11: #{resnet1d_forward.11} parent=5 // pred_region
        %s236 = ssub.s32 %s18, 1
        // Predicated region
        $region13: #{resnet1d_forward.11} parent=11 // pred_check
          %p237 = pneg %p91
        $region14: #{resnet1d_forward.11} parent=11 // pred_check_branch
          %239 = sbr.rel (%p237) target = $region16
        $region15: #{resnet1d_forward.11} parent=11 // pred_region
          %241 = vsyncadd [#allocation4], 0
          %s242 = sshll.u32 %s2, 4
          %s243 = int_to_ptr.hbm [resolvable:$true] %s242
          %s244 = sshll.u32 [#allocation3], 4
          %s245 = int_to_ptr.vmem [resolvable:$true] %s244
          %250 = dma.hbm_to_vmem [thread:$0]  %s243, 6144, %s245, [#allocation4], 128, 128, 8
        $region16: #{resnet1d_forward.11} parent=11 // pred_fallthru
          _
        // Predicated region
        $region17: #{resnet1d_forward.11} parent=11 // pred_check
          %p251 = pneg %p112
        $region18: #{resnet1d_forward.11} parent=11 // pred_check_branch
          %253 = sbr.rel (%p251) target = $region20
        $region19: #{resnet1d_forward.11} parent=11 // pred_region
          %255 = vsyncadd [#allocation6], 0
          %s257 = sshll.u32 %s3, 4
          %s258 = int_to_ptr.hbm [resolvable:$true] %s257
          %s259 = sshll.u32 [#allocation5], 4
          %s260 = int_to_ptr.vmem [resolvable:$true] %s259
          %262 = dma.hbm_to_vmem [thread:$0]  %s258, 32, %s260, [#allocation6]
        $region20: #{resnet1d_forward.11} parent=11 // pred_fallthru
          _
        // Predicated region
        $region21: #{resnet1d_forward.11} parent=11 // pred_check
          %p263 = pneg %p133
        $region22: #{resnet1d_forward.11} parent=11 // pred_check_branch
          %265 = sbr.rel (%p263) target = $region24
        $region23: #{resnet1d_forward.11} parent=11 // pred_region
          %267 = vsyncadd [#allocation6], 0
          %s268 = sshll.u32 %s4, 4
          %s269 = int_to_ptr.hbm [resolvable:$true] %s268
          %s270 = sshll.u32 [#allocation7], 4
          %s271 = int_to_ptr.vmem [resolvable:$true] %s270
          %276 = dma.hbm_to_vmem [thread:$0]  %s269, 12288, %s271, [#allocation6], 128, 128, 8
        $region24: #{resnet1d_forward.11} parent=11 // pred_fallthru
          _
        // Predicated region
        $region25: #{resnet1d_forward.11} parent=11 // pred_check
          %p277 = pneg %p154
        $region26: #{resnet1d_forward.11} parent=11 // pred_check_branch
          %279 = sbr.rel (%p277) target = $region28
        $region27: #{resnet1d_forward.11} parent=11 // pred_region
          %281 = vsyncadd [#allocation9], 0
          %s283 = sshll.u32 %s5, 4
          %s284 = int_to_ptr.hbm [resolvable:$true] %s283
          %s285 = sshll.u32 [#allocation8], 4
          %s286 = int_to_ptr.vmem [resolvable:$true] %s285
          %288 = dma.hbm_to_vmem [thread:$0]  %s284, 32, %s286, [#allocation9]
        $region28: #{resnet1d_forward.11} parent=11 // pred_fallthru
          _
        // Predicated region
        $region29: #{resnet1d_forward.11} parent=11 // pred_check
          %p289 = pneg %p175
        $region30: #{resnet1d_forward.11} parent=11 // pred_check_branch
          %291 = sbr.rel (%p289) target = $region32
        $region31: #{resnet1d_forward.11} parent=11 // pred_region
          %293 = vsyncadd [#allocation9], 0
          %s294 = sshll.u32 %s6, 4
          %s295 = int_to_ptr.hbm [resolvable:$true] %s294
          %s296 = sshll.u32 [#allocation10], 4
          %s297 = int_to_ptr.vmem [resolvable:$true] %s296
          %302 = dma.hbm_to_vmem [thread:$0]  %s295, 2048, %s297, [#allocation9], 128, 128, 8
        $region32: #{resnet1d_forward.11} parent=11 // pred_fallthru
          _
        // Predicated region
        $region33: #{resnet1d_forward.11} parent=11 // pred_check
          %p303 = pneg %p196
        $region34: #{resnet1d_forward.11} parent=11 // pred_check_branch
          %305 = sbr.rel (%p303) target = $region36
        $region35: #{resnet1d_forward.11} parent=11 // pred_region
          %307 = vsyncadd [#allocation12], 0
          %s309 = sshll.u32 %s7, 4
          %s310 = int_to_ptr.hbm [resolvable:$true] %s309
          %s311 = sshll.u32 [#allocation11], 4
          %s312 = int_to_ptr.vmem [resolvable:$true] %s311
          %314 = dma.hbm_to_vmem [thread:$0]  %s310, 32, %s312, [#allocation12]
        $region36: #{resnet1d_forward.11} parent=11 // pred_fallthru
          _
      $region12: #{resnet1d_forward.11} parent=5 // pred_fallthru
        _
      %p315 = scmp.lt.s32.totalorder %s18, 2
      // Predicated region
      $region37: #{resnet1d_forward.11} parent=5 // pred_check
        %p316 = pneg %p315
      $region38: #{resnet1d_forward.11} parent=5 // pred_check_branch
        %318 = sbr.rel (%p316) target = $region40
      $region39: #{resnet1d_forward.11} parent=5 // pred_region
        // Predicated region
        $region41: #{resnet1d_forward.11} parent=39 // pred_check
          %p319 = pneg %p38
        $region42: #{resnet1d_forward.11} parent=39 // pred_check_branch
          %321 = sbr.rel (%p319) target = $region44
        $region43: #{resnet1d_forward.11} parent=39 // pred_region
          %p322 = scmp.lt.s32.totalorder %s18, 1
          %s323 = scalar_select %p322, %s18, 1
          %s324 = smul.addr %s323, 4
          %s325 = scalar_lea.vmem %s0, %s324
        $region44: #{resnet1d_forward.11} parent=39 // pred_fallthru
          _
        // Predicated region
        $region45: #{resnet1d_forward.11} parent=39 // pred_check
          %p326 = pneg %p64
        $region46: #{resnet1d_forward.11} parent=39 // pred_check_branch
          %328 = sbr.rel (%p326) target = $region48
        $region47: #{resnet1d_forward.11} parent=39 // pred_region
          %p329 = scmp.lt.s32.totalorder %s18, 1
          %s330 = scalar_select %p329, %s18, 1
          %s331 = smul.addr %s330, 4
          %s332 = scalar_lea.vmem %s1, %s331
        $region48: #{resnet1d_forward.11} parent=39 // pred_fallthru
          _
      $region40: #{resnet1d_forward.11} parent=5 // pred_fallthru
        _
      %p333 = scmp.le.s32.totalorder 1, %s18
      %p334 = scmp.lt.s32.totalorder %s18, 3
      %p335 = pnand %p333, %p334
      %p336 = pneg %p335
      // Predicated region
      $region49: #{resnet1d_forward.11} parent=5 // pred_check
        _
      $region50: #{resnet1d_forward.11} parent=5 // pred_check_branch
        %338 = sbr.rel (%p335) target = $region52
      $region51: #{resnet1d_forward.11} parent=5 // pred_region
        %s339 = ssub.s32 %s18, 1
        // Predicated region
        $region53: #{resnet1d_forward.11} parent=51 // pred_check
          %p340 = pneg %p91
        $region54: #{resnet1d_forward.11} parent=51 // pred_check_branch
          %342 = sbr.rel (%p340) target = $region56
        $region55: #{resnet1d_forward.11} parent=51 // pred_region
          %344 = dma.done [#allocation4], 6144
        $region56: #{resnet1d_forward.11} parent=51 // pred_fallthru
          _
        // Predicated region
        $region57: #{resnet1d_forward.11} parent=51 // pred_check
          %p345 = pneg %p112
        $region58: #{resnet1d_forward.11} parent=51 // pred_check_branch
          %347 = sbr.rel (%p345) target = $region60
        $region59: #{resnet1d_forward.11} parent=51 // pred_region
          %349 = dma.done [#allocation6], 32
        $region60: #{resnet1d_forward.11} parent=51 // pred_fallthru
          _
        // Predicated region
        $region61: #{resnet1d_forward.11} parent=51 // pred_check
          %p350 = pneg %p133
        $region62: #{resnet1d_forward.11} parent=51 // pred_check_branch
          %352 = sbr.rel (%p350) target = $region64
        $region63: #{resnet1d_forward.11} parent=51 // pred_region
          %354 = dma.done [#allocation6], 12288
        $region64: #{resnet1d_forward.11} parent=51 // pred_fallthru
          _
        // Predicated region
        $region65: #{resnet1d_forward.11} parent=51 // pred_check
          %p355 = pneg %p154
        $region66: #{resnet1d_forward.11} parent=51 // pred_check_branch
          %357 = sbr.rel (%p355) target = $region68
        $region67: #{resnet1d_forward.11} parent=51 // pred_region
          %359 = dma.done [#allocation9], 32
        $region68: #{resnet1d_forward.11} parent=51 // pred_fallthru
          _
        // Predicated region
        $region69: #{resnet1d_forward.11} parent=51 // pred_check
          %p360 = pneg %p175
        $region70: #{resnet1d_forward.11} parent=51 // pred_check_branch
          %362 = sbr.rel (%p360) target = $region72
        $region71: #{resnet1d_forward.11} parent=51 // pred_region
          %364 = dma.done [#allocation9], 2048
        $region72: #{resnet1d_forward.11} parent=51 // pred_fallthru
          _
        // Predicated region
        $region73: #{resnet1d_forward.11} parent=51 // pred_check
          %p365 = pneg %p196
        $region74: #{resnet1d_forward.11} parent=51 // pred_check_branch
          %367 = sbr.rel (%p365) target = $region76
        $region75: #{resnet1d_forward.11} parent=51 // pred_region
          %369 = dma.done [#allocation12], 32
        $region76: #{resnet1d_forward.11} parent=51 // pred_fallthru
          _
        %p370 = scmp.lt.s32.totalorder %s23, 1
        %s371 = scalar_select %p370, %s23, 1
        %s372 = smul.addr %s371, 4
        %s373 = scalar_lea.vmem %s0, %s372
        %p374 = pneg %p44
        %p375 = pneg %p41
        %p376 = scmp.lt.s32.totalorder %s23, 1
        %s377 = scalar_select %p376, %s23, 1
        %s378 = smul.addr %s377, 4
        %s379 = scalar_lea.vmem %s1, %s378
        %p380 = pneg %p70
        %p381 = pneg %p67
        %p382 = pneg %p91
        %p383 = pneg %p88
        %p384 = pneg %p112
        %p385 = pneg %p109
        %p386 = pneg %p133
        %p387 = pneg %p130
        %p388 = pneg %p154
        %p389 = pneg %p151
        %p390 = pneg %p175
        %p391 = pneg %p172
        %p392 = pneg %p196
        %p393 = pneg %p193
        %p394 = pneg %p222
        %p395 = pneg %p219
        %p396 = scmp.lt.s32.totalorder %s23, 1
        %s397 = scalar_select %p396, %s23, 1
        %s398 = smul.addr %s397, 2
        %s399 = smul.addr %s398, 2
        %s400 = scalar_lea.vmem %s8, %s399
        %p401 = scmp.lt.s32.totalorder %s23, 1
        %s402 = scalar_select %p401, %s23, 1
        %s403 = smul.addr %s402, 4
        %s404 = scalar_lea.vmem %s0, %s403
        %p405 = scmp.lt.s32.totalorder %s23, 1
        %s406 = scalar_select %p405, %s23, 1
        %s407 = smul.addr %s406, 4
        %s408 = scalar_lea.vmem %s1, %s407
        %p409 = scmp.lt.s32.totalorder %s23, 1
        %s410 = scalar_select %p409, %s23, 1
        %s411 = smul.addr %s410, 2
        %s412 = smul.addr %s411, 2
        %s413 = scalar_lea.vmem %s8, %s412
        %v414 = vld [vmem:[%s404] sm:$0x3]
        %v415 = vld [vmem:[#allocation3] sm:$0xff]
        %v416 = vld [vmem:[#allocation3 + $0x8] sm:$0xff]
        %v417 = vld [vmem:[#allocation3 + $0x10] sm:$0xff]
        %v418 = vld [vmem:[#allocation3 + $0x18] sm:$0xff]
        %v419 = vld [vmem:[#allocation3 + $0x20] sm:$0xff]
        %v420 = vld [vmem:[#allocation3 + $0x28] sm:$0xff]
        %v421 = vld [vmem:[#allocation3 + $0x30] sm:$0xff]
        %v422 = vld [vmem:[#allocation3 + $0x38] sm:$0xff]
        %v423 = vld [vmem:[#allocation3 + $0x40] sm:$0xff]
        %v424 = vld [vmem:[#allocation3 + $0x48] sm:$0xff]
        %v425 = vld [vmem:[#allocation3 + $0x50] sm:$0xff]
        %v426 = vld [vmem:[#allocation3 + $0x58] sm:$0xff]
        %v427 = vld [vmem:[#allocation3 + $0x60] sm:$0xff]
        %v428 = vld [vmem:[#allocation3 + $0x68] sm:$0xff]
        %v429 = vld [vmem:[#allocation3 + $0x70] sm:$0xff]
        %v430 = vld [vmem:[#allocation3 + $0x78] sm:$0xff]
        %v431 = vld [vmem:[%s408] sm:$0x3]
        %s432 = scalar_lea.vmem [#allocation3], 128
        %v433 = vld [vmem:[%s432] sm:$0xff]
        %v434 = vld [vmem:[%s432 + $0x8] sm:$0xff]
        %v435 = vld [vmem:[%s432 + $0x10] sm:$0xff]
        %v436 = vld [vmem:[%s432 + $0x18] sm:$0xff]
        %v437 = vld [vmem:[%s432 + $0x20] sm:$0xff]
        %v438 = vld [vmem:[%s432 + $0x28] sm:$0xff]
        %v439 = vld [vmem:[%s432 + $0x30] sm:$0xff]
        %v440 = vld [vmem:[%s432 + $0x38] sm:$0xff]
        %v441 = vld [vmem:[%s432 + $0x40] sm:$0xff]
        %v442 = vld [vmem:[%s432 + $0x48] sm:$0xff]
        %v443 = vld [vmem:[%s432 + $0x50] sm:$0xff]
        %v444 = vld [vmem:[%s432 + $0x58] sm:$0xff]
        %v445 = vld [vmem:[%s432 + $0x60] sm:$0xff]
        %v446 = vld [vmem:[%s432 + $0x68] sm:$0xff]
        %v447 = vld [vmem:[%s432 + $0x70] sm:$0xff]
        %v448 = vld [vmem:[%s432 + $0x78] sm:$0xff]
        %v465 = vunpack.c.l.b16 %v433
        %v466 = vunpack.c.h.b16 %v433
        %v467 = vunpack.c.l.b16 %v434
        %v468 = vunpack.c.h.b16 %v434
        %v469 = vunpack.c.l.b16 %v435
        %v470 = vunpack.c.h.b16 %v435
        %v471 = vunpack.c.l.b16 %v436
        %v472 = vunpack.c.h.b16 %v436
        %v473 = vunpack.c.l.b16 %v437
        %v474 = vunpack.c.h.b16 %v437
        %v475 = vunpack.c.l.b16 %v438
        %v476 = vunpack.c.h.b16 %v438
        %v477 = vunpack.c.l.b16 %v439
        %v478 = vunpack.c.h.b16 %v439
        %v479 = vunpack.c.l.b16 %v440
        %v480 = vunpack.c.h.b16 %v440
        %v481 = vunpack.c.l.b16 %v441
        %v482 = vunpack.c.h.b16 %v441
        %v483 = vunpack.c.l.b16 %v442
        %v484 = vunpack.c.h.b16 %v442
        %v485 = vunpack.c.l.b16 %v443
        %v486 = vunpack.c.h.b16 %v443
        %v487 = vunpack.c.l.b16 %v444
        %v488 = vunpack.c.h.b16 %v444
        %v489 = vunpack.c.l.b16 %v445
        %v490 = vunpack.c.h.b16 %v445
        %v491 = vunpack.c.l.b16 %v446
        %v492 = vunpack.c.h.b16 %v446
        %v493 = vunpack.c.l.b16 %v447
        %v494 = vunpack.c.h.b16 %v447
        %v495 = vunpack.c.l.b16 %v448
        %v496 = vunpack.c.h.b16 %v448
        %v497 = vpack.c.b16 %v467, %v465
        %v498 = vpack.c.b16 %v468, %v466
        %v499 = vpack.c.b16 %v471, %v469
        %v500 = vpack.c.b16 %v472, %v470
        %v501 = vpack.c.b16 %v475, %v473
        %v502 = vpack.c.b16 %v476, %v474
        %v503 = vpack.c.b16 %v479, %v477
        %v504 = vpack.c.b16 %v480, %v478
        %v505 = vpack.c.b16 %v483, %v481
        %v506 = vpack.c.b16 %v484, %v482
        %v507 = vpack.c.b16 %v487, %v485
        %v508 = vpack.c.b16 %v488, %v486
        %v509 = vpack.c.b16 %v491, %v489
        %v510 = vpack.c.b16 %v492, %v490
        %v511 = vpack.c.b16 %v495, %v493
        %v512 = vpack.c.b16 %v496, %v494
        %529 = vmatpush.bf16.msra.mxu0 %v511
        %530 = vmatpush.bf16.msra.mxu0 %v509
        %531 = vmatpush.bf16.msra.mxu0 %v507
        %532 = vmatpush.bf16.msra.mxu0 %v505
        %533 = vmatpush.bf16.msra.mxu0 %v503
        %534 = vmatpush.bf16.msra.mxu0 %v501
        %535 = vmatpush.bf16.msra.mxu0 %v499
        %536 = vmatpush.bf16.msra.mxu0 %v497
        %537 = vmatmul.bf16.gmra.mxu0 %v431
        %v538 = vpop.f32.mrf.mxu0
        %v539 = vadd.f32 0.0, %v538
        %v540 = vpop.f32.mrf.mxu0
        %541 = vdwg.mxu0
        %542 = vmatpush.bf16.msra.mxu0 %v512
        %543 = vmatpush.bf16.msra.mxu0 %v510
        %544 = vmatpush.bf16.msra.mxu0 %v508
        %545 = vmatpush.bf16.msra.mxu0 %v506
        %546 = vmatpush.bf16.msra.mxu0 %v504
        %547 = vmatpush.bf16.msra.mxu0 %v502
        %548 = vmatpush.bf16.msra.mxu0 %v500
        %549 = vmatpush.bf16.msra.mxu0 %v498
        %550 = vmatmul.bf16.gmra.mxu0 %v431
        %v551 = vpop.f32.mrf.mxu0
        %v552 = vadd.f32 0.0, %v551
        %v553 = vpop.f32.mrf.mxu0
        %554 = vdwg.mxu0
        %v571 = vunpack.c.l.b16 %v415
        %v572 = vunpack.c.h.b16 %v415
        %v573 = vunpack.c.l.b16 %v416
        %v574 = vunpack.c.h.b16 %v416
        %v575 = vunpack.c.l.b16 %v417
        %v576 = vunpack.c.h.b16 %v417
        %v577 = vunpack.c.l.b16 %v418
        %v578 = vunpack.c.h.b16 %v418
        %v579 = vunpack.c.l.b16 %v419
        %v580 = vunpack.c.h.b16 %v419
        %v581 = vunpack.c.l.b16 %v420
        %v582 = vunpack.c.h.b16 %v420
        %v583 = vunpack.c.l.b16 %v421
        %v584 = vunpack.c.h.b16 %v421
        %v585 = vunpack.c.l.b16 %v422
        %v586 = vunpack.c.h.b16 %v422
        %v587 = vunpack.c.l.b16 %v423
        %v588 = vunpack.c.h.b16 %v423
        %v589 = vunpack.c.l.b16 %v424
        %v590 = vunpack.c.h.b16 %v424
        %v591 = vunpack.c.l.b16 %v425
        %v592 = vunpack.c.h.b16 %v425
        %v593 = vunpack.c.l.b16 %v426
        %v594 = vunpack.c.h.b16 %v426
        %v595 = vunpack.c.l.b16 %v427
        %v596 = vunpack.c.h.b16 %v427
        %v597 = vunpack.c.l.b16 %v428
        %v598 = vunpack.c.h.b16 %v428
        %v599 = vunpack.c.l.b16 %v429
        %v600 = vunpack.c.h.b16 %v429
        %v601 = vunpack.c.l.b16 %v430
        %v602 = vunpack.c.h.b16 %v430
        %v603 = vpack.c.b16 %v573, %v571
        %v604 = vpack.c.b16 %v574, %v572
        %v605 = vpack.c.b16 %v577, %v575
        %v606 = vpack.c.b16 %v578, %v576
        %v607 = vpack.c.b16 %v581, %v579
        %v608 = vpack.c.b16 %v582, %v580
        %v609 = vpack.c.b16 %v585, %v583
        %v610 = vpack.c.b16 %v586, %v584
        %v611 = vpack.c.b16 %v589, %v587
        %v612 = vpack.c.b16 %v590, %v588
        %v613 = vpack.c.b16 %v593, %v591
        %v614 = vpack.c.b16 %v594, %v592
        %v615 = vpack.c.b16 %v597, %v595
        %v616 = vpack.c.b16 %v598, %v596
        %v617 = vpack.c.b16 %v601, %v599
        %v618 = vpack.c.b16 %v602, %v600
        %635 = vmatpush.bf16.msra.mxu0 %v617
        %636 = vmatpush.bf16.msra.mxu0 %v615
        %637 = vmatpush.bf16.msra.mxu0 %v613
        %638 = vmatpush.bf16.msra.mxu0 %v611
        %639 = vmatpush.bf16.msra.mxu0 %v609
        %640 = vmatpush.bf16.msra.mxu0 %v607
        %641 = vmatpush.bf16.msra.mxu0 %v605
        %642 = vmatpush.bf16.msra.mxu0 %v603
        %643 = vmatmul.bf16.gmra.mxu0 %v414
        %v644 = vpop.f32.mrf.mxu0
        %v645 = vadd.f32 %v539, %v644
        %v646 = vpop.f32.mrf.mxu0
        %647 = vdwg.mxu0
        %648 = vmatpush.bf16.msra.mxu0 %v618
        %649 = vmatpush.bf16.msra.mxu0 %v616
        %650 = vmatpush.bf16.msra.mxu0 %v614
        %651 = vmatpush.bf16.msra.mxu0 %v612
        %652 = vmatpush.bf16.msra.mxu0 %v610
        %653 = vmatpush.bf16.msra.mxu0 %v608
        %654 = vmatpush.bf16.msra.mxu0 %v606
        %655 = vmatpush.bf16.msra.mxu0 %v604
        %656 = vmatmul.bf16.gmra.mxu0 %v414
        %v657 = vpop.f32.mrf.mxu0
        %v658 = vadd.f32 %v552, %v657
        %v659 = vpop.f32.mrf.mxu0
        %660 = vdwg.mxu0
        %v661 = vld [vmem:[%s404] sm:$0x7]
        %s662 = scalar_lea.vmem [#allocation3], 256
        %v663 = vld [vmem:[%s662] sm:$0xff]
        %v664 = vld [vmem:[%s662 + $0x8] sm:$0xff]
        %v665 = vld [vmem:[%s662 + $0x10] sm:$0xff]
        %v666 = vld [vmem:[%s662 + $0x18] sm:$0xff]
        %v667 = vld [vmem:[%s662 + $0x20] sm:$0xff]
        %v668 = vld [vmem:[%s662 + $0x28] sm:$0xff]
        %v669 = vld [vmem:[%s662 + $0x30] sm:$0xff]
        %v670 = vld [vmem:[%s662 + $0x38] sm:$0xff]
        %v671 = vld [vmem:[%s662 + $0x40] sm:$0xff]
        %v672 = vld [vmem:[%s662 + $0x48] sm:$0xff]
        %v673 = vld [vmem:[%s662 + $0x50] sm:$0xff]
        %v674 = vld [vmem:[%s662 + $0x58] sm:$0xff]
        %v675 = vld [vmem:[%s662 + $0x60] sm:$0xff]
        %v676 = vld [vmem:[%s662 + $0x68] sm:$0xff]
        %v677 = vld [vmem:[%s662 + $0x70] sm:$0xff]
        %v678 = vld [vmem:[%s662 + $0x78] sm:$0xff]
        %v680 = vunpack.c.l.b16 %v661
        %v681 = vpack.c.b16 %v680, %v680
        %v683 = vshrl.u32 %v681, 16
        %v685 = vshll.u32 %v681, 16
        %v687 = vrot.slane %v685, 1
        %v688 = vor.u32 %v683, %v687
        %v706 = vunpack.c.l.b16 %v663
        %v707 = vunpack.c.h.b16 %v663
        %v708 = vunpack.c.l.b16 %v664
        %v709 = vunpack.c.h.b16 %v664
        %v710 = vunpack.c.l.b16 %v665
        %v711 = vunpack.c.h.b16 %v665
        %v712 = vunpack.c.l.b16 %v666
        %v713 = vunpack.c.h.b16 %v666
        %v714 = vunpack.c.l.b16 %v667
        %v715 = vunpack.c.h.b16 %v667
        %v716 = vunpack.c.l.b16 %v668
        %v717 = vunpack.c.h.b16 %v668
        %v718 = vunpack.c.l.b16 %v669
        %v719 = vunpack.c.h.b16 %v669
        %v720 = vunpack.c.l.b16 %v670
        %v721 = vunpack.c.h.b16 %v670
        %v722 = vunpack.c.l.b16 %v671
        %v723 = vunpack.c.h.b16 %v671
        %v724 = vunpack.c.l.b16 %v672
        %v725 = vunpack.c.h.b16 %v672
        %v726 = vunpack.c.l.b16 %v673
        %v727 = vunpack.c.h.b16 %v673
        %v728 = vunpack.c.l.b16 %v674
        %v729 = vunpack.c.h.b16 %v674
        %v730 = vunpack.c.l.b16 %v675
        %v731 = vunpack.c.h.b16 %v675
        %v732 = vunpack.c.l.b16 %v676
        %v733 = vunpack.c.h.b16 %v676
        %v734 = vunpack.c.l.b16 %v677
        %v735 = vunpack.c.h.b16 %v677
        %v736 = vunpack.c.l.b16 %v678
        %v737 = vunpack.c.h.b16 %v678
        %v738 = vpack.c.b16 %v708, %v706
        %v739 = vpack.c.b16 %v709, %v707
        %v740 = vpack.c.b16 %v712, %v710
        %v741 = vpack.c.b16 %v713, %v711
        %v742 = vpack.c.b16 %v716, %v714
        %v743 = vpack.c.b16 %v717, %v715
        %v744 = vpack.c.b16 %v720, %v718
        %v745 = vpack.c.b16 %v721, %v719
        %v746 = vpack.c.b16 %v724, %v722
        %v747 = vpack.c.b16 %v725, %v723
        %v748 = vpack.c.b16 %v728, %v726
        %v749 = vpack.c.b16 %v729, %v727
        %v750 = vpack.c.b16 %v732, %v730
        %v751 = vpack.c.b16 %v733, %v731
        %v752 = vpack.c.b16 %v736, %v734
        %v753 = vpack.c.b16 %v737, %v735
        %770 = vmatpush.bf16.msra.mxu0 %v752
        %771 = vmatpush.bf16.msra.mxu0 %v750
        %772 = vmatpush.bf16.msra.mxu0 %v748
        %773 = vmatpush.bf16.msra.mxu0 %v746
        %774 = vmatpush.bf16.msra.mxu0 %v744
        %775 = vmatpush.bf16.msra.mxu0 %v742
        %776 = vmatpush.bf16.msra.mxu0 %v740
        %777 = vmatpush.bf16.msra.mxu0 %v738
        %778 = vmatmul.bf16.gmra.mxu0 %v688
        %v779 = vpop.f32.mrf.mxu0
        %v780 = vadd.f32 0.0, %v779
        %v781 = vpop.f32.mrf.mxu0
        %782 = vdwg.mxu0
        %783 = vmatpush.bf16.msra.mxu0 %v753
        %784 = vmatpush.bf16.msra.mxu0 %v751
        %785 = vmatpush.bf16.msra.mxu0 %v749
        %786 = vmatpush.bf16.msra.mxu0 %v747
        %787 = vmatpush.bf16.msra.mxu0 %v745
        %788 = vmatpush.bf16.msra.mxu0 %v743
        %789 = vmatpush.bf16.msra.mxu0 %v741
        %790 = vmatpush.bf16.msra.mxu0 %v739
        %791 = vmatmul.bf16.gmra.mxu0 %v688
        %v792 = vpop.f32.mrf.mxu0
        %v793 = vadd.f32 0.0, %v792
        %v794 = vpop.f32.mrf.mxu0
        %795 = vdwg.mxu0
        %v796 = vadd.f32 %v645, %v780
        %v797 = vadd.f32 %v658, %v793
        %v798 = vld [vmem:[#allocation5] sm:$0x3]
        %v800 = vperm.slane %v798, 0
        %v801 = vperm.slane %v798, 1
        %v804 = vadd.f32 %v796, %v800
        %v805 = vadd.f32 %v797, %v801
        %v806 = vmax.f32 %v804, 0.0
        %v807 = vmax.f32 %v805, 0.0
        %808 = vst [vmem:[#allocation2] sm:$0x3f] 0.0
        %809 = vst [vmem:[#allocation2 + $0x8] sm:$0x3f] 0.0
        %v812 = vrot.slane %v806, 7
        %v813 = vrot.slane %v807, 7
        %816 = vst [vmem:[#allocation2] sm:$0x1e] %v812
        %817 = vst [vmem:[#allocation2 + $0x8] sm:$0x1e] %v813
        %v818 = vld [vmem:[#allocation2] sm:$0xf]
        %v819 = vld [vmem:[#allocation2 + $0x8] sm:$0xf]
        %v820 = vld [vmem:[#allocation7] sm:$0xff]
        %v821 = vld [vmem:[#allocation7 + $0x8] sm:$0xff]
        %v822 = vld [vmem:[#allocation7 + $0x10] sm:$0xff]
        %v823 = vld [vmem:[#allocation7 + $0x18] sm:$0xff]
        %v824 = vld [vmem:[#allocation7 + $0x20] sm:$0xff]
        %v825 = vld [vmem:[#allocation7 + $0x28] sm:$0xff]
        %v826 = vld [vmem:[#allocation7 + $0x30] sm:$0xff]
        %v827 = vld [vmem:[#allocation7 + $0x38] sm:$0xff]
        %v828 = vld [vmem:[#allocation7 + $0x40] sm:$0xff]
        %v829 = vld [vmem:[#allocation7 + $0x48] sm:$0xff]
        %v830 = vld [vmem:[#allocation7 + $0x50] sm:$0xff]
        %v831 = vld [vmem:[#allocation7 + $0x58] sm:$0xff]
        %v832 = vld [vmem:[#allocation7 + $0x60] sm:$0xff]
        %v833 = vld [vmem:[#allocation7 + $0x68] sm:$0xff]
        %v834 = vld [vmem:[#allocation7 + $0x70] sm:$0xff]
        %v835 = vld [vmem:[#allocation7 + $0x78] sm:$0xff]
        %v836 = vld [vmem:[#allocation7 + $0x80] sm:$0xff]
        %v837 = vld [vmem:[#allocation7 + $0x88] sm:$0xff]
        %v838 = vld [vmem:[#allocation7 + $0x90] sm:$0xff]
        %v839 = vld [vmem:[#allocation7 + $0x98] sm:$0xff]
        %v840 = vld [vmem:[#allocation7 + $0xa0] sm:$0xff]
        %v841 = vld [vmem:[#allocation7 + $0xa8] sm:$0xff]
        %v842 = vld [vmem:[#allocation7 + $0xb0] sm:$0xff]
        %v843 = vld [vmem:[#allocation7 + $0xb8] sm:$0xff]
        %v844 = vld [vmem:[#allocation7 + $0xc0] sm:$0xff]
        %v845 = vld [vmem:[#allocation7 + $0xc8] sm:$0xff]
        %v846 = vld [vmem:[#allocation7 + $0xd0] sm:$0xff]
        %v847 = vld [vmem:[#allocation7 + $0xd8] sm:$0xff]
        %v848 = vld [vmem:[#allocation7 + $0xe0] sm:$0xff]
        %v849 = vld [vmem:[#allocation7 + $0xe8] sm:$0xff]
        %v850 = vld [vmem:[#allocation7 + $0xf0] sm:$0xff]
        %v851 = vld [vmem:[#allocation7 + $0xf8] sm:$0xff]
        %v852 = vld [vmem:[#allocation2] sm:$0x1e]
        %v853 = vld [vmem:[#allocation2 + $0x8] sm:$0x1e]
        %s854 = scalar_lea.vmem [#allocation7], 256
        %v855 = vld [vmem:[%s854] sm:$0xff]
        %v856 = vld [vmem:[%s854 + $0x8] sm:$0xff]
        %v857 = vld [vmem:[%s854 + $0x10] sm:$0xff]
        %v858 = vld [vmem:[%s854 + $0x18] sm:$0xff]
        %v859 = vld [vmem:[%s854 + $0x20] sm:$0xff]
        %v860 = vld [vmem:[%s854 + $0x28] sm:$0xff]
        %v861 = vld [vmem:[%s854 + $0x30] sm:$0xff]
        %v862 = vld [vmem:[%s854 + $0x38] sm:$0xff]
        %v863 = vld [vmem:[%s854 + $0x40] sm:$0xff]
        %v864 = vld [vmem:[%s854 + $0x48] sm:$0xff]
        %v865 = vld [vmem:[%s854 + $0x50] sm:$0xff]
        %v866 = vld [vmem:[%s854 + $0x58] sm:$0xff]
        %v867 = vld [vmem:[%s854 + $0x60] sm:$0xff]
        %v868 = vld [vmem:[%s854 + $0x68] sm:$0xff]
        %v869 = vld [vmem:[%s854 + $0x70] sm:$0xff]
        %v870 = vld [vmem:[%s854 + $0x78] sm:$0xff]
        %v871 = vld [vmem:[%s854 + $0x80] sm:$0xff]
        %v872 = vld [vmem:[%s854 + $0x88] sm:$0xff]
        %v873 = vld [vmem:[%s854 + $0x90] sm:$0xff]
        %v874 = vld [vmem:[%s854 + $0x98] sm:$0xff]
        %v875 = vld [vmem:[%s854 + $0xa0] sm:$0xff]
        %v876 = vld [vmem:[%s854 + $0xa8] sm:$0xff]
        %v877 = vld [vmem:[%s854 + $0xb0] sm:$0xff]
        %v878 = vld [vmem:[%s854 + $0xb8] sm:$0xff]
        %v879 = vld [vmem:[%s854 + $0xc0] sm:$0xff]
        %v880 = vld [vmem:[%s854 + $0xc8] sm:$0xff]
        %v881 = vld [vmem:[%s854 + $0xd0] sm:$0xff]
        %v882 = vld [vmem:[%s854 + $0xd8] sm:$0xff]
        %v883 = vld [vmem:[%s854 + $0xe0] sm:$0xff]
        %v884 = vld [vmem:[%s854 + $0xe8] sm:$0xff]
        %v885 = vld [vmem:[%s854 + $0xf0] sm:$0xff]
        %v886 = vld [vmem:[%s854 + $0xf8] sm:$0xff]
        %v889 = vrot.slane %v852, 1
        %v890 = vrot.slane %v853, 1
        %v925 = vunpack.c.l.b16 %v855
        %v926 = vunpack.c.h.b16 %v855
        %v927 = vunpack.c.l.b16 %v856
        %v928 = vunpack.c.h.b16 %v856
        %v929 = vunpack.c.l.b16 %v857
        %v930 = vunpack.c.h.b16 %v857
        %v931 = vunpack.c.l.b16 %v858
        %v932 = vunpack.c.h.b16 %v858
        %v933 = vunpack.c.l.b16 %v859
        %v934 = vunpack.c.h.b16 %v859
        %v935 = vunpack.c.l.b16 %v860
        %v936 = vunpack.c.h.b16 %v860
        %v937 = vunpack.c.l.b16 %v861
        %v938 = vunpack.c.h.b16 %v861
        %v939 = vunpack.c.l.b16 %v862
        %v940 = vunpack.c.h.b16 %v862
        %v941 = vunpack.c.l.b16 %v863
        %v942 = vunpack.c.h.b16 %v863
        %v943 = vunpack.c.l.b16 %v864
        %v944 = vunpack.c.h.b16 %v864
        %v945 = vunpack.c.l.b16 %v865
        %v946 = vunpack.c.h.b16 %v865
        %v947 = vunpack.c.l.b16 %v866
        %v948 = vunpack.c.h.b16 %v866
        %v949 = vunpack.c.l.b16 %v867
        %v950 = vunpack.c.h.b16 %v867
        %v951 = vunpack.c.l.b16 %v868
        %v952 = vunpack.c.h.b16 %v868
        %v953 = vunpack.c.l.b16 %v869
        %v954 = vunpack.c.h.b16 %v869
        %v955 = vunpack.c.l.b16 %v870
        %v956 = vunpack.c.h.b16 %v870
        %v957 = vunpack.c.l.b16 %v871
        %v958 = vunpack.c.h.b16 %v871
        %v959 = vunpack.c.l.b16 %v872
        %v960 = vunpack.c.h.b16 %v872
        %v961 = vunpack.c.l.b16 %v873
        %v962 = vunpack.c.h.b16 %v873
        %v963 = vunpack.c.l.b16 %v874
        %v964 = vunpack.c.h.b16 %v874
        %v965 = vunpack.c.l.b16 %v875
        %v966 = vunpack.c.h.b16 %v875
        %v967 = vunpack.c.l.b16 %v876
        %v968 = vunpack.c.h.b16 %v876
        %v969 = vunpack.c.l.b16 %v877
        %v970 = vunpack.c.h.b16 %v877
        %v971 = vunpack.c.l.b16 %v878
        %v972 = vunpack.c.h.b16 %v878
        %v973 = vunpack.c.l.b16 %v879
        %v974 = vunpack.c.h.b16 %v879
        %v975 = vunpack.c.l.b16 %v880
        %v976 = vunpack.c.h.b16 %v880
        %v977 = vunpack.c.l.b16 %v881
        %v978 = vunpack.c.h.b16 %v881
        %v979 = vunpack.c.l.b16 %v882
        %v980 = vunpack.c.h.b16 %v882
        %v981 = vunpack.c.l.b16 %v883
        %v982 = vunpack.c.h.b16 %v883
        %v983 = vunpack.c.l.b16 %v884
        %v984 = vunpack.c.h.b16 %v884
        %v985 = vunpack.c.l.b16 %v885
        %v986 = vunpack.c.h.b16 %v885
        %v987 = vunpack.c.l.b16 %v886
        %v988 = vunpack.c.h.b16 %v886
        %v989 = vpack.c.b16 %v927, %v925
        %v990 = vpack.c.b16 %v928, %v926
        %v991 = vpack.c.b16 %v931, %v929
        %v992 = vpack.c.b16 %v932, %v930
        %v993 = vpack.c.b16 %v935, %v933
        %v994 = vpack.c.b16 %v936, %v934
        %v995 = vpack.c.b16 %v939, %v937
        %v996 = vpack.c.b16 %v940, %v938
        %v997 = vpack.c.b16 %v943, %v941
        %v998 = vpack.c.b16 %v944, %v942
        %v999 = vpack.c.b16 %v947, %v945
        %v1000 = vpack.c.b16 %v948, %v946
        %v1001 = vpack.c.b16 %v951, %v949
        %v1002 = vpack.c.b16 %v952, %v950
        %v1003 = vpack.c.b16 %v955, %v953
        %v1004 = vpack.c.b16 %v956, %v954
        %v1005 = vpack.c.b16 %v959, %v957
        %v1006 = vpack.c.b16 %v960, %v958
        %v1007 = vpack.c.b16 %v963, %v961
        %v1008 = vpack.c.b16 %v964, %v962
        %v1009 = vpack.c.b16 %v967, %v965
        %v1010 = vpack.c.b16 %v968, %v966
        %v1011 = vpack.c.b16 %v971, %v969
        %v1012 = vpack.c.b16 %v972, %v970
        %v1013 = vpack.c.b16 %v975, %v973
        %v1014 = vpack.c.b16 %v976, %v974
        %v1015 = vpack.c.b16 %v979, %v977
        %v1016 = vpack.c.b16 %v980, %v978
        %v1017 = vpack.c.b16 %v983, %v981
        %v1018 = vpack.c.b16 %v984, %v982
        %v1019 = vpack.c.b16 %v987, %v985
        %v1020 = vpack.c.b16 %v988, %v986
        %1053 = vmatpush.bf16.msra.mxu0 %v1003
        %1054 = vmatpush.bf16.msra.mxu0 %v1001
        %1055 = vmatpush.bf16.msra.mxu0 %v999
        %1056 = vmatpush.bf16.msra.mxu0 %v997
        %1057 = vmatpush.bf16.msra.mxu0 %v995
        %1058 = vmatpush.bf16.msra.mxu0 %v993
        %1059 = vmatpush.bf16.msra.mxu0 %v991
        %1060 = vmatpush.bf16.msra.mxu0 %v989
        %1061 = vmatmul.f32.gmra.mxu0 %v889
        %v1062 = vpop.f32.mrf.mxu0
        %v1063 = vadd.f32 0.0, %v1062
        %1064 = vdwg.mxu0
        %1065 = vmatpush.bf16.msra.mxu0 %v1019
        %1066 = vmatpush.bf16.msra.mxu0 %v1017
        %1067 = vmatpush.bf16.msra.mxu0 %v1015
        %1068 = vmatpush.bf16.msra.mxu0 %v1013
        %1069 = vmatpush.bf16.msra.mxu0 %v1011
        %1070 = vmatpush.bf16.msra.mxu0 %v1009
        %1071 = vmatpush.bf16.msra.mxu0 %v1007
        %1072 = vmatpush.bf16.msra.mxu0 %v1005
        %1073 = vmatmul.f32.gmra.mxu0 %v890
        %v1074 = vpop.f32.mrf.mxu0
        %v1075 = vadd.f32 %v1063, %v1074
        %1076 = vdwg.mxu0
        %1077 = vmatpush.bf16.msra.mxu0 %v1004
        %1078 = vmatpush.bf16.msra.mxu0 %v1002
        %1079 = vmatpush.bf16.msra.mxu0 %v1000
        %1080 = vmatpush.bf16.msra.mxu0 %v998
        %1081 = vmatpush.bf16.msra.mxu0 %v996
        %1082 = vmatpush.bf16.msra.mxu0 %v994
        %1083 = vmatpush.bf16.msra.mxu0 %v992
        %1084 = vmatpush.bf16.msra.mxu0 %v990
        %1085 = vmatmul.f32.gmra.mxu0 %v889
        %v1086 = vpop.f32.mrf.mxu0
        %v1087 = vadd.f32 0.0, %v1086
        %1088 = vdwg.mxu0
        %1089 = vmatpush.bf16.msra.mxu0 %v1020
        %1090 = vmatpush.bf16.msra.mxu0 %v1018
        %1091 = vmatpush.bf16.msra.mxu0 %v1016
        %1092 = vmatpush.bf16.msra.mxu0 %v1014
        %1093 = vmatpush.bf16.msra.mxu0 %v1012
        %1094 = vmatpush.bf16.msra.mxu0 %v1010
        %1095 = vmatpush.bf16.msra.mxu0 %v1008
        %1096 = vmatpush.bf16.msra.mxu0 %v1006
        %1097 = vmatmul.f32.gmra.mxu0 %v890
        %v1098 = vpop.f32.mrf.mxu0
        %v1099 = vadd.f32 %v1087, %v1098
        %1100 = vdwg.mxu0
        %v1133 = vunpack.c.l.b16 %v820
        %v1134 = vunpack.c.h.b16 %v820
        %v1135 = vunpack.c.l.b16 %v821
        %v1136 = vunpack.c.h.b16 %v821
        %v1137 = vunpack.c.l.b16 %v822
        %v1138 = vunpack.c.h.b16 %v822
        %v1139 = vunpack.c.l.b16 %v823
        %v1140 = vunpack.c.h.b16 %v823
        %v1141 = vunpack.c.l.b16 %v824
        %v1142 = vunpack.c.h.b16 %v824
        %v1143 = vunpack.c.l.b16 %v825
        %v1144 = vunpack.c.h.b16 %v825
        %v1145 = vunpack.c.l.b16 %v826
        %v1146 = vunpack.c.h.b16 %v826
        %v1147 = vunpack.c.l.b16 %v827
        %v1148 = vunpack.c.h.b16 %v827
        %v1149 = vunpack.c.l.b16 %v828
        %v1150 = vunpack.c.h.b16 %v828
        %v1151 = vunpack.c.l.b16 %v829
        %v1152 = vunpack.c.h.b16 %v829
        %v1153 = vunpack.c.l.b16 %v830
        %v1154 = vunpack.c.h.b16 %v830
        %v1155 = vunpack.c.l.b16 %v831
        %v1156 = vunpack.c.h.b16 %v831
        %v1157 = vunpack.c.l.b16 %v832
        %v1158 = vunpack.c.h.b16 %v832
        %v1159 = vunpack.c.l.b16 %v833
        %v1160 = vunpack.c.h.b16 %v833
        %v1161 = vunpack.c.l.b16 %v834
        %v1162 = vunpack.c.h.b16 %v834
        %v1163 = vunpack.c.l.b16 %v835
        %v1164 = vunpack.c.h.b16 %v835
        %v1165 = vunpack.c.l.b16 %v836
        %v1166 = vunpack.c.h.b16 %v836
        %v1167 = vunpack.c.l.b16 %v837
        %v1168 = vunpack.c.h.b16 %v837
        %v1169 = vunpack.c.l.b16 %v838
        %v1170 = vunpack.c.h.b16 %v838
        %v1171 = vunpack.c.l.b16 %v839
        %v1172 = vunpack.c.h.b16 %v839
        %v1173 = vunpack.c.l.b16 %v840
        %v1174 = vunpack.c.h.b16 %v840
        %v1175 = vunpack.c.l.b16 %v841
        %v1176 = vunpack.c.h.b16 %v841
        %v1177 = vunpack.c.l.b16 %v842
        %v1178 = vunpack.c.h.b16 %v842
        %v1179 = vunpack.c.l.b16 %v843
        %v1180 = vunpack.c.h.b16 %v843
        %v1181 = vunpack.c.l.b16 %v844
        %v1182 = vunpack.c.h.b16 %v844
        %v1183 = vunpack.c.l.b16 %v845
        %v1184 = vunpack.c.h.b16 %v845
        %v1185 = vunpack.c.l.b16 %v846
        %v1186 = vunpack.c.h.b16 %v846
        %v1187 = vunpack.c.l.b16 %v847
        %v1188 = vunpack.c.h.b16 %v847
        %v1189 = vunpack.c.l.b16 %v848
        %v1190 = vunpack.c.h.b16 %v848
        %v1191 = vunpack.c.l.b16 %v849
        %v1192 = vunpack.c.h.b16 %v849
        %v1193 = vunpack.c.l.b16 %v850
        %v1194 = vunpack.c.h.b16 %v850
        %v1195 = vunpack.c.l.b16 %v851
        %v1196 = vunpack.c.h.b16 %v851
        %v1197 = vpack.c.b16 %v1135, %v1133
        %v1198 = vpack.c.b16 %v1136, %v1134
        %v1199 = vpack.c.b16 %v1139, %v1137
        %v1200 = vpack.c.b16 %v1140, %v1138
        %v1201 = vpack.c.b16 %v1143, %v1141
        %v1202 = vpack.c.b16 %v1144, %v1142
        %v1203 = vpack.c.b16 %v1147, %v1145
        %v1204 = vpack.c.b16 %v1148, %v1146
        %v1205 = vpack.c.b16 %v1151, %v1149
        %v1206 = vpack.c.b16 %v1152, %v1150
        %v1207 = vpack.c.b16 %v1155, %v1153
        %v1208 = vpack.c.b16 %v1156, %v1154
        %v1209 = vpack.c.b16 %v1159, %v1157
        %v1210 = vpack.c.b16 %v1160, %v1158
        %v1211 = vpack.c.b16 %v1163, %v1161
        %v1212 = vpack.c.b16 %v1164, %v1162
        %v1213 = vpack.c.b16 %v1167, %v1165
        %v1214 = vpack.c.b16 %v1168, %v1166
        %v1215 = vpack.c.b16 %v1171, %v1169
        %v1216 = vpack.c.b16 %v1172, %v1170
        %v1217 = vpack.c.b16 %v1175, %v1173
        %v1218 = vpack.c.b16 %v1176, %v1174
        %v1219 = vpack.c.b16 %v1179, %v1177
        %v1220 = vpack.c.b16 %v1180, %v1178
        %v1221 = vpack.c.b16 %v1183, %v1181
        %v1222 = vpack.c.b16 %v1184, %v1182
        %v1223 = vpack.c.b16 %v1187, %v1185
        %v1224 = vpack.c.b16 %v1188, %v1186
        %v1225 = vpack.c.b16 %v1191, %v1189
        %v1226 = vpack.c.b16 %v1192, %v1190
        %v1227 = vpack.c.b16 %v1195, %v1193
        %v1228 = vpack.c.b16 %v1196, %v1194
        %1261 = vmatpush.bf16.msra.mxu0 %v1211
        %1262 = vmatpush.bf16.msra.mxu0 %v1209
        %1263 = vmatpush.bf16.msra.mxu0 %v1207
        %1264 = vmatpush.bf16.msra.mxu0 %v1205
        %1265 = vmatpush.bf16.msra.mxu0 %v1203
        %1266 = vmatpush.bf16.msra.mxu0 %v1201
        %1267 = vmatpush.bf16.msra.mxu0 %v1199
        %1268 = vmatpush.bf16.msra.mxu0 %v1197
        %1269 = vmatmul.f32.gmra.mxu0 %v818
        %v1270 = vpop.f32.mrf.mxu0
        %v1271 = vadd.f32 %v1075, %v1270
        %1272 = vdwg.mxu0
        %1273 = vmatpush.bf16.msra.mxu0 %v1227
        %1274 = vmatpush.bf16.msra.mxu0 %v1225
        %1275 = vmatpush.bf16.msra.mxu0 %v1223
        %1276 = vmatpush.bf16.msra.mxu0 %v1221
        %1277 = vmatpush.bf16.msra.mxu0 %v1219
        %1278 = vmatpush.bf16.msra.mxu0 %v1217
        %1279 = vmatpush.bf16.msra.mxu0 %v1215
        %1280 = vmatpush.bf16.msra.mxu0 %v1213
        %1281 = vmatmul.f32.gmra.mxu0 %v819
        %v1282 = vpop.f32.mrf.mxu0
        %v1283 = vadd.f32 %v1271, %v1282
        %1284 = vdwg.mxu0
        %1285 = vmatpush.bf16.msra.mxu0 %v1212
        %1286 = vmatpush.bf16.msra.mxu0 %v1210
        %1287 = vmatpush.bf16.msra.mxu0 %v1208
        %1288 = vmatpush.bf16.msra.mxu0 %v1206
        %1289 = vmatpush.bf16.msra.mxu0 %v1204
        %1290 = vmatpush.bf16.msra.mxu0 %v1202
        %1291 = vmatpush.bf16.msra.mxu0 %v1200
        %1292 = vmatpush.bf16.msra.mxu0 %v1198
        %1293 = vmatmul.f32.gmra.mxu0 %v818
        %v1294 = vpop.f32.mrf.mxu0
        %v1295 = vadd.f32 %v1099, %v1294
        %1296 = vdwg.mxu0
        %1297 = vmatpush.bf16.msra.mxu0 %v1228
        %1298 = vmatpush.bf16.msra.mxu0 %v1226
        %1299 = vmatpush.bf16.msra.mxu0 %v1224
        %1300 = vmatpush.bf16.msra.mxu0 %v1222
        %1301 = vmatpush.bf16.msra.mxu0 %v1220
        %1302 = vmatpush.bf16.msra.mxu0 %v1218
        %1303 = vmatpush.bf16.msra.mxu0 %v1216
        %1304 = vmatpush.bf16.msra.mxu0 %v1214
        %1305 = vmatmul.f32.gmra.mxu0 %v819
        %v1306 = vpop.f32.mrf.mxu0
        %v1307 = vadd.f32 %v1295, %v1306
        %1308 = vdwg.mxu0
        %v1309 = vld [vmem:[#allocation2] sm:$0x3c]
        %v1310 = vld [vmem:[#allocation2 + $0x8] sm:$0x3c]
        %s1311 = scalar_lea.vmem [#allocation7], 512
        %v1312 = vld [vmem:[%s1311] sm:$0xff]
        %v1313 = vld [vmem:[%s1311 + $0x8] sm:$0xff]
        %v1314 = vld [vmem:[%s1311 + $0x10] sm:$0xff]
        %v1315 = vld [vmem:[%s1311 + $0x18] sm:$0xff]
        %v1316 = vld [vmem:[%s1311 + $0x20] sm:$0xff]
        %v1317 = vld [vmem:[%s1311 + $0x28] sm:$0xff]
        %v1318 = vld [vmem:[%s1311 + $0x30] sm:$0xff]
        %v1319 = vld [vmem:[%s1311 + $0x38] sm:$0xff]
        %v1320 = vld [vmem:[%s1311 + $0x40] sm:$0xff]
        %v1321 = vld [vmem:[%s1311 + $0x48] sm:$0xff]
        %v1322 = vld [vmem:[%s1311 + $0x50] sm:$0xff]
        %v1323 = vld [vmem:[%s1311 + $0x58] sm:$0xff]
        %v1324 = vld [vmem:[%s1311 + $0x60] sm:$0xff]
        %v1325 = vld [vmem:[%s1311 + $0x68] sm:$0xff]
        %v1326 = vld [vmem:[%s1311 + $0x70] sm:$0xff]
        %v1327 = vld [vmem:[%s1311 + $0x78] sm:$0xff]
        %v1328 = vld [vmem:[%s1311 + $0x80] sm:$0xff]
        %v1329 = vld [vmem:[%s1311 + $0x88] sm:$0xff]
        %v1330 = vld [vmem:[%s1311 + $0x90] sm:$0xff]
        %v1331 = vld [vmem:[%s1311 + $0x98] sm:$0xff]
        %v1332 = vld [vmem:[%s1311 + $0xa0] sm:$0xff]
        %v1333 = vld [vmem:[%s1311 + $0xa8] sm:$0xff]
        %v1334 = vld [vmem:[%s1311 + $0xb0] sm:$0xff]
        %v1335 = vld [vmem:[%s1311 + $0xb8] sm:$0xff]
        %v1336 = vld [vmem:[%s1311 + $0xc0] sm:$0xff]
        %v1337 = vld [vmem:[%s1311 + $0xc8] sm:$0xff]
        %v1338 = vld [vmem:[%s1311 + $0xd0] sm:$0xff]
        %v1339 = vld [vmem:[%s1311 + $0xd8] sm:$0xff]
        %v1340 = vld [vmem:[%s1311 + $0xe0] sm:$0xff]
        %v1341 = vld [vmem:[%s1311 + $0xe8] sm:$0xff]
        %v1342 = vld [vmem:[%s1311 + $0xf0] sm:$0xff]
        %v1343 = vld [vmem:[%s1311 + $0xf8] sm:$0xff]
        %v1346 = vrot.slane %v1309, 2
        %v1347 = vrot.slane %v1310, 2
        %v1382 = vunpack.c.l.b16 %v1312
        %v1383 = vunpack.c.h.b16 %v1312
        %v1384 = vunpack.c.l.b16 %v1313
        %v1385 = vunpack.c.h.b16 %v1313
        %v1386 = vunpack.c.l.b16 %v1314
        %v1387 = vunpack.c.h.b16 %v1314
        %v1388 = vunpack.c.l.b16 %v1315
        %v1389 = vunpack.c.h.b16 %v1315
        %v1390 = vunpack.c.l.b16 %v1316
        %v1391 = vunpack.c.h.b16 %v1316
        %v1392 = vunpack.c.l.b16 %v1317
        %v1393 = vunpack.c.h.b16 %v1317
        %v1394 = vunpack.c.l.b16 %v1318
        %v1395 = vunpack.c.h.b16 %v1318
        %v1396 = vunpack.c.l.b16 %v1319
        %v1397 = vunpack.c.h.b16 %v1319
        %v1398 = vunpack.c.l.b16 %v1320
        %v1399 = vunpack.c.h.b16 %v1320
        %v1400 = vunpack.c.l.b16 %v1321
        %v1401 = vunpack.c.h.b16 %v1321
        %v1402 = vunpack.c.l.b16 %v1322
        %v1403 = vunpack.c.h.b16 %v1322
        %v1404 = vunpack.c.l.b16 %v1323
        %v1405 = vunpack.c.h.b16 %v1323
        %v1406 = vunpack.c.l.b16 %v1324
        %v1407 = vunpack.c.h.b16 %v1324
        %v1408 = vunpack.c.l.b16 %v1325
        %v1409 = vunpack.c.h.b16 %v1325
        %v1410 = vunpack.c.l.b16 %v1326
        %v1411 = vunpack.c.h.b16 %v1326
        %v1412 = vunpack.c.l.b16 %v1327
        %v1413 = vunpack.c.h.b16 %v1327
        %v1414 = vunpack.c.l.b16 %v1328
        %v1415 = vunpack.c.h.b16 %v1328
        %v1416 = vunpack.c.l.b16 %v1329
        %v1417 = vunpack.c.h.b16 %v1329
        %v1418 = vunpack.c.l.b16 %v1330
        %v1419 = vunpack.c.h.b16 %v1330
        %v1420 = vunpack.c.l.b16 %v1331
        %v1421 = vunpack.c.h.b16 %v1331
        %v1422 = vunpack.c.l.b16 %v1332
        %v1423 = vunpack.c.h.b16 %v1332
        %v1424 = vunpack.c.l.b16 %v1333
        %v1425 = vunpack.c.h.b16 %v1333
        %v1426 = vunpack.c.l.b16 %v1334
        %v1427 = vunpack.c.h.b16 %v1334
        %v1428 = vunpack.c.l.b16 %v1335
        %v1429 = vunpack.c.h.b16 %v1335
        %v1430 = vunpack.c.l.b16 %v1336
        %v1431 = vunpack.c.h.b16 %v1336
        %v1432 = vunpack.c.l.b16 %v1337
        %v1433 = vunpack.c.h.b16 %v1337
        %v1434 = vunpack.c.l.b16 %v1338
        %v1435 = vunpack.c.h.b16 %v1338
        %v1436 = vunpack.c.l.b16 %v1339
        %v1437 = vunpack.c.h.b16 %v1339
        %v1438 = vunpack.c.l.b16 %v1340
        %v1439 = vunpack.c.h.b16 %v1340
        %v1440 = vunpack.c.l.b16 %v1341
        %v1441 = vunpack.c.h.b16 %v1341
        %v1442 = vunpack.c.l.b16 %v1342
        %v1443 = vunpack.c.h.b16 %v1342
        %v1444 = vunpack.c.l.b16 %v1343
        %v1445 = vunpack.c.h.b16 %v1343
        %v1446 = vpack.c.b16 %v1384, %v1382
        %v1447 = vpack.c.b16 %v1385, %v1383
        %v1448 = vpack.c.b16 %v1388, %v1386
        %v1449 = vpack.c.b16 %v1389, %v1387
        %v1450 = vpack.c.b16 %v1392, %v1390
        %v1451 = vpack.c.b16 %v1393, %v1391
        %v1452 = vpack.c.b16 %v1396, %v1394
        %v1453 = vpack.c.b16 %v1397, %v1395
        %v1454 = vpack.c.b16 %v1400, %v1398
        %v1455 = vpack.c.b16 %v1401, %v1399
        %v1456 = vpack.c.b16 %v1404, %v1402
        %v1457 = vpack.c.b16 %v1405, %v1403
        %v1458 = vpack.c.b16 %v1408, %v1406
        %v1459 = vpack.c.b16 %v1409, %v1407
        %v1460 = vpack.c.b16 %v1412, %v1410
        %v1461 = vpack.c.b16 %v1413, %v1411
        %v1462 = vpack.c.b16 %v1416, %v1414
        %v1463 = vpack.c.b16 %v1417, %v1415
        %v1464 = vpack.c.b16 %v1420, %v1418
        %v1465 = vpack.c.b16 %v1421, %v1419
        %v1466 = vpack.c.b16 %v1424, %v1422
        %v1467 = vpack.c.b16 %v1425, %v1423
        %v1468 = vpack.c.b16 %v1428, %v1426
        %v1469 = vpack.c.b16 %v1429, %v1427
        %v1470 = vpack.c.b16 %v1432, %v1430
        %v1471 = vpack.c.b16 %v1433, %v1431
        %v1472 = vpack.c.b16 %v1436, %v1434
        %v1473 = vpack.c.b16 %v1437, %v1435
        %v1474 = vpack.c.b16 %v1440, %v1438
        %v1475 = vpack.c.b16 %v1441, %v1439
        %v1476 = vpack.c.b16 %v1444, %v1442
        %v1477 = vpack.c.b16 %v1445, %v1443
        %1510 = vmatpush.bf16.msra.mxu0 %v1460
        %1511 = vmatpush.bf16.msra.mxu0 %v1458
        %1512 = vmatpush.bf16.msra.mxu0 %v1456
        %1513 = vmatpush.bf16.msra.mxu0 %v1454
        %1514 = vmatpush.bf16.msra.mxu0 %v1452
        %1515 = vmatpush.bf16.msra.mxu0 %v1450
        %1516 = vmatpush.bf16.msra.mxu0 %v1448
        %1517 = vmatpush.bf16.msra.mxu0 %v1446
        %1518 = vmatmul.f32.gmra.mxu0 %v1346
        %v1519 = vpop.f32.mrf.mxu0
        %v1520 = vadd.f32 0.0, %v1519
        %1521 = vdwg.mxu0
        %1522 = vmatpush.bf16.msra.mxu0 %v1476
        %1523 = vmatpush.bf16.msra.mxu0 %v1474
        %1524 = vmatpush.bf16.msra.mxu0 %v1472
        %1525 = vmatpush.bf16.msra.mxu0 %v1470
        %1526 = vmatpush.bf16.msra.mxu0 %v1468
        %1527 = vmatpush.bf16.msra.mxu0 %v1466
        %1528 = vmatpush.bf16.msra.mxu0 %v1464
        %1529 = vmatpush.bf16.msra.mxu0 %v1462
        %1530 = vmatmul.f32.gmra.mxu0 %v1347
        %v1531 = vpop.f32.mrf.mxu0
        %v1532 = vadd.f32 %v1520, %v1531
        %1533 = vdwg.mxu0
        %1534 = vmatpush.bf16.msra.mxu0 %v1461
        %1535 = vmatpush.bf16.msra.mxu0 %v1459
        %1536 = vmatpush.bf16.msra.mxu0 %v1457
        %1537 = vmatpush.bf16.msra.mxu0 %v1455
        %1538 = vmatpush.bf16.msra.mxu0 %v1453
        %1539 = vmatpush.bf16.msra.mxu0 %v1451
        %1540 = vmatpush.bf16.msra.mxu0 %v1449
        %1541 = vmatpush.bf16.msra.mxu0 %v1447
        %1542 = vmatmul.f32.gmra.mxu0 %v1346
        %v1543 = vpop.f32.mrf.mxu0
        %v1544 = vadd.f32 0.0, %v1543
        %1545 = vdwg.mxu0
        %1546 = vmatpush.bf16.msra.mxu0 %v1477
        %1547 = vmatpush.bf16.msra.mxu0 %v1475
        %1548 = vmatpush.bf16.msra.mxu0 %v1473
        %1549 = vmatpush.bf16.msra.mxu0 %v1471
        %1550 = vmatpush.bf16.msra.mxu0 %v1469
        %1551 = vmatpush.bf16.msra.mxu0 %v1467
        %1552 = vmatpush.bf16.msra.mxu0 %v1465
        %1553 = vmatpush.bf16.msra.mxu0 %v1463
        %1554 = vmatmul.f32.gmra.mxu0 %v1347
        %v1555 = vpop.f32.mrf.mxu0
        %v1556 = vadd.f32 %v1544, %v1555
        %1557 = vdwg.mxu0
        %v1558 = vadd.f32 %v1283, %v1532
        %v1559 = vadd.f32 %v1307, %v1556
        %v1560 = vld [vmem:[%s408] sm:$0x3]
        %v1561 = vld [vmem:[#allocation10] sm:$0xff]
        %v1562 = vld [vmem:[#allocation10 + $0x8] sm:$0xff]
        %v1563 = vld [vmem:[#allocation10 + $0x10] sm:$0xff]
        %v1564 = vld [vmem:[#allocation10 + $0x18] sm:$0xff]
        %v1565 = vld [vmem:[#allocation10 + $0x20] sm:$0xff]
        %v1566 = vld [vmem:[#allocation10 + $0x28] sm:$0xff]
        %v1567 = vld [vmem:[#allocation10 + $0x30] sm:$0xff]
        %v1568 = vld [vmem:[#allocation10 + $0x38] sm:$0xff]
        %v1569 = vld [vmem:[#allocation10 + $0x40] sm:$0xff]
        %v1570 = vld [vmem:[#allocation10 + $0x48] sm:$0xff]
        %v1571 = vld [vmem:[#allocation10 + $0x50] sm:$0xff]
        %v1572 = vld [vmem:[#allocation10 + $0x58] sm:$0xff]
        %v1573 = vld [vmem:[#allocation10 + $0x60] sm:$0xff]
        %v1574 = vld [vmem:[#allocation10 + $0x68] sm:$0xff]
        %v1575 = vld [vmem:[#allocation10 + $0x70] sm:$0xff]
        %v1576 = vld [vmem:[#allocation10 + $0x78] sm:$0xff]
        %v1577 = vld [vmem:[#allocation11] sm:$0x3]
        %v1579 = vperm.slane %v1577, 0
        %v1580 = vperm.slane %v1577, 1
        %v1599 = vunpack.c.l.b16 %v1561
        %v1600 = vunpack.c.h.b16 %v1561
        %v1601 = vunpack.c.l.b16 %v1562
        %v1602 = vunpack.c.h.b16 %v1562
        %v1603 = vunpack.c.l.b16 %v1563
        %v1604 = vunpack.c.h.b16 %v1563
        %v1605 = vunpack.c.l.b16 %v1564
        %v1606 = vunpack.c.h.b16 %v1564
        %v1607 = vunpack.c.l.b16 %v1565
        %v1608 = vunpack.c.h.b16 %v1565
        %v1609 = vunpack.c.l.b16 %v1566
        %v1610 = vunpack.c.h.b16 %v1566
        %v1611 = vunpack.c.l.b16 %v1567
        %v1612 = vunpack.c.h.b16 %v1567
        %v1613 = vunpack.c.l.b16 %v1568
        %v1614 = vunpack.c.h.b16 %v1568
        %v1615 = vunpack.c.l.b16 %v1569
        %v1616 = vunpack.c.h.b16 %v1569
        %v1617 = vunpack.c.l.b16 %v1570
        %v1618 = vunpack.c.h.b16 %v1570
        %v1619 = vunpack.c.l.b16 %v1571
        %v1620 = vunpack.c.h.b16 %v1571
        %v1621 = vunpack.c.l.b16 %v1572
        %v1622 = vunpack.c.h.b16 %v1572
        %v1623 = vunpack.c.l.b16 %v1573
        %v1624 = vunpack.c.h.b16 %v1573
        %v1625 = vunpack.c.l.b16 %v1574
        %v1626 = vunpack.c.h.b16 %v1574
        %v1627 = vunpack.c.l.b16 %v1575
        %v1628 = vunpack.c.h.b16 %v1575
        %v1629 = vunpack.c.l.b16 %v1576
        %v1630 = vunpack.c.h.b16 %v1576
        %v1631 = vpack.c.b16 %v1601, %v1599
        %v1632 = vpack.c.b16 %v1602, %v1600
        %v1633 = vpack.c.b16 %v1605, %v1603
        %v1634 = vpack.c.b16 %v1606, %v1604
        %v1635 = vpack.c.b16 %v1609, %v1607
        %v1636 = vpack.c.b16 %v1610, %v1608
        %v1637 = vpack.c.b16 %v1613, %v1611
        %v1638 = vpack.c.b16 %v1614, %v1612
        %v1639 = vpack.c.b16 %v1617, %v1615
        %v1640 = vpack.c.b16 %v1618, %v1616
        %v1641 = vpack.c.b16 %v1621, %v1619
        %v1642 = vpack.c.b16 %v1622, %v1620
        %v1643 = vpack.c.b16 %v1625, %v1623
        %v1644 = vpack.c.b16 %v1626, %v1624
        %v1645 = vpack.c.b16 %v1629, %v1627
        %v1646 = vpack.c.b16 %v1630, %v1628
        %1663 = vmatpush.bf16.msra.mxu0 %v1645
        %1664 = vmatpush.bf16.msra.mxu0 %v1643
        %1665 = vmatpush.bf16.msra.mxu0 %v1641
        %1666 = vmatpush.bf16.msra.mxu0 %v1639
        %1667 = vmatpush.bf16.msra.mxu0 %v1637
        %1668 = vmatpush.bf16.msra.mxu0 %v1635
        %1669 = vmatpush.bf16.msra.mxu0 %v1633
        %1670 = vmatpush.bf16.msra.mxu0 %v1631
        %1671 = vmatmul.bf16.gmra.mxu0 %v1560
        %v1672 = vpop.f32.mrf.mxu0
        %v1673 = vadd.f32 %v1579, %v1672
        %v1674 = vpop.f32.mrf.mxu0
        %1675 = vdwg.mxu0
        %1676 = vmatpush.bf16.msra.mxu0 %v1646
        %1677 = vmatpush.bf16.msra.mxu0 %v1644
        %1678 = vmatpush.bf16.msra.mxu0 %v1642
        %1679 = vmatpush.bf16.msra.mxu0 %v1640
        %1680 = vmatpush.bf16.msra.mxu0 %v1638
        %1681 = vmatpush.bf16.msra.mxu0 %v1636
        %1682 = vmatpush.bf16.msra.mxu0 %v1634
        %1683 = vmatpush.bf16.msra.mxu0 %v1632
        %1684 = vmatmul.bf16.gmra.mxu0 %v1560
        %v1685 = vpop.f32.mrf.mxu0
        %v1686 = vadd.f32 %v1580, %v1685
        %v1687 = vpop.f32.mrf.mxu0
        %1688 = vdwg.mxu0
        %v1689 = vld [vmem:[#allocation8] sm:$0x3]
        %v1691 = vperm.slane %v1689, 0
        %v1692 = vperm.slane %v1689, 1
        %v1695 = vadd.f32 %v1558, %v1691
        %v1696 = vadd.f32 %v1559, %v1692
        %v1697 = vadd.f32 %v1695, %v1673
        %v1698 = vadd.f32 %v1696, %v1686
        %v1699 = vmax.f32 %v1697, 0.0
        %v1700 = vmax.f32 %v1698, 0.0
        %v1701 = vpack.c.bf16 %v1700, %v1699
        %v1703 = vrot.slane %v1701, 2
        %vm1704 = vcmask 1041408
        %v1707 = vsel %vm1704, %v1701, %v1703
        %1709 = vst [vmem:[%s413] sm:$0xf] %v1707
        %p1710 = scmp.lt.s32.totalorder %s23, 1
        %s1711 = scalar_select %p1710, %s23, 1
        %s1712 = smul.addr %s1711, 2
        %s1713 = smul.addr %s1712, 2
        %s1714 = scalar_lea.vmem %s8, %s1713
        // Predicated region
        $region77: #{resnet1d_forward.11} parent=51 // pred_check
          %p1715 = pneg %p219
        $region78: #{resnet1d_forward.11} parent=51 // pred_check_branch
          %1717 = sbr.rel (%p1715) target = $region80
        $region79: #{resnet1d_forward.11} parent=51 // pred_region
          _
        $region80: #{resnet1d_forward.11} parent=51 // pred_fallthru
          _
      $region52: #{resnet1d_forward.11} parent=5 // pred_fallthru
        _
      %p1718 = scmp.le.s32.totalorder 2, %s18
      // Predicated region
      $region81: #{resnet1d_forward.11} parent=5 // pred_check
        %p1719 = pneg %p1718
      $region82: #{resnet1d_forward.11} parent=5 // pred_check_branch
        %1721 = sbr.rel (%p1719) target = $region84
      $region83: #{resnet1d_forward.11} parent=5 // pred_region
        %s1722 = ssub.s32 %s18, 2
        // Predicated region
        $region85: #{resnet1d_forward.11} parent=83 // pred_check
          %p1723 = pneg %p225
        $region86: #{resnet1d_forward.11} parent=83 // pred_check_branch
          %1725 = sbr.rel (%p1723) target = $region88
        $region87: #{resnet1d_forward.11} parent=83 // pred_region
          %p1726 = scmp.lt.s32.totalorder %s24, 1
          %s1727 = scalar_select %p1726, %s24, 1
          %s1728 = smul.addr %s1727, 2
          %s1729 = smul.addr %s1728, 2
          %s1730 = scalar_lea.vmem %s8, %s1729
        $region88: #{resnet1d_forward.11} parent=83 // pred_fallthru
          _
      $region84: #{resnet1d_forward.11} parent=5 // pred_fallthru
        _
    $region6: #{resnet1d_forward.11} parent=1 // loop_footer
      %s22 = sadd.s32 1, %s18
    $region7: #{resnet1d_forward.11} parent=1 // loop_footer_branch
      %17 = sbr.rel target = $region3
    $region8: #{resnet1d_forward.11} parent=1 // loop_exit
      _
    %1731 = vsyncpa [#allocation4], 1
    %s1732 = scalar_lea.sflag [#allocation4], 1
    %1733 = vsyncpa %s1732, 1
    %1734 = vsyncpa [#allocation6], 1
    %1735 = vsyncpa [#allocation9], 1
    %1736 = vsyncpa [#allocation12], 1

// kernel: resnet1d_forward.12
$region0: #{resnet1d_forward.12}
  #allocation0 [shape = 'u32[]', space=smem, size = 0x4, offset = 0x4, fixed_abs, tag = 'smem constant byte address 0x4 - core index']
  #allocation1 [shape = 'u32[72,128]{1,0:T(1,128)}', space=vmem, size = 0x9000, scoped, tag = 'internal scratch']
  #allocation2 [shape = 'f32[4,512]{1,0:T(4,128)}', space=vmem, size = 0x2000, scoped, tag = 'scratch operand']
  %s0 = inlined_call_operand.vmem [shape: bf16[2,3,256], index: 0, kind: input, shape index: {}]
  %s1 = inlined_call_operand.vmem [shape: bf16[2,3,256], index: 1, kind: input, shape index: {}]
  %s2 = inlined_call_operand.hbm [shape: bf16[3,256,512], index: 2, kind: input, shape index: {}]
  %s3 = inlined_call_operand.hbm [shape: f32[1,512], index: 3, kind: input, shape index: {}]
  %s4 = inlined_call_operand.hbm [shape: bf16[3,512,512], index: 4, kind: input, shape index: {}]
  %s5 = inlined_call_operand.hbm [shape: f32[1,512], index: 5, kind: input, shape index: {}]
  %s6 = inlined_call_operand.hbm [shape: bf16[1,256,512], index: 6, kind: input, shape index: {}]
  %s7 = inlined_call_operand.hbm [shape: f32[1,512], index: 7, kind: input, shape index: {}]
  %s8 = inlined_call_operand.vmem [shape: bf16[2,2,512], index: 8, kind: output, shape index: {}]
  %s9 = sld [smem:[#allocation0]]
  $region89: #{resnet1d_forward.12} parent=0
    _
  %s11 = ssub.s32 1, %s9
  %s12 = scalar_select 0, %s11, %s9
  $region1: #{resnet1d_forward.12} parent=0
    #allocation3 [shape = 'u8[786432]{0}', space=vmem, size = 0xc0000, scoped, tag = 'input window, operand 2, single buffered']
    #allocation4 [shape = 's32[2]{0}', space=sflag, size = 0x8, scoped, tag = 'scoped memory for resnet1d_forward.12']
    #allocation5 [shape = 'u8[2048]{0}', space=vmem, size = 0x800, scoped, tag = 'input window, operand 3, single buffered']
    #allocation6 [shape = 's32[1]{0}', space=sflag, size = 0x4, scoped, tag = 'scoped memory for resnet1d_forward.12']
    #allocation7 [shape = 'u8[1572864]{0}', space=vmem, size = 0x180000, scoped, tag = 'input window, operand 4, single buffered']
    #allocation8 [shape = 'u8[2048]{0}', space=vmem, size = 0x800, scoped, tag = 'input window, operand 5, single buffered']
    #allocation9 [shape = 's32[1]{0}', space=sflag, size = 0x4, scoped, tag = 'scoped memory for resnet1d_forward.12']
    #allocation10 [shape = 'u8[262144]{0}', space=vmem, size = 0x40000, scoped, tag = 'input window, operand 6, single buffered']
    #allocation11 [shape = 'u8[2048]{0}', space=vmem, size = 0x800, scoped, tag = 'input window, operand 7, single buffered']
    #allocation12 [shape = 's32[1]{0}', space=sflag, size = 0x4, scoped, tag = 'scoped memory for resnet1d_forward.12']
    %13 = vsyncpa [#allocation4], 0
    %14 = vsyncpa [#allocation6], 0
    %15 = vsyncpa [#allocation9], 0
    %16 = vsyncpa [#allocation12], 0
    loop: start=0, step=1, limit=4
    $region2: #{resnet1d_forward.12} parent=1 // loop_pre_header
      _
    $region3: #{resnet1d_forward.12} parent=1 // loop_header
      %s18 = sphi 0, %s22
      %p19 = scmp.ge.s32.totalorder %s18, 4
      %s28 = sphi 0, %s30
      %s31 = sphi 0, %s28
      %s32 = sphi 0, %s31
      %s48 = sphi 0, %s32
      %s54 = sphi 0, %s56
      %s57 = sphi 0, %s54
      %s58 = sphi 0, %s57
      %s74 = sphi 0, %s58
      %s78 = sphi 0, %s78
      %s80 = sphi 0, %s78
      %s81 = sphi 0, %s80
      %s95 = sphi 0, %s81
      %s99 = sphi 0, %s99
      %s101 = sphi 0, %s99
      %s102 = sphi 0, %s101
      %s116 = sphi 0, %s102
      %s120 = sphi 0, %s120
      %s122 = sphi 0, %s120
      %s123 = sphi 0, %s122
      %s137 = sphi 0, %s123
      %s141 = sphi 0, %s141
      %s143 = sphi 0, %s141
      %s144 = sphi 0, %s143
      %s158 = sphi 0, %s144
      %s162 = sphi 0, %s162
      %s164 = sphi 0, %s162
      %s165 = sphi 0, %s164
      %s179 = sphi 0, %s165
      %s183 = sphi 0, %s183
      %s185 = sphi 0, %s183
      %s186 = sphi 0, %s185
      %s200 = sphi 0, %s186
      %s206 = sphi 0, %s208
      %s209 = sphi 0, %s206
      %s210 = sphi 0, %s209
      %s226 = sphi 0, %s210
    $region4: #{resnet1d_forward.12} parent=1 // loop_header_branch
      %21 = sbr.rel (%p19) target = $region8
    $region5: #{resnet1d_forward.12} parent=1 // loop_body
      %s23 = ssub.s32 %s18, 1
      %s24 = ssub.s32 %s18, 2
      %s25 = sadd.s32 %s18, 1
      %s26 = ssub.s32 %s18, %s25
      %p27 = scmp.eq.s32.totalorder %s26, 0
      %s29 = sadd.s32 %s28, 1
      %s30 = scalar_select %p27, %s28, %s29
      %p33 = pneg %p27
      %p34 = scmp.eq.s32.totalorder %s18, 1
      %p35 = por %p33, %p34
      %p36 = scmp.ne.s32.totalorder %s28, %s31
      %p37 = scmp.eq.s32.totalorder %s18, 0
      %p38 = por %p36, %p37
      %p39 = scmp.ne.s32.totalorder %s28, %s31
      %p40 = scmp.eq.s32.totalorder %s23, 1
      %p41 = por %p39, %p40
      %p42 = scmp.ne.s32.totalorder %s31, %s32
      %p43 = scmp.eq.s32.totalorder %s23, 0
      %p44 = por %p42, %p43
      %p45 = scmp.ne.s32.totalorder %s31, %s32
      %p46 = scmp.eq.s32.totalorder %s24, 1
      %p47 = por %p45, %p46
      %p49 = scmp.ne.s32.totalorder %s32, %s48
      %p50 = scmp.eq.s32.totalorder %s24, 0
      %p51 = por %p49, %p50
      %s52 = ssub.s32 %s18, %s25
      %p53 = scmp.eq.s32.totalorder %s52, 0
      %s55 = sadd.s32 %s54, 1
      %s56 = scalar_select %p53, %s54, %s55
      %p59 = pneg %p53
      %p60 = scmp.eq.s32.totalorder %s18, 1
      %p61 = por %p59, %p60
      %p62 = scmp.ne.s32.totalorder %s54, %s57
      %p63 = scmp.eq.s32.totalorder %s18, 0
      %p64 = por %p62, %p63
      %p65 = scmp.ne.s32.totalorder %s54, %s57
      %p66 = scmp.eq.s32.totalorder %s23, 1
      %p67 = por %p65, %p66
      %p68 = scmp.ne.s32.totalorder %s57, %s58
      %p69 = scmp.eq.s32.totalorder %s23, 0
      %p70 = por %p68, %p69
      %p71 = scmp.ne.s32.totalorder %s57, %s58
      %p72 = scmp.eq.s32.totalorder %s24, 1
      %p73 = por %p71, %p72
      %p75 = scmp.ne.s32.totalorder %s58, %s74
      %p76 = scmp.eq.s32.totalorder %s24, 0
      %p77 = por %p75, %p76
      %s79 = sadd.s32 %s78, 1
      %p82 = scmp.eq.s32.totalorder %s18, 1
      %p83 = scmp.ne.s32.totalorder %s78, %s80
      %p84 = scmp.eq.s32.totalorder %s18, 0
      %p85 = por %p83, %p84
      %p86 = scmp.ne.s32.totalorder %s78, %s80
      %p87 = scmp.eq.s32.totalorder %s23, 1
      %p88 = por %p86, %p87
      %p89 = scmp.ne.s32.totalorder %s80, %s81
      %p90 = scmp.eq.s32.totalorder %s23, 0
      %p91 = por %p89, %p90
      %p92 = scmp.ne.s32.totalorder %s80, %s81
      %p93 = scmp.eq.s32.totalorder %s24, 1
      %p94 = por %p92, %p93
      %p96 = scmp.ne.s32.totalorder %s81, %s95
      %p97 = scmp.eq.s32.totalorder %s24, 0
      %p98 = por %p96, %p97
      %s100 = sadd.s32 %s99, 1
      %p103 = scmp.eq.s32.totalorder %s18, 1
      %p104 = scmp.ne.s32.totalorder %s99, %s101
      %p105 = scmp.eq.s32.totalorder %s18, 0
      %p106 = por %p104, %p105
      %p107 = scmp.ne.s32.totalorder %s99, %s101
      %p108 = scmp.eq.s32.totalorder %s23, 1
      %p109 = por %p107, %p108
      %p110 = scmp.ne.s32.totalorder %s101, %s102
      %p111 = scmp.eq.s32.totalorder %s23, 0
      %p112 = por %p110, %p111
      %p113 = scmp.ne.s32.totalorder %s101, %s102
      %p114 = scmp.eq.s32.totalorder %s24, 1
      %p115 = por %p113, %p114
      %p117 = scmp.ne.s32.totalorder %s102, %s116
      %p118 = scmp.eq.s32.totalorder %s24, 0
      %p119 = por %p117, %p118
      %s121 = sadd.s32 %s120, 1
      %p124 = scmp.eq.s32.totalorder %s18, 1
      %p125 = scmp.ne.s32.totalorder %s120, %s122
      %p126 = scmp.eq.s32.totalorder %s18, 0
      %p127 = por %p125, %p126
      %p128 = scmp.ne.s32.totalorder %s120, %s122
      %p129 = scmp.eq.s32.totalorder %s23, 1
      %p130 = por %p128, %p129
      %p131 = scmp.ne.s32.totalorder %s122, %s123
      %p132 = scmp.eq.s32.totalorder %s23, 0
      %p133 = por %p131, %p132
      %p134 = scmp.ne.s32.totalorder %s122, %s123
      %p135 = scmp.eq.s32.totalorder %s24, 1
      %p136 = por %p134, %p135
      %p138 = scmp.ne.s32.totalorder %s123, %s137
      %p139 = scmp.eq.s32.totalorder %s24, 0
      %p140 = por %p138, %p139
      %s142 = sadd.s32 %s141, 1
      %p145 = scmp.eq.s32.totalorder %s18, 1
      %p146 = scmp.ne.s32.totalorder %s141, %s143
      %p147 = scmp.eq.s32.totalorder %s18, 0
      %p148 = por %p146, %p147
      %p149 = scmp.ne.s32.totalorder %s141, %s143
      %p150 = scmp.eq.s32.totalorder %s23, 1
      %p151 = por %p149, %p150
      %p152 = scmp.ne.s32.totalorder %s143, %s144
      %p153 = scmp.eq.s32.totalorder %s23, 0
      %p154 = por %p152, %p153
      %p155 = scmp.ne.s32.totalorder %s143, %s144
      %p156 = scmp.eq.s32.totalorder %s24, 1
      %p157 = por %p155, %p156
      %p159 = scmp.ne.s32.totalorder %s144, %s158
      %p160 = scmp.eq.s32.totalorder %s24, 0
      %p161 = por %p159, %p160
      %s163 = sadd.s32 %s162, 1
      %p166 = scmp.eq.s32.totalorder %s18, 1
      %p167 = scmp.ne.s32.totalorder %s162, %s164
      %p168 = scmp.eq.s32.totalorder %s18, 0
      %p169 = por %p167, %p168
      %p170 = scmp.ne.s32.totalorder %s162, %s164
      %p171 = scmp.eq.s32.totalorder %s23, 1
      %p172 = por %p170, %p171
      %p173 = scmp.ne.s32.totalorder %s164, %s165
      %p174 = scmp.eq.s32.totalorder %s23, 0
      %p175 = por %p173, %p174
      %p176 = scmp.ne.s32.totalorder %s164, %s165
      %p177 = scmp.eq.s32.totalorder %s24, 1
      %p178 = por %p176, %p177
      %p180 = scmp.ne.s32.totalorder %s165, %s179
      %p181 = scmp.eq.s32.totalorder %s24, 0
      %p182 = por %p180, %p181
      %s184 = sadd.s32 %s183, 1
      %p187 = scmp.eq.s32.totalorder %s18, 1
      %p188 = scmp.ne.s32.totalorder %s183, %s185
      %p189 = scmp.eq.s32.totalorder %s18, 0
      %p190 = por %p188, %p189
      %p191 = scmp.ne.s32.totalorder %s183, %s185
      %p192 = scmp.eq.s32.totalorder %s23, 1
      %p193 = por %p191, %p192
      %p194 = scmp.ne.s32.totalorder %s185, %s186
      %p195 = scmp.eq.s32.totalorder %s23, 0
      %p196 = por %p194, %p195
      %p197 = scmp.ne.s32.totalorder %s185, %s186
      %p198 = scmp.eq.s32.totalorder %s24, 1
      %p199 = por %p197, %p198
      %p201 = scmp.ne.s32.totalorder %s186, %s200
      %p202 = scmp.eq.s32.totalorder %s24, 0
      %p203 = por %p201, %p202
      %s204 = ssub.s32 %s18, %s25
      %p205 = scmp.eq.s32.totalorder %s204, 0
      %s207 = sadd.s32 %s206, 1
      %s208 = scalar_select %p205, %s206, %s207
      %p211 = pneg %p205
      %p212 = scmp.eq.s32.totalorder %s18, 1
      %p213 = por %p211, %p212
      %p214 = scmp.ne.s32.totalorder %s206, %s209
      %p215 = scmp.eq.s32.totalorder %s18, 0
      %p216 = por %p214, %p215
      %p217 = scmp.ne.s32.totalorder %s206, %s209
      %p218 = scmp.eq.s32.totalorder %s23, 1
      %p219 = por %p217, %p218
      %p220 = scmp.ne.s32.totalorder %s209, %s210
      %p221 = scmp.eq.s32.totalorder %s23, 0
      %p222 = por %p220, %p221
      %p223 = scmp.ne.s32.totalorder %s209, %s210
      %p224 = scmp.eq.s32.totalorder %s24, 1
      %p225 = por %p223, %p224
      %p227 = scmp.ne.s32.totalorder %s210, %s226
      %p228 = scmp.eq.s32.totalorder %s24, 0
      %p229 = por %p227, %p228
      %p230 = scmp.le.s32.totalorder 1, %s18
      %p231 = scmp.lt.s32.totalorder %s18, 3
      %p232 = pnand %p230, %p231
      %p233 = pneg %p232
      // Predicated region
      $region9: #{resnet1d_forward.12} parent=5 // pred_check
        _
      $region10: #{resnet1d_forward.12} parent=5 // pred_check_branch
        %235 = sbr.rel (%p232) target = $region12
      $region11: #{resnet1d_forward.12} parent=5 // pred_region
        %s236 = ssub.s32 %s18, 1
        // Predicated region
        $region13: #{resnet1d_forward.12} parent=11 // pred_check
          %p237 = pneg %p91
        $region14: #{resnet1d_forward.12} parent=11 // pred_check_branch
          %239 = sbr.rel (%p237) target = $region16
        $region15: #{resnet1d_forward.12} parent=11 // pred_region
          %241 = vsyncadd [#allocation4], 0
          %s242 = sshll.u32 %s2, 4
          %s243 = int_to_ptr.hbm [resolvable:$true] %s242
          %s244 = sshll.u32 [#allocation3], 4
          %s245 = int_to_ptr.vmem [resolvable:$true] %s244
          %250 = dma.hbm_to_vmem [thread:$0]  %s243, 24576, %s245, [#allocation4], 256, 256, 16
        $region16: #{resnet1d_forward.12} parent=11 // pred_fallthru
          _
        // Predicated region
        $region17: #{resnet1d_forward.12} parent=11 // pred_check
          %p251 = pneg %p112
        $region18: #{resnet1d_forward.12} parent=11 // pred_check_branch
          %253 = sbr.rel (%p251) target = $region20
        $region19: #{resnet1d_forward.12} parent=11 // pred_region
          %255 = vsyncadd [#allocation6], 0
          %s257 = sshll.u32 %s3, 4
          %s258 = int_to_ptr.hbm [resolvable:$true] %s257
          %s259 = sshll.u32 [#allocation5], 4
          %s260 = int_to_ptr.vmem [resolvable:$true] %s259
          %262 = dma.hbm_to_vmem [thread:$0]  %s258, 64, %s260, [#allocation6]
        $region20: #{resnet1d_forward.12} parent=11 // pred_fallthru
          _
        // Predicated region
        $region21: #{resnet1d_forward.12} parent=11 // pred_check
          %p263 = pneg %p133
        $region22: #{resnet1d_forward.12} parent=11 // pred_check_branch
          %265 = sbr.rel (%p263) target = $region24
        $region23: #{resnet1d_forward.12} parent=11 // pred_region
          %267 = vsyncadd [#allocation6], 0
          %s268 = sshll.u32 %s4, 4
          %s269 = int_to_ptr.hbm [resolvable:$true] %s268
          %s270 = sshll.u32 [#allocation7], 4
          %s271 = int_to_ptr.vmem [resolvable:$true] %s270
          %276 = dma.hbm_to_vmem [thread:$0]  %s269, 49152, %s271, [#allocation6], 256, 256, 16
        $region24: #{resnet1d_forward.12} parent=11 // pred_fallthru
          _
        // Predicated region
        $region25: #{resnet1d_forward.12} parent=11 // pred_check
          %p277 = pneg %p154
        $region26: #{resnet1d_forward.12} parent=11 // pred_check_branch
          %279 = sbr.rel (%p277) target = $region28
        $region27: #{resnet1d_forward.12} parent=11 // pred_region
          %281 = vsyncadd [#allocation9], 0
          %s283 = sshll.u32 %s5, 4
          %s284 = int_to_ptr.hbm [resolvable:$true] %s283
          %s285 = sshll.u32 [#allocation8], 4
          %s286 = int_to_ptr.vmem [resolvable:$true] %s285
          %288 = dma.hbm_to_vmem [thread:$0]  %s284, 64, %s286, [#allocation9]
        $region28: #{resnet1d_forward.12} parent=11 // pred_fallthru
          _
        // Predicated region
        $region29: #{resnet1d_forward.12} parent=11 // pred_check
          %p289 = pneg %p175
        $region30: #{resnet1d_forward.12} parent=11 // pred_check_branch
          %291 = sbr.rel (%p289) target = $region32
        $region31: #{resnet1d_forward.12} parent=11 // pred_region
          %293 = vsyncadd [#allocation9], 0
          %s294 = sshll.u32 %s6, 4
          %s295 = int_to_ptr.hbm [resolvable:$true] %s294
          %s296 = sshll.u32 [#allocation10], 4
          %s297 = int_to_ptr.vmem [resolvable:$true] %s296
          %302 = dma.hbm_to_vmem [thread:$0]  %s295, 8192, %s297, [#allocation9], 256, 256, 16
        $region32: #{resnet1d_forward.12} parent=11 // pred_fallthru
          _
        // Predicated region
        $region33: #{resnet1d_forward.12} parent=11 // pred_check
          %p303 = pneg %p196
        $region34: #{resnet1d_forward.12} parent=11 // pred_check_branch
          %305 = sbr.rel (%p303) target = $region36
        $region35: #{resnet1d_forward.12} parent=11 // pred_region
          %307 = vsyncadd [#allocation12], 0
          %s309 = sshll.u32 %s7, 4
          %s310 = int_to_ptr.hbm [resolvable:$true] %s309
          %s311 = sshll.u32 [#allocation11], 4
          %s312 = int_to_ptr.vmem [resolvable:$true] %s311
          %314 = dma.hbm_to_vmem [thread:$0]  %s310, 64, %s312, [#allocation12]
        $region36: #{resnet1d_forward.12} parent=11 // pred_fallthru
          _
      $region12: #{resnet1d_forward.12} parent=5 // pred_fallthru
        _
      %p315 = scmp.lt.s32.totalorder %s18, 2
      // Predicated region
      $region37: #{resnet1d_forward.12} parent=5 // pred_check
        %p316 = pneg %p315
      $region38: #{resnet1d_forward.12} parent=5 // pred_check_branch
        %318 = sbr.rel (%p316) target = $region40
      $region39: #{resnet1d_forward.12} parent=5 // pred_region
        // Predicated region
        $region41: #{resnet1d_forward.12} parent=39 // pred_check
          %p319 = pneg %p38
        $region42: #{resnet1d_forward.12} parent=39 // pred_check_branch
          %321 = sbr.rel (%p319) target = $region44
        $region43: #{resnet1d_forward.12} parent=39 // pred_region
          %p322 = scmp.lt.s32.totalorder %s18, 1
          %s323 = scalar_select %p322, %s18, 1
          %s324 = smul.addr %s323, 2
          %s325 = smul.addr %s324, 2
          %s326 = scalar_lea.vmem %s0, %s325
        $region44: #{resnet1d_forward.12} parent=39 // pred_fallthru
          _
        // Predicated region
        $region45: #{resnet1d_forward.12} parent=39 // pred_check
          %p327 = pneg %p64
        $region46: #{resnet1d_forward.12} parent=39 // pred_check_branch
          %329 = sbr.rel (%p327) target = $region48
        $region47: #{resnet1d_forward.12} parent=39 // pred_region
          %p330 = scmp.lt.s32.totalorder %s18, 1
          %s331 = scalar_select %p330, %s18, 1
          %s332 = smul.addr %s331, 2
          %s333 = smul.addr %s332, 2
          %s334 = scalar_lea.vmem %s1, %s333
        $region48: #{resnet1d_forward.12} parent=39 // pred_fallthru
          _
      $region40: #{resnet1d_forward.12} parent=5 // pred_fallthru
        _
      %p335 = scmp.le.s32.totalorder 1, %s18
      %p336 = scmp.lt.s32.totalorder %s18, 3
      %p337 = pnand %p335, %p336
      %p338 = pneg %p337
      // Predicated region
      $region49: #{resnet1d_forward.12} parent=5 // pred_check
        _
      $region50: #{resnet1d_forward.12} parent=5 // pred_check_branch
        %340 = sbr.rel (%p337) target = $region52
      $region51: #{resnet1d_forward.12} parent=5 // pred_region
        %s341 = ssub.s32 %s18, 1
        // Predicated region
        $region53: #{resnet1d_forward.12} parent=51 // pred_check
          %p342 = pneg %p91
        $region54: #{resnet1d_forward.12} parent=51 // pred_check_branch
          %344 = sbr.rel (%p342) target = $region56
        $region55: #{resnet1d_forward.12} parent=51 // pred_region
          %346 = dma.done [#allocation4], 24576
        $region56: #{resnet1d_forward.12} parent=51 // pred_fallthru
          _
        // Predicated region
        $region57: #{resnet1d_forward.12} parent=51 // pred_check
          %p347 = pneg %p112
        $region58: #{resnet1d_forward.12} parent=51 // pred_check_branch
          %349 = sbr.rel (%p347) target = $region60
        $region59: #{resnet1d_forward.12} parent=51 // pred_region
          %351 = dma.done [#allocation6], 64
        $region60: #{resnet1d_forward.12} parent=51 // pred_fallthru
          _
        // Predicated region
        $region61: #{resnet1d_forward.12} parent=51 // pred_check
          %p352 = pneg %p133
        $region62: #{resnet1d_forward.12} parent=51 // pred_check_branch
          %354 = sbr.rel (%p352) target = $region64
        $region63: #{resnet1d_forward.12} parent=51 // pred_region
          %356 = dma.done [#allocation6], 49152
        $region64: #{resnet1d_forward.12} parent=51 // pred_fallthru
          _
        // Predicated region
        $region65: #{resnet1d_forward.12} parent=51 // pred_check
          %p357 = pneg %p154
        $region66: #{resnet1d_forward.12} parent=51 // pred_check_branch
          %359 = sbr.rel (%p357) target = $region68
        $region67: #{resnet1d_forward.12} parent=51 // pred_region
          %361 = dma.done [#allocation9], 64
        $region68: #{resnet1d_forward.12} parent=51 // pred_fallthru
          _
        // Predicated region
        $region69: #{resnet1d_forward.12} parent=51 // pred_check
          %p362 = pneg %p175
        $region70: #{resnet1d_forward.12} parent=51 // pred_check_branch
          %364 = sbr.rel (%p362) target = $region72
        $region71: #{resnet1d_forward.12} parent=51 // pred_region
          %366 = dma.done [#allocation9], 8192
        $region72: #{resnet1d_forward.12} parent=51 // pred_fallthru
          _
        // Predicated region
        $region73: #{resnet1d_forward.12} parent=51 // pred_check
          %p367 = pneg %p196
        $region74: #{resnet1d_forward.12} parent=51 // pred_check_branch
          %369 = sbr.rel (%p367) target = $region76
        $region75: #{resnet1d_forward.12} parent=51 // pred_region
          %371 = dma.done [#allocation12], 64
        $region76: #{resnet1d_forward.12} parent=51 // pred_fallthru
          _
        %p372 = scmp.lt.s32.totalorder %s23, 1
        %s373 = scalar_select %p372, %s23, 1
        %s374 = smul.addr %s373, 2
        %s375 = smul.addr %s374, 2
        %s376 = scalar_lea.vmem %s0, %s375
        %p377 = pneg %p44
        %p378 = pneg %p41
        %p379 = scmp.lt.s32.totalorder %s23, 1
        %s380 = scalar_select %p379, %s23, 1
        %s381 = smul.addr %s380, 2
        %s382 = smul.addr %s381, 2
        %s383 = scalar_lea.vmem %s1, %s382
        %p384 = pneg %p70
        %p385 = pneg %p67
        %p386 = pneg %p91
        %p387 = pneg %p88
        %p388 = pneg %p112
        %p389 = pneg %p109
        %p390 = pneg %p133
        %p391 = pneg %p130
        %p392 = pneg %p154
        %p393 = pneg %p151
        %p394 = pneg %p175
        %p395 = pneg %p172
        %p396 = pneg %p196
        %p397 = pneg %p193
        %p398 = pneg %p222
        %p399 = pneg %p219
        %p400 = scmp.lt.s32.totalorder %s23, 1
        %s401 = scalar_select %p400, %s23, 1
        %s402 = smul.addr %s401, 4
        %s403 = scalar_lea.vmem %s8, %s402
        %p404 = scmp.lt.s32.totalorder %s23, 1
        %s405 = scalar_select %p404, %s23, 1
        %s406 = smul.addr %s405, 2
        %s407 = smul.addr %s406, 2
        %s408 = scalar_lea.vmem %s0, %s407
        %p409 = scmp.lt.s32.totalorder %s23, 1
        %s410 = scalar_select %p409, %s23, 1
        %s411 = smul.addr %s410, 2
        %s412 = smul.addr %s411, 2
        %s413 = scalar_lea.vmem %s1, %s412
        %p414 = scmp.lt.s32.totalorder %s23, 1
        %s415 = scalar_select %p414, %s23, 1
        %s416 = smul.addr %s415, 4
        %s417 = scalar_lea.vmem %s8, %s416
        %v418 = vld [vmem:[%s408] sm:$0x5]
        %v419 = vld [vmem:[#allocation3] sm:$0xff]
        %v420 = vld [vmem:[#allocation3 + $0x8] sm:$0xff]
        %v421 = vld [vmem:[#allocation3 + $0x10] sm:$0xff]
        %v422 = vld [vmem:[#allocation3 + $0x18] sm:$0xff]
        %v423 = vld [vmem:[#allocation3 + $0x20] sm:$0xff]
        %v424 = vld [vmem:[#allocation3 + $0x28] sm:$0xff]
        %v425 = vld [vmem:[#allocation3 + $0x30] sm:$0xff]
        %v426 = vld [vmem:[#allocation3 + $0x38] sm:$0xff]
        %v427 = vld [vmem:[#allocation3 + $0x40] sm:$0xff]
        %v428 = vld [vmem:[#allocation3 + $0x48] sm:$0xff]
        %v429 = vld [vmem:[#allocation3 + $0x50] sm:$0xff]
        %v430 = vld [vmem:[#allocation3 + $0x58] sm:$0xff]
        %v431 = vld [vmem:[#allocation3 + $0x60] sm:$0xff]
        %v432 = vld [vmem:[#allocation3 + $0x68] sm:$0xff]
        %v433 = vld [vmem:[#allocation3 + $0x70] sm:$0xff]
        %v434 = vld [vmem:[#allocation3 + $0x78] sm:$0xff]
        %v435 = vld [vmem:[#allocation3 + $0x80] sm:$0xff]
        %v436 = vld [vmem:[#allocation3 + $0x88] sm:$0xff]
        %v437 = vld [vmem:[#allocation3 + $0x90] sm:$0xff]
        %v438 = vld [vmem:[#allocation3 + $0x98] sm:$0xff]
        %v439 = vld [vmem:[#allocation3 + $0xa0] sm:$0xff]
        %v440 = vld [vmem:[#allocation3 + $0xa8] sm:$0xff]
        %v441 = vld [vmem:[#allocation3 + $0xb0] sm:$0xff]
        %v442 = vld [vmem:[#allocation3 + $0xb8] sm:$0xff]
        %v443 = vld [vmem:[#allocation3 + $0xc0] sm:$0xff]
        %v444 = vld [vmem:[#allocation3 + $0xc8] sm:$0xff]
        %v445 = vld [vmem:[#allocation3 + $0xd0] sm:$0xff]
        %v446 = vld [vmem:[#allocation3 + $0xd8] sm:$0xff]
        %v447 = vld [vmem:[#allocation3 + $0xe0] sm:$0xff]
        %v448 = vld [vmem:[#allocation3 + $0xe8] sm:$0xff]
        %v449 = vld [vmem:[#allocation3 + $0xf0] sm:$0xff]
        %v450 = vld [vmem:[#allocation3 + $0xf8] sm:$0xff]
        %v451 = vld [vmem:[#allocation3 + $0x100] sm:$0xff]
        %v452 = vld [vmem:[#allocation3 + $0x108] sm:$0xff]
        %v453 = vld [vmem:[#allocation3 + $0x110] sm:$0xff]
        %v454 = vld [vmem:[#allocation3 + $0x118] sm:$0xff]
        %v455 = vld [vmem:[#allocation3 + $0x120] sm:$0xff]
        %v456 = vld [vmem:[#allocation3 + $0x128] sm:$0xff]
        %v457 = vld [vmem:[#allocation3 + $0x130] sm:$0xff]
        %v458 = vld [vmem:[#allocation3 + $0x138] sm:$0xff]
        %v459 = vld [vmem:[#allocation3 + $0x140] sm:$0xff]
        %v460 = vld [vmem:[#allocation3 + $0x148] sm:$0xff]
        %v461 = vld [vmem:[#allocation3 + $0x150] sm:$0xff]
        %v462 = vld [vmem:[#allocation3 + $0x158] sm:$0xff]
        %v463 = vld [vmem:[#allocation3 + $0x160] sm:$0xff]
        %v464 = vld [vmem:[#allocation3 + $0x168] sm:$0xff]
        %v465 = vld [vmem:[#allocation3 + $0x170] sm:$0xff]
        %v466 = vld [vmem:[#allocation3 + $0x178] sm:$0xff]
        %v467 = vld [vmem:[#allocation3 + $0x180] sm:$0xff]
        %v468 = vld [vmem:[#allocation3 + $0x188] sm:$0xff]
        %v469 = vld [vmem:[#allocation3 + $0x190] sm:$0xff]
        %v470 = vld [vmem:[#allocation3 + $0x198] sm:$0xff]
        %v471 = vld [vmem:[#allocation3 + $0x1a0] sm:$0xff]
        %v472 = vld [vmem:[#allocation3 + $0x1a8] sm:$0xff]
        %v473 = vld [vmem:[#allocation3 + $0x1b0] sm:$0xff]
        %v474 = vld [vmem:[#allocation3 + $0x1b8] sm:$0xff]
        %v475 = vld [vmem:[#allocation3 + $0x1c0] sm:$0xff]
        %v476 = vld [vmem:[#allocation3 + $0x1c8] sm:$0xff]
        %v477 = vld [vmem:[#allocation3 + $0x1d0] sm:$0xff]
        %v478 = vld [vmem:[#allocation3 + $0x1d8] sm:$0xff]
        %v479 = vld [vmem:[#allocation3 + $0x1e0] sm:$0xff]
        %v480 = vld [vmem:[#allocation3 + $0x1e8] sm:$0xff]
        %v481 = vld [vmem:[#allocation3 + $0x1f0] sm:$0xff]
        %v482 = vld [vmem:[#allocation3 + $0x1f8] sm:$0xff]
        %v483 = vld [vmem:[%s413] sm:$0x5]
        %s484 = scalar_lea.vmem [#allocation3], 512
        %v485 = vld [vmem:[%s484] sm:$0xff]
        %v486 = vld [vmem:[%s484 + $0x8] sm:$0xff]
        %v487 = vld [vmem:[%s484 + $0x10] sm:$0xff]
        %v488 = vld [vmem:[%s484 + $0x18] sm:$0xff]
        %v489 = vld [vmem:[%s484 + $0x20] sm:$0xff]
        %v490 = vld [vmem:[%s484 + $0x28] sm:$0xff]
        %v491 = vld [vmem:[%s484 + $0x30] sm:$0xff]
        %v492 = vld [vmem:[%s484 + $0x38] sm:$0xff]
        %v493 = vld [vmem:[%s484 + $0x40] sm:$0xff]
        %v494 = vld [vmem:[%s484 + $0x48] sm:$0xff]
        %v495 = vld [vmem:[%s484 + $0x50] sm:$0xff]
        %v496 = vld [vmem:[%s484 + $0x58] sm:$0xff]
        %v497 = vld [vmem:[%s484 + $0x60] sm:$0xff]
        %v498 = vld [vmem:[%s484 + $0x68] sm:$0xff]
        %v499 = vld [vmem:[%s484 + $0x70] sm:$0xff]
        %v500 = vld [vmem:[%s484 + $0x78] sm:$0xff]
        %v501 = vld [vmem:[%s484 + $0x80] sm:$0xff]
        %v502 = vld [vmem:[%s484 + $0x88] sm:$0xff]
        %v503 = vld [vmem:[%s484 + $0x90] sm:$0xff]
        %v504 = vld [vmem:[%s484 + $0x98] sm:$0xff]
        %v505 = vld [vmem:[%s484 + $0xa0] sm:$0xff]
        %v506 = vld [vmem:[%s484 + $0xa8] sm:$0xff]
        %v507 = vld [vmem:[%s484 + $0xb0] sm:$0xff]
        %v508 = vld [vmem:[%s484 + $0xb8] sm:$0xff]
        %v509 = vld [vmem:[%s484 + $0xc0] sm:$0xff]
        %v510 = vld [vmem:[%s484 + $0xc8] sm:$0xff]
        %v511 = vld [vmem:[%s484 + $0xd0] sm:$0xff]
        %v512 = vld [vmem:[%s484 + $0xd8] sm:$0xff]
        %v513 = vld [vmem:[%s484 + $0xe0] sm:$0xff]
        %v514 = vld [vmem:[%s484 + $0xe8] sm:$0xff]
        %v515 = vld [vmem:[%s484 + $0xf0] sm:$0xff]
        %v516 = vld [vmem:[%s484 + $0xf8] sm:$0xff]
        %v517 = vld [vmem:[%s484 + $0x100] sm:$0xff]
        %v518 = vld [vmem:[%s484 + $0x108] sm:$0xff]
        %v519 = vld [vmem:[%s484 + $0x110] sm:$0xff]
        %v520 = vld [vmem:[%s484 + $0x118] sm:$0xff]
        %v521 = vld [vmem:[%s484 + $0x120] sm:$0xff]
        %v522 = vld [vmem:[%s484 + $0x128] sm:$0xff]
        %v523 = vld [vmem:[%s484 + $0x130] sm:$0xff]
        %v524 = vld [vmem:[%s484 + $0x138] sm:$0xff]
        %v525 = vld [vmem:[%s484 + $0x140] sm:$0xff]
        %v526 = vld [vmem:[%s484 + $0x148] sm:$0xff]
        %v527 = vld [vmem:[%s484 + $0x150] sm:$0xff]
        %v528 = vld [vmem:[%s484 + $0x158] sm:$0xff]
        %v529 = vld [vmem:[%s484 + $0x160] sm:$0xff]
        %v530 = vld [vmem:[%s484 + $0x168] sm:$0xff]
        %v531 = vld [vmem:[%s484 + $0x170] sm:$0xff]
        %v532 = vld [vmem:[%s484 + $0x178] sm:$0xff]
        %v533 = vld [vmem:[%s484 + $0x180] sm:$0xff]
        %v534 = vld [vmem:[%s484 + $0x188] sm:$0xff]
        %v535 = vld [vmem:[%s484 + $0x190] sm:$0xff]
        %v536 = vld [vmem:[%s484 + $0x198] sm:$0xff]
        %v537 = vld [vmem:[%s484 + $0x1a0] sm:$0xff]
        %v538 = vld [vmem:[%s484 + $0x1a8] sm:$0xff]
        %v539 = vld [vmem:[%s484 + $0x1b0] sm:$0xff]
        %v540 = vld [vmem:[%s484 + $0x1b8] sm:$0xff]
        %v541 = vld [vmem:[%s484 + $0x1c0] sm:$0xff]
        %v542 = vld [vmem:[%s484 + $0x1c8] sm:$0xff]
        %v543 = vld [vmem:[%s484 + $0x1d0] sm:$0xff]
        %v544 = vld [vmem:[%s484 + $0x1d8] sm:$0xff]
        %v545 = vld [vmem:[%s484 + $0x1e0] sm:$0xff]
        %v546 = vld [vmem:[%s484 + $0x1e8] sm:$0xff]
        %v547 = vld [vmem:[%s484 + $0x1f0] sm:$0xff]
        %v548 = vld [vmem:[%s484 + $0x1f8] sm:$0xff]
        %550 = vst [vmem:[#allocation1] ss:$4 sm:$0xff] %v483
        %v551 = vld.sshfl [vmem:[#allocation1] sm:$0xff pattern:$0x73625140]
        %v552 = vld.sshfl [vmem:[#allocation1 + $0x8] sm:$0xff pattern:$0x73625140]
        %v619 = vunpack.c.l.b16 %v485
        %v620 = vunpack.c.h.b16 %v485
        %v621 = vunpack.c.l.b16 %v486
        %v622 = vunpack.c.h.b16 %v486
        %v623 = vunpack.c.l.b16 %v487
        %v624 = vunpack.c.h.b16 %v487
        %v625 = vunpack.c.l.b16 %v488
        %v626 = vunpack.c.h.b16 %v488
        %v627 = vunpack.c.l.b16 %v489
        %v628 = vunpack.c.h.b16 %v489
        %v629 = vunpack.c.l.b16 %v490
        %v630 = vunpack.c.h.b16 %v490
        %v631 = vunpack.c.l.b16 %v491
        %v632 = vunpack.c.h.b16 %v491
        %v633 = vunpack.c.l.b16 %v492
        %v634 = vunpack.c.h.b16 %v492
        %v635 = vunpack.c.l.b16 %v493
        %v636 = vunpack.c.h.b16 %v493
        %v637 = vunpack.c.l.b16 %v494
        %v638 = vunpack.c.h.b16 %v494
        %v639 = vunpack.c.l.b16 %v495
        %v640 = vunpack.c.h.b16 %v495
        %v641 = vunpack.c.l.b16 %v496
        %v642 = vunpack.c.h.b16 %v496
        %v643 = vunpack.c.l.b16 %v497
        %v644 = vunpack.c.h.b16 %v497
        %v645 = vunpack.c.l.b16 %v498
        %v646 = vunpack.c.h.b16 %v498
        %v647 = vunpack.c.l.b16 %v499
        %v648 = vunpack.c.h.b16 %v499
        %v649 = vunpack.c.l.b16 %v500
        %v650 = vunpack.c.h.b16 %v500
        %v651 = vunpack.c.l.b16 %v501
        %v652 = vunpack.c.h.b16 %v501
        %v653 = vunpack.c.l.b16 %v502
        %v654 = vunpack.c.h.b16 %v502
        %v655 = vunpack.c.l.b16 %v503
        %v656 = vunpack.c.h.b16 %v503
        %v657 = vunpack.c.l.b16 %v504
        %v658 = vunpack.c.h.b16 %v504
        %v659 = vunpack.c.l.b16 %v505
        %v660 = vunpack.c.h.b16 %v505
        %v661 = vunpack.c.l.b16 %v506
        %v662 = vunpack.c.h.b16 %v506
        %v663 = vunpack.c.l.b16 %v507
        %v664 = vunpack.c.h.b16 %v507
        %v665 = vunpack.c.l.b16 %v508
        %v666 = vunpack.c.h.b16 %v508
        %v667 = vunpack.c.l.b16 %v509
        %v668 = vunpack.c.h.b16 %v509
        %v669 = vunpack.c.l.b16 %v510
        %v670 = vunpack.c.h.b16 %v510
        %v671 = vunpack.c.l.b16 %v511
        %v672 = vunpack.c.h.b16 %v511
        %v673 = vunpack.c.l.b16 %v512
        %v674 = vunpack.c.h.b16 %v512
        %v675 = vunpack.c.l.b16 %v513
        %v676 = vunpack.c.h.b16 %v513
        %v677 = vunpack.c.l.b16 %v514
        %v678 = vunpack.c.h.b16 %v514
        %v679 = vunpack.c.l.b16 %v515
        %v680 = vunpack.c.h.b16 %v515
        %v681 = vunpack.c.l.b16 %v516
        %v682 = vunpack.c.h.b16 %v516
        %v683 = vunpack.c.l.b16 %v517
        %v684 = vunpack.c.h.b16 %v517
        %v685 = vunpack.c.l.b16 %v518
        %v686 = vunpack.c.h.b16 %v518
        %v687 = vunpack.c.l.b16 %v519
        %v688 = vunpack.c.h.b16 %v519
        %v689 = vunpack.c.l.b16 %v520
        %v690 = vunpack.c.h.b16 %v520
        %v691 = vunpack.c.l.b16 %v521
        %v692 = vunpack.c.h.b16 %v521
        %v693 = vunpack.c.l.b16 %v522
        %v694 = vunpack.c.h.b16 %v522
        %v695 = vunpack.c.l.b16 %v523
        %v696 = vunpack.c.h.b16 %v523
        %v697 = vunpack.c.l.b16 %v524
        %v698 = vunpack.c.h.b16 %v524
        %v699 = vunpack.c.l.b16 %v525
        %v700 = vunpack.c.h.b16 %v525
        %v701 = vunpack.c.l.b16 %v526
        %v702 = vunpack.c.h.b16 %v526
        %v703 = vunpack.c.l.b16 %v527
        %v704 = vunpack.c.h.b16 %v527
        %v705 = vunpack.c.l.b16 %v528
        %v706 = vunpack.c.h.b16 %v528
        %v707 = vunpack.c.l.b16 %v529
        %v708 = vunpack.c.h.b16 %v529
        %v709 = vunpack.c.l.b16 %v530
        %v710 = vunpack.c.h.b16 %v530
        %v711 = vunpack.c.l.b16 %v531
        %v712 = vunpack.c.h.b16 %v531
        %v713 = vunpack.c.l.b16 %v532
        %v714 = vunpack.c.h.b16 %v532
        %v715 = vunpack.c.l.b16 %v533
        %v716 = vunpack.c.h.b16 %v533
        %v717 = vunpack.c.l.b16 %v534
        %v718 = vunpack.c.h.b16 %v534
        %v719 = vunpack.c.l.b16 %v535
        %v720 = vunpack.c.h.b16 %v535
        %v721 = vunpack.c.l.b16 %v536
        %v722 = vunpack.c.h.b16 %v536
        %v723 = vunpack.c.l.b16 %v537
        %v724 = vunpack.c.h.b16 %v537
        %v725 = vunpack.c.l.b16 %v538
        %v726 = vunpack.c.h.b16 %v538
        %v727 = vunpack.c.l.b16 %v539
        %v728 = vunpack.c.h.b16 %v539
        %v729 = vunpack.c.l.b16 %v540
        %v730 = vunpack.c.h.b16 %v540
        %v731 = vunpack.c.l.b16 %v541
        %v732 = vunpack.c.h.b16 %v541
        %v733 = vunpack.c.l.b16 %v542
        %v734 = vunpack.c.h.b16 %v542
        %v735 = vunpack.c.l.b16 %v543
        %v736 = vunpack.c.h.b16 %v543
        %v737 = vunpack.c.l.b16 %v544
        %v738 = vunpack.c.h.b16 %v544
        %v739 = vunpack.c.l.b16 %v545
        %v740 = vunpack.c.h.b16 %v545
        %v741 = vunpack.c.l.b16 %v546
        %v742 = vunpack.c.h.b16 %v546
        %v743 = vunpack.c.l.b16 %v547
        %v744 = vunpack.c.h.b16 %v547
        %v745 = vunpack.c.l.b16 %v548
        %v746 = vunpack.c.h.b16 %v548
        %v747 = vpack.c.b16 %v623, %v619
        %v748 = vpack.c.b16 %v624, %v620
        %v749 = vpack.c.b16 %v625, %v621
        %v750 = vpack.c.b16 %v626, %v622
        %v751 = vpack.c.b16 %v631, %v627
        %v752 = vpack.c.b16 %v632, %v628
        %v753 = vpack.c.b16 %v633, %v629
        %v754 = vpack.c.b16 %v634, %v630
        %v755 = vpack.c.b16 %v639, %v635
        %v756 = vpack.c.b16 %v640, %v636
        %v757 = vpack.c.b16 %v641, %v637
        %v758 = vpack.c.b16 %v642, %v638
        %v759 = vpack.c.b16 %v647, %v643
        %v760 = vpack.c.b16 %v648, %v644
        %v761 = vpack.c.b16 %v649, %v645
        %v762 = vpack.c.b16 %v650, %v646
        %v763 = vpack.c.b16 %v655, %v651
        %v764 = vpack.c.b16 %v656, %v652
        %v765 = vpack.c.b16 %v657, %v653
        %v766 = vpack.c.b16 %v658, %v654
        %v767 = vpack.c.b16 %v663, %v659
        %v768 = vpack.c.b16 %v664, %v660
        %v769 = vpack.c.b16 %v665, %v661
        %v770 = vpack.c.b16 %v666, %v662
        %v771 = vpack.c.b16 %v671, %v667
        %v772 = vpack.c.b16 %v672, %v668
        %v773 = vpack.c.b16 %v673, %v669
        %v774 = vpack.c.b16 %v674, %v670
        %v775 = vpack.c.b16 %v679, %v675
        %v776 = vpack.c.b16 %v680, %v676
        %v777 = vpack.c.b16 %v681, %v677
        %v778 = vpack.c.b16 %v682, %v678
        %v779 = vpack.c.b16 %v687, %v683
        %v780 = vpack.c.b16 %v688, %v684
        %v781 = vpack.c.b16 %v689, %v685
        %v782 = vpack.c.b16 %v690, %v686
        %v783 = vpack.c.b16 %v695, %v691
        %v784 = vpack.c.b16 %v696, %v692
        %v785 = vpack.c.b16 %v697, %v693
        %v786 = vpack.c.b16 %v698, %v694
        %v787 = vpack.c.b16 %v703, %v699
        %v788 = vpack.c.b16 %v704, %v700
        %v789 = vpack.c.b16 %v705, %v701
        %v790 = vpack.c.b16 %v706, %v702
        %v791 = vpack.c.b16 %v711, %v707
        %v792 = vpack.c.b16 %v712, %v708
        %v793 = vpack.c.b16 %v713, %v709
        %v794 = vpack.c.b16 %v714, %v710
        %v795 = vpack.c.b16 %v719, %v715
        %v796 = vpack.c.b16 %v720, %v716
        %v797 = vpack.c.b16 %v721, %v717
        %v798 = vpack.c.b16 %v722, %v718
        %v799 = vpack.c.b16 %v727, %v723
        %v800 = vpack.c.b16 %v728, %v724
        %v801 = vpack.c.b16 %v729, %v725
        %v802 = vpack.c.b16 %v730, %v726
        %v803 = vpack.c.b16 %v735, %v731
        %v804 = vpack.c.b16 %v736, %v732
        %v805 = vpack.c.b16 %v737, %v733
        %v806 = vpack.c.b16 %v738, %v734
        %v807 = vpack.c.b16 %v743, %v739
        %v808 = vpack.c.b16 %v744, %v740
        %v809 = vpack.c.b16 %v745, %v741
        %v810 = vpack.c.b16 %v746, %v742
        %875 = vmatpush.bf16.msra.mxu0 %v775
        %876 = vmatpush.bf16.msra.mxu0 %v771
        %877 = vmatpush.bf16.msra.mxu0 %v767
        %878 = vmatpush.bf16.msra.mxu0 %v763
        %879 = vmatpush.bf16.msra.mxu0 %v759
        %880 = vmatpush.bf16.msra.mxu0 %v755
        %881 = vmatpush.bf16.msra.mxu0 %v751
        %882 = vmatpush.bf16.msra.mxu0 %v747
        %883 = vmatmul.bf16.gmra.mxu0 %v551
        %v884 = vpop.f32.mrf.mxu0
        %v885 = vadd.f32 0.0, %v884
        %v886 = vpop.f32.mrf.mxu0
        %887 = vdwg.mxu0
        %888 = vmatpush.bf16.msra.mxu0 %v807
        %889 = vmatpush.bf16.msra.mxu0 %v803
        %890 = vmatpush.bf16.msra.mxu0 %v799
        %891 = vmatpush.bf16.msra.mxu0 %v795
        %892 = vmatpush.bf16.msra.mxu0 %v791
        %893 = vmatpush.bf16.msra.mxu0 %v787
        %894 = vmatpush.bf16.msra.mxu0 %v783
        %895 = vmatpush.bf16.msra.mxu0 %v779
        %896 = vmatmul.bf16.gmra.mxu0 %v552
        %v897 = vpop.f32.mrf.mxu0
        %v898 = vadd.f32 %v885, %v897
        %v899 = vpop.f32.mrf.mxu0
        %900 = vdwg.mxu0
        %901 = vmatpush.bf16.msra.mxu0 %v776
        %902 = vmatpush.bf16.msra.mxu0 %v772
        %903 = vmatpush.bf16.msra.mxu0 %v768
        %904 = vmatpush.bf16.msra.mxu0 %v764
        %905 = vmatpush.bf16.msra.mxu0 %v760
        %906 = vmatpush.bf16.msra.mxu0 %v756
        %907 = vmatpush.bf16.msra.mxu0 %v752
        %908 = vmatpush.bf16.msra.mxu0 %v748
        %909 = vmatmul.bf16.gmra.mxu0 %v551
        %v910 = vpop.f32.mrf.mxu0
        %v911 = vadd.f32 0.0, %v910
        %v912 = vpop.f32.mrf.mxu0
        %913 = vdwg.mxu0
        %914 = vmatpush.bf16.msra.mxu0 %v808
        %915 = vmatpush.bf16.msra.mxu0 %v804
        %916 = vmatpush.bf16.msra.mxu0 %v800
        %917 = vmatpush.bf16.msra.mxu0 %v796
        %918 = vmatpush.bf16.msra.mxu0 %v792
        %919 = vmatpush.bf16.msra.mxu0 %v788
        %920 = vmatpush.bf16.msra.mxu0 %v784
        %921 = vmatpush.bf16.msra.mxu0 %v780
        %922 = vmatmul.bf16.gmra.mxu0 %v552
        %v923 = vpop.f32.mrf.mxu0
        %v924 = vadd.f32 %v911, %v923
        %v925 = vpop.f32.mrf.mxu0
        %926 = vdwg.mxu0
        %927 = vmatpush.bf16.msra.mxu0 %v777
        %928 = vmatpush.bf16.msra.mxu0 %v773
        %929 = vmatpush.bf16.msra.mxu0 %v769
        %930 = vmatpush.bf16.msra.mxu0 %v765
        %931 = vmatpush.bf16.msra.mxu0 %v761
        %932 = vmatpush.bf16.msra.mxu0 %v757
        %933 = vmatpush.bf16.msra.mxu0 %v753
        %934 = vmatpush.bf16.msra.mxu0 %v749
        %935 = vmatmul.bf16.gmra.mxu0 %v551
        %v936 = vpop.f32.mrf.mxu0
        %v937 = vadd.f32 0.0, %v936
        %v938 = vpop.f32.mrf.mxu0
        %939 = vdwg.mxu0
        %940 = vmatpush.bf16.msra.mxu0 %v809
        %941 = vmatpush.bf16.msra.mxu0 %v805
        %942 = vmatpush.bf16.msra.mxu0 %v801
        %943 = vmatpush.bf16.msra.mxu0 %v797
        %944 = vmatpush.bf16.msra.mxu0 %v793
        %945 = vmatpush.bf16.msra.mxu0 %v789
        %946 = vmatpush.bf16.msra.mxu0 %v785
        %947 = vmatpush.bf16.msra.mxu0 %v781
        %948 = vmatmul.bf16.gmra.mxu0 %v552
        %v949 = vpop.f32.mrf.mxu0
        %v950 = vadd.f32 %v937, %v949
        %v951 = vpop.f32.mrf.mxu0
        %952 = vdwg.mxu0
        %953 = vmatpush.bf16.msra.mxu0 %v778
        %954 = vmatpush.bf16.msra.mxu0 %v774
        %955 = vmatpush.bf16.msra.mxu0 %v770
        %956 = vmatpush.bf16.msra.mxu0 %v766
        %957 = vmatpush.bf16.msra.mxu0 %v762
        %958 = vmatpush.bf16.msra.mxu0 %v758
        %959 = vmatpush.bf16.msra.mxu0 %v754
        %960 = vmatpush.bf16.msra.mxu0 %v750
        %961 = vmatmul.bf16.gmra.mxu0 %v551
        %v962 = vpop.f32.mrf.mxu0
        %v963 = vadd.f32 0.0, %v962
        %v964 = vpop.f32.mrf.mxu0
        %965 = vdwg.mxu0
        %966 = vmatpush.bf16.msra.mxu0 %v810
        %967 = vmatpush.bf16.msra.mxu0 %v806
        %968 = vmatpush.bf16.msra.mxu0 %v802
        %969 = vmatpush.bf16.msra.mxu0 %v798
        %970 = vmatpush.bf16.msra.mxu0 %v794
        %971 = vmatpush.bf16.msra.mxu0 %v790
        %972 = vmatpush.bf16.msra.mxu0 %v786
        %973 = vmatpush.bf16.msra.mxu0 %v782
        %974 = vmatmul.bf16.gmra.mxu0 %v552
        %v975 = vpop.f32.mrf.mxu0
        %v976 = vadd.f32 %v963, %v975
        %v977 = vpop.f32.mrf.mxu0
        %978 = vdwg.mxu0
        %980 = vst [vmem:[#allocation1] ss:$4 sm:$0xff] %v418
        %v981 = vld.sshfl [vmem:[#allocation1] sm:$0xff pattern:$0x73625140]
        %v982 = vld.sshfl [vmem:[#allocation1 + $0x8] sm:$0xff pattern:$0x73625140]
        %v1049 = vunpack.c.l.b16 %v419
        %v1050 = vunpack.c.h.b16 %v419
        %v1051 = vunpack.c.l.b16 %v420
        %v1052 = vunpack.c.h.b16 %v420
        %v1053 = vunpack.c.l.b16 %v421
        %v1054 = vunpack.c.h.b16 %v421
        %v1055 = vunpack.c.l.b16 %v422
        %v1056 = vunpack.c.h.b16 %v422
        %v1057 = vunpack.c.l.b16 %v423
        %v1058 = vunpack.c.h.b16 %v423
        %v1059 = vunpack.c.l.b16 %v424
        %v1060 = vunpack.c.h.b16 %v424
        %v1061 = vunpack.c.l.b16 %v425
        %v1062 = vunpack.c.h.b16 %v425
        %v1063 = vunpack.c.l.b16 %v426
        %v1064 = vunpack.c.h.b16 %v426
        %v1065 = vunpack.c.l.b16 %v427
        %v1066 = vunpack.c.h.b16 %v427
        %v1067 = vunpack.c.l.b16 %v428
        %v1068 = vunpack.c.h.b16 %v428
        %v1069 = vunpack.c.l.b16 %v429
        %v1070 = vunpack.c.h.b16 %v429
        %v1071 = vunpack.c.l.b16 %v430
        %v1072 = vunpack.c.h.b16 %v430
        %v1073 = vunpack.c.l.b16 %v431
        %v1074 = vunpack.c.h.b16 %v431
        %v1075 = vunpack.c.l.b16 %v432
        %v1076 = vunpack.c.h.b16 %v432
        %v1077 = vunpack.c.l.b16 %v433
        %v1078 = vunpack.c.h.b16 %v433
        %v1079 = vunpack.c.l.b16 %v434
        %v1080 = vunpack.c.h.b16 %v434
        %v1081 = vunpack.c.l.b16 %v435
        %v1082 = vunpack.c.h.b16 %v435
        %v1083 = vunpack.c.l.b16 %v436
        %v1084 = vunpack.c.h.b16 %v436
        %v1085 = vunpack.c.l.b16 %v437
        %v1086 = vunpack.c.h.b16 %v437
        %v1087 = vunpack.c.l.b16 %v438
        %v1088 = vunpack.c.h.b16 %v438
        %v1089 = vunpack.c.l.b16 %v439
        %v1090 = vunpack.c.h.b16 %v439
        %v1091 = vunpack.c.l.b16 %v440
        %v1092 = vunpack.c.h.b16 %v440
        %v1093 = vunpack.c.l.b16 %v441
        %v1094 = vunpack.c.h.b16 %v441
        %v1095 = vunpack.c.l.b16 %v442
        %v1096 = vunpack.c.h.b16 %v442
        %v1097 = vunpack.c.l.b16 %v443
        %v1098 = vunpack.c.h.b16 %v443
        %v1099 = vunpack.c.l.b16 %v444
        %v1100 = vunpack.c.h.b16 %v444
        %v1101 = vunpack.c.l.b16 %v445
        %v1102 = vunpack.c.h.b16 %v445
        %v1103 = vunpack.c.l.b16 %v446
        %v1104 = vunpack.c.h.b16 %v446
        %v1105 = vunpack.c.l.b16 %v447
        %v1106 = vunpack.c.h.b16 %v447
        %v1107 = vunpack.c.l.b16 %v448
        %v1108 = vunpack.c.h.b16 %v448
        %v1109 = vunpack.c.l.b16 %v449
        %v1110 = vunpack.c.h.b16 %v449
        %v1111 = vunpack.c.l.b16 %v450
        %v1112 = vunpack.c.h.b16 %v450
        %v1113 = vunpack.c.l.b16 %v451
        %v1114 = vunpack.c.h.b16 %v451
        %v1115 = vunpack.c.l.b16 %v452
        %v1116 = vunpack.c.h.b16 %v452
        %v1117 = vunpack.c.l.b16 %v453
        %v1118 = vunpack.c.h.b16 %v453
        %v1119 = vunpack.c.l.b16 %v454
        %v1120 = vunpack.c.h.b16 %v454
        %v1121 = vunpack.c.l.b16 %v455
        %v1122 = vunpack.c.h.b16 %v455
        %v1123 = vunpack.c.l.b16 %v456
        %v1124 = vunpack.c.h.b16 %v456
        %v1125 = vunpack.c.l.b16 %v457
        %v1126 = vunpack.c.h.b16 %v457
        %v1127 = vunpack.c.l.b16 %v458
        %v1128 = vunpack.c.h.b16 %v458
        %v1129 = vunpack.c.l.b16 %v459
        %v1130 = vunpack.c.h.b16 %v459
        %v1131 = vunpack.c.l.b16 %v460
        %v1132 = vunpack.c.h.b16 %v460
        %v1133 = vunpack.c.l.b16 %v461
        %v1134 = vunpack.c.h.b16 %v461
        %v1135 = vunpack.c.l.b16 %v462
        %v1136 = vunpack.c.h.b16 %v462
        %v1137 = vunpack.c.l.b16 %v463
        %v1138 = vunpack.c.h.b16 %v463
        %v1139 = vunpack.c.l.b16 %v464
        %v1140 = vunpack.c.h.b16 %v464
        %v1141 = vunpack.c.l.b16 %v465
        %v1142 = vunpack.c.h.b16 %v465
        %v1143 = vunpack.c.l.b16 %v466
        %v1144 = vunpack.c.h.b16 %v466
        %v1145 = vunpack.c.l.b16 %v467
        %v1146 = vunpack.c.h.b16 %v467
        %v1147 = vunpack.c.l.b16 %v468
        %v1148 = vunpack.c.h.b16 %v468
        %v1149 = vunpack.c.l.b16 %v469
        %v1150 = vunpack.c.h.b16 %v469
        %v1151 = vunpack.c.l.b16 %v470
        %v1152 = vunpack.c.h.b16 %v470
        %v1153 = vunpack.c.l.b16 %v471
        %v1154 = vunpack.c.h.b16 %v471
        %v1155 = vunpack.c.l.b16 %v472
        %v1156 = vunpack.c.h.b16 %v472
        %v1157 = vunpack.c.l.b16 %v473
        %v1158 = vunpack.c.h.b16 %v473
        %v1159 = vunpack.c.l.b16 %v474
        %v1160 = vunpack.c.h.b16 %v474
        %v1161 = vunpack.c.l.b16 %v475
        %v1162 = vunpack.c.h.b16 %v475
        %v1163 = vunpack.c.l.b16 %v476
        %v1164 = vunpack.c.h.b16 %v476
        %v1165 = vunpack.c.l.b16 %v477
        %v1166 = vunpack.c.h.b16 %v477
        %v1167 = vunpack.c.l.b16 %v478
        %v1168 = vunpack.c.h.b16 %v478
        %v1169 = vunpack.c.l.b16 %v479
        %v1170 = vunpack.c.h.b16 %v479
        %v1171 = vunpack.c.l.b16 %v480
        %v1172 = vunpack.c.h.b16 %v480
        %v1173 = vunpack.c.l.b16 %v481
        %v1174 = vunpack.c.h.b16 %v481
        %v1175 = vunpack.c.l.b16 %v482
        %v1176 = vunpack.c.h.b16 %v482
        %v1177 = vpack.c.b16 %v1053, %v1049
        %v1178 = vpack.c.b16 %v1054, %v1050
        %v1179 = vpack.c.b16 %v1055, %v1051
        %v1180 = vpack.c.b16 %v1056, %v1052
        %v1181 = vpack.c.b16 %v1061, %v1057
        %v1182 = vpack.c.b16 %v1062, %v1058
        %v1183 = vpack.c.b16 %v1063, %v1059
        %v1184 = vpack.c.b16 %v1064, %v1060
        %v1185 = vpack.c.b16 %v1069, %v1065
        %v1186 = vpack.c.b16 %v1070, %v1066
        %v1187 = vpack.c.b16 %v1071, %v1067
        %v1188 = vpack.c.b16 %v1072, %v1068
        %v1189 = vpack.c.b16 %v1077, %v1073
        %v1190 = vpack.c.b16 %v1078, %v1074
        %v1191 = vpack.c.b16 %v1079, %v1075
        %v1192 = vpack.c.b16 %v1080, %v1076
        %v1193 = vpack.c.b16 %v1085, %v1081
        %v1194 = vpack.c.b16 %v1086, %v1082
        %v1195 = vpack.c.b16 %v1087, %v1083
        %v1196 = vpack.c.b16 %v1088, %v1084
        %v1197 = vpack.c.b16 %v1093, %v1089
        %v1198 = vpack.c.b16 %v1094, %v1090
        %v1199 = vpack.c.b16 %v1095, %v1091
        %v1200 = vpack.c.b16 %v1096, %v1092
        %v1201 = vpack.c.b16 %v1101, %v1097
        %v1202 = vpack.c.b16 %v1102, %v1098
        %v1203 = vpack.c.b16 %v1103, %v1099
        %v1204 = vpack.c.b16 %v1104, %v1100
        %v1205 = vpack.c.b16 %v1109, %v1105
        %v1206 = vpack.c.b16 %v1110, %v1106
        %v1207 = vpack.c.b16 %v1111, %v1107
        %v1208 = vpack.c.b16 %v1112, %v1108
        %v1209 = vpack.c.b16 %v1117, %v1113
        %v1210 = vpack.c.b16 %v1118, %v1114
        %v1211 = vpack.c.b16 %v1119, %v1115
        %v1212 = vpack.c.b16 %v1120, %v1116
        %v1213 = vpack.c.b16 %v1125, %v1121
        %v1214 = vpack.c.b16 %v1126, %v1122
        %v1215 = vpack.c.b16 %v1127, %v1123
        %v1216 = vpack.c.b16 %v1128, %v1124
        %v1217 = vpack.c.b16 %v1133, %v1129
        %v1218 = vpack.c.b16 %v1134, %v1130
        %v1219 = vpack.c.b16 %v1135, %v1131
        %v1220 = vpack.c.b16 %v1136, %v1132
        %v1221 = vpack.c.b16 %v1141, %v1137
        %v1222 = vpack.c.b16 %v1142, %v1138
        %v1223 = vpack.c.b16 %v1143, %v1139
        %v1224 = vpack.c.b16 %v1144, %v1140
        %v1225 = vpack.c.b16 %v1149, %v1145
        %v1226 = vpack.c.b16 %v1150, %v1146
        %v1227 = vpack.c.b16 %v1151, %v1147
        %v1228 = vpack.c.b16 %v1152, %v1148
        %v1229 = vpack.c.b16 %v1157, %v1153
        %v1230 = vpack.c.b16 %v1158, %v1154
        %v1231 = vpack.c.b16 %v1159, %v1155
        %v1232 = vpack.c.b16 %v1160, %v1156
        %v1233 = vpack.c.b16 %v1165, %v1161
        %v1234 = vpack.c.b16 %v1166, %v1162
        %v1235 = vpack.c.b16 %v1167, %v1163
        %v1236 = vpack.c.b16 %v1168, %v1164
        %v1237 = vpack.c.b16 %v1173, %v1169
        %v1238 = vpack.c.b16 %v1174, %v1170
        %v1239 = vpack.c.b16 %v1175, %v1171
        %v1240 = vpack.c.b16 %v1176, %v1172
        %1305 = vmatpush.bf16.msra.mxu0 %v1205
        %1306 = vmatpush.bf16.msra.mxu0 %v1201
        %1307 = vmatpush.bf16.msra.mxu0 %v1197
        %1308 = vmatpush.bf16.msra.mxu0 %v1193
        %1309 = vmatpush.bf16.msra.mxu0 %v1189
        %1310 = vmatpush.bf16.msra.mxu0 %v1185
        %1311 = vmatpush.bf16.msra.mxu0 %v1181
        %1312 = vmatpush.bf16.msra.mxu0 %v1177
        %1313 = vmatmul.bf16.gmra.mxu0 %v981
        %v1314 = vpop.f32.mrf.mxu0
        %v1315 = vadd.f32 %v898, %v1314
        %v1316 = vpop.f32.mrf.mxu0
        %1317 = vdwg.mxu0
        %1318 = vmatpush.bf16.msra.mxu0 %v1237
        %1319 = vmatpush.bf16.msra.mxu0 %v1233
        %1320 = vmatpush.bf16.msra.mxu0 %v1229
        %1321 = vmatpush.bf16.msra.mxu0 %v1225
        %1322 = vmatpush.bf16.msra.mxu0 %v1221
        %1323 = vmatpush.bf16.msra.mxu0 %v1217
        %1324 = vmatpush.bf16.msra.mxu0 %v1213
        %1325 = vmatpush.bf16.msra.mxu0 %v1209
        %1326 = vmatmul.bf16.gmra.mxu0 %v982
        %v1327 = vpop.f32.mrf.mxu0
        %v1328 = vadd.f32 %v1315, %v1327
        %v1329 = vpop.f32.mrf.mxu0
        %1330 = vdwg.mxu0
        %1331 = vmatpush.bf16.msra.mxu0 %v1206
        %1332 = vmatpush.bf16.msra.mxu0 %v1202
        %1333 = vmatpush.bf16.msra.mxu0 %v1198
        %1334 = vmatpush.bf16.msra.mxu0 %v1194
        %1335 = vmatpush.bf16.msra.mxu0 %v1190
        %1336 = vmatpush.bf16.msra.mxu0 %v1186
        %1337 = vmatpush.bf16.msra.mxu0 %v1182
        %1338 = vmatpush.bf16.msra.mxu0 %v1178
        %1339 = vmatmul.bf16.gmra.mxu0 %v981
        %v1340 = vpop.f32.mrf.mxu0
        %v1341 = vadd.f32 %v924, %v1340
        %v1342 = vpop.f32.mrf.mxu0
        %1343 = vdwg.mxu0
        %1344 = vmatpush.bf16.msra.mxu0 %v1238
        %1345 = vmatpush.bf16.msra.mxu0 %v1234
        %1346 = vmatpush.bf16.msra.mxu0 %v1230
        %1347 = vmatpush.bf16.msra.mxu0 %v1226
        %1348 = vmatpush.bf16.msra.mxu0 %v1222
        %1349 = vmatpush.bf16.msra.mxu0 %v1218
        %1350 = vmatpush.bf16.msra.mxu0 %v1214
        %1351 = vmatpush.bf16.msra.mxu0 %v1210
        %1352 = vmatmul.bf16.gmra.mxu0 %v982
        %v1353 = vpop.f32.mrf.mxu0
        %v1354 = vadd.f32 %v1341, %v1353
        %v1355 = vpop.f32.mrf.mxu0
        %1356 = vdwg.mxu0
        %1357 = vmatpush.bf16.msra.mxu0 %v1207
        %1358 = vmatpush.bf16.msra.mxu0 %v1203
        %1359 = vmatpush.bf16.msra.mxu0 %v1199
        %1360 = vmatpush.bf16.msra.mxu0 %v1195
        %1361 = vmatpush.bf16.msra.mxu0 %v1191
        %1362 = vmatpush.bf16.msra.mxu0 %v1187
        %1363 = vmatpush.bf16.msra.mxu0 %v1183
        %1364 = vmatpush.bf16.msra.mxu0 %v1179
        %1365 = vmatmul.bf16.gmra.mxu0 %v981
        %v1366 = vpop.f32.mrf.mxu0
        %v1367 = vadd.f32 %v950, %v1366
        %v1368 = vpop.f32.mrf.mxu0
        %1369 = vdwg.mxu0
        %1370 = vmatpush.bf16.msra.mxu0 %v1239
        %1371 = vmatpush.bf16.msra.mxu0 %v1235
        %1372 = vmatpush.bf16.msra.mxu0 %v1231
        %1373 = vmatpush.bf16.msra.mxu0 %v1227
        %1374 = vmatpush.bf16.msra.mxu0 %v1223
        %1375 = vmatpush.bf16.msra.mxu0 %v1219
        %1376 = vmatpush.bf16.msra.mxu0 %v1215
        %1377 = vmatpush.bf16.msra.mxu0 %v1211
        %1378 = vmatmul.bf16.gmra.mxu0 %v982
        %v1379 = vpop.f32.mrf.mxu0
        %v1380 = vadd.f32 %v1367, %v1379
        %v1381 = vpop.f32.mrf.mxu0
        %1382 = vdwg.mxu0
        %1383 = vmatpush.bf16.msra.mxu0 %v1208
        %1384 = vmatpush.bf16.msra.mxu0 %v1204
        %1385 = vmatpush.bf16.msra.mxu0 %v1200
        %1386 = vmatpush.bf16.msra.mxu0 %v1196
        %1387 = vmatpush.bf16.msra.mxu0 %v1192
        %1388 = vmatpush.bf16.msra.mxu0 %v1188
        %1389 = vmatpush.bf16.msra.mxu0 %v1184
        %1390 = vmatpush.bf16.msra.mxu0 %v1180
        %1391 = vmatmul.bf16.gmra.mxu0 %v981
        %v1392 = vpop.f32.mrf.mxu0
        %v1393 = vadd.f32 %v976, %v1392
        %v1394 = vpop.f32.mrf.mxu0
        %1395 = vdwg.mxu0
        %1396 = vmatpush.bf16.msra.mxu0 %v1240
        %1397 = vmatpush.bf16.msra.mxu0 %v1236
        %1398 = vmatpush.bf16.msra.mxu0 %v1232
        %1399 = vmatpush.bf16.msra.mxu0 %v1228
        %1400 = vmatpush.bf16.msra.mxu0 %v1224
        %1401 = vmatpush.bf16.msra.mxu0 %v1220
        %1402 = vmatpush.bf16.msra.mxu0 %v1216
        %1403 = vmatpush.bf16.msra.mxu0 %v1212
        %1404 = vmatmul.bf16.gmra.mxu0 %v982
        %v1405 = vpop.f32.mrf.mxu0
        %v1406 = vadd.f32 %v1393, %v1405
        %v1407 = vpop.f32.mrf.mxu0
        %1408 = vdwg.mxu0
        %v1409 = vld [vmem:[%s408] sm:$0xf]
        %s1410 = scalar_lea.vmem [#allocation3], 1024
        %v1411 = vld [vmem:[%s1410] sm:$0xff]
        %v1412 = vld [vmem:[%s1410 + $0x8] sm:$0xff]
        %v1413 = vld [vmem:[%s1410 + $0x10] sm:$0xff]
        %v1414 = vld [vmem:[%s1410 + $0x18] sm:$0xff]
        %v1415 = vld [vmem:[%s1410 + $0x20] sm:$0xff]
        %v1416 = vld [vmem:[%s1410 + $0x28] sm:$0xff]
        %v1417 = vld [vmem:[%s1410 + $0x30] sm:$0xff]
        %v1418 = vld [vmem:[%s1410 + $0x38] sm:$0xff]
        %v1419 = vld [vmem:[%s1410 + $0x40] sm:$0xff]
        %v1420 = vld [vmem:[%s1410 + $0x48] sm:$0xff]
        %v1421 = vld [vmem:[%s1410 + $0x50] sm:$0xff]
        %v1422 = vld [vmem:[%s1410 + $0x58] sm:$0xff]
        %v1423 = vld [vmem:[%s1410 + $0x60] sm:$0xff]
        %v1424 = vld [vmem:[%s1410 + $0x68] sm:$0xff]
        %v1425 = vld [vmem:[%s1410 + $0x70] sm:$0xff]
        %v1426 = vld [vmem:[%s1410 + $0x78] sm:$0xff]
        %v1427 = vld [vmem:[%s1410 + $0x80] sm:$0xff]
        %v1428 = vld [vmem:[%s1410 + $0x88] sm:$0xff]
        %v1429 = vld [vmem:[%s1410 + $0x90] sm:$0xff]
        %v1430 = vld [vmem:[%s1410 + $0x98] sm:$0xff]
        %v1431 = vld [vmem:[%s1410 + $0xa0] sm:$0xff]
        %v1432 = vld [vmem:[%s1410 + $0xa8] sm:$0xff]
        %v1433 = vld [vmem:[%s1410 + $0xb0] sm:$0xff]
        %v1434 = vld [vmem:[%s1410 + $0xb8] sm:$0xff]
        %v1435 = vld [vmem:[%s1410 + $0xc0] sm:$0xff]
        %v1436 = vld [vmem:[%s1410 + $0xc8] sm:$0xff]
        %v1437 = vld [vmem:[%s1410 + $0xd0] sm:$0xff]
        %v1438 = vld [vmem:[%s1410 + $0xd8] sm:$0xff]
        %v1439 = vld [vmem:[%s1410 + $0xe0] sm:$0xff]
        %v1440 = vld [vmem:[%s1410 + $0xe8] sm:$0xff]
        %v1441 = vld [vmem:[%s1410 + $0xf0] sm:$0xff]
        %v1442 = vld [vmem:[%s1410 + $0xf8] sm:$0xff]
        %v1443 = vld [vmem:[%s1410 + $0x100] sm:$0xff]
        %v1444 = vld [vmem:[%s1410 + $0x108] sm:$0xff]
        %v1445 = vld [vmem:[%s1410 + $0x110] sm:$0xff]
        %v1446 = vld [vmem:[%s1410 + $0x118] sm:$0xff]
        %v1447 = vld [vmem:[%s1410 + $0x120] sm:$0xff]
        %v1448 = vld [vmem:[%s1410 + $0x128] sm:$0xff]
        %v1449 = vld [vmem:[%s1410 + $0x130] sm:$0xff]
        %v1450 = vld [vmem:[%s1410 + $0x138] sm:$0xff]
        %v1451 = vld [vmem:[%s1410 + $0x140] sm:$0xff]
        %v1452 = vld [vmem:[%s1410 + $0x148] sm:$0xff]
        %v1453 = vld [vmem:[%s1410 + $0x150] sm:$0xff]
        %v1454 = vld [vmem:[%s1410 + $0x158] sm:$0xff]
        %v1455 = vld [vmem:[%s1410 + $0x160] sm:$0xff]
        %v1456 = vld [vmem:[%s1410 + $0x168] sm:$0xff]
        %v1457 = vld [vmem:[%s1410 + $0x170] sm:$0xff]
        %v1458 = vld [vmem:[%s1410 + $0x178] sm:$0xff]
        %v1459 = vld [vmem:[%s1410 + $0x180] sm:$0xff]
        %v1460 = vld [vmem:[%s1410 + $0x188] sm:$0xff]
        %v1461 = vld [vmem:[%s1410 + $0x190] sm:$0xff]
        %v1462 = vld [vmem:[%s1410 + $0x198] sm:$0xff]
        %v1463 = vld [vmem:[%s1410 + $0x1a0] sm:$0xff]
        %v1464 = vld [vmem:[%s1410 + $0x1a8] sm:$0xff]
        %v1465 = vld [vmem:[%s1410 + $0x1b0] sm:$0xff]
        %v1466 = vld [vmem:[%s1410 + $0x1b8] sm:$0xff]
        %v1467 = vld [vmem:[%s1410 + $0x1c0] sm:$0xff]
        %v1468 = vld [vmem:[%s1410 + $0x1c8] sm:$0xff]
        %v1469 = vld [vmem:[%s1410 + $0x1d0] sm:$0xff]
        %v1470 = vld [vmem:[%s1410 + $0x1d8] sm:$0xff]
        %v1471 = vld [vmem:[%s1410 + $0x1e0] sm:$0xff]
        %v1472 = vld [vmem:[%s1410 + $0x1e8] sm:$0xff]
        %v1473 = vld [vmem:[%s1410 + $0x1f0] sm:$0xff]
        %v1474 = vld [vmem:[%s1410 + $0x1f8] sm:$0xff]
        %1476 = vst [vmem:[#allocation1] ss:$4 sm:$0xff] %v1409
        %v1477 = vld.sshfl [vmem:[#allocation1] sm:$0xff pattern:$0x73625140]
        %v1478 = vld.sshfl [vmem:[#allocation1 + $0x8] sm:$0xff pattern:$0x73625140]
        %v1479 = vshrl.u32 %v1477, 16
        %v1481 = vshll.u32 %v1477, 16
        %v1483 = vrot.slane %v1481, 1
        %v1484 = vor.u32 %v1479, %v1483
        %v1485 = vshrl.u32 %v1478, 16
        %v1487 = vshll.u32 %v1478, 16
        %v1489 = vrot.slane %v1487, 1
        %v1490 = vor.u32 %v1485, %v1489
        %v1557 = vunpack.c.l.b16 %v1411
        %v1558 = vunpack.c.h.b16 %v1411
        %v1559 = vunpack.c.l.b16 %v1412
        %v1560 = vunpack.c.h.b16 %v1412
        %v1561 = vunpack.c.l.b16 %v1413
        %v1562 = vunpack.c.h.b16 %v1413
        %v1563 = vunpack.c.l.b16 %v1414
        %v1564 = vunpack.c.h.b16 %v1414
        %v1565 = vunpack.c.l.b16 %v1415
        %v1566 = vunpack.c.h.b16 %v1415
        %v1567 = vunpack.c.l.b16 %v1416
        %v1568 = vunpack.c.h.b16 %v1416
        %v1569 = vunpack.c.l.b16 %v1417
        %v1570 = vunpack.c.h.b16 %v1417
        %v1571 = vunpack.c.l.b16 %v1418
        %v1572 = vunpack.c.h.b16 %v1418
        %v1573 = vunpack.c.l.b16 %v1419
        %v1574 = vunpack.c.h.b16 %v1419
        %v1575 = vunpack.c.l.b16 %v1420
        %v1576 = vunpack.c.h.b16 %v1420
        %v1577 = vunpack.c.l.b16 %v1421
        %v1578 = vunpack.c.h.b16 %v1421
        %v1579 = vunpack.c.l.b16 %v1422
        %v1580 = vunpack.c.h.b16 %v1422
        %v1581 = vunpack.c.l.b16 %v1423
        %v1582 = vunpack.c.h.b16 %v1423
        %v1583 = vunpack.c.l.b16 %v1424
        %v1584 = vunpack.c.h.b16 %v1424
        %v1585 = vunpack.c.l.b16 %v1425
        %v1586 = vunpack.c.h.b16 %v1425
        %v1587 = vunpack.c.l.b16 %v1426
        %v1588 = vunpack.c.h.b16 %v1426
        %v1589 = vunpack.c.l.b16 %v1427
        %v1590 = vunpack.c.h.b16 %v1427
        %v1591 = vunpack.c.l.b16 %v1428
        %v1592 = vunpack.c.h.b16 %v1428
        %v1593 = vunpack.c.l.b16 %v1429
        %v1594 = vunpack.c.h.b16 %v1429
        %v1595 = vunpack.c.l.b16 %v1430
        %v1596 = vunpack.c.h.b16 %v1430
        %v1597 = vunpack.c.l.b16 %v1431
        %v1598 = vunpack.c.h.b16 %v1431
        %v1599 = vunpack.c.l.b16 %v1432
        %v1600 = vunpack.c.h.b16 %v1432
        %v1601 = vunpack.c.l.b16 %v1433
        %v1602 = vunpack.c.h.b16 %v1433
        %v1603 = vunpack.c.l.b16 %v1434
        %v1604 = vunpack.c.h.b16 %v1434
        %v1605 = vunpack.c.l.b16 %v1435
        %v1606 = vunpack.c.h.b16 %v1435
        %v1607 = vunpack.c.l.b16 %v1436
        %v1608 = vunpack.c.h.b16 %v1436
        %v1609 = vunpack.c.l.b16 %v1437
        %v1610 = vunpack.c.h.b16 %v1437
        %v1611 = vunpack.c.l.b16 %v1438
        %v1612 = vunpack.c.h.b16 %v1438
        %v1613 = vunpack.c.l.b16 %v1439
        %v1614 = vunpack.c.h.b16 %v1439
        %v1615 = vunpack.c.l.b16 %v1440
        %v1616 = vunpack.c.h.b16 %v1440
        %v1617 = vunpack.c.l.b16 %v1441
        %v1618 = vunpack.c.h.b16 %v1441
        %v1619 = vunpack.c.l.b16 %v1442
        %v1620 = vunpack.c.h.b16 %v1442
        %v1621 = vunpack.c.l.b16 %v1443
        %v1622 = vunpack.c.h.b16 %v1443
        %v1623 = vunpack.c.l.b16 %v1444
        %v1624 = vunpack.c.h.b16 %v1444
        %v1625 = vunpack.c.l.b16 %v1445
        %v1626 = vunpack.c.h.b16 %v1445
        %v1627 = vunpack.c.l.b16 %v1446
        %v1628 = vunpack.c.h.b16 %v1446
        %v1629 = vunpack.c.l.b16 %v1447
        %v1630 = vunpack.c.h.b16 %v1447
        %v1631 = vunpack.c.l.b16 %v1448
        %v1632 = vunpack.c.h.b16 %v1448
        %v1633 = vunpack.c.l.b16 %v1449
        %v1634 = vunpack.c.h.b16 %v1449
        %v1635 = vunpack.c.l.b16 %v1450
        %v1636 = vunpack.c.h.b16 %v1450
        %v1637 = vunpack.c.l.b16 %v1451
        %v1638 = vunpack.c.h.b16 %v1451
        %v1639 = vunpack.c.l.b16 %v1452
        %v1640 = vunpack.c.h.b16 %v1452
        %v1641 = vunpack.c.l.b16 %v1453
        %v1642 = vunpack.c.h.b16 %v1453
        %v1643 = vunpack.c.l.b16 %v1454
        %v1644 = vunpack.c.h.b16 %v1454
        %v1645 = vunpack.c.l.b16 %v1455
        %v1646 = vunpack.c.h.b16 %v1455
        %v1647 = vunpack.c.l.b16 %v1456
        %v1648 = vunpack.c.h.b16 %v1456
        %v1649 = vunpack.c.l.b16 %v1457
        %v1650 = vunpack.c.h.b16 %v1457
        %v1651 = vunpack.c.l.b16 %v1458
        %v1652 = vunpack.c.h.b16 %v1458
        %v1653 = vunpack.c.l.b16 %v1459
        %v1654 = vunpack.c.h.b16 %v1459
        %v1655 = vunpack.c.l.b16 %v1460
        %v1656 = vunpack.c.h.b16 %v1460
        %v1657 = vunpack.c.l.b16 %v1461
        %v1658 = vunpack.c.h.b16 %v1461
        %v1659 = vunpack.c.l.b16 %v1462
        %v1660 = vunpack.c.h.b16 %v1462
        %v1661 = vunpack.c.l.b16 %v1463
        %v1662 = vunpack.c.h.b16 %v1463
        %v1663 = vunpack.c.l.b16 %v1464
        %v1664 = vunpack.c.h.b16 %v1464
        %v1665 = vunpack.c.l.b16 %v1465
        %v1666 = vunpack.c.h.b16 %v1465
        %v1667 = vunpack.c.l.b16 %v1466
        %v1668 = vunpack.c.h.b16 %v1466
        %v1669 = vunpack.c.l.b16 %v1467
        %v1670 = vunpack.c.h.b16 %v1467
        %v1671 = vunpack.c.l.b16 %v1468
        %v1672 = vunpack.c.h.b16 %v1468
        %v1673 = vunpack.c.l.b16 %v1469
        %v1674 = vunpack.c.h.b16 %v1469
        %v1675 = vunpack.c.l.b16 %v1470
        %v1676 = vunpack.c.h.b16 %v1470
        %v1677 = vunpack.c.l.b16 %v1471
        %v1678 = vunpack.c.h.b16 %v1471
        %v1679 = vunpack.c.l.b16 %v1472
        %v1680 = vunpack.c.h.b16 %v1472
        %v1681 = vunpack.c.l.b16 %v1473
        %v1682 = vunpack.c.h.b16 %v1473
        %v1683 = vunpack.c.l.b16 %v1474
        %v1684 = vunpack.c.h.b16 %v1474
        %v1685 = vpack.c.b16 %v1561, %v1557
        %v1686 = vpack.c.b16 %v1562, %v1558
        %v1687 = vpack.c.b16 %v1563, %v1559
        %v1688 = vpack.c.b16 %v1564, %v1560
        %v1689 = vpack.c.b16 %v1569, %v1565
        %v1690 = vpack.c.b16 %v1570, %v1566
        %v1691 = vpack.c.b16 %v1571, %v1567
        %v1692 = vpack.c.b16 %v1572, %v1568
        %v1693 = vpack.c.b16 %v1577, %v1573
        %v1694 = vpack.c.b16 %v1578, %v1574
        %v1695 = vpack.c.b16 %v1579, %v1575
        %v1696 = vpack.c.b16 %v1580, %v1576
        %v1697 = vpack.c.b16 %v1585, %v1581
        %v1698 = vpack.c.b16 %v1586, %v1582
        %v1699 = vpack.c.b16 %v1587, %v1583
        %v1700 = vpack.c.b16 %v1588, %v1584
        %v1701 = vpack.c.b16 %v1593, %v1589
        %v1702 = vpack.c.b16 %v1594, %v1590
        %v1703 = vpack.c.b16 %v1595, %v1591
        %v1704 = vpack.c.b16 %v1596, %v1592
        %v1705 = vpack.c.b16 %v1601, %v1597
        %v1706 = vpack.c.b16 %v1602, %v1598
        %v1707 = vpack.c.b16 %v1603, %v1599
        %v1708 = vpack.c.b16 %v1604, %v1600
        %v1709 = vpack.c.b16 %v1609, %v1605
        %v1710 = vpack.c.b16 %v1610, %v1606
        %v1711 = vpack.c.b16 %v1611, %v1607
        %v1712 = vpack.c.b16 %v1612, %v1608
        %v1713 = vpack.c.b16 %v1617, %v1613
        %v1714 = vpack.c.b16 %v1618, %v1614
        %v1715 = vpack.c.b16 %v1619, %v1615
        %v1716 = vpack.c.b16 %v1620, %v1616
        %v1717 = vpack.c.b16 %v1625, %v1621
        %v1718 = vpack.c.b16 %v1626, %v1622
        %v1719 = vpack.c.b16 %v1627, %v1623
        %v1720 = vpack.c.b16 %v1628, %v1624
        %v1721 = vpack.c.b16 %v1633, %v1629
        %v1722 = vpack.c.b16 %v1634, %v1630
        %v1723 = vpack.c.b16 %v1635, %v1631
        %v1724 = vpack.c.b16 %v1636, %v1632
        %v1725 = vpack.c.b16 %v1641, %v1637
        %v1726 = vpack.c.b16 %v1642, %v1638
        %v1727 = vpack.c.b16 %v1643, %v1639
        %v1728 = vpack.c.b16 %v1644, %v1640
        %v1729 = vpack.c.b16 %v1649, %v1645
        %v1730 = vpack.c.b16 %v1650, %v1646
        %v1731 = vpack.c.b16 %v1651, %v1647
        %v1732 = vpack.c.b16 %v1652, %v1648
        %v1733 = vpack.c.b16 %v1657, %v1653
        %v1734 = vpack.c.b16 %v1658, %v1654
        %v1735 = vpack.c.b16 %v1659, %v1655
        %v1736 = vpack.c.b16 %v1660, %v1656
        %v1737 = vpack.c.b16 %v1665, %v1661
        %v1738 = vpack.c.b16 %v1666, %v1662
        %v1739 = vpack.c.b16 %v1667, %v1663
        %v1740 = vpack.c.b16 %v1668, %v1664
        %v1741 = vpack.c.b16 %v1673, %v1669
        %v1742 = vpack.c.b16 %v1674, %v1670
        %v1743 = vpack.c.b16 %v1675, %v1671
        %v1744 = vpack.c.b16 %v1676, %v1672
        %v1745 = vpack.c.b16 %v1681, %v1677
        %v1746 = vpack.c.b16 %v1682, %v1678
        %v1747 = vpack.c.b16 %v1683, %v1679
        %v1748 = vpack.c.b16 %v1684, %v1680
        %1813 = vmatpush.bf16.msra.mxu0 %v1713
        %1814 = vmatpush.bf16.msra.mxu0 %v1709
        %1815 = vmatpush.bf16.msra.mxu0 %v1705
        %1816 = vmatpush.bf16.msra.mxu0 %v1701
        %1817 = vmatpush.bf16.msra.mxu0 %v1697
        %1818 = vmatpush.bf16.msra.mxu0 %v1693
        %1819 = vmatpush.bf16.msra.mxu0 %v1689
        %1820 = vmatpush.bf16.msra.mxu0 %v1685
        %1821 = vmatmul.bf16.gmra.mxu0 %v1484
        %v1822 = vpop.f32.mrf.mxu0
        %v1823 = vadd.f32 0.0, %v1822
        %v1824 = vpop.f32.mrf.mxu0
        %1825 = vdwg.mxu0
        %1826 = vmatpush.bf16.msra.mxu0 %v1745
        %1827 = vmatpush.bf16.msra.mxu0 %v1741
        %1828 = vmatpush.bf16.msra.mxu0 %v1737
        %1829 = vmatpush.bf16.msra.mxu0 %v1733
        %1830 = vmatpush.bf16.msra.mxu0 %v1729
        %1831 = vmatpush.bf16.msra.mxu0 %v1725
        %1832 = vmatpush.bf16.msra.mxu0 %v1721
        %1833 = vmatpush.bf16.msra.mxu0 %v1717
        %1834 = vmatmul.bf16.gmra.mxu0 %v1490
        %v1835 = vpop.f32.mrf.mxu0
        %v1836 = vadd.f32 %v1823, %v1835
        %v1837 = vpop.f32.mrf.mxu0
        %1838 = vdwg.mxu0
        %1839 = vmatpush.bf16.msra.mxu0 %v1714
        %1840 = vmatpush.bf16.msra.mxu0 %v1710
        %1841 = vmatpush.bf16.msra.mxu0 %v1706
        %1842 = vmatpush.bf16.msra.mxu0 %v1702
        %1843 = vmatpush.bf16.msra.mxu0 %v1698
        %1844 = vmatpush.bf16.msra.mxu0 %v1694
        %1845 = vmatpush.bf16.msra.mxu0 %v1690
        %1846 = vmatpush.bf16.msra.mxu0 %v1686
        %1847 = vmatmul.bf16.gmra.mxu0 %v1484
        %v1848 = vpop.f32.mrf.mxu0
        %v1849 = vadd.f32 0.0, %v1848
        %v1850 = vpop.f32.mrf.mxu0
        %1851 = vdwg.mxu0
        %1852 = vmatpush.bf16.msra.mxu0 %v1746
        %1853 = vmatpush.bf16.msra.mxu0 %v1742
        %1854 = vmatpush.bf16.msra.mxu0 %v1738
        %1855 = vmatpush.bf16.msra.mxu0 %v1734
        %1856 = vmatpush.bf16.msra.mxu0 %v1730
        %1857 = vmatpush.bf16.msra.mxu0 %v1726
        %1858 = vmatpush.bf16.msra.mxu0 %v1722
        %1859 = vmatpush.bf16.msra.mxu0 %v1718
        %1860 = vmatmul.bf16.gmra.mxu0 %v1490
        %v1861 = vpop.f32.mrf.mxu0
        %v1862 = vadd.f32 %v1849, %v1861
        %v1863 = vpop.f32.mrf.mxu0
        %1864 = vdwg.mxu0
        %1865 = vmatpush.bf16.msra.mxu0 %v1715
        %1866 = vmatpush.bf16.msra.mxu0 %v1711
        %1867 = vmatpush.bf16.msra.mxu0 %v1707
        %1868 = vmatpush.bf16.msra.mxu0 %v1703
        %1869 = vmatpush.bf16.msra.mxu0 %v1699
        %1870 = vmatpush.bf16.msra.mxu0 %v1695
        %1871 = vmatpush.bf16.msra.mxu0 %v1691
        %1872 = vmatpush.bf16.msra.mxu0 %v1687
        %1873 = vmatmul.bf16.gmra.mxu0 %v1484
        %v1874 = vpop.f32.mrf.mxu0
        %v1875 = vadd.f32 0.0, %v1874
        %v1876 = vpop.f32.mrf.mxu0
        %1877 = vdwg.mxu0
        %1878 = vmatpush.bf16.msra.mxu0 %v1747
        %1879 = vmatpush.bf16.msra.mxu0 %v1743
        %1880 = vmatpush.bf16.msra.mxu0 %v1739
        %1881 = vmatpush.bf16.msra.mxu0 %v1735
        %1882 = vmatpush.bf16.msra.mxu0 %v1731
        %1883 = vmatpush.bf16.msra.mxu0 %v1727
        %1884 = vmatpush.bf16.msra.mxu0 %v1723
        %1885 = vmatpush.bf16.msra.mxu0 %v1719
        %1886 = vmatmul.bf16.gmra.mxu0 %v1490
        %v1887 = vpop.f32.mrf.mxu0
        %v1888 = vadd.f32 %v1875, %v1887
        %v1889 = vpop.f32.mrf.mxu0
        %1890 = vdwg.mxu0
        %1891 = vmatpush.bf16.msra.mxu0 %v1716
        %1892 = vmatpush.bf16.msra.mxu0 %v1712
        %1893 = vmatpush.bf16.msra.mxu0 %v1708
        %1894 = vmatpush.bf16.msra.mxu0 %v1704
        %1895 = vmatpush.bf16.msra.mxu0 %v1700
        %1896 = vmatpush.bf16.msra.mxu0 %v1696
        %1897 = vmatpush.bf16.msra.mxu0 %v1692
        %1898 = vmatpush.bf16.msra.mxu0 %v1688
        %1899 = vmatmul.bf16.gmra.mxu0 %v1484
        %v1900 = vpop.f32.mrf.mxu0
        %v1901 = vadd.f32 0.0, %v1900
        %v1902 = vpop.f32.mrf.mxu0
        %1903 = vdwg.mxu0
        %1904 = vmatpush.bf16.msra.mxu0 %v1748
        %1905 = vmatpush.bf16.msra.mxu0 %v1744
        %1906 = vmatpush.bf16.msra.mxu0 %v1740
        %1907 = vmatpush.bf16.msra.mxu0 %v1736
        %1908 = vmatpush.bf16.msra.mxu0 %v1732
        %1909 = vmatpush.bf16.msra.mxu0 %v1728
        %1910 = vmatpush.bf16.msra.mxu0 %v1724
        %1911 = vmatpush.bf16.msra.mxu0 %v1720
        %1912 = vmatmul.bf16.gmra.mxu0 %v1490
        %v1913 = vpop.f32.mrf.mxu0
        %v1914 = vadd.f32 %v1901, %v1913
        %v1915 = vpop.f32.mrf.mxu0
        %1916 = vdwg.mxu0
        %v1917 = vadd.f32 %v1328, %v1836
        %v1918 = vadd.f32 %v1354, %v1862
        %v1919 = vadd.f32 %v1380, %v1888
        %v1920 = vadd.f32 %v1406, %v1914
        %v1921 = vld [vmem:[#allocation5] sm:$0xf]
        %v1923 = vperm.slane %v1921, 0
        %v1924 = vperm.slane %v1921, 1
        %v1925 = vperm.slane %v1921, 2
        %v1926 = vperm.slane %v1921, 3
        %v1931 = vadd.f32 %v1917, %v1923
        %v1932 = vadd.f32 %v1918, %v1924
        %v1933 = vadd.f32 %v1919, %v1925
        %v1934 = vadd.f32 %v1920, %v1926
        %v1935 = vmax.f32 %v1931, 0.0
        %v1936 = vmax.f32 %v1932, 0.0
        %v1937 = vmax.f32 %v1933, 0.0
        %v1938 = vmax.f32 %v1934, 0.0
        %1939 = vst [vmem:[#allocation2] sm:$0xff] 0.0
        %1940 = vst [vmem:[#allocation2 + $0x8] sm:$0xff] 0.0
        %v1945 = vrot.slane %v1936, 4
        %v1946 = vrot.slane %v1938, 4
        %vm1947 = vcmask 1043456
        %v1948 = vsel %vm1947, %v1935, %v1945
        %v1949 = vsel %vm1947, %v1937, %v1946
        %v1950 = vrot.slane %v1948, 7
        %v1951 = vrot.slane %v1949, 7
        %1954 = vst [vmem:[#allocation2] sm:$0x66] %v1950
        %1955 = vst [vmem:[#allocation2 + $0x8] sm:$0x66] %v1951
        %v1956 = vld [vmem:[#allocation2] sm:$0x33]
        %v1957 = vld [vmem:[#allocation2 + $0x8] sm:$0x33]
        %v1958 = vld [vmem:[#allocation7] sm:$0xff]
        %v1959 = vld [vmem:[#allocation7 + $0x8] sm:$0xff]
        %v1960 = vld [vmem:[#allocation7 + $0x10] sm:$0xff]
        %v1961 = vld [vmem:[#allocation7 + $0x18] sm:$0xff]
        %v1962 = vld [vmem:[#allocation7 + $0x20] sm:$0xff]
        %v1963 = vld [vmem:[#allocation7 + $0x28] sm:$0xff]
        %v1964 = vld [vmem:[#allocation7 + $0x30] sm:$0xff]
        %v1965 = vld [vmem:[#allocation7 + $0x38] sm:$0xff]
        %v1966 = vld [vmem:[#allocation7 + $0x40] sm:$0xff]
        %v1967 = vld [vmem:[#allocation7 + $0x48] sm:$0xff]
        %v1968 = vld [vmem:[#allocation7 + $0x50] sm:$0xff]
        %v1969 = vld [vmem:[#allocation7 + $0x58] sm:$0xff]
        %v1970 = vld [vmem:[#allocation7 + $0x60] sm:$0xff]
        %v1971 = vld [vmem:[#allocation7 + $0x68] sm:$0xff]
        %v1972 = vld [vmem:[#allocation7 + $0x70] sm:$0xff]
        %v1973 = vld [vmem:[#allocation7 + $0x78] sm:$0xff]
        %v1974 = vld [vmem:[#allocation7 + $0x80] sm:$0xff]
        %v1975 = vld [vmem:[#allocation7 + $0x88] sm:$0xff]
        %v1976 = vld [vmem:[#allocation7 + $0x90] sm:$0xff]
        %v1977 = vld [vmem:[#allocation7 + $0x98] sm:$0xff]
        %v1978 = vld [vmem:[#allocation7 + $0xa0] sm:$0xff]
        %v1979 = vld [vmem:[#allocation7 + $0xa8] sm:$0xff]
        %v1980 = vld [vmem:[#allocation7 + $0xb0] sm:$0xff]
        %v1981 = vld [vmem:[#allocation7 + $0xb8] sm:$0xff]
        %v1982 = vld [vmem:[#allocation7 + $0xc0] sm:$0xff]
        %v1983 = vld [vmem:[#allocation7 + $0xc8] sm:$0xff]
        %v1984 = vld [vmem:[#allocation7 + $0xd0] sm:$0xff]
        %v1985 = vld [vmem:[#allocation7 + $0xd8] sm:$0xff]
        %v1986 = vld [vmem:[#allocation7 + $0xe0] sm:$0xff]
        %v1987 = vld [vmem:[#allocation7 + $0xe8] sm:$0xff]
        %v1988 = vld [vmem:[#allocation7 + $0xf0] sm:$0xff]
        %v1989 = vld [vmem:[#allocation7 + $0xf8] sm:$0xff]
        %v1990 = vld [vmem:[#allocation7 + $0x100] sm:$0xff]
        %v1991 = vld [vmem:[#allocation7 + $0x108] sm:$0xff]
        %v1992 = vld [vmem:[#allocation7 + $0x110] sm:$0xff]
        %v1993 = vld [vmem:[#allocation7 + $0x118] sm:$0xff]
        %v1994 = vld [vmem:[#allocation7 + $0x120] sm:$0xff]
        %v1995 = vld [vmem:[#allocation7 + $0x128] sm:$0xff]
        %v1996 = vld [vmem:[#allocation7 + $0x130] sm:$0xff]
        %v1997 = vld [vmem:[#allocation7 + $0x138] sm:$0xff]
        %v1998 = vld [vmem:[#allocation7 + $0x140] sm:$0xff]
        %v1999 = vld [vmem:[#allocation7 + $0x148] sm:$0xff]
        %v2000 = vld [vmem:[#allocation7 + $0x150] sm:$0xff]
        %v2001 = vld [vmem:[#allocation7 + $0x158] sm:$0xff]
        %v2002 = vld [vmem:[#allocation7 + $0x160] sm:$0xff]
        %v2003 = vld [vmem:[#allocation7 + $0x168] sm:$0xff]
        %v2004 = vld [vmem:[#allocation7 + $0x170] sm:$0xff]
        %v2005 = vld [vmem:[#allocation7 + $0x178] sm:$0xff]
        %v2006 = vld [vmem:[#allocation7 + $0x180] sm:$0xff]
        %v2007 = vld [vmem:[#allocation7 + $0x188] sm:$0xff]
        %v2008 = vld [vmem:[#allocation7 + $0x190] sm:$0xff]
        %v2009 = vld [vmem:[#allocation7 + $0x198] sm:$0xff]
        %v2010 = vld [vmem:[#allocation7 + $0x1a0] sm:$0xff]
        %v2011 = vld [vmem:[#allocation7 + $0x1a8] sm:$0xff]
        %v2012 = vld [vmem:[#allocation7 + $0x1b0] sm:$0xff]
        %v2013 = vld [vmem:[#allocation7 + $0x1b8] sm:$0xff]
        %v2014 = vld [vmem:[#allocation7 + $0x1c0] sm:$0xff]
        %v2015 = vld [vmem:[#allocation7 + $0x1c8] sm:$0xff]
        %v2016 = vld [vmem:[#allocation7 + $0x1d0] sm:$0xff]
        %v2017 = vld [vmem:[#allocation7 + $0x1d8] sm:$0xff]
        %v2018 = vld [vmem:[#allocation7 + $0x1e0] sm:$0xff]
        %v2019 = vld [vmem:[#allocation7 + $0x1e8] sm:$0xff]
        %v2020 = vld [vmem:[#allocation7 + $0x1f0] sm:$0xff]
        %v2021 = vld [vmem:[#allocation7 + $0x1f8] sm:$0xff]
        %v2022 = vld [vmem:[#allocation7 + $0x200] sm:$0xff]
        %v2023 = vld [vmem:[#allocation7 + $0x208] sm:$0xff]
        %v2024 = vld [vmem:[#allocation7 + $0x210] sm:$0xff]
        %v2025 = vld [vmem:[#allocation7 + $0x218] sm:$0xff]
        %v2026 = vld [vmem:[#allocation7 + $0x220] sm:$0xff]
        %v2027 = vld [vmem:[#allocation7 + $0x228] sm:$0xff]
        %v2028 = vld [vmem:[#allocation7 + $0x230] sm:$0xff]
        %v2029 = vld [vmem:[#allocation7 + $0x238] sm:$0xff]
        %v2030 = vld [vmem:[#allocation7 + $0x240] sm:$0xff]
        %v2031 = vld [vmem:[#allocation7 + $0x248] sm:$0xff]
        %v2032 = vld [vmem:[#allocation7 + $0x250] sm:$0xff]
        %v2033 = vld [vmem:[#allocation7 + $0x258] sm:$0xff]
        %v2034 = vld [vmem:[#allocation7 + $0x260] sm:$0xff]
        %v2035 = vld [vmem:[#allocation7 + $0x268] sm:$0xff]
        %v2036 = vld [vmem:[#allocation7 + $0x270] sm:$0xff]
        %v2037 = vld [vmem:[#allocation7 + $0x278] sm:$0xff]
        %v2038 = vld [vmem:[#allocation7 + $0x280] sm:$0xff]
        %v2039 = vld [vmem:[#allocation7 + $0x288] sm:$0xff]
        %v2040 = vld [vmem:[#allocation7 + $0x290] sm:$0xff]
        %v2041 = vld [vmem:[#allocation7 + $0x298] sm:$0xff]
        %v2042 = vld [vmem:[#allocation7 + $0x2a0] sm:$0xff]
        %v2043 = vld [vmem:[#allocation7 + $0x2a8] sm:$0xff]
        %v2044 = vld [vmem:[#allocation7 + $0x2b0] sm:$0xff]
        %v2045 = vld [vmem:[#allocation7 + $0x2b8] sm:$0xff]
        %v2046 = vld [vmem:[#allocation7 + $0x2c0] sm:$0xff]
        %v2047 = vld [vmem:[#allocation7 + $0x2c8] sm:$0xff]
        %v2048 = vld [vmem:[#allocation7 + $0x2d0] sm:$0xff]
        %v2049 = vld [vmem:[#allocation7 + $0x2d8] sm:$0xff]
        %v2050 = vld [vmem:[#allocation7 + $0x2e0] sm:$0xff]
        %v2051 = vld [vmem:[#allocation7 + $0x2e8] sm:$0xff]
        %v2052 = vld [vmem:[#allocation7 + $0x2f0] sm:$0xff]
        %v2053 = vld [vmem:[#allocation7 + $0x2f8] sm:$0xff]
        %v2054 = vld [vmem:[#allocation7 + $0x300] sm:$0xff]
        %v2055 = vld [vmem:[#allocation7 + $0x308] sm:$0xff]
        %v2056 = vld [vmem:[#allocation7 + $0x310] sm:$0xff]
        %v2057 = vld [vmem:[#allocation7 + $0x318] sm:$0xff]
        %v2058 = vld [vmem:[#allocation7 + $0x320] sm:$0xff]
        %v2059 = vld [vmem:[#allocation7 + $0x328] sm:$0xff]
        %v2060 = vld [vmem:[#allocation7 + $0x330] sm:$0xff]
        %v2061 = vld [vmem:[#allocation7 + $0x338] sm:$0xff]
        %v2062 = vld [vmem:[#allocation7 + $0x340] sm:$0xff]
        %v2063 = vld [vmem:[#allocation7 + $0x348] sm:$0xff]
        %v2064 = vld [vmem:[#allocation7 + $0x350] sm:$0xff]
        %v2065 = vld [vmem:[#allocation7 + $0x358] sm:$0xff]
        %v2066 = vld [vmem:[#allocation7 + $0x360] sm:$0xff]
        %v2067 = vld [vmem:[#allocation7 + $0x368] sm:$0xff]
        %v2068 = vld [vmem:[#allocation7 + $0x370] sm:$0xff]
        %v2069 = vld [vmem:[#allocation7 + $0x378] sm:$0xff]
        %v2070 = vld [vmem:[#allocation7 + $0x380] sm:$0xff]
        %v2071 = vld [vmem:[#allocation7 + $0x388] sm:$0xff]
        %v2072 = vld [vmem:[#allocation7 + $0x390] sm:$0xff]
        %v2073 = vld [vmem:[#allocation7 + $0x398] sm:$0xff]
        %v2074 = vld [vmem:[#allocation7 + $0x3a0] sm:$0xff]
        %v2075 = vld [vmem:[#allocation7 + $0x3a8] sm:$0xff]
        %v2076 = vld [vmem:[#allocation7 + $0x3b0] sm:$0xff]
        %v2077 = vld [vmem:[#allocation7 + $0x3b8] sm:$0xff]
        %v2078 = vld [vmem:[#allocation7 + $0x3c0] sm:$0xff]
        %v2079 = vld [vmem:[#allocation7 + $0x3c8] sm:$0xff]
        %v2080 = vld [vmem:[#allocation7 + $0x3d0] sm:$0xff]
        %v2081 = vld [vmem:[#allocation7 + $0x3d8] sm:$0xff]
        %v2082 = vld [vmem:[#allocation7 + $0x3e0] sm:$0xff]
        %v2083 = vld [vmem:[#allocation7 + $0x3e8] sm:$0xff]
        %v2084 = vld [vmem:[#allocation7 + $0x3f0] sm:$0xff]
        %v2085 = vld [vmem:[#allocation7 + $0x3f8] sm:$0xff]
        %v2086 = vld [vmem:[#allocation2] sm:$0x66]
        %v2087 = vld [vmem:[#allocation2 + $0x8] sm:$0x66]
        %s2088 = scalar_lea.vmem [#allocation7], 1024
        %v2089 = vld [vmem:[%s2088] sm:$0xff]
        %v2090 = vld [vmem:[%s2088 + $0x8] sm:$0xff]
        %v2091 = vld [vmem:[%s2088 + $0x10] sm:$0xff]
        %v2092 = vld [vmem:[%s2088 + $0x18] sm:$0xff]
        %v2093 = vld [vmem:[%s2088 + $0x20] sm:$0xff]
        %v2094 = vld [vmem:[%s2088 + $0x28] sm:$0xff]
        %v2095 = vld [vmem:[%s2088 + $0x30] sm:$0xff]
        %v2096 = vld [vmem:[%s2088 + $0x38] sm:$0xff]
        %v2097 = vld [vmem:[%s2088 + $0x40] sm:$0xff]
        %v2098 = vld [vmem:[%s2088 + $0x48] sm:$0xff]
        %v2099 = vld [vmem:[%s2088 + $0x50] sm:$0xff]
        %v2100 = vld [vmem:[%s2088 + $0x58] sm:$0xff]
        %v2101 = vld [vmem:[%s2088 + $0x60] sm:$0xff]
        %v2102 = vld [vmem:[%s2088 + $0x68] sm:$0xff]
        %v2103 = vld [vmem:[%s2088 + $0x70] sm:$0xff]
        %v2104 = vld [vmem:[%s2088 + $0x78] sm:$0xff]
        %v2105 = vld [vmem:[%s2088 + $0x80] sm:$0xff]
        %v2106 = vld [vmem:[%s2088 + $0x88] sm:$0xff]
        %v2107 = vld [vmem:[%s2088 + $0x90] sm:$0xff]
        %v2108 = vld [vmem:[%s2088 + $0x98] sm:$0xff]
        %v2109 = vld [vmem:[%s2088 + $0xa0] sm:$0xff]
        %v2110 = vld [vmem:[%s2088 + $0xa8] sm:$0xff]
        %v2111 = vld [vmem:[%s2088 + $0xb0] sm:$0xff]
        %v2112 = vld [vmem:[%s2088 + $0xb8] sm:$0xff]
        %v2113 = vld [vmem:[%s2088 + $0xc0] sm:$0xff]
        %v2114 = vld [vmem:[%s2088 + $0xc8] sm:$0xff]
        %v2115 = vld [vmem:[%s2088 + $0xd0] sm:$0xff]
        %v2116 = vld [vmem:[%s2088 + $0xd8] sm:$0xff]
        %v2117 = vld [vmem:[%s2088 + $0xe0] sm:$0xff]
        %v2118 = vld [vmem:[%s2088 + $0xe8] sm:$0xff]
        %v2119 = vld [vmem:[%s2088 + $0xf0] sm:$0xff]
        %v2120 = vld [vmem:[%s2088 + $0xf8] sm:$0xff]
        %v2121 = vld [vmem:[%s2088 + $0x100] sm:$0xff]
        %v2122 = vld [vmem:[%s2088 + $0x108] sm:$0xff]
        %v2123 = vld [vmem:[%s2088 + $0x110] sm:$0xff]
        %v2124 = vld [vmem:[%s2088 + $0x118] sm:$0xff]
        %v2125 = vld [vmem:[%s2088 + $0x120] sm:$0xff]
        %v2126 = vld [vmem:[%s2088 + $0x128] sm:$0xff]
        %v2127 = vld [vmem:[%s2088 + $0x130] sm:$0xff]
        %v2128 = vld [vmem:[%s2088 + $0x138] sm:$0xff]
        %v2129 = vld [vmem:[%s2088 + $0x140] sm:$0xff]
        %v2130 = vld [vmem:[%s2088 + $0x148] sm:$0xff]
        %v2131 = vld [vmem:[%s2088 + $0x150] sm:$0xff]
        %v2132 = vld [vmem:[%s2088 + $0x158] sm:$0xff]
        %v2133 = vld [vmem:[%s2088 + $0x160] sm:$0xff]
        %v2134 = vld [vmem:[%s2088 + $0x168] sm:$0xff]
        %v2135 = vld [vmem:[%s2088 + $0x170] sm:$0xff]
        %v2136 = vld [vmem:[%s2088 + $0x178] sm:$0xff]
        %v2137 = vld [vmem:[%s2088 + $0x180] sm:$0xff]
        %v2138 = vld [vmem:[%s2088 + $0x188] sm:$0xff]
        %v2139 = vld [vmem:[%s2088 + $0x190] sm:$0xff]
        %v2140 = vld [vmem:[%s2088 + $0x198] sm:$0xff]
        %v2141 = vld [vmem:[%s2088 + $0x1a0] sm:$0xff]
        %v2142 = vld [vmem:[%s2088 + $0x1a8] sm:$0xff]
        %v2143 = vld [vmem:[%s2088 + $0x1b0] sm:$0xff]
        %v2144 = vld [vmem:[%s2088 + $0x1b8] sm:$0xff]
        %v2145 = vld [vmem:[%s2088 + $0x1c0] sm:$0xff]
        %v2146 = vld [vmem:[%s2088 + $0x1c8] sm:$0xff]
        %v2147 = vld [vmem:[%s2088 + $0x1d0] sm:$0xff]
        %v2148 = vld [vmem:[%s2088 + $0x1d8] sm:$0xff]
        %v2149 = vld [vmem:[%s2088 + $0x1e0] sm:$0xff]
        %v2150 = vld [vmem:[%s2088 + $0x1e8] sm:$0xff]
        %v2151 = vld [vmem:[%s2088 + $0x1f0] sm:$0xff]
        %v2152 = vld [vmem:[%s2088 + $0x1f8] sm:$0xff]
        %v2153 = vld [vmem:[%s2088 + $0x200] sm:$0xff]
        %v2154 = vld [vmem:[%s2088 + $0x208] sm:$0xff]
        %v2155 = vld [vmem:[%s2088 + $0x210] sm:$0xff]
        %v2156 = vld [vmem:[%s2088 + $0x218] sm:$0xff]
        %v2157 = vld [vmem:[%s2088 + $0x220] sm:$0xff]
        %v2158 = vld [vmem:[%s2088 + $0x228] sm:$0xff]
        %v2159 = vld [vmem:[%s2088 + $0x230] sm:$0xff]
        %v2160 = vld [vmem:[%s2088 + $0x238] sm:$0xff]
        %v2161 = vld [vmem:[%s2088 + $0x240] sm:$0xff]
        %v2162 = vld [vmem:[%s2088 + $0x248] sm:$0xff]
        %v2163 = vld [vmem:[%s2088 + $0x250] sm:$0xff]
        %v2164 = vld [vmem:[%s2088 + $0x258] sm:$0xff]
        %v2165 = vld [vmem:[%s2088 + $0x260] sm:$0xff]
        %v2166 = vld [vmem:[%s2088 + $0x268] sm:$0xff]
        %v2167 = vld [vmem:[%s2088 + $0x270] sm:$0xff]
        %v2168 = vld [vmem:[%s2088 + $0x278] sm:$0xff]
        %v2169 = vld [vmem:[%s2088 + $0x280] sm:$0xff]
        %v2170 = vld [vmem:[%s2088 + $0x288] sm:$0xff]
        %v2171 = vld [vmem:[%s2088 + $0x290] sm:$0xff]
        %v2172 = vld [vmem:[%s2088 + $0x298] sm:$0xff]
        %v2173 = vld [vmem:[%s2088 + $0x2a0] sm:$0xff]
        %v2174 = vld [vmem:[%s2088 + $0x2a8] sm:$0xff]
        %v2175 = vld [vmem:[%s2088 + $0x2b0] sm:$0xff]
        %v2176 = vld [vmem:[%s2088 + $0x2b8] sm:$0xff]
        %v2177 = vld [vmem:[%s2088 + $0x2c0] sm:$0xff]
        %v2178 = vld [vmem:[%s2088 + $0x2c8] sm:$0xff]
        %v2179 = vld [vmem:[%s2088 + $0x2d0] sm:$0xff]
        %v2180 = vld [vmem:[%s2088 + $0x2d8] sm:$0xff]
        %v2181 = vld [vmem:[%s2088 + $0x2e0] sm:$0xff]
        %v2182 = vld [vmem:[%s2088 + $0x2e8] sm:$0xff]
        %v2183 = vld [vmem:[%s2088 + $0x2f0] sm:$0xff]
        %v2184 = vld [vmem:[%s2088 + $0x2f8] sm:$0xff]
        %v2185 = vld [vmem:[%s2088 + $0x300] sm:$0xff]
        %v2186 = vld [vmem:[%s2088 + $0x308] sm:$0xff]
        %v2187 = vld [vmem:[%s2088 + $0x310] sm:$0xff]
        %v2188 = vld [vmem:[%s2088 + $0x318] sm:$0xff]
        %v2189 = vld [vmem:[%s2088 + $0x320] sm:$0xff]
        %v2190 = vld [vmem:[%s2088 + $0x328] sm:$0xff]
        %v2191 = vld [vmem:[%s2088 + $0x330] sm:$0xff]
        %v2192 = vld [vmem:[%s2088 + $0x338] sm:$0xff]
        %v2193 = vld [vmem:[%s2088 + $0x340] sm:$0xff]
        %v2194 = vld [vmem:[%s2088 + $0x348] sm:$0xff]
        %v2195 = vld [vmem:[%s2088 + $0x350] sm:$0xff]
        %v2196 = vld [vmem:[%s2088 + $0x358] sm:$0xff]
        %v2197 = vld [vmem:[%s2088 + $0x360] sm:$0xff]
        %v2198 = vld [vmem:[%s2088 + $0x368] sm:$0xff]
        %v2199 = vld [vmem:[%s2088 + $0x370] sm:$0xff]
        %v2200 = vld [vmem:[%s2088 + $0x378] sm:$0xff]
        %v2201 = vld [vmem:[%s2088 + $0x380] sm:$0xff]
        %v2202 = vld [vmem:[%s2088 + $0x388] sm:$0xff]
        %v2203 = vld [vmem:[%s2088 + $0x390] sm:$0xff]
        %v2204 = vld [vmem:[%s2088 + $0x398] sm:$0xff]
        %v2205 = vld [vmem:[%s2088 + $0x3a0] sm:$0xff]
        %v2206 = vld [vmem:[%s2088 + $0x3a8] sm:$0xff]
        %v2207 = vld [vmem:[%s2088 + $0x3b0] sm:$0xff]
        %v2208 = vld [vmem:[%s2088 + $0x3b8] sm:$0xff]
        %v2209 = vld [vmem:[%s2088 + $0x3c0] sm:$0xff]
        %v2210 = vld [vmem:[%s2088 + $0x3c8] sm:$0xff]
        %v2211 = vld [vmem:[%s2088 + $0x3d0] sm:$0xff]
        %v2212 = vld [vmem:[%s2088 + $0x3d8] sm:$0xff]
        %v2213 = vld [vmem:[%s2088 + $0x3e0] sm:$0xff]
        %v2214 = vld [vmem:[%s2088 + $0x3e8] sm:$0xff]
        %v2215 = vld [vmem:[%s2088 + $0x3f0] sm:$0xff]
        %v2216 = vld [vmem:[%s2088 + $0x3f8] sm:$0xff]
        %2219 = vst [vmem:[#allocation1] ss:$2 sm:$0xff] %v2086
        %s2220 = scalar_lea.vmem [#allocation1], 16
        %2221 = vst [vmem:[%s2220] ss:$2 sm:$0xff] %v2087
        %v2222 = vld.sshfl [vmem:[#allocation1] sm:$0xff pattern:$0x75316420]
        %v2223 = vld.sshfl [vmem:[#allocation1 + $0x8] sm:$0xff pattern:$0x75316420]
        %v2224 = vld.sshfl [vmem:[#allocation1 + $0x10] sm:$0xff pattern:$0x75316420]
        %v2225 = vld.sshfl [vmem:[#allocation1 + $0x18] sm:$0xff pattern:$0x75316420]
        %v2226 = vrot.slane %v2222, 1
        %v2227 = vrot.slane %v2223, 1
        %v2228 = vrot.slane %v2224, 1
        %v2229 = vrot.slane %v2225, 1
        %v2362 = vunpack.c.l.b16 %v2089
        %v2363 = vunpack.c.h.b16 %v2089
        %v2364 = vunpack.c.l.b16 %v2090
        %v2365 = vunpack.c.h.b16 %v2090
        %v2366 = vunpack.c.l.b16 %v2091
        %v2367 = vunpack.c.h.b16 %v2091
        %v2368 = vunpack.c.l.b16 %v2092
        %v2369 = vunpack.c.h.b16 %v2092
        %v2370 = vunpack.c.l.b16 %v2093
        %v2371 = vunpack.c.h.b16 %v2093
        %v2372 = vunpack.c.l.b16 %v2094
        %v2373 = vunpack.c.h.b16 %v2094
        %v2374 = vunpack.c.l.b16 %v2095
        %v2375 = vunpack.c.h.b16 %v2095
        %v2376 = vunpack.c.l.b16 %v2096
        %v2377 = vunpack.c.h.b16 %v2096
        %v2378 = vunpack.c.l.b16 %v2097
        %v2379 = vunpack.c.h.b16 %v2097
        %v2380 = vunpack.c.l.b16 %v2098
        %v2381 = vunpack.c.h.b16 %v2098
        %v2382 = vunpack.c.l.b16 %v2099
        %v2383 = vunpack.c.h.b16 %v2099
        %v2384 = vunpack.c.l.b16 %v2100
        %v2385 = vunpack.c.h.b16 %v2100
        %v2386 = vunpack.c.l.b16 %v2101
        %v2387 = vunpack.c.h.b16 %v2101
        %v2388 = vunpack.c.l.b16 %v2102
        %v2389 = vunpack.c.h.b16 %v2102
        %v2390 = vunpack.c.l.b16 %v2103
        %v2391 = vunpack.c.h.b16 %v2103
        %v2392 = vunpack.c.l.b16 %v2104
        %v2393 = vunpack.c.h.b16 %v2104
        %v2394 = vunpack.c.l.b16 %v2105
        %v2395 = vunpack.c.h.b16 %v2105
        %v2396 = vunpack.c.l.b16 %v2106
        %v2397 = vunpack.c.h.b16 %v2106
        %v2398 = vunpack.c.l.b16 %v2107
        %v2399 = vunpack.c.h.b16 %v2107
        %v2400 = vunpack.c.l.b16 %v2108
        %v2401 = vunpack.c.h.b16 %v2108
        %v2402 = vunpack.c.l.b16 %v2109
        %v2403 = vunpack.c.h.b16 %v2109
        %v2404 = vunpack.c.l.b16 %v2110
        %v2405 = vunpack.c.h.b16 %v2110
        %v2406 = vunpack.c.l.b16 %v2111
        %v2407 = vunpack.c.h.b16 %v2111
        %v2408 = vunpack.c.l.b16 %v2112
        %v2409 = vunpack.c.h.b16 %v2112
        %v2410 = vunpack.c.l.b16 %v2113
        %v2411 = vunpack.c.h.b16 %v2113
        %v2412 = vunpack.c.l.b16 %v2114
        %v2413 = vunpack.c.h.b16 %v2114
        %v2414 = vunpack.c.l.b16 %v2115
        %v2415 = vunpack.c.h.b16 %v2115
        %v2416 = vunpack.c.l.b16 %v2116
        %v2417 = vunpack.c.h.b16 %v2116
        %v2418 = vunpack.c.l.b16 %v2117
        %v2419 = vunpack.c.h.b16 %v2117
        %v2420 = vunpack.c.l.b16 %v2118
        %v2421 = vunpack.c.h.b16 %v2118
        %v2422 = vunpack.c.l.b16 %v2119
        %v2423 = vunpack.c.h.b16 %v2119
        %v2424 = vunpack.c.l.b16 %v2120
        %v2425 = vunpack.c.h.b16 %v2120
        %v2426 = vunpack.c.l.b16 %v2121
        %v2427 = vunpack.c.h.b16 %v2121
        %v2428 = vunpack.c.l.b16 %v2122
        %v2429 = vunpack.c.h.b16 %v2122
        %v2430 = vunpack.c.l.b16 %v2123
        %v2431 = vunpack.c.h.b16 %v2123
        %v2432 = vunpack.c.l.b16 %v2124
        %v2433 = vunpack.c.h.b16 %v2124
        %v2434 = vunpack.c.l.b16 %v2125
        %v2435 = vunpack.c.h.b16 %v2125
        %v2436 = vunpack.c.l.b16 %v2126
        %v2437 = vunpack.c.h.b16 %v2126
        %v2438 = vunpack.c.l.b16 %v2127
        %v2439 = vunpack.c.h.b16 %v2127
        %v2440 = vunpack.c.l.b16 %v2128
        %v2441 = vunpack.c.h.b16 %v2128
        %v2442 = vunpack.c.l.b16 %v2129
        %v2443 = vunpack.c.h.b16 %v2129
        %v2444 = vunpack.c.l.b16 %v2130
        %v2445 = vunpack.c.h.b16 %v2130
        %v2446 = vunpack.c.l.b16 %v2131
        %v2447 = vunpack.c.h.b16 %v2131
        %v2448 = vunpack.c.l.b16 %v2132
        %v2449 = vunpack.c.h.b16 %v2132
        %v2450 = vunpack.c.l.b16 %v2133
        %v2451 = vunpack.c.h.b16 %v2133
        %v2452 = vunpack.c.l.b16 %v2134
        %v2453 = vunpack.c.h.b16 %v2134
        %v2454 = vunpack.c.l.b16 %v2135
        %v2455 = vunpack.c.h.b16 %v2135
        %v2456 = vunpack.c.l.b16 %v2136
        %v2457 = vunpack.c.h.b16 %v2136
        %v2458 = vunpack.c.l.b16 %v2137
        %v2459 = vunpack.c.h.b16 %v2137
        %v2460 = vunpack.c.l.b16 %v2138
        %v2461 = vunpack.c.h.b16 %v2138
        %v2462 = vunpack.c.l.b16 %v2139
        %v2463 = vunpack.c.h.b16 %v2139
        %v2464 = vunpack.c.l.b16 %v2140
        %v2465 = vunpack.c.h.b16 %v2140
        %v2466 = vunpack.c.l.b16 %v2141
        %v2467 = vunpack.c.h.b16 %v2141
        %v2468 = vunpack.c.l.b16 %v2142
        %v2469 = vunpack.c.h.b16 %v2142
        %v2470 = vunpack.c.l.b16 %v2143
        %v2471 = vunpack.c.h.b16 %v2143
        %v2472 = vunpack.c.l.b16 %v2144
        %v2473 = vunpack.c.h.b16 %v2144
        %v2474 = vunpack.c.l.b16 %v2145
        %v2475 = vunpack.c.h.b16 %v2145
        %v2476 = vunpack.c.l.b16 %v2146
        %v2477 = vunpack.c.h.b16 %v2146
        %v2478 = vunpack.c.l.b16 %v2147
        %v2479 = vunpack.c.h.b16 %v2147
        %v2480 = vunpack.c.l.b16 %v2148
        %v2481 = vunpack.c.h.b16 %v2148
        %v2482 = vunpack.c.l.b16 %v2149
        %v2483 = vunpack.c.h.b16 %v2149
        %v2484 = vunpack.c.l.b16 %v2150
        %v2485 = vunpack.c.h.b16 %v2150
        %v2486 = vunpack.c.l.b16 %v2151
        %v2487 = vunpack.c.h.b16 %v2151
        %v2488 = vunpack.c.l.b16 %v2152
        %v2489 = vunpack.c.h.b16 %v2152
        %v2490 = vunpack.c.l.b16 %v2153
        %v2491 = vunpack.c.h.b16 %v2153
        %v2492 = vunpack.c.l.b16 %v2154
        %v2493 = vunpack.c.h.b16 %v2154
        %v2494 = vunpack.c.l.b16 %v2155
        %v2495 = vunpack.c.h.b16 %v2155
        %v2496 = vunpack.c.l.b16 %v2156
        %v2497 = vunpack.c.h.b16 %v2156
        %v2498 = vunpack.c.l.b16 %v2157
        %v2499 = vunpack.c.h.b16 %v2157
        %v2500 = vunpack.c.l.b16 %v2158
        %v2501 = vunpack.c.h.b16 %v2158
        %v2502 = vunpack.c.l.b16 %v2159
        %v2503 = vunpack.c.h.b16 %v2159
        %v2504 = vunpack.c.l.b16 %v2160
        %v2505 = vunpack.c.h.b16 %v2160
        %v2506 = vunpack.c.l.b16 %v2161
        %v2507 = vunpack.c.h.b16 %v2161
        %v2508 = vunpack.c.l.b16 %v2162
        %v2509 = vunpack.c.h.b16 %v2162
        %v2510 = vunpack.c.l.b16 %v2163
        %v2511 = vunpack.c.h.b16 %v2163
        %v2512 = vunpack.c.l.b16 %v2164
        %v2513 = vunpack.c.h.b16 %v2164
        %v2514 = vunpack.c.l.b16 %v2165
        %v2515 = vunpack.c.h.b16 %v2165
        %v2516 = vunpack.c.l.b16 %v2166
        %v2517 = vunpack.c.h.b16 %v2166
        %v2518 = vunpack.c.l.b16 %v2167
        %v2519 = vunpack.c.h.b16 %v2167
        %v2520 = vunpack.c.l.b16 %v2168
        %v2521 = vunpack.c.h.b16 %v2168
        %v2522 = vunpack.c.l.b16 %v2169
        %v2523 = vunpack.c.h.b16 %v2169
        %v2524 = vunpack.c.l.b16 %v2170
        %v2525 = vunpack.c.h.b16 %v2170
        %v2526 = vunpack.c.l.b16 %v2171
        %v2527 = vunpack.c.h.b16 %v2171
        %v2528 = vunpack.c.l.b16 %v2172
        %v2529 = vunpack.c.h.b16 %v2172
        %v2530 = vunpack.c.l.b16 %v2173
        %v2531 = vunpack.c.h.b16 %v2173
        %v2532 = vunpack.c.l.b16 %v2174
        %v2533 = vunpack.c.h.b16 %v2174
        %v2534 = vunpack.c.l.b16 %v2175
        %v2535 = vunpack.c.h.b16 %v2175
        %v2536 = vunpack.c.l.b16 %v2176
        %v2537 = vunpack.c.h.b16 %v2176
        %v2538 = vunpack.c.l.b16 %v2177
        %v2539 = vunpack.c.h.b16 %v2177
        %v2540 = vunpack.c.l.b16 %v2178
        %v2541 = vunpack.c.h.b16 %v2178
        %v2542 = vunpack.c.l.b16 %v2179
        %v2543 = vunpack.c.h.b16 %v2179
        %v2544 = vunpack.c.l.b16 %v2180
        %v2545 = vunpack.c.h.b16 %v2180
        %v2546 = vunpack.c.l.b16 %v2181
        %v2547 = vunpack.c.h.b16 %v2181
        %v2548 = vunpack.c.l.b16 %v2182
        %v2549 = vunpack.c.h.b16 %v2182
        %v2550 = vunpack.c.l.b16 %v2183
        %v2551 = vunpack.c.h.b16 %v2183
        %v2552 = vunpack.c.l.b16 %v2184
        %v2553 = vunpack.c.h.b16 %v2184
        %v2554 = vunpack.c.l.b16 %v2185
        %v2555 = vunpack.c.h.b16 %v2185
        %v2556 = vunpack.c.l.b16 %v2186
        %v2557 = vunpack.c.h.b16 %v2186
        %v2558 = vunpack.c.l.b16 %v2187
        %v2559 = vunpack.c.h.b16 %v2187
        %v2560 = vunpack.c.l.b16 %v2188
        %v2561 = vunpack.c.h.b16 %v2188
        %v2562 = vunpack.c.l.b16 %v2189
        %v2563 = vunpack.c.h.b16 %v2189
        %v2564 = vunpack.c.l.b16 %v2190
        %v2565 = vunpack.c.h.b16 %v2190
        %v2566 = vunpack.c.l.b16 %v2191
        %v2567 = vunpack.c.h.b16 %v2191
        %v2568 = vunpack.c.l.b16 %v2192
        %v2569 = vunpack.c.h.b16 %v2192
        %v2570 = vunpack.c.l.b16 %v2193
        %v2571 = vunpack.c.h.b16 %v2193
        %v2572 = vunpack.c.l.b16 %v2194
        %v2573 = vunpack.c.h.b16 %v2194
        %v2574 = vunpack.c.l.b16 %v2195
        %v2575 = vunpack.c.h.b16 %v2195
        %v2576 = vunpack.c.l.b16 %v2196
        %v2577 = vunpack.c.h.b16 %v2196
        %v2578 = vunpack.c.l.b16 %v2197
        %v2579 = vunpack.c.h.b16 %v2197
        %v2580 = vunpack.c.l.b16 %v2198
        %v2581 = vunpack.c.h.b16 %v2198
        %v2582 = vunpack.c.l.b16 %v2199
        %v2583 = vunpack.c.h.b16 %v2199
        %v2584 = vunpack.c.l.b16 %v2200
        %v2585 = vunpack.c.h.b16 %v2200
        %v2586 = vunpack.c.l.b16 %v2201
        %v2587 = vunpack.c.h.b16 %v2201
        %v2588 = vunpack.c.l.b16 %v2202
        %v2589 = vunpack.c.h.b16 %v2202
        %v2590 = vunpack.c.l.b16 %v2203
        %v2591 = vunpack.c.h.b16 %v2203
        %v2592 = vunpack.c.l.b16 %v2204
        %v2593 = vunpack.c.h.b16 %v2204
        %v2594 = vunpack.c.l.b16 %v2205
        %v2595 = vunpack.c.h.b16 %v2205
        %v2596 = vunpack.c.l.b16 %v2206
        %v2597 = vunpack.c.h.b16 %v2206
        %v2598 = vunpack.c.l.b16 %v2207
        %v2599 = vunpack.c.h.b16 %v2207
        %v2600 = vunpack.c.l.b16 %v2208
        %v2601 = vunpack.c.h.b16 %v2208
        %v2602 = vunpack.c.l.b16 %v2209
        %v2603 = vunpack.c.h.b16 %v2209
        %v2604 = vunpack.c.l.b16 %v2210
        %v2605 = vunpack.c.h.b16 %v2210
        %v2606 = vunpack.c.l.b16 %v2211
        %v2607 = vunpack.c.h.b16 %v2211
        %v2608 = vunpack.c.l.b16 %v2212
        %v2609 = vunpack.c.h.b16 %v2212
        %v2610 = vunpack.c.l.b16 %v2213
        %v2611 = vunpack.c.h.b16 %v2213
        %v2612 = vunpack.c.l.b16 %v2214
        %v2613 = vunpack.c.h.b16 %v2214
        %v2614 = vunpack.c.l.b16 %v2215
        %v2615 = vunpack.c.h.b16 %v2215
        %v2616 = vunpack.c.l.b16 %v2216
        %v2617 = vunpack.c.h.b16 %v2216
        %v2618 = vpack.c.b16 %v2366, %v2362
        %v2619 = vpack.c.b16 %v2367, %v2363
        %v2620 = vpack.c.b16 %v2368, %v2364
        %v2621 = vpack.c.b16 %v2369, %v2365
        %v2622 = vpack.c.b16 %v2374, %v2370
        %v2623 = vpack.c.b16 %v2375, %v2371
        %v2624 = vpack.c.b16 %v2376, %v2372
        %v2625 = vpack.c.b16 %v2377, %v2373
        %v2626 = vpack.c.b16 %v2382, %v2378
        %v2627 = vpack.c.b16 %v2383, %v2379
        %v2628 = vpack.c.b16 %v2384, %v2380
        %v2629 = vpack.c.b16 %v2385, %v2381
        %v2630 = vpack.c.b16 %v2390, %v2386
        %v2631 = vpack.c.b16 %v2391, %v2387
        %v2632 = vpack.c.b16 %v2392, %v2388
        %v2633 = vpack.c.b16 %v2393, %v2389
        %v2634 = vpack.c.b16 %v2398, %v2394
        %v2635 = vpack.c.b16 %v2399, %v2395
        %v2636 = vpack.c.b16 %v2400, %v2396
        %v2637 = vpack.c.b16 %v2401, %v2397
        %v2638 = vpack.c.b16 %v2406, %v2402
        %v2639 = vpack.c.b16 %v2407, %v2403
        %v2640 = vpack.c.b16 %v2408, %v2404
        %v2641 = vpack.c.b16 %v2409, %v2405
        %v2642 = vpack.c.b16 %v2414, %v2410
        %v2643 = vpack.c.b16 %v2415, %v2411
        %v2644 = vpack.c.b16 %v2416, %v2412
        %v2645 = vpack.c.b16 %v2417, %v2413
        %v2646 = vpack.c.b16 %v2422, %v2418
        %v2647 = vpack.c.b16 %v2423, %v2419
        %v2648 = vpack.c.b16 %v2424, %v2420
        %v2649 = vpack.c.b16 %v2425, %v2421
        %v2650 = vpack.c.b16 %v2430, %v2426
        %v2651 = vpack.c.b16 %v2431, %v2427
        %v2652 = vpack.c.b16 %v2432, %v2428
        %v2653 = vpack.c.b16 %v2433, %v2429
        %v2654 = vpack.c.b16 %v2438, %v2434
        %v2655 = vpack.c.b16 %v2439, %v2435
        %v2656 = vpack.c.b16 %v2440, %v2436
        %v2657 = vpack.c.b16 %v2441, %v2437
        %v2658 = vpack.c.b16 %v2446, %v2442
        %v2659 = vpack.c.b16 %v2447, %v2443
        %v2660 = vpack.c.b16 %v2448, %v2444
        %v2661 = vpack.c.b16 %v2449, %v2445
        %v2662 = vpack.c.b16 %v2454, %v2450
        %v2663 = vpack.c.b16 %v2455, %v2451
        %v2664 = vpack.c.b16 %v2456, %v2452
        %v2665 = vpack.c.b16 %v2457, %v2453
        %v2666 = vpack.c.b16 %v2462, %v2458
        %v2667 = vpack.c.b16 %v2463, %v2459
        %v2668 = vpack.c.b16 %v2464, %v2460
        %v2669 = vpack.c.b16 %v2465, %v2461
        %v2670 = vpack.c.b16 %v2470, %v2466
        %v2671 = vpack.c.b16 %v2471, %v2467
        %v2672 = vpack.c.b16 %v2472, %v2468
        %v2673 = vpack.c.b16 %v2473, %v2469
        %v2674 = vpack.c.b16 %v2478, %v2474
        %v2675 = vpack.c.b16 %v2479, %v2475
        %v2676 = vpack.c.b16 %v2480, %v2476
        %v2677 = vpack.c.b16 %v2481, %v2477
        %v2678 = vpack.c.b16 %v2486, %v2482
        %v2679 = vpack.c.b16 %v2487, %v2483
        %v2680 = vpack.c.b16 %v2488, %v2484
        %v2681 = vpack.c.b16 %v2489, %v2485
        %v2682 = vpack.c.b16 %v2494, %v2490
        %v2683 = vpack.c.b16 %v2495, %v2491
        %v2684 = vpack.c.b16 %v2496, %v2492
        %v2685 = vpack.c.b16 %v2497, %v2493
        %v2686 = vpack.c.b16 %v2502, %v2498
        %v2687 = vpack.c.b16 %v2503, %v2499
        %v2688 = vpack.c.b16 %v2504, %v2500
        %v2689 = vpack.c.b16 %v2505, %v2501
        %v2690 = vpack.c.b16 %v2510, %v2506
        %v2691 = vpack.c.b16 %v2511, %v2507
        %v2692 = vpack.c.b16 %v2512, %v2508
        %v2693 = vpack.c.b16 %v2513, %v2509
        %v2694 = vpack.c.b16 %v2518, %v2514
        %v2695 = vpack.c.b16 %v2519, %v2515
        %v2696 = vpack.c.b16 %v2520, %v2516
        %v2697 = vpack.c.b16 %v2521, %v2517
        %v2698 = vpack.c.b16 %v2526, %v2522
        %v2699 = vpack.c.b16 %v2527, %v2523
        %v2700 = vpack.c.b16 %v2528, %v2524
        %v2701 = vpack.c.b16 %v2529, %v2525
        %v2702 = vpack.c.b16 %v2534, %v2530
        %v2703 = vpack.c.b16 %v2535, %v2531
        %v2704 = vpack.c.b16 %v2536, %v2532
        %v2705 = vpack.c.b16 %v2537, %v2533
        %v2706 = vpack.c.b16 %v2542, %v2538
        %v2707 = vpack.c.b16 %v2543, %v2539
        %v2708 = vpack.c.b16 %v2544, %v2540
        %v2709 = vpack.c.b16 %v2545, %v2541
        %v2710 = vpack.c.b16 %v2550, %v2546
        %v2711 = vpack.c.b16 %v2551, %v2547
        %v2712 = vpack.c.b16 %v2552, %v2548
        %v2713 = vpack.c.b16 %v2553, %v2549
        %v2714 = vpack.c.b16 %v2558, %v2554
        %v2715 = vpack.c.b16 %v2559, %v2555
        %v2716 = vpack.c.b16 %v2560, %v2556
        %v2717 = vpack.c.b16 %v2561, %v2557
        %v2718 = vpack.c.b16 %v2566, %v2562
        %v2719 = vpack.c.b16 %v2567, %v2563
        %v2720 = vpack.c.b16 %v2568, %v2564
        %v2721 = vpack.c.b16 %v2569, %v2565
        %v2722 = vpack.c.b16 %v2574, %v2570
        %v2723 = vpack.c.b16 %v2575, %v2571
        %v2724 = vpack.c.b16 %v2576, %v2572
        %v2725 = vpack.c.b16 %v2577, %v2573
        %v2726 = vpack.c.b16 %v2582, %v2578
        %v2727 = vpack.c.b16 %v2583, %v2579
        %v2728 = vpack.c.b16 %v2584, %v2580
        %v2729 = vpack.c.b16 %v2585, %v2581
        %v2730 = vpack.c.b16 %v2590, %v2586
        %v2731 = vpack.c.b16 %v2591, %v2587
        %v2732 = vpack.c.b16 %v2592, %v2588
        %v2733 = vpack.c.b16 %v2593, %v2589
        %v2734 = vpack.c.b16 %v2598, %v2594
        %v2735 = vpack.c.b16 %v2599, %v2595
        %v2736 = vpack.c.b16 %v2600, %v2596
        %v2737 = vpack.c.b16 %v2601, %v2597
        %v2738 = vpack.c.b16 %v2606, %v2602
        %v2739 = vpack.c.b16 %v2607, %v2603
        %v2740 = vpack.c.b16 %v2608, %v2604
        %v2741 = vpack.c.b16 %v2609, %v2605
        %v2742 = vpack.c.b16 %v2614, %v2610
        %v2743 = vpack.c.b16 %v2615, %v2611
        %v2744 = vpack.c.b16 %v2616, %v2612
        %v2745 = vpack.c.b16 %v2617, %v2613
        %2874 = vmatpush.bf16.msra.mxu0 %v2646
        %2875 = vmatpush.bf16.msra.mxu0 %v2642
        %2876 = vmatpush.bf16.msra.mxu0 %v2638
        %2877 = vmatpush.bf16.msra.mxu0 %v2634
        %2878 = vmatpush.bf16.msra.mxu0 %v2630
        %2879 = vmatpush.bf16.msra.mxu0 %v2626
        %2880 = vmatpush.bf16.msra.mxu0 %v2622
        %2881 = vmatpush.bf16.msra.mxu0 %v2618
        %2882 = vmatmul.f32.gmra.mxu0 %v2226
        %v2883 = vpop.f32.mrf.mxu0
        %v2884 = vadd.f32 0.0, %v2883
        %2885 = vdwg.mxu0
        %2886 = vmatpush.bf16.msra.mxu0 %v2678
        %2887 = vmatpush.bf16.msra.mxu0 %v2674
        %2888 = vmatpush.bf16.msra.mxu0 %v2670
        %2889 = vmatpush.bf16.msra.mxu0 %v2666
        %2890 = vmatpush.bf16.msra.mxu0 %v2662
        %2891 = vmatpush.bf16.msra.mxu0 %v2658
        %2892 = vmatpush.bf16.msra.mxu0 %v2654
        %2893 = vmatpush.bf16.msra.mxu0 %v2650
        %2894 = vmatmul.f32.gmra.mxu0 %v2227
        %v2895 = vpop.f32.mrf.mxu0
        %v2896 = vadd.f32 %v2884, %v2895
        %2897 = vdwg.mxu0
        %2898 = vmatpush.bf16.msra.mxu0 %v2710
        %2899 = vmatpush.bf16.msra.mxu0 %v2706
        %2900 = vmatpush.bf16.msra.mxu0 %v2702
        %2901 = vmatpush.bf16.msra.mxu0 %v2698
        %2902 = vmatpush.bf16.msra.mxu0 %v2694
        %2903 = vmatpush.bf16.msra.mxu0 %v2690
        %2904 = vmatpush.bf16.msra.mxu0 %v2686
        %2905 = vmatpush.bf16.msra.mxu0 %v2682
        %2906 = vmatmul.f32.gmra.mxu0 %v2228
        %v2907 = vpop.f32.mrf.mxu0
        %v2908 = vadd.f32 %v2896, %v2907
        %2909 = vdwg.mxu0
        %2910 = vmatpush.bf16.msra.mxu0 %v2742
        %2911 = vmatpush.bf16.msra.mxu0 %v2738
        %2912 = vmatpush.bf16.msra.mxu0 %v2734
        %2913 = vmatpush.bf16.msra.mxu0 %v2730
        %2914 = vmatpush.bf16.msra.mxu0 %v2726
        %2915 = vmatpush.bf16.msra.mxu0 %v2722
        %2916 = vmatpush.bf16.msra.mxu0 %v2718
        %2917 = vmatpush.bf16.msra.mxu0 %v2714
        %2918 = vmatmul.f32.gmra.mxu0 %v2229
        %v2919 = vpop.f32.mrf.mxu0
        %v2920 = vadd.f32 %v2908, %v2919
        %2921 = vdwg.mxu0
        %2922 = vmatpush.bf16.msra.mxu0 %v2647
        %2923 = vmatpush.bf16.msra.mxu0 %v2643
        %2924 = vmatpush.bf16.msra.mxu0 %v2639
        %2925 = vmatpush.bf16.msra.mxu0 %v2635
        %2926 = vmatpush.bf16.msra.mxu0 %v2631
        %2927 = vmatpush.bf16.msra.mxu0 %v2627
        %2928 = vmatpush.bf16.msra.mxu0 %v2623
        %2929 = vmatpush.bf16.msra.mxu0 %v2619
        %2930 = vmatmul.f32.gmra.mxu0 %v2226
        %v2931 = vpop.f32.mrf.mxu0
        %v2932 = vadd.f32 0.0, %v2931
        %2933 = vdwg.mxu0
        %2934 = vmatpush.bf16.msra.mxu0 %v2679
        %2935 = vmatpush.bf16.msra.mxu0 %v2675
        %2936 = vmatpush.bf16.msra.mxu0 %v2671
        %2937 = vmatpush.bf16.msra.mxu0 %v2667
        %2938 = vmatpush.bf16.msra.mxu0 %v2663
        %2939 = vmatpush.bf16.msra.mxu0 %v2659
        %2940 = vmatpush.bf16.msra.mxu0 %v2655
        %2941 = vmatpush.bf16.msra.mxu0 %v2651
        %2942 = vmatmul.f32.gmra.mxu0 %v2227
        %v2943 = vpop.f32.mrf.mxu0
        %v2944 = vadd.f32 %v2932, %v2943
        %2945 = vdwg.mxu0
        %2946 = vmatpush.bf16.msra.mxu0 %v2711
        %2947 = vmatpush.bf16.msra.mxu0 %v2707
        %2948 = vmatpush.bf16.msra.mxu0 %v2703
        %2949 = vmatpush.bf16.msra.mxu0 %v2699
        %2950 = vmatpush.bf16.msra.mxu0 %v2695
        %2951 = vmatpush.bf16.msra.mxu0 %v2691
        %2952 = vmatpush.bf16.msra.mxu0 %v2687
        %2953 = vmatpush.bf16.msra.mxu0 %v2683
        %2954 = vmatmul.f32.gmra.mxu0 %v2228
        %v2955 = vpop.f32.mrf.mxu0
        %v2956 = vadd.f32 %v2944, %v2955
        %2957 = vdwg.mxu0
        %2958 = vmatpush.bf16.msra.mxu0 %v2743
        %2959 = vmatpush.bf16.msra.mxu0 %v2739
        %2960 = vmatpush.bf16.msra.mxu0 %v2735
        %2961 = vmatpush.bf16.msra.mxu0 %v2731
        %2962 = vmatpush.bf16.msra.mxu0 %v2727
        %2963 = vmatpush.bf16.msra.mxu0 %v2723
        %2964 = vmatpush.bf16.msra.mxu0 %v2719
        %2965 = vmatpush.bf16.msra.mxu0 %v2715
        %2966 = vmatmul.f32.gmra.mxu0 %v2229
        %v2967 = vpop.f32.mrf.mxu0
        %v2968 = vadd.f32 %v2956, %v2967
        %2969 = vdwg.mxu0
        %2970 = vmatpush.bf16.msra.mxu0 %v2648
        %2971 = vmatpush.bf16.msra.mxu0 %v2644
        %2972 = vmatpush.bf16.msra.mxu0 %v2640
        %2973 = vmatpush.bf16.msra.mxu0 %v2636
        %2974 = vmatpush.bf16.msra.mxu0 %v2632
        %2975 = vmatpush.bf16.msra.mxu0 %v2628
        %2976 = vmatpush.bf16.msra.mxu0 %v2624
        %2977 = vmatpush.bf16.msra.mxu0 %v2620
        %2978 = vmatmul.f32.gmra.mxu0 %v2226
        %v2979 = vpop.f32.mrf.mxu0
        %v2980 = vadd.f32 0.0, %v2979
        %2981 = vdwg.mxu0
        %2982 = vmatpush.bf16.msra.mxu0 %v2680
        %2983 = vmatpush.bf16.msra.mxu0 %v2676
        %2984 = vmatpush.bf16.msra.mxu0 %v2672
        %2985 = vmatpush.bf16.msra.mxu0 %v2668
        %2986 = vmatpush.bf16.msra.mxu0 %v2664
        %2987 = vmatpush.bf16.msra.mxu0 %v2660
        %2988 = vmatpush.bf16.msra.mxu0 %v2656
        %2989 = vmatpush.bf16.msra.mxu0 %v2652
        %2990 = vmatmul.f32.gmra.mxu0 %v2227
        %v2991 = vpop.f32.mrf.mxu0
        %v2992 = vadd.f32 %v2980, %v2991
        %2993 = vdwg.mxu0
        %2994 = vmatpush.bf16.msra.mxu0 %v2712
        %2995 = vmatpush.bf16.msra.mxu0 %v2708
        %2996 = vmatpush.bf16.msra.mxu0 %v2704
        %2997 = vmatpush.bf16.msra.mxu0 %v2700
        %2998 = vmatpush.bf16.msra.mxu0 %v2696
        %2999 = vmatpush.bf16.msra.mxu0 %v2692
        %3000 = vmatpush.bf16.msra.mxu0 %v2688
        %3001 = vmatpush.bf16.msra.mxu0 %v2684
        %3002 = vmatmul.f32.gmra.mxu0 %v2228
        %v3003 = vpop.f32.mrf.mxu0
        %v3004 = vadd.f32 %v2992, %v3003
        %3005 = vdwg.mxu0
        %3006 = vmatpush.bf16.msra.mxu0 %v2744
        %3007 = vmatpush.bf16.msra.mxu0 %v2740
        %3008 = vmatpush.bf16.msra.mxu0 %v2736
        %3009 = vmatpush.bf16.msra.mxu0 %v2732
        %3010 = vmatpush.bf16.msra.mxu0 %v2728
        %3011 = vmatpush.bf16.msra.mxu0 %v2724
        %3012 = vmatpush.bf16.msra.mxu0 %v2720
        %3013 = vmatpush.bf16.msra.mxu0 %v2716
        %3014 = vmatmul.f32.gmra.mxu0 %v2229
        %v3015 = vpop.f32.mrf.mxu0
        %v3016 = vadd.f32 %v3004, %v3015
        %3017 = vdwg.mxu0
        %3018 = vmatpush.bf16.msra.mxu0 %v2649
        %3019 = vmatpush.bf16.msra.mxu0 %v2645
        %3020 = vmatpush.bf16.msra.mxu0 %v2641
        %3021 = vmatpush.bf16.msra.mxu0 %v2637
        %3022 = vmatpush.bf16.msra.mxu0 %v2633
        %3023 = vmatpush.bf16.msra.mxu0 %v2629
        %3024 = vmatpush.bf16.msra.mxu0 %v2625
        %3025 = vmatpush.bf16.msra.mxu0 %v2621
        %3026 = vmatmul.f32.gmra.mxu0 %v2226
        %v3027 = vpop.f32.mrf.mxu0
        %v3028 = vadd.f32 0.0, %v3027
        %3029 = vdwg.mxu0
        %3030 = vmatpush.bf16.msra.mxu0 %v2681
        %3031 = vmatpush.bf16.msra.mxu0 %v2677
        %3032 = vmatpush.bf16.msra.mxu0 %v2673
        %3033 = vmatpush.bf16.msra.mxu0 %v2669
        %3034 = vmatpush.bf16.msra.mxu0 %v2665
        %3035 = vmatpush.bf16.msra.mxu0 %v2661
        %3036 = vmatpush.bf16.msra.mxu0 %v2657
        %3037 = vmatpush.bf16.msra.mxu0 %v2653
        %3038 = vmatmul.f32.gmra.mxu0 %v2227
        %v3039 = vpop.f32.mrf.mxu0
        %v3040 = vadd.f32 %v3028, %v3039
        %3041 = vdwg.mxu0
        %3042 = vmatpush.bf16.msra.mxu0 %v2713
        %3043 = vmatpush.bf16.msra.mxu0 %v2709
        %3044 = vmatpush.bf16.msra.mxu0 %v2705
        %3045 = vmatpush.bf16.msra.mxu0 %v2701
        %3046 = vmatpush.bf16.msra.mxu0 %v2697
        %3047 = vmatpush.bf16.msra.mxu0 %v2693
        %3048 = vmatpush.bf16.msra.mxu0 %v2689
        %3049 = vmatpush.bf16.msra.mxu0 %v2685
        %3050 = vmatmul.f32.gmra.mxu0 %v2228
        %v3051 = vpop.f32.mrf.mxu0
        %v3052 = vadd.f32 %v3040, %v3051
        %3053 = vdwg.mxu0
        %3054 = vmatpush.bf16.msra.mxu0 %v2745
        %3055 = vmatpush.bf16.msra.mxu0 %v2741
        %3056 = vmatpush.bf16.msra.mxu0 %v2737
        %3057 = vmatpush.bf16.msra.mxu0 %v2733
        %3058 = vmatpush.bf16.msra.mxu0 %v2729
        %3059 = vmatpush.bf16.msra.mxu0 %v2725
        %3060 = vmatpush.bf16.msra.mxu0 %v2721
        %3061 = vmatpush.bf16.msra.mxu0 %v2717
        %3062 = vmatmul.f32.gmra.mxu0 %v2229
        %v3063 = vpop.f32.mrf.mxu0
        %v3064 = vadd.f32 %v3052, %v3063
        %3065 = vdwg.mxu0
        %3068 = vst [vmem:[#allocation1] ss:$2 sm:$0xff] %v1956
        %s3069 = scalar_lea.vmem [#allocation1], 16
        %3070 = vst [vmem:[%s3069] ss:$2 sm:$0xff] %v1957
        %v3071 = vld.sshfl [vmem:[#allocation1] sm:$0xff pattern:$0x75316420]
        %v3072 = vld.sshfl [vmem:[#allocation1 + $0x8] sm:$0xff pattern:$0x75316420]
        %v3073 = vld.sshfl [vmem:[#allocation1 + $0x10] sm:$0xff pattern:$0x75316420]
        %v3074 = vld.sshfl [vmem:[#allocation1 + $0x18] sm:$0xff pattern:$0x75316420]
        %v3207 = vunpack.c.l.b16 %v1958
        %v3208 = vunpack.c.h.b16 %v1958
        %v3209 = vunpack.c.l.b16 %v1959
        %v3210 = vunpack.c.h.b16 %v1959
        %v3211 = vunpack.c.l.b16 %v1960
        %v3212 = vunpack.c.h.b16 %v1960
        %v3213 = vunpack.c.l.b16 %v1961
        %v3214 = vunpack.c.h.b16 %v1961
        %v3215 = vunpack.c.l.b16 %v1962
        %v3216 = vunpack.c.h.b16 %v1962
        %v3217 = vunpack.c.l.b16 %v1963
        %v3218 = vunpack.c.h.b16 %v1963
        %v3219 = vunpack.c.l.b16 %v1964
        %v3220 = vunpack.c.h.b16 %v1964
        %v3221 = vunpack.c.l.b16 %v1965
        %v3222 = vunpack.c.h.b16 %v1965
        %v3223 = vunpack.c.l.b16 %v1966
        %v3224 = vunpack.c.h.b16 %v1966
        %v3225 = vunpack.c.l.b16 %v1967
        %v3226 = vunpack.c.h.b16 %v1967
        %v3227 = vunpack.c.l.b16 %v1968
        %v3228 = vunpack.c.h.b16 %v1968
        %v3229 = vunpack.c.l.b16 %v1969
        %v3230 = vunpack.c.h.b16 %v1969
        %v3231 = vunpack.c.l.b16 %v1970
        %v3232 = vunpack.c.h.b16 %v1970
        %v3233 = vunpack.c.l.b16 %v1971
        %v3234 = vunpack.c.h.b16 %v1971
        %v3235 = vunpack.c.l.b16 %v1972
        %v3236 = vunpack.c.h.b16 %v1972
        %v3237 = vunpack.c.l.b16 %v1973
        %v3238 = vunpack.c.h.b16 %v1973
        %v3239 = vunpack.c.l.b16 %v1974
        %v3240 = vunpack.c.h.b16 %v1974
        %v3241 = vunpack.c.l.b16 %v1975
        %v3242 = vunpack.c.h.b16 %v1975
        %v3243 = vunpack.c.l.b16 %v1976
        %v3244 = vunpack.c.h.b16 %v1976
        %v3245 = vunpack.c.l.b16 %v1977
        %v3246 = vunpack.c.h.b16 %v1977
        %v3247 = vunpack.c.l.b16 %v1978
        %v3248 = vunpack.c.h.b16 %v1978
        %v3249 = vunpack.c.l.b16 %v1979
        %v3250 = vunpack.c.h.b16 %v1979
        %v3251 = vunpack.c.l.b16 %v1980
        %v3252 = vunpack.c.h.b16 %v1980
        %v3253 = vunpack.c.l.b16 %v1981
        %v3254 = vunpack.c.h.b16 %v1981
        %v3255 = vunpack.c.l.b16 %v1982
        %v3256 = vunpack.c.h.b16 %v1982
        %v3257 = vunpack.c.l.b16 %v1983
        %v3258 = vunpack.c.h.b16 %v1983
        %v3259 = vunpack.c.l.b16 %v1984
        %v3260 = vunpack.c.h.b16 %v1984
        %v3261 = vunpack.c.l.b16 %v1985
        %v3262 = vunpack.c.h.b16 %v1985
        %v3263 = vunpack.c.l.b16 %v1986
        %v3264 = vunpack.c.h.b16 %v1986
        %v3265 = vunpack.c.l.b16 %v1987
        %v3266 = vunpack.c.h.b16 %v1987
        %v3267 = vunpack.c.l.b16 %v1988
        %v3268 = vunpack.c.h.b16 %v1988
        %v3269 = vunpack.c.l.b16 %v1989
        %v3270 = vunpack.c.h.b16 %v1989
        %v3271 = vunpack.c.l.b16 %v1990
        %v3272 = vunpack.c.h.b16 %v1990
        %v3273 = vunpack.c.l.b16 %v1991
        %v3274 = vunpack.c.h.b16 %v1991
        %v3275 = vunpack.c.l.b16 %v1992
        %v3276 = vunpack.c.h.b16 %v1992
        %v3277 = vunpack.c.l.b16 %v1993
        %v3278 = vunpack.c.h.b16 %v1993
        %v3279 = vunpack.c.l.b16 %v1994
        %v3280 = vunpack.c.h.b16 %v1994
        %v3281 = vunpack.c.l.b16 %v1995
        %v3282 = vunpack.c.h.b16 %v1995
        %v3283 = vunpack.c.l.b16 %v1996
        %v3284 = vunpack.c.h.b16 %v1996
        %v3285 = vunpack.c.l.b16 %v1997
        %v3286 = vunpack.c.h.b16 %v1997
        %v3287 = vunpack.c.l.b16 %v1998
        %v3288 = vunpack.c.h.b16 %v1998
        %v3289 = vunpack.c.l.b16 %v1999
        %v3290 = vunpack.c.h.b16 %v1999
        %v3291 = vunpack.c.l.b16 %v2000
        %v3292 = vunpack.c.h.b16 %v2000
        %v3293 = vunpack.c.l.b16 %v2001
        %v3294 = vunpack.c.h.b16 %v2001
        %v3295 = vunpack.c.l.b16 %v2002
        %v3296 = vunpack.c.h.b16 %v2002
        %v3297 = vunpack.c.l.b16 %v2003
        %v3298 = vunpack.c.h.b16 %v2003
        %v3299 = vunpack.c.l.b16 %v2004
        %v3300 = vunpack.c.h.b16 %v2004
        %v3301 = vunpack.c.l.b16 %v2005
        %v3302 = vunpack.c.h.b16 %v2005
        %v3303 = vunpack.c.l.b16 %v2006
        %v3304 = vunpack.c.h.b16 %v2006
        %v3305 = vunpack.c.l.b16 %v2007
        %v3306 = vunpack.c.h.b16 %v2007
        %v3307 = vunpack.c.l.b16 %v2008
        %v3308 = vunpack.c.h.b16 %v2008
        %v3309 = vunpack.c.l.b16 %v2009
        %v3310 = vunpack.c.h.b16 %v2009
        %v3311 = vunpack.c.l.b16 %v2010
        %v3312 = vunpack.c.h.b16 %v2010
        %v3313 = vunpack.c.l.b16 %v2011
        %v3314 = vunpack.c.h.b16 %v2011
        %v3315 = vunpack.c.l.b16 %v2012
        %v3316 = vunpack.c.h.b16 %v2012
        %v3317 = vunpack.c.l.b16 %v2013
        %v3318 = vunpack.c.h.b16 %v2013
        %v3319 = vunpack.c.l.b16 %v2014
        %v3320 = vunpack.c.h.b16 %v2014
        %v3321 = vunpack.c.l.b16 %v2015
        %v3322 = vunpack.c.h.b16 %v2015
        %v3323 = vunpack.c.l.b16 %v2016
        %v3324 = vunpack.c.h.b16 %v2016
        %v3325 = vunpack.c.l.b16 %v2017
        %v3326 = vunpack.c.h.b16 %v2017
        %v3327 = vunpack.c.l.b16 %v2018
        %v3328 = vunpack.c.h.b16 %v2018
        %v3329 = vunpack.c.l.b16 %v2019
        %v3330 = vunpack.c.h.b16 %v2019
        %v3331 = vunpack.c.l.b16 %v2020
        %v3332 = vunpack.c.h.b16 %v2020
        %v3333 = vunpack.c.l.b16 %v2021
        %v3334 = vunpack.c.h.b16 %v2021
        %v3335 = vunpack.c.l.b16 %v2022
        %v3336 = vunpack.c.h.b16 %v2022
        %v3337 = vunpack.c.l.b16 %v2023
        %v3338 = vunpack.c.h.b16 %v2023
        %v3339 = vunpack.c.l.b16 %v2024
        %v3340 = vunpack.c.h.b16 %v2024
        %v3341 = vunpack.c.l.b16 %v2025
        %v3342 = vunpack.c.h.b16 %v2025
        %v3343 = vunpack.c.l.b16 %v2026
        %v3344 = vunpack.c.h.b16 %v2026
        %v3345 = vunpack.c.l.b16 %v2027
        %v3346 = vunpack.c.h.b16 %v2027
        %v3347 = vunpack.c.l.b16 %v2028
        %v3348 = vunpack.c.h.b16 %v2028
        %v3349 = vunpack.c.l.b16 %v2029
        %v3350 = vunpack.c.h.b16 %v2029
        %v3351 = vunpack.c.l.b16 %v2030
        %v3352 = vunpack.c.h.b16 %v2030
        %v3353 = vunpack.c.l.b16 %v2031
        %v3354 = vunpack.c.h.b16 %v2031
        %v3355 = vunpack.c.l.b16 %v2032
        %v3356 = vunpack.c.h.b16 %v2032
        %v3357 = vunpack.c.l.b16 %v2033
        %v3358 = vunpack.c.h.b16 %v2033
        %v3359 = vunpack.c.l.b16 %v2034
        %v3360 = vunpack.c.h.b16 %v2034
        %v3361 = vunpack.c.l.b16 %v2035
        %v3362 = vunpack.c.h.b16 %v2035
        %v3363 = vunpack.c.l.b16 %v2036
        %v3364 = vunpack.c.h.b16 %v2036
        %v3365 = vunpack.c.l.b16 %v2037
        %v3366 = vunpack.c.h.b16 %v2037
        %v3367 = vunpack.c.l.b16 %v2038
        %v3368 = vunpack.c.h.b16 %v2038
        %v3369 = vunpack.c.l.b16 %v2039
        %v3370 = vunpack.c.h.b16 %v2039
        %v3371 = vunpack.c.l.b16 %v2040
        %v3372 = vunpack.c.h.b16 %v2040
        %v3373 = vunpack.c.l.b16 %v2041
        %v3374 = vunpack.c.h.b16 %v2041
        %v3375 = vunpack.c.l.b16 %v2042
        %v3376 = vunpack.c.h.b16 %v2042
        %v3377 = vunpack.c.l.b16 %v2043
        %v3378 = vunpack.c.h.b16 %v2043
        %v3379 = vunpack.c.l.b16 %v2044
        %v3380 = vunpack.c.h.b16 %v2044
        %v3381 = vunpack.c.l.b16 %v2045
        %v3382 = vunpack.c.h.b16 %v2045
        %v3383 = vunpack.c.l.b16 %v2046
        %v3384 = vunpack.c.h.b16 %v2046
        %v3385 = vunpack.c.l.b16 %v2047
        %v3386 = vunpack.c.h.b16 %v2047
        %v3387 = vunpack.c.l.b16 %v2048
        %v3388 = vunpack.c.h.b16 %v2048
        %v3389 = vunpack.c.l.b16 %v2049
        %v3390 = vunpack.c.h.b16 %v2049
        %v3391 = vunpack.c.l.b16 %v2050
        %v3392 = vunpack.c.h.b16 %v2050
        %v3393 = vunpack.c.l.b16 %v2051
        %v3394 = vunpack.c.h.b16 %v2051
        %v3395 = vunpack.c.l.b16 %v2052
        %v3396 = vunpack.c.h.b16 %v2052
        %v3397 = vunpack.c.l.b16 %v2053
        %v3398 = vunpack.c.h.b16 %v2053
        %v3399 = vunpack.c.l.b16 %v2054
        %v3400 = vunpack.c.h.b16 %v2054
        %v3401 = vunpack.c.l.b16 %v2055
        %v3402 = vunpack.c.h.b16 %v2055
        %v3403 = vunpack.c.l.b16 %v2056
        %v3404 = vunpack.c.h.b16 %v2056
        %v3405 = vunpack.c.l.b16 %v2057
        %v3406 = vunpack.c.h.b16 %v2057
        %v3407 = vunpack.c.l.b16 %v2058
        %v3408 = vunpack.c.h.b16 %v2058
        %v3409 = vunpack.c.l.b16 %v2059
        %v3410 = vunpack.c.h.b16 %v2059
        %v3411 = vunpack.c.l.b16 %v2060
        %v3412 = vunpack.c.h.b16 %v2060
        %v3413 = vunpack.c.l.b16 %v2061
        %v3414 = vunpack.c.h.b16 %v2061
        %v3415 = vunpack.c.l.b16 %v2062
        %v3416 = vunpack.c.h.b16 %v2062
        %v3417 = vunpack.c.l.b16 %v2063
        %v3418 = vunpack.c.h.b16 %v2063
        %v3419 = vunpack.c.l.b16 %v2064
        %v3420 = vunpack.c.h.b16 %v2064
        %v3421 = vunpack.c.l.b16 %v2065
        %v3422 = vunpack.c.h.b16 %v2065
        %v3423 = vunpack.c.l.b16 %v2066
        %v3424 = vunpack.c.h.b16 %v2066
        %v3425 = vunpack.c.l.b16 %v2067
        %v3426 = vunpack.c.h.b16 %v2067
        %v3427 = vunpack.c.l.b16 %v2068
        %v3428 = vunpack.c.h.b16 %v2068
        %v3429 = vunpack.c.l.b16 %v2069
        %v3430 = vunpack.c.h.b16 %v2069
        %v3431 = vunpack.c.l.b16 %v2070
        %v3432 = vunpack.c.h.b16 %v2070
        %v3433 = vunpack.c.l.b16 %v2071
        %v3434 = vunpack.c.h.b16 %v2071
        %v3435 = vunpack.c.l.b16 %v2072
        %v3436 = vunpack.c.h.b16 %v2072
        %v3437 = vunpack.c.l.b16 %v2073
        %v3438 = vunpack.c.h.b16 %v2073
        %v3439 = vunpack.c.l.b16 %v2074
        %v3440 = vunpack.c.h.b16 %v2074
        %v3441 = vunpack.c.l.b16 %v2075
        %v3442 = vunpack.c.h.b16 %v2075
        %v3443 = vunpack.c.l.b16 %v2076
        %v3444 = vunpack.c.h.b16 %v2076
        %v3445 = vunpack.c.l.b16 %v2077
        %v3446 = vunpack.c.h.b16 %v2077
        %v3447 = vunpack.c.l.b16 %v2078
        %v3448 = vunpack.c.h.b16 %v2078
        %v3449 = vunpack.c.l.b16 %v2079
        %v3450 = vunpack.c.h.b16 %v2079
        %v3451 = vunpack.c.l.b16 %v2080
        %v3452 = vunpack.c.h.b16 %v2080
        %v3453 = vunpack.c.l.b16 %v2081
        %v3454 = vunpack.c.h.b16 %v2081
        %v3455 = vunpack.c.l.b16 %v2082
        %v3456 = vunpack.c.h.b16 %v2082
        %v3457 = vunpack.c.l.b16 %v2083
        %v3458 = vunpack.c.h.b16 %v2083
        %v3459 = vunpack.c.l.b16 %v2084
        %v3460 = vunpack.c.h.b16 %v2084
        %v3461 = vunpack.c.l.b16 %v2085
        %v3462 = vunpack.c.h.b16 %v2085
        %v3463 = vpack.c.b16 %v3211, %v3207
        %v3464 = vpack.c.b16 %v3212, %v3208
        %v3465 = vpack.c.b16 %v3213, %v3209
        %v3466 = vpack.c.b16 %v3214, %v3210
        %v3467 = vpack.c.b16 %v3219, %v3215
        %v3468 = vpack.c.b16 %v3220, %v3216
        %v3469 = vpack.c.b16 %v3221, %v3217
        %v3470 = vpack.c.b16 %v3222, %v3218
        %v3471 = vpack.c.b16 %v3227, %v3223
        %v3472 = vpack.c.b16 %v3228, %v3224
        %v3473 = vpack.c.b16 %v3229, %v3225
        %v3474 = vpack.c.b16 %v3230, %v3226
        %v3475 = vpack.c.b16 %v3235, %v3231
        %v3476 = vpack.c.b16 %v3236, %v3232
        %v3477 = vpack.c.b16 %v3237, %v3233
        %v3478 = vpack.c.b16 %v3238, %v3234
        %v3479 = vpack.c.b16 %v3243, %v3239
        %v3480 = vpack.c.b16 %v3244, %v3240
        %v3481 = vpack.c.b16 %v3245, %v3241
        %v3482 = vpack.c.b16 %v3246, %v3242
        %v3483 = vpack.c.b16 %v3251, %v3247
        %v3484 = vpack.c.b16 %v3252, %v3248
        %v3485 = vpack.c.b16 %v3253, %v3249
        %v3486 = vpack.c.b16 %v3254, %v3250
        %v3487 = vpack.c.b16 %v3259, %v3255
        %v3488 = vpack.c.b16 %v3260, %v3256
        %v3489 = vpack.c.b16 %v3261, %v3257
        %v3490 = vpack.c.b16 %v3262, %v3258
        %v3491 = vpack.c.b16 %v3267, %v3263
        %v3492 = vpack.c.b16 %v3268, %v3264
        %v3493 = vpack.c.b16 %v3269, %v3265
        %v3494 = vpack.c.b16 %v3270, %v3266
        %v3495 = vpack.c.b16 %v3275, %v3271
        %v3496 = vpack.c.b16 %v3276, %v3272
        %v3497 = vpack.c.b16 %v3277, %v3273
        %v3498 = vpack.c.b16 %v3278, %v3274
        %v3499 = vpack.c.b16 %v3283, %v3279
        %v3500 = vpack.c.b16 %v3284, %v3280
        %v3501 = vpack.c.b16 %v3285, %v3281
        %v3502 = vpack.c.b16 %v3286, %v3282
        %v3503 = vpack.c.b16 %v3291, %v3287
        %v3504 = vpack.c.b16 %v3292, %v3288
        %v3505 = vpack.c.b16 %v3293, %v3289
        %v3506 = vpack.c.b16 %v3294, %v3290
        %v3507 = vpack.c.b16 %v3299, %v3295
        %v3508 = vpack.c.b16 %v3300, %v3296
        %v3509 = vpack.c.b16 %v3301, %v3297
        %v3510 = vpack.c.b16 %v3302, %v3298
        %v3511 = vpack.c.b16 %v3307, %v3303
        %v3512 = vpack.c.b16 %v3308, %v3304
        %v3513 = vpack.c.b16 %v3309, %v3305
        %v3514 = vpack.c.b16 %v3310, %v3306
        %v3515 = vpack.c.b16 %v3315, %v3311
        %v3516 = vpack.c.b16 %v3316, %v3312
        %v3517 = vpack.c.b16 %v3317, %v3313
        %v3518 = vpack.c.b16 %v3318, %v3314
        %v3519 = vpack.c.b16 %v3323, %v3319
        %v3520 = vpack.c.b16 %v3324, %v3320
        %v3521 = vpack.c.b16 %v3325, %v3321
        %v3522 = vpack.c.b16 %v3326, %v3322
        %v3523 = vpack.c.b16 %v3331, %v3327
        %v3524 = vpack.c.b16 %v3332, %v3328
        %v3525 = vpack.c.b16 %v3333, %v3329
        %v3526 = vpack.c.b16 %v3334, %v3330
        %v3527 = vpack.c.b16 %v3339, %v3335
        %v3528 = vpack.c.b16 %v3340, %v3336
        %v3529 = vpack.c.b16 %v3341, %v3337
        %v3530 = vpack.c.b16 %v3342, %v3338
        %v3531 = vpack.c.b16 %v3347, %v3343
        %v3532 = vpack.c.b16 %v3348, %v3344
        %v3533 = vpack.c.b16 %v3349, %v3345
        %v3534 = vpack.c.b16 %v3350, %v3346
        %v3535 = vpack.c.b16 %v3355, %v3351
        %v3536 = vpack.c.b16 %v3356, %v3352
        %v3537 = vpack.c.b16 %v3357, %v3353
        %v3538 = vpack.c.b16 %v3358, %v3354
        %v3539 = vpack.c.b16 %v3363, %v3359
        %v3540 = vpack.c.b16 %v3364, %v3360
        %v3541 = vpack.c.b16 %v3365, %v3361
        %v3542 = vpack.c.b16 %v3366, %v3362
        %v3543 = vpack.c.b16 %v3371, %v3367
        %v3544 = vpack.c.b16 %v3372, %v3368
        %v3545 = vpack.c.b16 %v3373, %v3369
        %v3546 = vpack.c.b16 %v3374, %v3370
        %v3547 = vpack.c.b16 %v3379, %v3375
        %v3548 = vpack.c.b16 %v3380, %v3376
        %v3549 = vpack.c.b16 %v3381, %v3377
        %v3550 = vpack.c.b16 %v3382, %v3378
        %v3551 = vpack.c.b16 %v3387, %v3383
        %v3552 = vpack.c.b16 %v3388, %v3384
        %v3553 = vpack.c.b16 %v3389, %v3385
        %v3554 = vpack.c.b16 %v3390, %v3386
        %v3555 = vpack.c.b16 %v3395, %v3391
        %v3556 = vpack.c.b16 %v3396, %v3392
        %v3557 = vpack.c.b16 %v3397, %v3393
        %v3558 = vpack.c.b16 %v3398, %v3394
        %v3559 = vpack.c.b16 %v3403, %v3399
        %v3560 = vpack.c.b16 %v3404, %v3400
        %v3561 = vpack.c.b16 %v3405, %v3401
        %v3562 = vpack.c.b16 %v3406, %v3402
        %v3563 = vpack.c.b16 %v3411, %v3407
        %v3564 = vpack.c.b16 %v3412, %v3408
        %v3565 = vpack.c.b16 %v3413, %v3409
        %v3566 = vpack.c.b16 %v3414, %v3410
        %v3567 = vpack.c.b16 %v3419, %v3415
        %v3568 = vpack.c.b16 %v3420, %v3416
        %v3569 = vpack.c.b16 %v3421, %v3417
        %v3570 = vpack.c.b16 %v3422, %v3418
        %v3571 = vpack.c.b16 %v3427, %v3423
        %v3572 = vpack.c.b16 %v3428, %v3424
        %v3573 = vpack.c.b16 %v3429, %v3425
        %v3574 = vpack.c.b16 %v3430, %v3426
        %v3575 = vpack.c.b16 %v3435, %v3431
        %v3576 = vpack.c.b16 %v3436, %v3432
        %v3577 = vpack.c.b16 %v3437, %v3433
        %v3578 = vpack.c.b16 %v3438, %v3434
        %v3579 = vpack.c.b16 %v3443, %v3439
        %v3580 = vpack.c.b16 %v3444, %v3440
        %v3581 = vpack.c.b16 %v3445, %v3441
        %v3582 = vpack.c.b16 %v3446, %v3442
        %v3583 = vpack.c.b16 %v3451, %v3447
        %v3584 = vpack.c.b16 %v3452, %v3448
        %v3585 = vpack.c.b16 %v3453, %v3449
        %v3586 = vpack.c.b16 %v3454, %v3450
        %v3587 = vpack.c.b16 %v3459, %v3455
        %v3588 = vpack.c.b16 %v3460, %v3456
        %v3589 = vpack.c.b16 %v3461, %v3457
        %v3590 = vpack.c.b16 %v3462, %v3458
        %3719 = vmatpush.bf16.msra.mxu0 %v3491
        %3720 = vmatpush.bf16.msra.mxu0 %v3487
        %3721 = vmatpush.bf16.msra.mxu0 %v3483
        %3722 = vmatpush.bf16.msra.mxu0 %v3479
        %3723 = vmatpush.bf16.msra.mxu0 %v3475
        %3724 = vmatpush.bf16.msra.mxu0 %v3471
        %3725 = vmatpush.bf16.msra.mxu0 %v3467
        %3726 = vmatpush.bf16.msra.mxu0 %v3463
        %3727 = vmatmul.f32.gmra.mxu0 %v3071
        %v3728 = vpop.f32.mrf.mxu0
        %v3729 = vadd.f32 %v2920, %v3728
        %3730 = vdwg.mxu0
        %3731 = vmatpush.bf16.msra.mxu0 %v3523
        %3732 = vmatpush.bf16.msra.mxu0 %v3519
        %3733 = vmatpush.bf16.msra.mxu0 %v3515
        %3734 = vmatpush.bf16.msra.mxu0 %v3511
        %3735 = vmatpush.bf16.msra.mxu0 %v3507
        %3736 = vmatpush.bf16.msra.mxu0 %v3503
        %3737 = vmatpush.bf16.msra.mxu0 %v3499
        %3738 = vmatpush.bf16.msra.mxu0 %v3495
        %3739 = vmatmul.f32.gmra.mxu0 %v3072
        %v3740 = vpop.f32.mrf.mxu0
        %v3741 = vadd.f32 %v3729, %v3740
        %3742 = vdwg.mxu0
        %3743 = vmatpush.bf16.msra.mxu0 %v3555
        %3744 = vmatpush.bf16.msra.mxu0 %v3551
        %3745 = vmatpush.bf16.msra.mxu0 %v3547
        %3746 = vmatpush.bf16.msra.mxu0 %v3543
        %3747 = vmatpush.bf16.msra.mxu0 %v3539
        %3748 = vmatpush.bf16.msra.mxu0 %v3535
        %3749 = vmatpush.bf16.msra.mxu0 %v3531
        %3750 = vmatpush.bf16.msra.mxu0 %v3527
        %3751 = vmatmul.f32.gmra.mxu0 %v3073
        %v3752 = vpop.f32.mrf.mxu0
        %v3753 = vadd.f32 %v3741, %v3752
        %3754 = vdwg.mxu0
        %3755 = vmatpush.bf16.msra.mxu0 %v3587
        %3756 = vmatpush.bf16.msra.mxu0 %v3583
        %3757 = vmatpush.bf16.msra.mxu0 %v3579
        %3758 = vmatpush.bf16.msra.mxu0 %v3575
        %3759 = vmatpush.bf16.msra.mxu0 %v3571
        %3760 = vmatpush.bf16.msra.mxu0 %v3567
        %3761 = vmatpush.bf16.msra.mxu0 %v3563
        %3762 = vmatpush.bf16.msra.mxu0 %v3559
        %3763 = vmatmul.f32.gmra.mxu0 %v3074
        %v3764 = vpop.f32.mrf.mxu0
        %v3765 = vadd.f32 %v3753, %v3764
        %3766 = vdwg.mxu0
        %3767 = vmatpush.bf16.msra.mxu0 %v3492
        %3768 = vmatpush.bf16.msra.mxu0 %v3488
        %3769 = vmatpush.bf16.msra.mxu0 %v3484
        %3770 = vmatpush.bf16.msra.mxu0 %v3480
        %3771 = vmatpush.bf16.msra.mxu0 %v3476
        %3772 = vmatpush.bf16.msra.mxu0 %v3472
        %3773 = vmatpush.bf16.msra.mxu0 %v3468
        %3774 = vmatpush.bf16.msra.mxu0 %v3464
        %3775 = vmatmul.f32.gmra.mxu0 %v3071
        %v3776 = vpop.f32.mrf.mxu0
        %v3777 = vadd.f32 %v2968, %v3776
        %3778 = vdwg.mxu0
        %3779 = vmatpush.bf16.msra.mxu0 %v3524
        %3780 = vmatpush.bf16.msra.mxu0 %v3520
        %3781 = vmatpush.bf16.msra.mxu0 %v3516
        %3782 = vmatpush.bf16.msra.mxu0 %v3512
        %3783 = vmatpush.bf16.msra.mxu0 %v3508
        %3784 = vmatpush.bf16.msra.mxu0 %v3504
        %3785 = vmatpush.bf16.msra.mxu0 %v3500
        %3786 = vmatpush.bf16.msra.mxu0 %v3496
        %3787 = vmatmul.f32.gmra.mxu0 %v3072
        %v3788 = vpop.f32.mrf.mxu0
        %v3789 = vadd.f32 %v3777, %v3788
        %3790 = vdwg.mxu0
        %3791 = vmatpush.bf16.msra.mxu0 %v3556
        %3792 = vmatpush.bf16.msra.mxu0 %v3552
        %3793 = vmatpush.bf16.msra.mxu0 %v3548
        %3794 = vmatpush.bf16.msra.mxu0 %v3544
        %3795 = vmatpush.bf16.msra.mxu0 %v3540
        %3796 = vmatpush.bf16.msra.mxu0 %v3536
        %3797 = vmatpush.bf16.msra.mxu0 %v3532
        %3798 = vmatpush.bf16.msra.mxu0 %v3528
        %3799 = vmatmul.f32.gmra.mxu0 %v3073
        %v3800 = vpop.f32.mrf.mxu0
        %v3801 = vadd.f32 %v3789, %v3800
        %3802 = vdwg.mxu0
        %3803 = vmatpush.bf16.msra.mxu0 %v3588
        %3804 = vmatpush.bf16.msra.mxu0 %v3584
        %3805 = vmatpush.bf16.msra.mxu0 %v3580
        %3806 = vmatpush.bf16.msra.mxu0 %v3576
        %3807 = vmatpush.bf16.msra.mxu0 %v3572
        %3808 = vmatpush.bf16.msra.mxu0 %v3568
        %3809 = vmatpush.bf16.msra.mxu0 %v3564
        %3810 = vmatpush.bf16.msra.mxu0 %v3560
        %3811 = vmatmul.f32.gmra.mxu0 %v3074
        %v3812 = vpop.f32.mrf.mxu0
        %v3813 = vadd.f32 %v3801, %v3812
        %3814 = vdwg.mxu0
        %3815 = vmatpush.bf16.msra.mxu0 %v3493
        %3816 = vmatpush.bf16.msra.mxu0 %v3489
        %3817 = vmatpush.bf16.msra.mxu0 %v3485
        %3818 = vmatpush.bf16.msra.mxu0 %v3481
        %3819 = vmatpush.bf16.msra.mxu0 %v3477
        %3820 = vmatpush.bf16.msra.mxu0 %v3473
        %3821 = vmatpush.bf16.msra.mxu0 %v3469
        %3822 = vmatpush.bf16.msra.mxu0 %v3465
        %3823 = vmatmul.f32.gmra.mxu0 %v3071
        %v3824 = vpop.f32.mrf.mxu0
        %v3825 = vadd.f32 %v3016, %v3824
        %3826 = vdwg.mxu0
        %3827 = vmatpush.bf16.msra.mxu0 %v3525
        %3828 = vmatpush.bf16.msra.mxu0 %v3521
        %3829 = vmatpush.bf16.msra.mxu0 %v3517
        %3830 = vmatpush.bf16.msra.mxu0 %v3513
        %3831 = vmatpush.bf16.msra.mxu0 %v3509
        %3832 = vmatpush.bf16.msra.mxu0 %v3505
        %3833 = vmatpush.bf16.msra.mxu0 %v3501
        %3834 = vmatpush.bf16.msra.mxu0 %v3497
        %3835 = vmatmul.f32.gmra.mxu0 %v3072
        %v3836 = vpop.f32.mrf.mxu0
        %v3837 = vadd.f32 %v3825, %v3836
        %3838 = vdwg.mxu0
        %3839 = vmatpush.bf16.msra.mxu0 %v3557
        %3840 = vmatpush.bf16.msra.mxu0 %v3553
        %3841 = vmatpush.bf16.msra.mxu0 %v3549
        %3842 = vmatpush.bf16.msra.mxu0 %v3545
        %3843 = vmatpush.bf16.msra.mxu0 %v3541
        %3844 = vmatpush.bf16.msra.mxu0 %v3537
        %3845 = vmatpush.bf16.msra.mxu0 %v3533
        %3846 = vmatpush.bf16.msra.mxu0 %v3529
        %3847 = vmatmul.f32.gmra.mxu0 %v3073
        %v3848 = vpop.f32.mrf.mxu0
        %v3849 = vadd.f32 %v3837, %v3848
        %3850 = vdwg.mxu0
        %3851 = vmatpush.bf16.msra.mxu0 %v3589
        %3852 = vmatpush.bf16.msra.mxu0 %v3585
        %3853 = vmatpush.bf16.msra.mxu0 %v3581
        %3854 = vmatpush.bf16.msra.mxu0 %v3577
        %3855 = vmatpush.bf16.msra.mxu0 %v3573
        %3856 = vmatpush.bf16.msra.mxu0 %v3569
        %3857 = vmatpush.bf16.msra.mxu0 %v3565
        %3858 = vmatpush.bf16.msra.mxu0 %v3561
        %3859 = vmatmul.f32.gmra.mxu0 %v3074
        %v3860 = vpop.f32.mrf.mxu0
        %v3861 = vadd.f32 %v3849, %v3860
        %3862 = vdwg.mxu0
        %3863 = vmatpush.bf16.msra.mxu0 %v3494
        %3864 = vmatpush.bf16.msra.mxu0 %v3490
        %3865 = vmatpush.bf16.msra.mxu0 %v3486
        %3866 = vmatpush.bf16.msra.mxu0 %v3482
        %3867 = vmatpush.bf16.msra.mxu0 %v3478
        %3868 = vmatpush.bf16.msra.mxu0 %v3474
        %3869 = vmatpush.bf16.msra.mxu0 %v3470
        %3870 = vmatpush.bf16.msra.mxu0 %v3466
        %3871 = vmatmul.f32.gmra.mxu0 %v3071
        %v3872 = vpop.f32.mrf.mxu0
        %v3873 = vadd.f32 %v3064, %v3872
        %3874 = vdwg.mxu0
        %3875 = vmatpush.bf16.msra.mxu0 %v3526
        %3876 = vmatpush.bf16.msra.mxu0 %v3522
        %3877 = vmatpush.bf16.msra.mxu0 %v3518
        %3878 = vmatpush.bf16.msra.mxu0 %v3514
        %3879 = vmatpush.bf16.msra.mxu0 %v3510
        %3880 = vmatpush.bf16.msra.mxu0 %v3506
        %3881 = vmatpush.bf16.msra.mxu0 %v3502
        %3882 = vmatpush.bf16.msra.mxu0 %v3498
        %3883 = vmatmul.f32.gmra.mxu0 %v3072
        %v3884 = vpop.f32.mrf.mxu0
        %v3885 = vadd.f32 %v3873, %v3884
        %3886 = vdwg.mxu0
        %3887 = vmatpush.bf16.msra.mxu0 %v3558
        %3888 = vmatpush.bf16.msra.mxu0 %v3554
        %3889 = vmatpush.bf16.msra.mxu0 %v3550
        %3890 = vmatpush.bf16.msra.mxu0 %v3546
        %3891 = vmatpush.bf16.msra.mxu0 %v3542
        %3892 = vmatpush.bf16.msra.mxu0 %v3538
        %3893 = vmatpush.bf16.msra.mxu0 %v3534
        %3894 = vmatpush.bf16.msra.mxu0 %v3530
        %3895 = vmatmul.f32.gmra.mxu0 %v3073
        %v3896 = vpop.f32.mrf.mxu0
        %v3897 = vadd.f32 %v3885, %v3896
        %3898 = vdwg.mxu0
        %3899 = vmatpush.bf16.msra.mxu0 %v3590
        %3900 = vmatpush.bf16.msra.mxu0 %v3586
        %3901 = vmatpush.bf16.msra.mxu0 %v3582
        %3902 = vmatpush.bf16.msra.mxu0 %v3578
        %3903 = vmatpush.bf16.msra.mxu0 %v3574
        %3904 = vmatpush.bf16.msra.mxu0 %v3570
        %3905 = vmatpush.bf16.msra.mxu0 %v3566
        %3906 = vmatpush.bf16.msra.mxu0 %v3562
        %3907 = vmatmul.f32.gmra.mxu0 %v3074
        %v3908 = vpop.f32.mrf.mxu0
        %v3909 = vadd.f32 %v3897, %v3908
        %3910 = vdwg.mxu0
        %v3911 = vld [vmem:[#allocation2] sm:$0xcc]
        %v3912 = vld [vmem:[#allocation2 + $0x8] sm:$0xcc]
        %s3913 = scalar_lea.vmem [#allocation7], 2048
        %v3914 = vld [vmem:[%s3913] sm:$0xff]
        %v3915 = vld [vmem:[%s3913 + $0x8] sm:$0xff]
        %v3916 = vld [vmem:[%s3913 + $0x10] sm:$0xff]
        %v3917 = vld [vmem:[%s3913 + $0x18] sm:$0xff]
        %v3918 = vld [vmem:[%s3913 + $0x20] sm:$0xff]
        %v3919 = vld [vmem:[%s3913 + $0x28] sm:$0xff]
        %v3920 = vld [vmem:[%s3913 + $0x30] sm:$0xff]
        %v3921 = vld [vmem:[%s3913 + $0x38] sm:$0xff]
        %v3922 = vld [vmem:[%s3913 + $0x40] sm:$0xff]
        %v3923 = vld [vmem:[%s3913 + $0x48] sm:$0xff]
        %v3924 = vld [vmem:[%s3913 + $0x50] sm:$0xff]
        %v3925 = vld [vmem:[%s3913 + $0x58] sm:$0xff]
        %v3926 = vld [vmem:[%s3913 + $0x60] sm:$0xff]
        %v3927 = vld [vmem:[%s3913 + $0x68] sm:$0xff]
        %v3928 = vld [vmem:[%s3913 + $0x70] sm:$0xff]
        %v3929 = vld [vmem:[%s3913 + $0x78] sm:$0xff]
        %v3930 = vld [vmem:[%s3913 + $0x80] sm:$0xff]
        %v3931 = vld [vmem:[%s3913 + $0x88] sm:$0xff]
        %v3932 = vld [vmem:[%s3913 + $0x90] sm:$0xff]
        %v3933 = vld [vmem:[%s3913 + $0x98] sm:$0xff]
        %v3934 = vld [vmem:[%s3913 + $0xa0] sm:$0xff]
        %v3935 = vld [vmem:[%s3913 + $0xa8] sm:$0xff]
        %v3936 = vld [vmem:[%s3913 + $0xb0] sm:$0xff]
        %v3937 = vld [vmem:[%s3913 + $0xb8] sm:$0xff]
        %v3938 = vld [vmem:[%s3913 + $0xc0] sm:$0xff]
        %v3939 = vld [vmem:[%s3913 + $0xc8] sm:$0xff]
        %v3940 = vld [vmem:[%s3913 + $0xd0] sm:$0xff]
        %v3941 = vld [vmem:[%s3913 + $0xd8] sm:$0xff]
        %v3942 = vld [vmem:[%s3913 + $0xe0] sm:$0xff]
        %v3943 = vld [vmem:[%s3913 + $0xe8] sm:$0xff]
        %v3944 = vld [vmem:[%s3913 + $0xf0] sm:$0xff]
        %v3945 = vld [vmem:[%s3913 + $0xf8] sm:$0xff]
        %v3946 = vld [vmem:[%s3913 + $0x100] sm:$0xff]
        %v3947 = vld [vmem:[%s3913 + $0x108] sm:$0xff]
        %v3948 = vld [vmem:[%s3913 + $0x110] sm:$0xff]
        %v3949 = vld [vmem:[%s3913 + $0x118] sm:$0xff]
        %v3950 = vld [vmem:[%s3913 + $0x120] sm:$0xff]
        %v3951 = vld [vmem:[%s3913 + $0x128] sm:$0xff]
        %v3952 = vld [vmem:[%s3913 + $0x130] sm:$0xff]
        %v3953 = vld [vmem:[%s3913 + $0x138] sm:$0xff]
        %v3954 = vld [vmem:[%s3913 + $0x140] sm:$0xff]
        %v3955 = vld [vmem:[%s3913 + $0x148] sm:$0xff]
        %v3956 = vld [vmem:[%s3913 + $0x150] sm:$0xff]
        %v3957 = vld [vmem:[%s3913 + $0x158] sm:$0xff]
        %v3958 = vld [vmem:[%s3913 + $0x160] sm:$0xff]
        %v3959 = vld [vmem:[%s3913 + $0x168] sm:$0xff]
        %v3960 = vld [vmem:[%s3913 + $0x170] sm:$0xff]
        %v3961 = vld [vmem:[%s3913 + $0x178] sm:$0xff]
        %v3962 = vld [vmem:[%s3913 + $0x180] sm:$0xff]
        %v3963 = vld [vmem:[%s3913 + $0x188] sm:$0xff]
        %v3964 = vld [vmem:[%s3913 + $0x190] sm:$0xff]
        %v3965 = vld [vmem:[%s3913 + $0x198] sm:$0xff]
        %v3966 = vld [vmem:[%s3913 + $0x1a0] sm:$0xff]
        %v3967 = vld [vmem:[%s3913 + $0x1a8] sm:$0xff]
        %v3968 = vld [vmem:[%s3913 + $0x1b0] sm:$0xff]
        %v3969 = vld [vmem:[%s3913 + $0x1b8] sm:$0xff]
        %v3970 = vld [vmem:[%s3913 + $0x1c0] sm:$0xff]
        %v3971 = vld [vmem:[%s3913 + $0x1c8] sm:$0xff]
        %v3972 = vld [vmem:[%s3913 + $0x1d0] sm:$0xff]
        %v3973 = vld [vmem:[%s3913 + $0x1d8] sm:$0xff]
        %v3974 = vld [vmem:[%s3913 + $0x1e0] sm:$0xff]
        %v3975 = vld [vmem:[%s3913 + $0x1e8] sm:$0xff]
        %v3976 = vld [vmem:[%s3913 + $0x1f0] sm:$0xff]
        %v3977 = vld [vmem:[%s3913 + $0x1f8] sm:$0xff]
        %v3978 = vld [vmem:[%s3913 + $0x200] sm:$0xff]
        %v3979 = vld [vmem:[%s3913 + $0x208] sm:$0xff]
        %v3980 = vld [vmem:[%s3913 + $0x210] sm:$0xff]
        %v3981 = vld [vmem:[%s3913 + $0x218] sm:$0xff]
        %v3982 = vld [vmem:[%s3913 + $0x220] sm:$0xff]
        %v3983 = vld [vmem:[%s3913 + $0x228] sm:$0xff]
        %v3984 = vld [vmem:[%s3913 + $0x230] sm:$0xff]
        %v3985 = vld [vmem:[%s3913 + $0x238] sm:$0xff]
        %v3986 = vld [vmem:[%s3913 + $0x240] sm:$0xff]
        %v3987 = vld [vmem:[%s3913 + $0x248] sm:$0xff]
        %v3988 = vld [vmem:[%s3913 + $0x250] sm:$0xff]
        %v3989 = vld [vmem:[%s3913 + $0x258] sm:$0xff]
        %v3990 = vld [vmem:[%s3913 + $0x260] sm:$0xff]
        %v3991 = vld [vmem:[%s3913 + $0x268] sm:$0xff]
        %v3992 = vld [vmem:[%s3913 + $0x270] sm:$0xff]
        %v3993 = vld [vmem:[%s3913 + $0x278] sm:$0xff]
        %v3994 = vld [vmem:[%s3913 + $0x280] sm:$0xff]
        %v3995 = vld [vmem:[%s3913 + $0x288] sm:$0xff]
        %v3996 = vld [vmem:[%s3913 + $0x290] sm:$0xff]
        %v3997 = vld [vmem:[%s3913 + $0x298] sm:$0xff]
        %v3998 = vld [vmem:[%s3913 + $0x2a0] sm:$0xff]
        %v3999 = vld [vmem:[%s3913 + $0x2a8] sm:$0xff]
        %v4000 = vld [vmem:[%s3913 + $0x2b0] sm:$0xff]
        %v4001 = vld [vmem:[%s3913 + $0x2b8] sm:$0xff]
        %v4002 = vld [vmem:[%s3913 + $0x2c0] sm:$0xff]
        %v4003 = vld [vmem:[%s3913 + $0x2c8] sm:$0xff]
        %v4004 = vld [vmem:[%s3913 + $0x2d0] sm:$0xff]
        %v4005 = vld [vmem:[%s3913 + $0x2d8] sm:$0xff]
        %v4006 = vld [vmem:[%s3913 + $0x2e0] sm:$0xff]
        %v4007 = vld [vmem:[%s3913 + $0x2e8] sm:$0xff]
        %v4008 = vld [vmem:[%s3913 + $0x2f0] sm:$0xff]
        %v4009 = vld [vmem:[%s3913 + $0x2f8] sm:$0xff]
        %v4010 = vld [vmem:[%s3913 + $0x300] sm:$0xff]
        %v4011 = vld [vmem:[%s3913 + $0x308] sm:$0xff]
        %v4012 = vld [vmem:[%s3913 + $0x310] sm:$0xff]
        %v4013 = vld [vmem:[%s3913 + $0x318] sm:$0xff]
        %v4014 = vld [vmem:[%s3913 + $0x320] sm:$0xff]
        %v4015 = vld [vmem:[%s3913 + $0x328] sm:$0xff]
        %v4016 = vld [vmem:[%s3913 + $0x330] sm:$0xff]
        %v4017 = vld [vmem:[%s3913 + $0x338] sm:$0xff]
        %v4018 = vld [vmem:[%s3913 + $0x340] sm:$0xff]
        %v4019 = vld [vmem:[%s3913 + $0x348] sm:$0xff]
        %v4020 = vld [vmem:[%s3913 + $0x350] sm:$0xff]
        %v4021 = vld [vmem:[%s3913 + $0x358] sm:$0xff]
        %v4022 = vld [vmem:[%s3913 + $0x360] sm:$0xff]
        %v4023 = vld [vmem:[%s3913 + $0x368] sm:$0xff]
        %v4024 = vld [vmem:[%s3913 + $0x370] sm:$0xff]
        %v4025 = vld [vmem:[%s3913 + $0x378] sm:$0xff]
        %v4026 = vld [vmem:[%s3913 + $0x380] sm:$0xff]
        %v4027 = vld [vmem:[%s3913 + $0x388] sm:$0xff]
        %v4028 = vld [vmem:[%s3913 + $0x390] sm:$0xff]
        %v4029 = vld [vmem:[%s3913 + $0x398] sm:$0xff]
        %v4030 = vld [vmem:[%s3913 + $0x3a0] sm:$0xff]
        %v4031 = vld [vmem:[%s3913 + $0x3a8] sm:$0xff]
        %v4032 = vld [vmem:[%s3913 + $0x3b0] sm:$0xff]
        %v4033 = vld [vmem:[%s3913 + $0x3b8] sm:$0xff]
        %v4034 = vld [vmem:[%s3913 + $0x3c0] sm:$0xff]
        %v4035 = vld [vmem:[%s3913 + $0x3c8] sm:$0xff]
        %v4036 = vld [vmem:[%s3913 + $0x3d0] sm:$0xff]
        %v4037 = vld [vmem:[%s3913 + $0x3d8] sm:$0xff]
        %v4038 = vld [vmem:[%s3913 + $0x3e0] sm:$0xff]
        %v4039 = vld [vmem:[%s3913 + $0x3e8] sm:$0xff]
        %v4040 = vld [vmem:[%s3913 + $0x3f0] sm:$0xff]
        %v4041 = vld [vmem:[%s3913 + $0x3f8] sm:$0xff]
        %4044 = vst [vmem:[#allocation1] ss:$2 sm:$0xff] %v3911
        %s4045 = scalar_lea.vmem [#allocation1], 16
        %4046 = vst [vmem:[%s4045] ss:$2 sm:$0xff] %v3912
        %v4047 = vld.sshfl [vmem:[#allocation1] sm:$0xff pattern:$0x75316420]
        %v4048 = vld.sshfl [vmem:[#allocation1 + $0x8] sm:$0xff pattern:$0x75316420]
        %v4049 = vld.sshfl [vmem:[#allocation1 + $0x10] sm:$0xff pattern:$0x75316420]
        %v4050 = vld.sshfl [vmem:[#allocation1 + $0x18] sm:$0xff pattern:$0x75316420]
        %v4051 = vrot.slane %v4047, 2
        %v4052 = vrot.slane %v4048, 2
        %v4053 = vrot.slane %v4049, 2
        %v4054 = vrot.slane %v4050, 2
        %v4187 = vunpack.c.l.b16 %v3914
        %v4188 = vunpack.c.h.b16 %v3914
        %v4189 = vunpack.c.l.b16 %v3915
        %v4190 = vunpack.c.h.b16 %v3915
        %v4191 = vunpack.c.l.b16 %v3916
        %v4192 = vunpack.c.h.b16 %v3916
        %v4193 = vunpack.c.l.b16 %v3917
        %v4194 = vunpack.c.h.b16 %v3917
        %v4195 = vunpack.c.l.b16 %v3918
        %v4196 = vunpack.c.h.b16 %v3918
        %v4197 = vunpack.c.l.b16 %v3919
        %v4198 = vunpack.c.h.b16 %v3919
        %v4199 = vunpack.c.l.b16 %v3920
        %v4200 = vunpack.c.h.b16 %v3920
        %v4201 = vunpack.c.l.b16 %v3921
        %v4202 = vunpack.c.h.b16 %v3921
        %v4203 = vunpack.c.l.b16 %v3922
        %v4204 = vunpack.c.h.b16 %v3922
        %v4205 = vunpack.c.l.b16 %v3923
        %v4206 = vunpack.c.h.b16 %v3923
        %v4207 = vunpack.c.l.b16 %v3924
        %v4208 = vunpack.c.h.b16 %v3924
        %v4209 = vunpack.c.l.b16 %v3925
        %v4210 = vunpack.c.h.b16 %v3925
        %v4211 = vunpack.c.l.b16 %v3926
        %v4212 = vunpack.c.h.b16 %v3926
        %v4213 = vunpack.c.l.b16 %v3927
        %v4214 = vunpack.c.h.b16 %v3927
        %v4215 = vunpack.c.l.b16 %v3928
        %v4216 = vunpack.c.h.b16 %v3928
        %v4217 = vunpack.c.l.b16 %v3929
        %v4218 = vunpack.c.h.b16 %v3929
        %v4219 = vunpack.c.l.b16 %v3930
        %v4220 = vunpack.c.h.b16 %v3930
        %v4221 = vunpack.c.l.b16 %v3931
        %v4222 = vunpack.c.h.b16 %v3931
        %v4223 = vunpack.c.l.b16 %v3932
        %v4224 = vunpack.c.h.b16 %v3932
        %v4225 = vunpack.c.l.b16 %v3933
        %v4226 = vunpack.c.h.b16 %v3933
        %v4227 = vunpack.c.l.b16 %v3934
        %v4228 = vunpack.c.h.b16 %v3934
        %v4229 = vunpack.c.l.b16 %v3935
        %v4230 = vunpack.c.h.b16 %v3935
        %v4231 = vunpack.c.l.b16 %v3936
        %v4232 = vunpack.c.h.b16 %v3936
        %v4233 = vunpack.c.l.b16 %v3937
        %v4234 = vunpack.c.h.b16 %v3937
        %v4235 = vunpack.c.l.b16 %v3938
        %v4236 = vunpack.c.h.b16 %v3938
        %v4237 = vunpack.c.l.b16 %v3939
        %v4238 = vunpack.c.h.b16 %v3939
        %v4239 = vunpack.c.l.b16 %v3940
        %v4240 = vunpack.c.h.b16 %v3940
        %v4241 = vunpack.c.l.b16 %v3941
        %v4242 = vunpack.c.h.b16 %v3941
        %v4243 = vunpack.c.l.b16 %v3942
        %v4244 = vunpack.c.h.b16 %v3942
        %v4245 = vunpack.c.l.b16 %v3943
        %v4246 = vunpack.c.h.b16 %v3943
        %v4247 = vunpack.c.l.b16 %v3944
        %v4248 = vunpack.c.h.b16 %v3944
        %v4249 = vunpack.c.l.b16 %v3945
        %v4250 = vunpack.c.h.b16 %v3945
        %v4251 = vunpack.c.l.b16 %v3946
        %v4252 = vunpack.c.h.b16 %v3946
        %v4253 = vunpack.c.l.b16 %v3947
        %v4254 = vunpack.c.h.b16 %v3947
        %v4255 = vunpack.c.l.b16 %v3948
        %v4256 = vunpack.c.h.b16 %v3948
        %v4257 = vunpack.c.l.b16 %v3949
        %v4258 = vunpack.c.h.b16 %v3949
        %v4259 = vunpack.c.l.b16 %v3950
        %v4260 = vunpack.c.h.b16 %v3950
        %v4261 = vunpack.c.l.b16 %v3951
        %v4262 = vunpack.c.h.b16 %v3951
        %v4263 = vunpack.c.l.b16 %v3952
        %v4264 = vunpack.c.h.b16 %v3952
        %v4265 = vunpack.c.l.b16 %v3953
        %v4266 = vunpack.c.h.b16 %v3953
        %v4267 = vunpack.c.l.b16 %v3954
        %v4268 = vunpack.c.h.b16 %v3954
        %v4269 = vunpack.c.l.b16 %v3955
        %v4270 = vunpack.c.h.b16 %v3955
        %v4271 = vunpack.c.l.b16 %v3956
        %v4272 = vunpack.c.h.b16 %v3956
        %v4273 = vunpack.c.l.b16 %v3957
        %v4274 = vunpack.c.h.b16 %v3957
        %v4275 = vunpack.c.l.b16 %v3958
        %v4276 = vunpack.c.h.b16 %v3958
        %v4277 = vunpack.c.l.b16 %v3959
        %v4278 = vunpack.c.h.b16 %v3959
        %v4279 = vunpack.c.l.b16 %v3960
        %v4280 = vunpack.c.h.b16 %v3960
        %v4281 = vunpack.c.l.b16 %v3961
        %v4282 = vunpack.c.h.b16 %v3961
        %v4283 = vunpack.c.l.b16 %v3962
        %v4284 = vunpack.c.h.b16 %v3962
        %v4285 = vunpack.c.l.b16 %v3963
        %v4286 = vunpack.c.h.b16 %v3963
        %v4287 = vunpack.c.l.b16 %v3964
        %v4288 = vunpack.c.h.b16 %v3964
        %v4289 = vunpack.c.l.b16 %v3965
        %v4290 = vunpack.c.h.b16 %v3965
        %v4291 = vunpack.c.l.b16 %v3966
        %v4292 = vunpack.c.h.b16 %v3966
        %v4293 = vunpack.c.l.b16 %v3967
        %v4294 = vunpack.c.h.b16 %v3967
        %v4295 = vunpack.c.l.b16 %v3968
        %v4296 = vunpack.c.h.b16 %v3968
        %v4297 = vunpack.c.l.b16 %v3969
        %v4298 = vunpack.c.h.b16 %v3969
        %v4299 = vunpack.c.l.b16 %v3970
        %v4300 = vunpack.c.h.b16 %v3970
        %v4301 = vunpack.c.l.b16 %v3971
        %v4302 = vunpack.c.h.b16 %v3971
        %v4303 = vunpack.c.l.b16 %v3972
        %v4304 = vunpack.c.h.b16 %v3972
        %v4305 = vunpack.c.l.b16 %v3973
        %v4306 = vunpack.c.h.b16 %v3973
        %v4307 = vunpack.c.l.b16 %v3974
        %v4308 = vunpack.c.h.b16 %v3974
        %v4309 = vunpack.c.l.b16 %v3975
        %v4310 = vunpack.c.h.b16 %v3975
        %v4311 = vunpack.c.l.b16 %v3976
        %v4312 = vunpack.c.h.b16 %v3976
        %v4313 = vunpack.c.l.b16 %v3977
        %v4314 = vunpack.c.h.b16 %v3977
        %v4315 = vunpack.c.l.b16 %v3978
        %v4316 = vunpack.c.h.b16 %v3978
        %v4317 = vunpack.c.l.b16 %v3979
        %v4318 = vunpack.c.h.b16 %v3979
        %v4319 = vunpack.c.l.b16 %v3980
        %v4320 = vunpack.c.h.b16 %v3980
        %v4321 = vunpack.c.l.b16 %v3981
        %v4322 = vunpack.c.h.b16 %v3981
        %v4323 = vunpack.c.l.b16 %v3982
        %v4324 = vunpack.c.h.b16 %v3982
        %v4325 = vunpack.c.l.b16 %v3983
        %v4326 = vunpack.c.h.b16 %v3983
        %v4327 = vunpack.c.l.b16 %v3984
        %v4328 = vunpack.c.h.b16 %v3984
        %v4329 = vunpack.c.l.b16 %v3985
        %v4330 = vunpack.c.h.b16 %v3985
        %v4331 = vunpack.c.l.b16 %v3986
        %v4332 = vunpack.c.h.b16 %v3986
        %v4333 = vunpack.c.l.b16 %v3987
        %v4334 = vunpack.c.h.b16 %v3987
        %v4335 = vunpack.c.l.b16 %v3988
        %v4336 = vunpack.c.h.b16 %v3988
        %v4337 = vunpack.c.l.b16 %v3989
        %v4338 = vunpack.c.h.b16 %v3989
        %v4339 = vunpack.c.l.b16 %v3990
        %v4340 = vunpack.c.h.b16 %v3990
        %v4341 = vunpack.c.l.b16 %v3991
        %v4342 = vunpack.c.h.b16 %v3991
        %v4343 = vunpack.c.l.b16 %v3992
        %v4344 = vunpack.c.h.b16 %v3992
        %v4345 = vunpack.c.l.b16 %v3993
        %v4346 = vunpack.c.h.b16 %v3993
        %v4347 = vunpack.c.l.b16 %v3994
        %v4348 = vunpack.c.h.b16 %v3994
        %v4349 = vunpack.c.l.b16 %v3995
        %v4350 = vunpack.c.h.b16 %v3995
        %v4351 = vunpack.c.l.b16 %v3996
        %v4352 = vunpack.c.h.b16 %v3996
        %v4353 = vunpack.c.l.b16 %v3997
        %v4354 = vunpack.c.h.b16 %v3997
        %v4355 = vunpack.c.l.b16 %v3998
        %v4356 = vunpack.c.h.b16 %v3998
        %v4357 = vunpack.c.l.b16 %v3999
        %v4358 = vunpack.c.h.b16 %v3999
        %v4359 = vunpack.c.l.b16 %v4000
        %v4360 = vunpack.c.h.b16 %v4000
        %v4361 = vunpack.c.l.b16 %v4001
        %v4362 = vunpack.c.h.b16 %v4001
        %v4363 = vunpack.c.l.b16 %v4002
        %v4364 = vunpack.c.h.b16 %v4002
        %v4365 = vunpack.c.l.b16 %v4003
        %v4366 = vunpack.c.h.b16 %v4003
        %v4367 = vunpack.c.l.b16 %v4004
        %v4368 = vunpack.c.h.b16 %v4004
        %v4369 = vunpack.c.l.b16 %v4005
        %v4370 = vunpack.c.h.b16 %v4005
        %v4371 = vunpack.c.l.b16 %v4006
        %v4372 = vunpack.c.h.b16 %v4006
        %v4373 = vunpack.c.l.b16 %v4007
        %v4374 = vunpack.c.h.b16 %v4007
        %v4375 = vunpack.c.l.b16 %v4008
        %v4376 = vunpack.c.h.b16 %v4008
        %v4377 = vunpack.c.l.b16 %v4009
        %v4378 = vunpack.c.h.b16 %v4009
        %v4379 = vunpack.c.l.b16 %v4010
        %v4380 = vunpack.c.h.b16 %v4010
        %v4381 = vunpack.c.l.b16 %v4011
        %v4382 = vunpack.c.h.b16 %v4011
        %v4383 = vunpack.c.l.b16 %v4012
        %v4384 = vunpack.c.h.b16 %v4012
        %v4385 = vunpack.c.l.b16 %v4013
        %v4386 = vunpack.c.h.b16 %v4013
        %v4387 = vunpack.c.l.b16 %v4014
        %v4388 = vunpack.c.h.b16 %v4014
        %v4389 = vunpack.c.l.b16 %v4015
        %v4390 = vunpack.c.h.b16 %v4015
        %v4391 = vunpack.c.l.b16 %v4016
        %v4392 = vunpack.c.h.b16 %v4016
        %v4393 = vunpack.c.l.b16 %v4017
        %v4394 = vunpack.c.h.b16 %v4017
        %v4395 = vunpack.c.l.b16 %v4018
        %v4396 = vunpack.c.h.b16 %v4018
        %v4397 = vunpack.c.l.b16 %v4019
        %v4398 = vunpack.c.h.b16 %v4019
        %v4399 = vunpack.c.l.b16 %v4020
        %v4400 = vunpack.c.h.b16 %v4020
        %v4401 = vunpack.c.l.b16 %v4021
        %v4402 = vunpack.c.h.b16 %v4021
        %v4403 = vunpack.c.l.b16 %v4022
        %v4404 = vunpack.c.h.b16 %v4022
        %v4405 = vunpack.c.l.b16 %v4023
        %v4406 = vunpack.c.h.b16 %v4023
        %v4407 = vunpack.c.l.b16 %v4024
        %v4408 = vunpack.c.h.b16 %v4024
        %v4409 = vunpack.c.l.b16 %v4025
        %v4410 = vunpack.c.h.b16 %v4025
        %v4411 = vunpack.c.l.b16 %v4026
        %v4412 = vunpack.c.h.b16 %v4026
        %v4413 = vunpack.c.l.b16 %v4027
        %v4414 = vunpack.c.h.b16 %v4027
        %v4415 = vunpack.c.l.b16 %v4028
        %v4416 = vunpack.c.h.b16 %v4028
        %v4417 = vunpack.c.l.b16 %v4029
        %v4418 = vunpack.c.h.b16 %v4029
        %v4419 = vunpack.c.l.b16 %v4030
        %v4420 = vunpack.c.h.b16 %v4030
        %v4421 = vunpack.c.l.b16 %v4031
        %v4422 = vunpack.c.h.b16 %v4031
        %v4423 = vunpack.c.l.b16 %v4032
        %v4424 = vunpack.c.h.b16 %v4032
        %v4425 = vunpack.c.l.b16 %v4033
        %v4426 = vunpack.c.h.b16 %v4033
        %v4427 = vunpack.c.l.b16 %v4034
        %v4428 = vunpack.c.h.b16 %v4034
        %v4429 = vunpack.c.l.b16 %v4035
        %v4430 = vunpack.c.h.b16 %v4035
        %v4431 = vunpack.c.l.b16 %v4036
        %v4432 = vunpack.c.h.b16 %v4036
        %v4433 = vunpack.c.l.b16 %v4037
        %v4434 = vunpack.c.h.b16 %v4037
        %v4435 = vunpack.c.l.b16 %v4038
        %v4436 = vunpack.c.h.b16 %v4038
        %v4437 = vunpack.c.l.b16 %v4039
        %v4438 = vunpack.c.h.b16 %v4039
        %v4439 = vunpack.c.l.b16 %v4040
        %v4440 = vunpack.c.h.b16 %v4040
        %v4441 = vunpack.c.l.b16 %v4041
        %v4442 = vunpack.c.h.b16 %v4041
        %v4443 = vpack.c.b16 %v4191, %v4187
        %v4444 = vpack.c.b16 %v4192, %v4188
        %v4445 = vpack.c.b16 %v4193, %v4189
        %v4446 = vpack.c.b16 %v4194, %v4190
        %v4447 = vpack.c.b16 %v4199, %v4195
        %v4448 = vpack.c.b16 %v4200, %v4196
        %v4449 = vpack.c.b16 %v4201, %v4197
        %v4450 = vpack.c.b16 %v4202, %v4198
        %v4451 = vpack.c.b16 %v4207, %v4203
        %v4452 = vpack.c.b16 %v4208, %v4204
        %v4453 = vpack.c.b16 %v4209, %v4205
        %v4454 = vpack.c.b16 %v4210, %v4206
        %v4455 = vpack.c.b16 %v4215, %v4211
        %v4456 = vpack.c.b16 %v4216, %v4212
        %v4457 = vpack.c.b16 %v4217, %v4213
        %v4458 = vpack.c.b16 %v4218, %v4214
        %v4459 = vpack.c.b16 %v4223, %v4219
        %v4460 = vpack.c.b16 %v4224, %v4220
        %v4461 = vpack.c.b16 %v4225, %v4221
        %v4462 = vpack.c.b16 %v4226, %v4222
        %v4463 = vpack.c.b16 %v4231, %v4227
        %v4464 = vpack.c.b16 %v4232, %v4228
        %v4465 = vpack.c.b16 %v4233, %v4229
        %v4466 = vpack.c.b16 %v4234, %v4230
        %v4467 = vpack.c.b16 %v4239, %v4235
        %v4468 = vpack.c.b16 %v4240, %v4236
        %v4469 = vpack.c.b16 %v4241, %v4237
        %v4470 = vpack.c.b16 %v4242, %v4238
        %v4471 = vpack.c.b16 %v4247, %v4243
        %v4472 = vpack.c.b16 %v4248, %v4244
        %v4473 = vpack.c.b16 %v4249, %v4245
        %v4474 = vpack.c.b16 %v4250, %v4246
        %v4475 = vpack.c.b16 %v4255, %v4251
        %v4476 = vpack.c.b16 %v4256, %v4252
        %v4477 = vpack.c.b16 %v4257, %v4253
        %v4478 = vpack.c.b16 %v4258, %v4254
        %v4479 = vpack.c.b16 %v4263, %v4259
        %v4480 = vpack.c.b16 %v4264, %v4260
        %v4481 = vpack.c.b16 %v4265, %v4261
        %v4482 = vpack.c.b16 %v4266, %v4262
        %v4483 = vpack.c.b16 %v4271, %v4267
        %v4484 = vpack.c.b16 %v4272, %v4268
        %v4485 = vpack.c.b16 %v4273, %v4269
        %v4486 = vpack.c.b16 %v4274, %v4270
        %v4487 = vpack.c.b16 %v4279, %v4275
        %v4488 = vpack.c.b16 %v4280, %v4276
        %v4489 = vpack.c.b16 %v4281, %v4277
        %v4490 = vpack.c.b16 %v4282, %v4278
        %v4491 = vpack.c.b16 %v4287, %v4283
        %v4492 = vpack.c.b16 %v4288, %v4284
        %v4493 = vpack.c.b16 %v4289, %v4285
        %v4494 = vpack.c.b16 %v4290, %v4286
        %v4495 = vpack.c.b16 %v4295, %v4291
        %v4496 = vpack.c.b16 %v4296, %v4292
        %v4497 = vpack.c.b16 %v4297, %v4293
        %v4498 = vpack.c.b16 %v4298, %v4294
        %v4499 = vpack.c.b16 %v4303, %v4299
        %v4500 = vpack.c.b16 %v4304, %v4300
        %v4501 = vpack.c.b16 %v4305, %v4301
        %v4502 = vpack.c.b16 %v4306, %v4302
        %v4503 = vpack.c.b16 %v4311, %v4307
        %v4504 = vpack.c.b16 %v4312, %v4308
        %v4505 = vpack.c.b16 %v4313, %v4309
        %v4506 = vpack.c.b16 %v4314, %v4310
        %v4507 = vpack.c.b16 %v4319, %v4315
        %v4508 = vpack.c.b16 %v4320, %v4316
        %v4509 = vpack.c.b16 %v4321, %v4317
        %v4510 = vpack.c.b16 %v4322, %v4318
        %v4511 = vpack.c.b16 %v4327, %v4323
        %v4512 = vpack.c.b16 %v4328, %v4324
        %v4513 = vpack.c.b16 %v4329, %v4325
        %v4514 = vpack.c.b16 %v4330, %v4326
        %v4515 = vpack.c.b16 %v4335, %v4331
        %v4516 = vpack.c.b16 %v4336, %v4332
        %v4517 = vpack.c.b16 %v4337, %v4333
        %v4518 = vpack.c.b16 %v4338, %v4334
        %v4519 = vpack.c.b16 %v4343, %v4339
        %v4520 = vpack.c.b16 %v4344, %v4340
        %v4521 = vpack.c.b16 %v4345, %v4341
        %v4522 = vpack.c.b16 %v4346, %v4342
        %v4523 = vpack.c.b16 %v4351, %v4347
        %v4524 = vpack.c.b16 %v4352, %v4348
        %v4525 = vpack.c.b16 %v4353, %v4349
        %v4526 = vpack.c.b16 %v4354, %v4350
        %v4527 = vpack.c.b16 %v4359, %v4355
        %v4528 = vpack.c.b16 %v4360, %v4356
        %v4529 = vpack.c.b16 %v4361, %v4357
        %v4530 = vpack.c.b16 %v4362, %v4358
        %v4531 = vpack.c.b16 %v4367, %v4363
        %v4532 = vpack.c.b16 %v4368, %v4364
        %v4533 = vpack.c.b16 %v4369, %v4365
        %v4534 = vpack.c.b16 %v4370, %v4366
        %v4535 = vpack.c.b16 %v4375, %v4371
        %v4536 = vpack.c.b16 %v4376, %v4372
        %v4537 = vpack.c.b16 %v4377, %v4373
        %v4538 = vpack.c.b16 %v4378, %v4374
        %v4539 = vpack.c.b16 %v4383, %v4379
        %v4540 = vpack.c.b16 %v4384, %v4380
        %v4541 = vpack.c.b16 %v4385, %v4381
        %v4542 = vpack.c.b16 %v4386, %v4382
        %v4543 = vpack.c.b16 %v4391, %v4387
        %v4544 = vpack.c.b16 %v4392, %v4388
        %v4545 = vpack.c.b16 %v4393, %v4389
        %v4546 = vpack.c.b16 %v4394, %v4390
        %v4547 = vpack.c.b16 %v4399, %v4395
        %v4548 = vpack.c.b16 %v4400, %v4396
        %v4549 = vpack.c.b16 %v4401, %v4397
        %v4550 = vpack.c.b16 %v4402, %v4398
        %v4551 = vpack.c.b16 %v4407, %v4403
        %v4552 = vpack.c.b16 %v4408, %v4404
        %v4553 = vpack.c.b16 %v4409, %v4405
        %v4554 = vpack.c.b16 %v4410, %v4406
        %v4555 = vpack.c.b16 %v4415, %v4411
        %v4556 = vpack.c.b16 %v4416, %v4412
        %v4557 = vpack.c.b16 %v4417, %v4413
        %v4558 = vpack.c.b16 %v4418, %v4414
        %v4559 = vpack.c.b16 %v4423, %v4419
        %v4560 = vpack.c.b16 %v4424, %v4420
        %v4561 = vpack.c.b16 %v4425, %v4421
        %v4562 = vpack.c.b16 %v4426, %v4422
        %v4563 = vpack.c.b16 %v4431, %v4427
        %v4564 = vpack.c.b16 %v4432, %v4428
        %v4565 = vpack.c.b16 %v4433, %v4429
        %v4566 = vpack.c.b16 %v4434, %v4430
        %v4567 = vpack.c.b16 %v4439, %v4435
        %v4568 = vpack.c.b16 %v4440, %v4436
        %v4569 = vpack.c.b16 %v4441, %v4437
        %v4570 = vpack.c.b16 %v4442, %v4438
        %4699 = vmatpush.bf16.msra.mxu0 %v4471
        %4700 = vmatpush.bf16.msra.mxu0 %v4467
        %4701 = vmatpush.bf16.msra.mxu0 %v4463
        %4702 = vmatpush.bf16.msra.mxu0 %v4459
        %4703 = vmatpush.bf16.msra.mxu0 %v4455
        %4704 = vmatpush.bf16.msra.mxu0 %v4451
        %4705 = vmatpush.bf16.msra.mxu0 %v4447
        %4706 = vmatpush.bf16.msra.mxu0 %v4443
        %4707 = vmatmul.f32.gmra.mxu0 %v4051
        %v4708 = vpop.f32.mrf.mxu0
        %v4709 = vadd.f32 0.0, %v4708
        %4710 = vdwg.mxu0
        %4711 = vmatpush.bf16.msra.mxu0 %v4503
        %4712 = vmatpush.bf16.msra.mxu0 %v4499
        %4713 = vmatpush.bf16.msra.mxu0 %v4495
        %4714 = vmatpush.bf16.msra.mxu0 %v4491
        %4715 = vmatpush.bf16.msra.mxu0 %v4487
        %4716 = vmatpush.bf16.msra.mxu0 %v4483
        %4717 = vmatpush.bf16.msra.mxu0 %v4479
        %4718 = vmatpush.bf16.msra.mxu0 %v4475
        %4719 = vmatmul.f32.gmra.mxu0 %v4052
        %v4720 = vpop.f32.mrf.mxu0
        %v4721 = vadd.f32 %v4709, %v4720
        %4722 = vdwg.mxu0
        %4723 = vmatpush.bf16.msra.mxu0 %v4535
        %4724 = vmatpush.bf16.msra.mxu0 %v4531
        %4725 = vmatpush.bf16.msra.mxu0 %v4527
        %4726 = vmatpush.bf16.msra.mxu0 %v4523
        %4727 = vmatpush.bf16.msra.mxu0 %v4519
        %4728 = vmatpush.bf16.msra.mxu0 %v4515
        %4729 = vmatpush.bf16.msra.mxu0 %v4511
        %4730 = vmatpush.bf16.msra.mxu0 %v4507
        %4731 = vmatmul.f32.gmra.mxu0 %v4053
        %v4732 = vpop.f32.mrf.mxu0
        %v4733 = vadd.f32 %v4721, %v4732
        %4734 = vdwg.mxu0
        %4735 = vmatpush.bf16.msra.mxu0 %v4567
        %4736 = vmatpush.bf16.msra.mxu0 %v4563
        %4737 = vmatpush.bf16.msra.mxu0 %v4559
        %4738 = vmatpush.bf16.msra.mxu0 %v4555
        %4739 = vmatpush.bf16.msra.mxu0 %v4551
        %4740 = vmatpush.bf16.msra.mxu0 %v4547
        %4741 = vmatpush.bf16.msra.mxu0 %v4543
        %4742 = vmatpush.bf16.msra.mxu0 %v4539
        %4743 = vmatmul.f32.gmra.mxu0 %v4054
        %v4744 = vpop.f32.mrf.mxu0
        %v4745 = vadd.f32 %v4733, %v4744
        %4746 = vdwg.mxu0
        %4747 = vmatpush.bf16.msra.mxu0 %v4472
        %4748 = vmatpush.bf16.msra.mxu0 %v4468
        %4749 = vmatpush.bf16.msra.mxu0 %v4464
        %4750 = vmatpush.bf16.msra.mxu0 %v4460
        %4751 = vmatpush.bf16.msra.mxu0 %v4456
        %4752 = vmatpush.bf16.msra.mxu0 %v4452
        %4753 = vmatpush.bf16.msra.mxu0 %v4448
        %4754 = vmatpush.bf16.msra.mxu0 %v4444
        %4755 = vmatmul.f32.gmra.mxu0 %v4051
        %v4756 = vpop.f32.mrf.mxu0
        %v4757 = vadd.f32 0.0, %v4756
        %4758 = vdwg.mxu0
        %4759 = vmatpush.bf16.msra.mxu0 %v4504
        %4760 = vmatpush.bf16.msra.mxu0 %v4500
        %4761 = vmatpush.bf16.msra.mxu0 %v4496
        %4762 = vmatpush.bf16.msra.mxu0 %v4492
        %4763 = vmatpush.bf16.msra.mxu0 %v4488
        %4764 = vmatpush.bf16.msra.mxu0 %v4484
        %4765 = vmatpush.bf16.msra.mxu0 %v4480
        %4766 = vmatpush.bf16.msra.mxu0 %v4476
        %4767 = vmatmul.f32.gmra.mxu0 %v4052
        %v4768 = vpop.f32.mrf.mxu0
        %v4769 = vadd.f32 %v4757, %v4768
        %4770 = vdwg.mxu0
        %4771 = vmatpush.bf16.msra.mxu0 %v4536
        %4772 = vmatpush.bf16.msra.mxu0 %v4532
        %4773 = vmatpush.bf16.msra.mxu0 %v4528
        %4774 = vmatpush.bf16.msra.mxu0 %v4524
        %4775 = vmatpush.bf16.msra.mxu0 %v4520
        %4776 = vmatpush.bf16.msra.mxu0 %v4516
        %4777 = vmatpush.bf16.msra.mxu0 %v4512
        %4778 = vmatpush.bf16.msra.mxu0 %v4508
        %4779 = vmatmul.f32.gmra.mxu0 %v4053
        %v4780 = vpop.f32.mrf.mxu0
        %v4781 = vadd.f32 %v4769, %v4780
        %4782 = vdwg.mxu0
        %4783 = vmatpush.bf16.msra.mxu0 %v4568
        %4784 = vmatpush.bf16.msra.mxu0 %v4564
        %4785 = vmatpush.bf16.msra.mxu0 %v4560
        %4786 = vmatpush.bf16.msra.mxu0 %v4556
        %4787 = vmatpush.bf16.msra.mxu0 %v4552
        %4788 = vmatpush.bf16.msra.mxu0 %v4548
        %4789 = vmatpush.bf16.msra.mxu0 %v4544
        %4790 = vmatpush.bf16.msra.mxu0 %v4540
        %4791 = vmatmul.f32.gmra.mxu0 %v4054
        %v4792 = vpop.f32.mrf.mxu0
        %v4793 = vadd.f32 %v4781, %v4792
        %4794 = vdwg.mxu0
        %4795 = vmatpush.bf16.msra.mxu0 %v4473
        %4796 = vmatpush.bf16.msra.mxu0 %v4469
        %4797 = vmatpush.bf16.msra.mxu0 %v4465
        %4798 = vmatpush.bf16.msra.mxu0 %v4461
        %4799 = vmatpush.bf16.msra.mxu0 %v4457
        %4800 = vmatpush.bf16.msra.mxu0 %v4453
        %4801 = vmatpush.bf16.msra.mxu0 %v4449
        %4802 = vmatpush.bf16.msra.mxu0 %v4445
        %4803 = vmatmul.f32.gmra.mxu0 %v4051
        %v4804 = vpop.f32.mrf.mxu0
        %v4805 = vadd.f32 0.0, %v4804
        %4806 = vdwg.mxu0
        %4807 = vmatpush.bf16.msra.mxu0 %v4505
        %4808 = vmatpush.bf16.msra.mxu0 %v4501
        %4809 = vmatpush.bf16.msra.mxu0 %v4497
        %4810 = vmatpush.bf16.msra.mxu0 %v4493
        %4811 = vmatpush.bf16.msra.mxu0 %v4489
        %4812 = vmatpush.bf16.msra.mxu0 %v4485
        %4813 = vmatpush.bf16.msra.mxu0 %v4481
        %4814 = vmatpush.bf16.msra.mxu0 %v4477
        %4815 = vmatmul.f32.gmra.mxu0 %v4052
        %v4816 = vpop.f32.mrf.mxu0
        %v4817 = vadd.f32 %v4805, %v4816
        %4818 = vdwg.mxu0
        %4819 = vmatpush.bf16.msra.mxu0 %v4537
        %4820 = vmatpush.bf16.msra.mxu0 %v4533
        %4821 = vmatpush.bf16.msra.mxu0 %v4529
        %4822 = vmatpush.bf16.msra.mxu0 %v4525
        %4823 = vmatpush.bf16.msra.mxu0 %v4521
        %4824 = vmatpush.bf16.msra.mxu0 %v4517
        %4825 = vmatpush.bf16.msra.mxu0 %v4513
        %4826 = vmatpush.bf16.msra.mxu0 %v4509
        %4827 = vmatmul.f32.gmra.mxu0 %v4053
        %v4828 = vpop.f32.mrf.mxu0
        %v4829 = vadd.f32 %v4817, %v4828
        %4830 = vdwg.mxu0
        %4831 = vmatpush.bf16.msra.mxu0 %v4569
        %4832 = vmatpush.bf16.msra.mxu0 %v4565
        %4833 = vmatpush.bf16.msra.mxu0 %v4561
        %4834 = vmatpush.bf16.msra.mxu0 %v4557
        %4835 = vmatpush.bf16.msra.mxu0 %v4553
        %4836 = vmatpush.bf16.msra.mxu0 %v4549
        %4837 = vmatpush.bf16.msra.mxu0 %v4545
        %4838 = vmatpush.bf16.msra.mxu0 %v4541
        %4839 = vmatmul.f32.gmra.mxu0 %v4054
        %v4840 = vpop.f32.mrf.mxu0
        %v4841 = vadd.f32 %v4829, %v4840
        %4842 = vdwg.mxu0
        %4843 = vmatpush.bf16.msra.mxu0 %v4474
        %4844 = vmatpush.bf16.msra.mxu0 %v4470
        %4845 = vmatpush.bf16.msra.mxu0 %v4466
        %4846 = vmatpush.bf16.msra.mxu0 %v4462
        %4847 = vmatpush.bf16.msra.mxu0 %v4458
        %4848 = vmatpush.bf16.msra.mxu0 %v4454
        %4849 = vmatpush.bf16.msra.mxu0 %v4450
        %4850 = vmatpush.bf16.msra.mxu0 %v4446
        %4851 = vmatmul.f32.gmra.mxu0 %v4051
        %v4852 = vpop.f32.mrf.mxu0
        %v4853 = vadd.f32 0.0, %v4852
        %4854 = vdwg.mxu0
        %4855 = vmatpush.bf16.msra.mxu0 %v4506
        %4856 = vmatpush.bf16.msra.mxu0 %v4502
        %4857 = vmatpush.bf16.msra.mxu0 %v4498
        %4858 = vmatpush.bf16.msra.mxu0 %v4494
        %4859 = vmatpush.bf16.msra.mxu0 %v4490
        %4860 = vmatpush.bf16.msra.mxu0 %v4486
        %4861 = vmatpush.bf16.msra.mxu0 %v4482
        %4862 = vmatpush.bf16.msra.mxu0 %v4478
        %4863 = vmatmul.f32.gmra.mxu0 %v4052
        %v4864 = vpop.f32.mrf.mxu0
        %v4865 = vadd.f32 %v4853, %v4864
        %4866 = vdwg.mxu0
        %4867 = vmatpush.bf16.msra.mxu0 %v4538
        %4868 = vmatpush.bf16.msra.mxu0 %v4534
        %4869 = vmatpush.bf16.msra.mxu0 %v4530
        %4870 = vmatpush.bf16.msra.mxu0 %v4526
        %4871 = vmatpush.bf16.msra.mxu0 %v4522
        %4872 = vmatpush.bf16.msra.mxu0 %v4518
        %4873 = vmatpush.bf16.msra.mxu0 %v4514
        %4874 = vmatpush.bf16.msra.mxu0 %v4510
        %4875 = vmatmul.f32.gmra.mxu0 %v4053
        %v4876 = vpop.f32.mrf.mxu0
        %v4877 = vadd.f32 %v4865, %v4876
        %4878 = vdwg.mxu0
        %4879 = vmatpush.bf16.msra.mxu0 %v4570
        %4880 = vmatpush.bf16.msra.mxu0 %v4566
        %4881 = vmatpush.bf16.msra.mxu0 %v4562
        %4882 = vmatpush.bf16.msra.mxu0 %v4558
        %4883 = vmatpush.bf16.msra.mxu0 %v4554
        %4884 = vmatpush.bf16.msra.mxu0 %v4550
        %4885 = vmatpush.bf16.msra.mxu0 %v4546
        %4886 = vmatpush.bf16.msra.mxu0 %v4542
        %4887 = vmatmul.f32.gmra.mxu0 %v4054
        %v4888 = vpop.f32.mrf.mxu0
        %v4889 = vadd.f32 %v4877, %v4888
        %4890 = vdwg.mxu0
        %v4891 = vadd.f32 %v3765, %v4745
        %v4892 = vadd.f32 %v3813, %v4793
        %v4893 = vadd.f32 %v3861, %v4841
        %v4894 = vadd.f32 %v3909, %v4889
        %v4895 = vld [vmem:[%s413] sm:$0x5]
        %v4896 = vld [vmem:[#allocation10] sm:$0xff]
        %v4897 = vld [vmem:[#allocation10 + $0x8] sm:$0xff]
        %v4898 = vld [vmem:[#allocation10 + $0x10] sm:$0xff]
        %v4899 = vld [vmem:[#allocation10 + $0x18] sm:$0xff]
        %v4900 = vld [vmem:[#allocation10 + $0x20] sm:$0xff]
        %v4901 = vld [vmem:[#allocation10 + $0x28] sm:$0xff]
        %v4902 = vld [vmem:[#allocation10 + $0x30] sm:$0xff]
        %v4903 = vld [vmem:[#allocation10 + $0x38] sm:$0xff]
        %v4904 = vld [vmem:[#allocation10 + $0x40] sm:$0xff]
        %v4905 = vld [vmem:[#allocation10 + $0x48] sm:$0xff]
        %v4906 = vld [vmem:[#allocation10 + $0x50] sm:$0xff]
        %v4907 = vld [vmem:[#allocation10 + $0x58] sm:$0xff]
        %v4908 = vld [vmem:[#allocation10 + $0x60] sm:$0xff]
        %v4909 = vld [vmem:[#allocation10 + $0x68] sm:$0xff]
        %v4910 = vld [vmem:[#allocation10 + $0x70] sm:$0xff]
        %v4911 = vld [vmem:[#allocation10 + $0x78] sm:$0xff]
        %v4912 = vld [vmem:[#allocation10 + $0x80] sm:$0xff]
        %v4913 = vld [vmem:[#allocation10 + $0x88] sm:$0xff]
        %v4914 = vld [vmem:[#allocation10 + $0x90] sm:$0xff]
        %v4915 = vld [vmem:[#allocation10 + $0x98] sm:$0xff]
        %v4916 = vld [vmem:[#allocation10 + $0xa0] sm:$0xff]
        %v4917 = vld [vmem:[#allocation10 + $0xa8] sm:$0xff]
        %v4918 = vld [vmem:[#allocation10 + $0xb0] sm:$0xff]
        %v4919 = vld [vmem:[#allocation10 + $0xb8] sm:$0xff]
        %v4920 = vld [vmem:[#allocation10 + $0xc0] sm:$0xff]
        %v4921 = vld [vmem:[#allocation10 + $0xc8] sm:$0xff]
        %v4922 = vld [vmem:[#allocation10 + $0xd0] sm:$0xff]
        %v4923 = vld [vmem:[#allocation10 + $0xd8] sm:$0xff]
        %v4924 = vld [vmem:[#allocation10 + $0xe0] sm:$0xff]
        %v4925 = vld [vmem:[#allocation10 + $0xe8] sm:$0xff]
        %v4926 = vld [vmem:[#allocation10 + $0xf0] sm:$0xff]
        %v4927 = vld [vmem:[#allocation10 + $0xf8] sm:$0xff]
        %v4928 = vld [vmem:[#allocation10 + $0x100] sm:$0xff]
        %v4929 = vld [vmem:[#allocation10 + $0x108] sm:$0xff]
        %v4930 = vld [vmem:[#allocation10 + $0x110] sm:$0xff]
        %v4931 = vld [vmem:[#allocation10 + $0x118] sm:$0xff]
        %v4932 = vld [vmem:[#allocation10 + $0x120] sm:$0xff]
        %v4933 = vld [vmem:[#allocation10 + $0x128] sm:$0xff]
        %v4934 = vld [vmem:[#allocation10 + $0x130] sm:$0xff]
        %v4935 = vld [vmem:[#allocation10 + $0x138] sm:$0xff]
        %v4936 = vld [vmem:[#allocation10 + $0x140] sm:$0xff]
        %v4937 = vld [vmem:[#allocation10 + $0x148] sm:$0xff]
        %v4938 = vld [vmem:[#allocation10 + $0x150] sm:$0xff]
        %v4939 = vld [vmem:[#allocation10 + $0x158] sm:$0xff]
        %v4940 = vld [vmem:[#allocation10 + $0x160] sm:$0xff]
        %v4941 = vld [vmem:[#allocation10 + $0x168] sm:$0xff]
        %v4942 = vld [vmem:[#allocation10 + $0x170] sm:$0xff]
        %v4943 = vld [vmem:[#allocation10 + $0x178] sm:$0xff]
        %v4944 = vld [vmem:[#allocation10 + $0x180] sm:$0xff]
        %v4945 = vld [vmem:[#allocation10 + $0x188] sm:$0xff]
        %v4946 = vld [vmem:[#allocation10 + $0x190] sm:$0xff]
        %v4947 = vld [vmem:[#allocation10 + $0x198] sm:$0xff]
        %v4948 = vld [vmem:[#allocation10 + $0x1a0] sm:$0xff]
        %v4949 = vld [vmem:[#allocation10 + $0x1a8] sm:$0xff]
        %v4950 = vld [vmem:[#allocation10 + $0x1b0] sm:$0xff]
        %v4951 = vld [vmem:[#allocation10 + $0x1b8] sm:$0xff]
        %v4952 = vld [vmem:[#allocation10 + $0x1c0] sm:$0xff]
        %v4953 = vld [vmem:[#allocation10 + $0x1c8] sm:$0xff]
        %v4954 = vld [vmem:[#allocation10 + $0x1d0] sm:$0xff]
        %v4955 = vld [vmem:[#allocation10 + $0x1d8] sm:$0xff]
        %v4956 = vld [vmem:[#allocation10 + $0x1e0] sm:$0xff]
        %v4957 = vld [vmem:[#allocation10 + $0x1e8] sm:$0xff]
        %v4958 = vld [vmem:[#allocation10 + $0x1f0] sm:$0xff]
        %v4959 = vld [vmem:[#allocation10 + $0x1f8] sm:$0xff]
        %v4960 = vld [vmem:[#allocation11] sm:$0xf]
        %v4962 = vperm.slane %v4960, 0
        %v4963 = vperm.slane %v4960, 1
        %v4964 = vperm.slane %v4960, 2
        %v4965 = vperm.slane %v4960, 3
        %4971 = vst [vmem:[#allocation1] ss:$4 sm:$0xff] %v4895
        %v4972 = vld.sshfl [vmem:[#allocation1] sm:$0xff pattern:$0x73625140]
        %v4973 = vld.sshfl [vmem:[#allocation1 + $0x8] sm:$0xff pattern:$0x73625140]
        %v5040 = vunpack.c.l.b16 %v4896
        %v5041 = vunpack.c.h.b16 %v4896
        %v5042 = vunpack.c.l.b16 %v4897
        %v5043 = vunpack.c.h.b16 %v4897
        %v5044 = vunpack.c.l.b16 %v4898
        %v5045 = vunpack.c.h.b16 %v4898
        %v5046 = vunpack.c.l.b16 %v4899
        %v5047 = vunpack.c.h.b16 %v4899
        %v5048 = vunpack.c.l.b16 %v4900
        %v5049 = vunpack.c.h.b16 %v4900
        %v5050 = vunpack.c.l.b16 %v4901
        %v5051 = vunpack.c.h.b16 %v4901
        %v5052 = vunpack.c.l.b16 %v4902
        %v5053 = vunpack.c.h.b16 %v4902
        %v5054 = vunpack.c.l.b16 %v4903
        %v5055 = vunpack.c.h.b16 %v4903
        %v5056 = vunpack.c.l.b16 %v4904
        %v5057 = vunpack.c.h.b16 %v4904
        %v5058 = vunpack.c.l.b16 %v4905
        %v5059 = vunpack.c.h.b16 %v4905
        %v5060 = vunpack.c.l.b16 %v4906
        %v5061 = vunpack.c.h.b16 %v4906
        %v5062 = vunpack.c.l.b16 %v4907
        %v5063 = vunpack.c.h.b16 %v4907
        %v5064 = vunpack.c.l.b16 %v4908
        %v5065 = vunpack.c.h.b16 %v4908
        %v5066 = vunpack.c.l.b16 %v4909
        %v5067 = vunpack.c.h.b16 %v4909
        %v5068 = vunpack.c.l.b16 %v4910
        %v5069 = vunpack.c.h.b16 %v4910
        %v5070 = vunpack.c.l.b16 %v4911
        %v5071 = vunpack.c.h.b16 %v4911
        %v5072 = vunpack.c.l.b16 %v4912
        %v5073 = vunpack.c.h.b16 %v4912
        %v5074 = vunpack.c.l.b16 %v4913
        %v5075 = vunpack.c.h.b16 %v4913
        %v5076 = vunpack.c.l.b16 %v4914
        %v5077 = vunpack.c.h.b16 %v4914
        %v5078 = vunpack.c.l.b16 %v4915
        %v5079 = vunpack.c.h.b16 %v4915
        %v5080 = vunpack.c.l.b16 %v4916
        %v5081 = vunpack.c.h.b16 %v4916
        %v5082 = vunpack.c.l.b16 %v4917
        %v5083 = vunpack.c.h.b16 %v4917
        %v5084 = vunpack.c.l.b16 %v4918
        %v5085 = vunpack.c.h.b16 %v4918
        %v5086 = vunpack.c.l.b16 %v4919
        %v5087 = vunpack.c.h.b16 %v4919
        %v5088 = vunpack.c.l.b16 %v4920
        %v5089 = vunpack.c.h.b16 %v4920
        %v5090 = vunpack.c.l.b16 %v4921
        %v5091 = vunpack.c.h.b16 %v4921
        %v5092 = vunpack.c.l.b16 %v4922
        %v5093 = vunpack.c.h.b16 %v4922
        %v5094 = vunpack.c.l.b16 %v4923
        %v5095 = vunpack.c.h.b16 %v4923
        %v5096 = vunpack.c.l.b16 %v4924
        %v5097 = vunpack.c.h.b16 %v4924
        %v5098 = vunpack.c.l.b16 %v4925
        %v5099 = vunpack.c.h.b16 %v4925
        %v5100 = vunpack.c.l.b16 %v4926
        %v5101 = vunpack.c.h.b16 %v4926
        %v5102 = vunpack.c.l.b16 %v4927
        %v5103 = vunpack.c.h.b16 %v4927
        %v5104 = vunpack.c.l.b16 %v4928
        %v5105 = vunpack.c.h.b16 %v4928
        %v5106 = vunpack.c.l.b16 %v4929
        %v5107 = vunpack.c.h.b16 %v4929
        %v5108 = vunpack.c.l.b16 %v4930
        %v5109 = vunpack.c.h.b16 %v4930
        %v5110 = vunpack.c.l.b16 %v4931
        %v5111 = vunpack.c.h.b16 %v4931
        %v5112 = vunpack.c.l.b16 %v4932
        %v5113 = vunpack.c.h.b16 %v4932
        %v5114 = vunpack.c.l.b16 %v4933
        %v5115 = vunpack.c.h.b16 %v4933
        %v5116 = vunpack.c.l.b16 %v4934
        %v5117 = vunpack.c.h.b16 %v4934
        %v5118 = vunpack.c.l.b16 %v4935
        %v5119 = vunpack.c.h.b16 %v4935
        %v5120 = vunpack.c.l.b16 %v4936
        %v5121 = vunpack.c.h.b16 %v4936
        %v5122 = vunpack.c.l.b16 %v4937
        %v5123 = vunpack.c.h.b16 %v4937
        %v5124 = vunpack.c.l.b16 %v4938
        %v5125 = vunpack.c.h.b16 %v4938
        %v5126 = vunpack.c.l.b16 %v4939
        %v5127 = vunpack.c.h.b16 %v4939
        %v5128 = vunpack.c.l.b16 %v4940
        %v5129 = vunpack.c.h.b16 %v4940
        %v5130 = vunpack.c.l.b16 %v4941
        %v5131 = vunpack.c.h.b16 %v4941
        %v5132 = vunpack.c.l.b16 %v4942
        %v5133 = vunpack.c.h.b16 %v4942
        %v5134 = vunpack.c.l.b16 %v4943
        %v5135 = vunpack.c.h.b16 %v4943
        %v5136 = vunpack.c.l.b16 %v4944
        %v5137 = vunpack.c.h.b16 %v4944
        %v5138 = vunpack.c.l.b16 %v4945
        %v5139 = vunpack.c.h.b16 %v4945
        %v5140 = vunpack.c.l.b16 %v4946
        %v5141 = vunpack.c.h.b16 %v4946
        %v5142 = vunpack.c.l.b16 %v4947
        %v5143 = vunpack.c.h.b16 %v4947
        %v5144 = vunpack.c.l.b16 %v4948
        %v5145 = vunpack.c.h.b16 %v4948
        %v5146 = vunpack.c.l.b16 %v4949
        %v5147 = vunpack.c.h.b16 %v4949
        %v5148 = vunpack.c.l.b16 %v4950
        %v5149 = vunpack.c.h.b16 %v4950
        %v5150 = vunpack.c.l.b16 %v4951
        %v5151 = vunpack.c.h.b16 %v4951
        %v5152 = vunpack.c.l.b16 %v4952
        %v5153 = vunpack.c.h.b16 %v4952
        %v5154 = vunpack.c.l.b16 %v4953
        %v5155 = vunpack.c.h.b16 %v4953
        %v5156 = vunpack.c.l.b16 %v4954
        %v5157 = vunpack.c.h.b16 %v4954
        %v5158 = vunpack.c.l.b16 %v4955
        %v5159 = vunpack.c.h.b16 %v4955
        %v5160 = vunpack.c.l.b16 %v4956
        %v5161 = vunpack.c.h.b16 %v4956
        %v5162 = vunpack.c.l.b16 %v4957
        %v5163 = vunpack.c.h.b16 %v4957
        %v5164 = vunpack.c.l.b16 %v4958
        %v5165 = vunpack.c.h.b16 %v4958
        %v5166 = vunpack.c.l.b16 %v4959
        %v5167 = vunpack.c.h.b16 %v4959
        %v5168 = vpack.c.b16 %v5044, %v5040
        %v5169 = vpack.c.b16 %v5045, %v5041
        %v5170 = vpack.c.b16 %v5046, %v5042
        %v5171 = vpack.c.b16 %v5047, %v5043
        %v5172 = vpack.c.b16 %v5052, %v5048
        %v5173 = vpack.c.b16 %v5053, %v5049
        %v5174 = vpack.c.b16 %v5054, %v5050
        %v5175 = vpack.c.b16 %v5055, %v5051
        %v5176 = vpack.c.b16 %v5060, %v5056
        %v5177 = vpack.c.b16 %v5061, %v5057
        %v5178 = vpack.c.b16 %v5062, %v5058
        %v5179 = vpack.c.b16 %v5063, %v5059
        %v5180 = vpack.c.b16 %v5068, %v5064
        %v5181 = vpack.c.b16 %v5069, %v5065
        %v5182 = vpack.c.b16 %v5070, %v5066
        %v5183 = vpack.c.b16 %v5071, %v5067
        %v5184 = vpack.c.b16 %v5076, %v5072
        %v5185 = vpack.c.b16 %v5077, %v5073
        %v5186 = vpack.c.b16 %v5078, %v5074
        %v5187 = vpack.c.b16 %v5079, %v5075
        %v5188 = vpack.c.b16 %v5084, %v5080
        %v5189 = vpack.c.b16 %v5085, %v5081
        %v5190 = vpack.c.b16 %v5086, %v5082
        %v5191 = vpack.c.b16 %v5087, %v5083
        %v5192 = vpack.c.b16 %v5092, %v5088
        %v5193 = vpack.c.b16 %v5093, %v5089
        %v5194 = vpack.c.b16 %v5094, %v5090
        %v5195 = vpack.c.b16 %v5095, %v5091
        %v5196 = vpack.c.b16 %v5100, %v5096
        %v5197 = vpack.c.b16 %v5101, %v5097
        %v5198 = vpack.c.b16 %v5102, %v5098
        %v5199 = vpack.c.b16 %v5103, %v5099
        %v5200 = vpack.c.b16 %v5108, %v5104
        %v5201 = vpack.c.b16 %v5109, %v5105
        %v5202 = vpack.c.b16 %v5110, %v5106
        %v5203 = vpack.c.b16 %v5111, %v5107
        %v5204 = vpack.c.b16 %v5116, %v5112
        %v5205 = vpack.c.b16 %v5117, %v5113
        %v5206 = vpack.c.b16 %v5118, %v5114
        %v5207 = vpack.c.b16 %v5119, %v5115
        %v5208 = vpack.c.b16 %v5124, %v5120
        %v5209 = vpack.c.b16 %v5125, %v5121
        %v5210 = vpack.c.b16 %v5126, %v5122
        %v5211 = vpack.c.b16 %v5127, %v5123
        %v5212 = vpack.c.b16 %v5132, %v5128
        %v5213 = vpack.c.b16 %v5133, %v5129
        %v5214 = vpack.c.b16 %v5134, %v5130
        %v5215 = vpack.c.b16 %v5135, %v5131
        %v5216 = vpack.c.b16 %v5140, %v5136
        %v5217 = vpack.c.b16 %v5141, %v5137
        %v5218 = vpack.c.b16 %v5142, %v5138
        %v5219 = vpack.c.b16 %v5143, %v5139
        %v5220 = vpack.c.b16 %v5148, %v5144
        %v5221 = vpack.c.b16 %v5149, %v5145
        %v5222 = vpack.c.b16 %v5150, %v5146
        %v5223 = vpack.c.b16 %v5151, %v5147
        %v5224 = vpack.c.b16 %v5156, %v5152
        %v5225 = vpack.c.b16 %v5157, %v5153
        %v5226 = vpack.c.b16 %v5158, %v5154
        %v5227 = vpack.c.b16 %v5159, %v5155
        %v5228 = vpack.c.b16 %v5164, %v5160
        %v5229 = vpack.c.b16 %v5165, %v5161
        %v5230 = vpack.c.b16 %v5166, %v5162
        %v5231 = vpack.c.b16 %v5167, %v5163
        %5296 = vmatpush.bf16.msra.mxu0 %v5196
        %5297 = vmatpush.bf16.msra.mxu0 %v5192
        %5298 = vmatpush.bf16.msra.mxu0 %v5188
        %5299 = vmatpush.bf16.msra.mxu0 %v5184
        %5300 = vmatpush.bf16.msra.mxu0 %v5180
        %5301 = vmatpush.bf16.msra.mxu0 %v5176
        %5302 = vmatpush.bf16.msra.mxu0 %v5172
        %5303 = vmatpush.bf16.msra.mxu0 %v5168
        %5304 = vmatmul.bf16.gmra.mxu0 %v4972
        %v5305 = vpop.f32.mrf.mxu0
        %v5306 = vadd.f32 %v4962, %v5305
        %v5307 = vpop.f32.mrf.mxu0
        %5308 = vdwg.mxu0
        %5309 = vmatpush.bf16.msra.mxu0 %v5228
        %5310 = vmatpush.bf16.msra.mxu0 %v5224
        %5311 = vmatpush.bf16.msra.mxu0 %v5220
        %5312 = vmatpush.bf16.msra.mxu0 %v5216
        %5313 = vmatpush.bf16.msra.mxu0 %v5212
        %5314 = vmatpush.bf16.msra.mxu0 %v5208
        %5315 = vmatpush.bf16.msra.mxu0 %v5204
        %5316 = vmatpush.bf16.msra.mxu0 %v5200
        %5317 = vmatmul.bf16.gmra.mxu0 %v4973
        %v5318 = vpop.f32.mrf.mxu0
        %v5319 = vadd.f32 %v5306, %v5318
        %v5320 = vpop.f32.mrf.mxu0
        %5321 = vdwg.mxu0
        %5322 = vmatpush.bf16.msra.mxu0 %v5197
        %5323 = vmatpush.bf16.msra.mxu0 %v5193
        %5324 = vmatpush.bf16.msra.mxu0 %v5189
        %5325 = vmatpush.bf16.msra.mxu0 %v5185
        %5326 = vmatpush.bf16.msra.mxu0 %v5181
        %5327 = vmatpush.bf16.msra.mxu0 %v5177
        %5328 = vmatpush.bf16.msra.mxu0 %v5173
        %5329 = vmatpush.bf16.msra.mxu0 %v5169
        %5330 = vmatmul.bf16.gmra.mxu0 %v4972
        %v5331 = vpop.f32.mrf.mxu0
        %v5332 = vadd.f32 %v4963, %v5331
        %v5333 = vpop.f32.mrf.mxu0
        %5334 = vdwg.mxu0
        %5335 = vmatpush.bf16.msra.mxu0 %v5229
        %5336 = vmatpush.bf16.msra.mxu0 %v5225
        %5337 = vmatpush.bf16.msra.mxu0 %v5221
        %5338 = vmatpush.bf16.msra.mxu0 %v5217
        %5339 = vmatpush.bf16.msra.mxu0 %v5213
        %5340 = vmatpush.bf16.msra.mxu0 %v5209
        %5341 = vmatpush.bf16.msra.mxu0 %v5205
        %5342 = vmatpush.bf16.msra.mxu0 %v5201
        %5343 = vmatmul.bf16.gmra.mxu0 %v4973
        %v5344 = vpop.f32.mrf.mxu0
        %v5345 = vadd.f32 %v5332, %v5344
        %v5346 = vpop.f32.mrf.mxu0
        %5347 = vdwg.mxu0
        %5348 = vmatpush.bf16.msra.mxu0 %v5198
        %5349 = vmatpush.bf16.msra.mxu0 %v5194
        %5350 = vmatpush.bf16.msra.mxu0 %v5190
        %5351 = vmatpush.bf16.msra.mxu0 %v5186
        %5352 = vmatpush.bf16.msra.mxu0 %v5182
        %5353 = vmatpush.bf16.msra.mxu0 %v5178
        %5354 = vmatpush.bf16.msra.mxu0 %v5174
        %5355 = vmatpush.bf16.msra.mxu0 %v5170
        %5356 = vmatmul.bf16.gmra.mxu0 %v4972
        %v5357 = vpop.f32.mrf.mxu0
        %v5358 = vadd.f32 %v4964, %v5357
        %v5359 = vpop.f32.mrf.mxu0
        %5360 = vdwg.mxu0
        %5361 = vmatpush.bf16.msra.mxu0 %v5230
        %5362 = vmatpush.bf16.msra.mxu0 %v5226
        %5363 = vmatpush.bf16.msra.mxu0 %v5222
        %5364 = vmatpush.bf16.msra.mxu0 %v5218
        %5365 = vmatpush.bf16.msra.mxu0 %v5214
        %5366 = vmatpush.bf16.msra.mxu0 %v5210
        %5367 = vmatpush.bf16.msra.mxu0 %v5206
        %5368 = vmatpush.bf16.msra.mxu0 %v5202
        %5369 = vmatmul.bf16.gmra.mxu0 %v4973
        %v5370 = vpop.f32.mrf.mxu0
        %v5371 = vadd.f32 %v5358, %v5370
        %v5372 = vpop.f32.mrf.mxu0
        %5373 = vdwg.mxu0
        %5374 = vmatpush.bf16.msra.mxu0 %v5199
        %5375 = vmatpush.bf16.msra.mxu0 %v5195
        %5376 = vmatpush.bf16.msra.mxu0 %v5191
        %5377 = vmatpush.bf16.msra.mxu0 %v5187
        %5378 = vmatpush.bf16.msra.mxu0 %v5183
        %5379 = vmatpush.bf16.msra.mxu0 %v5179
        %5380 = vmatpush.bf16.msra.mxu0 %v5175
        %5381 = vmatpush.bf16.msra.mxu0 %v5171
        %5382 = vmatmul.bf16.gmra.mxu0 %v4972
        %v5383 = vpop.f32.mrf.mxu0
        %v5384 = vadd.f32 %v4965, %v5383
        %v5385 = vpop.f32.mrf.mxu0
        %5386 = vdwg.mxu0
        %5387 = vmatpush.bf16.msra.mxu0 %v5231
        %5388 = vmatpush.bf16.msra.mxu0 %v5227
        %5389 = vmatpush.bf16.msra.mxu0 %v5223
        %5390 = vmatpush.bf16.msra.mxu0 %v5219
        %5391 = vmatpush.bf16.msra.mxu0 %v5215
        %5392 = vmatpush.bf16.msra.mxu0 %v5211
        %5393 = vmatpush.bf16.msra.mxu0 %v5207
        %5394 = vmatpush.bf16.msra.mxu0 %v5203
        %5395 = vmatmul.bf16.gmra.mxu0 %v4973
        %v5396 = vpop.f32.mrf.mxu0
        %v5397 = vadd.f32 %v5384, %v5396
        %v5398 = vpop.f32.mrf.mxu0
        %5399 = vdwg.mxu0
        %v5400 = vld [vmem:[#allocation8] sm:$0xf]
        %v5402 = vperm.slane %v5400, 0
        %v5403 = vperm.slane %v5400, 1
        %v5404 = vperm.slane %v5400, 2
        %v5405 = vperm.slane %v5400, 3
        %v5410 = vadd.f32 %v4891, %v5402
        %v5411 = vadd.f32 %v4892, %v5403
        %v5412 = vadd.f32 %v4893, %v5404
        %v5413 = vadd.f32 %v4894, %v5405
        %v5414 = vadd.f32 %v5410, %v5319
        %v5415 = vadd.f32 %v5411, %v5345
        %v5416 = vadd.f32 %v5412, %v5371
        %v5417 = vadd.f32 %v5413, %v5397
        %v5418 = vmax.f32 %v5414, 0.0
        %v5419 = vmax.f32 %v5415, 0.0
        %v5420 = vmax.f32 %v5416, 0.0
        %v5421 = vmax.f32 %v5417, 0.0
        %v5422 = vpack.c.bf16 %v5419, %v5418
        %v5423 = vpack.c.bf16 %v5421, %v5420
        %v5426 = vrot.slane %v5422, 3
        %v5427 = vrot.slane %v5423, 6
        %v5428 = vrot.slane %v5423, 1
        %vm5429 = vcmask 1040384
        %v5432 = vsel %vm5429, %v5422, %v5426
        %vm5433 = vcmask 1042434
        %v5436 = vsel %vm5433, %v5427, %v5428
        %vm5437 = vcmask 1041408
        %v5438 = vsel %vm5437, %v5432, %v5436
        %5440 = vst [vmem:[%s417] sm:$0xf] %v5438
        %p5441 = scmp.lt.s32.totalorder %s23, 1
        %s5442 = scalar_select %p5441, %s23, 1
        %s5443 = smul.addr %s5442, 4
        %s5444 = scalar_lea.vmem %s8, %s5443
        // Predicated region
        $region77: #{resnet1d_forward.12} parent=51 // pred_check
          %p5445 = pneg %p219
        $region78: #{resnet1d_forward.12} parent=51 // pred_check_branch
          %5447 = sbr.rel (%p5445) target = $region80
        $region79: #{resnet1d_forward.12} parent=51 // pred_region
          _
        $region80: #{resnet1d_forward.12} parent=51 // pred_fallthru
          _
      $region52: #{resnet1d_forward.12} parent=5 // pred_fallthru
        _
      %p5448 = scmp.le.s32.totalorder 2, %s18
      // Predicated region
      $region81: #{resnet1d_forward.12} parent=5 // pred_check
        %p5449 = pneg %p5448
      $region82: #{resnet1d_forward.12} parent=5 // pred_check_branch
        %5451 = sbr.rel (%p5449) target = $region84
      $region83: #{resnet1d_forward.12} parent=5 // pred_region
        %s5452 = ssub.s32 %s18, 2
        // Predicated region
        $region85: #{resnet1d_forward.12} parent=83 // pred_check
          %p5453 = pneg %p225
        $region86: #{resnet1d_forward.12} parent=83 // pred_check_branch
          %5455 = sbr.rel (%p5453) target = $region88
        $region87: #{resnet1d_forward.12} parent=83 // pred_region
          %p5456 = scmp.lt.s32.totalorder %s24, 1
          %s5457 = scalar_select %p5456, %s24, 1
          %s5458 = smul.addr %s5457, 4
          %s5459 = scalar_lea.vmem %s8, %s5458
        $region88: #{resnet1d_forward.12} parent=83 // pred_fallthru
          _
      $region84: #{resnet1d_forward.12} parent=5 // pred_fallthru
        _
    $region6: #{resnet1d_forward.12} parent=1 // loop_footer
      %s22 = sadd.s32 1, %s18
    $region7: #{resnet1d_forward.12} parent=1 // loop_footer_branch
      %17 = sbr.rel target = $region3
    $region8: #{resnet1d_forward.12} parent=1 // loop_exit
      _
    %5460 = vsyncpa [#allocation4], 1
    %s5461 = scalar_lea.sflag [#allocation4], 1
    %5462 = vsyncpa %s5461, 1
    %5463 = vsyncpa [#allocation6], 1
    %5464 = vsyncpa [#allocation9], 1
    %5465 = vsyncpa [#allocation12], 1

</llo_original>
